<compile_context>
chip_gen: v7x
topology: tpu7x:2x2x1
jax: 0.10.0
libtpu: 0.0.40
codegen_flags: <defaults>
</compile_context>

<pallas_src>
from functools import partial

import jax
import jax.numpy as jnp
from jax.experimental import pallas as pl
from jax.experimental.pallas import tpu as pltpu


def mha_kernel(x_ref, wqkv_ref, bqkv_ref, wo_ref, bo_ref,
               out_ref, attn_ref, *, n_heads, block_batch, seq_len):
    """One block of `block_batch` sequences per grid step.

    Fused QKV projection + fully head-batched attention (single score matmul,
    single softmax, single PV matmul over an (H*B) batch dim) + a single
    output-projection matmul.
    """
    H, B, L = n_heads, block_batch, seq_len
    E = x_ref.shape[-1]
    hd = E // H

    # x arrives pre-flattened as (B*L, E).
    x2d = x_ref[...].astype(jnp.float32)

    # Fused input projection: one (B*L, E) x (E, 3E) MXU matmul.
    # The 1/sqrt(hd) scale is already folded into the Wq / bq columns.
    qkv = jnp.dot(x2d, wqkv_ref[...],
                  preferred_element_type=jnp.float32) + bqkv_ref[0]   # (B*L, 3E)

    # Regroup per-head q/k/v into one (H*B, L, hd) batch so scores/softmax/
    # context are issued once instead of per head (review item).
    def split_heads(base):
        parts = [qkv[:, base + h * hd: base + (h + 1) * hd] for h in range(H)]
        return jnp.concatenate(parts, axis=0).reshape(H * B, L, hd)

    q = split_heads(0)            # scale pre-folded into the weights
    k = split_heads(E)
    v = split_heads(2 * E)

    s = jnp.einsum('nld,nmd->nlm', q, k,
                   preferred_element_type=jnp.float32)          # (H*B, L, L)
    s = s - jnp.max(s, axis=-1, keepdims=True)
    p = jnp.exp(s)
    # Exact reciprocal on the EUP instead of a wide VPU divide chain;
    # approx=True (~2^-12 rel err) would risk the 1e-4 attn tolerance.
    inv = pl.reciprocal(jnp.sum(p, axis=-1, keepdims=True), approx=False)
    p = p * inv                                                 # softmax over keys

    # Head-averaged attention weights (PyTorch average_attn_weights=True):
    # batch index is n = h*B + b, so head h occupies rows [h*B, (h+1)*B).
    attn = p[0:B]
    for h in range(1, H):
        attn = attn + p[h * B:(h + 1) * B]
    attn_ref[...] = (attn * (1.0 / H)).astype(attn_ref.dtype)   # (B, L, L)
    # TODO(synk): at larger L / B_blk, emit attn (and xm) lane-dense as
    # (B, L*L) / (B, L*E) to avoid 16-lane masked stores (review item).

    ctx = jnp.einsum('nlm,nmd->nld', p, v,
                     preferred_element_type=jnp.float32)        # (H*B, L, hd)
    # Lane-concat the heads back to (B*L, E) and do ONE output-projection
    # matmul with K=E instead of H matmuls with K=hd (review item).
    ctx = ctx.reshape(H, B * L, hd)
    ctx_full = jnp.concatenate([ctx[h] for h in range(H)], axis=-1)   # (B*L, E)

    out = jnp.dot(ctx_full, wo_ref[...],
                  preferred_element_type=jnp.float32) + bo_ref[0]     # (B*L, E)
    out_ref[...] = out.reshape(B, L, E).astype(out_ref.dtype)


def _tensorcores_per_chip():
    """Best-effort detection: v7x has 2 TensorCores/chip, v5e/v6e have 1."""
    try:
        kind = jax.devices()[0].device_kind.lower()
    except Exception:
        return 1
    return 2 if ("v7" in kind or "tpu7" in kind or "7x" in kind) else 1


def self_attention_pallas(x, params, n_heads, block_batch=None):
    """x: (L, N, E) -> (xm (L, N, E), attn_w (N, L, L))."""
    L, N, E = x.shape
    assert E % n_heads == 0, "embed_dim must be divisible by n_heads"

    in_w = params["in_proj_weight"]     # (3E, E)  rows: [Wq; Wk; Wv]
    in_b = params["in_proj_bias"]       # (3E,)
    out_w = params["out_proj_weight"]   # (E, E)
    out_b = params["out_proj_bias"]     # (E,)

    # Fold 1/sqrt(hd) into the Wq columns and the q bias (one-time transform).
    hd = E // n_heads
    scale = hd ** -0.5
    col_scale = jnp.concatenate(
        [jnp.full((E,), scale, jnp.float32), jnp.ones((2 * E,), jnp.float32)])
    wqkv_t = in_w.T * col_scale[None, :]          # (E, 3E) = [s*Wq^T | Wk^T | Wv^T]
    bqkv = (in_b * col_scale).reshape(1, 3 * E)
    wo_t = out_w.T                                # (E, E)
    bo = out_b.reshape(1, E)

    # Generation-aware grid (review item): one grid step per TensorCore.
    #   v5e/v6e -> 1 step (no serial per-step overhead, 128-row MXU tile),
    #   v7x     -> 2 parallel steps so both cores are busy.
    if block_batch is None:
        block_batch = pl.cdiv(N, _tensorcores_per_chip())
    B_blk = max(1, min(block_batch, N))
    N_pad = pl.cdiv(N, B_blk) * B_blk

    x_nle = jnp.transpose(x, (1, 0, 2))                       # (N, L, E)
    if N_pad != N:
        x_nle = jnp.pad(x_nle, ((0, N_pad - N), (0, 0), (0, 0)))
    # Pre-flattened 2-D input: contiguous (B_blk*L, E) DMA per step, no
    # in-kernel reshape of x (review item).
    x_flat = x_nle.reshape(N_pad * L, E)

    grid = (N_pad // B_blk,)
    full = lambda b: (0, 0)
    kernel = partial(mha_kernel, n_heads=n_heads, block_batch=B_blk, seq_len=L)

    out_nle, attn_w = pl.pallas_call(
        kernel,
        out_shape=(jax.ShapeDtypeStruct((N_pad, L, E), x.dtype),
                   jax.ShapeDtypeStruct((N_pad, L, L), jnp.float32)),
        grid=grid,
        in_specs=[
            pl.BlockSpec((B_blk * L, E), lambda b: (b, 0)),    # x, flattened
            pl.BlockSpec((E, 3 * E), full),                    # [s*Wq^T|Wk^T|Wv^T]
            pl.BlockSpec((1, 3 * E), full),                    # fused bias
            pl.BlockSpec((E, E), full),                        # Wo^T
            pl.BlockSpec((1, E), full),                        # bo
        ],
        out_specs=(
            pl.BlockSpec((B_blk, L, E), lambda b: (b, 0, 0)),  # xm (batch-major)
            pl.BlockSpec((B_blk, L, L), lambda b: (b, 0, 0)),  # attn weights
        ),
        compiler_params=pltpu.CompilerParams(
            dimension_semantics=("parallel",)),
    )(x_flat, wqkv_t, bqkv, wo_t, bo)

    out_nle = out_nle[:N]
    attn_w = attn_w[:N]
    xm = jnp.transpose(out_nle, (1, 0, 2))                    # back to (L, N, E)
    return xm, attn_w


def reference_jax(x, params, n_heads):
    """Pure-JAX reference mirroring torch.nn.MultiheadAttention forward."""
    L, N, E = x.shape
    hd = E // n_heads
    in_w, in_b = params["in_proj_weight"], params["in_proj_bias"]
    out_w, out_b = params["out_proj_weight"], params["out_proj_bias"]
    qkv = jnp.einsum("lne,fe->lnf", x, in_w) + in_b            # (L, N, 3E)
    q, k, v = jnp.split(qkv, 3, axis=-1)

    def heads(t):  # (L, N, E) -> (N, H, L, hd)
        return jnp.transpose(t.reshape(L, N, n_heads, hd), (1, 2, 0, 3))

    q, k, v = heads(q) * (hd ** -0.5), heads(k), heads(v)
    scores = jnp.einsum("nhld,nhmd->nhlm", q, k)
    p = jax.nn.softmax(scores, axis=-1)
    ctx = jnp.einsum("nhlm,nhmd->nhld", p, v)                   # (N, H, L, hd)
    ctx = jnp.transpose(ctx, (2, 0, 1, 3)).reshape(L, N, E)
    xm = jnp.einsum("lne,fe->lnf", ctx, out_w) + out_b
    return xm, jnp.mean(p, axis=1)


def init_params(key, embed_dim):
    """Deterministic synthetic parameters matching nn.MultiheadAttention shapes."""
    k1, k2, k3, k4 = jax.random.split(key, 4)
    lim_in = (6.0 / (embed_dim + 3 * embed_dim)) ** 0.5   # xavier-uniform-ish
    in_proj_weight = jax.random.uniform(
        k1, (3 * embed_dim, embed_dim), jnp.float32, -lim_in, lim_in)
    in_proj_bias = jax.random.uniform(
        k3, (3 * embed_dim,), jnp.float32, -0.1, 0.1)
    lim_out = (1.0 / embed_dim) ** 0.5
    out_proj_weight = jax.random.uniform(
        k2, (embed_dim, embed_dim), jnp.float32, -lim_out, lim_out)
    out_proj_bias = jax.random.uniform(
        k4, (embed_dim,), jnp.float32, -0.1, 0.1)
    return {
        "in_proj_weight": in_proj_weight,
        "in_proj_bias": in_proj_bias,
        "out_proj_weight": out_proj_weight,
        "out_proj_bias": out_proj_bias,
    }


if __name__ == "__main__":
    L, N, E, H = 16, 8, 32, 4   # seq, batch, embed_dim, heads
    key = jax.random.PRNGKey(0)
    kx, kp = jax.random.split(key)
    x = jax.random.normal(kx, (L, N, E), jnp.float32)
    params = init_params(kp, E)

    # block_batch=None -> generation-aware default (1 step on v5e/v6e,
    # 2 parallel steps on v7x).
    xm, attn_w = self_attention_pallas(x, params, H)
    xm = jax.block_until_ready(xm)
    attn_w = jax.block_until_ready(attn_w)

    xm_ref, attn_ref = reference_jax(x, params, H)
    assert xm.shape == (L, N, E) and attn_w.shape == (N, L, L)
    assert jnp.allclose(xm, xm_ref, atol=1e-4, rtol=1e-4)
    assert jnp.allclose(attn_w, attn_ref, atol=1e-4, rtol=1e-4)

    print("KERNEL_OK")
</pallas_src>

<mosaic_0001>
module attributes {stable_mosaic.version = 11 : i64} {
  func.func @mha_kernel(%arg0: i32, %arg1: memref<128x32xf32, #tpu.memory_space<vmem>>, %arg2: memref<32x96xf32, #tpu.memory_space<vmem>>, %arg3: memref<1x96xf32, #tpu.memory_space<vmem>>, %arg4: memref<32x32xf32, #tpu.memory_space<vmem>>, %arg5: memref<1x32xf32, #tpu.memory_space<vmem>>, %arg6: memref<8x16x32xf32, #tpu.memory_space<vmem>>, %arg7: memref<8x16x16xf32, #tpu.memory_space<vmem>>) attributes {dimension_semantics = [#tpu.dimension_semantics<parallel>], iteration_bounds = array<i64: 1>, scalar_prefetch = 0 : i64, scratch_operands = 0 : i64, tpu.core_type = #tpu.core_type<tc>, window_params = [{transform_indices = @transform_0, window_bounds = array<i64: 128, 32>}, {pipeline_mode = #tpu.pipeline_mode<synchronous>, transform_indices = @transform_1, window_bounds = array<i64: 32, 96>}, {pipeline_mode = #tpu.pipeline_mode<synchronous>, transform_indices = @transform_2, window_bounds = array<i64: 1, 96>}, {pipeline_mode = #tpu.pipeline_mode<synchronous>, transform_indices = @transform_3, window_bounds = array<i64: 32, 32>}, {pipeline_mode = #tpu.pipeline_mode<synchronous>, transform_indices = @transform_4, window_bounds = array<i64: 1, 32>}, {transform_indices = @transform_5, window_bounds = array<i64: 8, 16, 32>}, {transform_indices = @transform_6, window_bounds = array<i64: 8, 16, 16>}]} {
    %c0 = arith.constant 0 : index
    %c0_0 = arith.constant 0 : index
    %0 = vector.load %arg1[%c0, %c0_0] : memref<128x32xf32, #tpu.memory_space<vmem>>, vector<128x32xf32>
    %c0_1 = arith.constant 0 : index
    %c0_2 = arith.constant 0 : index
    %1 = vector.load %arg2[%c0_1, %c0_2] : memref<32x96xf32, #tpu.memory_space<vmem>>, vector<32x96xf32>
    %cst = arith.constant dense<0.000000e+00> : vector<128x96xf32>
    %2 = tpu.matmul %0, %1, %cst {dimension_numbers = #tpu.dot_dimension_numbers<[1], [0], [0], [1], [0, 0, 1, 1], [], []>} : vector<128x32xf32>, vector<32x96xf32>, vector<128x96xf32> -> vector<128x96xf32>
    %c0_3 = arith.constant 0 : index
    %c0_4 = arith.constant 0 : index
    %3 = vector.load %arg3[%c0_3, %c0_4] : memref<1x96xf32, #tpu.memory_space<vmem>>, vector<1x96xf32>
    %4 = vector.shape_cast %3 : vector<1x96xf32> to vector<96xf32>
    %5 = vector.shape_cast %4 : vector<96xf32> to vector<1x96xf32>
    %6 = vector.broadcast %5 : vector<1x96xf32> to vector<128x96xf32>
    %7 = arith.addf %2, %6 : vector<128x96xf32>
    %8 = vector.extract_strided_slice %7 {offsets = [0, 0], sizes = [128, 8], strides = [1, 1]} : vector<128x96xf32> to vector<128x8xf32>
    %9 = vector.extract_strided_slice %7 {offsets = [0, 8], sizes = [128, 8], strides = [1, 1]} : vector<128x96xf32> to vector<128x8xf32>
    %10 = vector.extract_strided_slice %7 {offsets = [0, 16], sizes = [128, 8], strides = [1, 1]} : vector<128x96xf32> to vector<128x8xf32>
    %11 = vector.extract_strided_slice %7 {offsets = [0, 24], sizes = [128, 8], strides = [1, 1]} : vector<128x96xf32> to vector<128x8xf32>
    %12 = tpu.concatenate %8, %9, %10, %11 in 0 : vector<128x8xf32>, vector<128x8xf32>, vector<128x8xf32>, vector<128x8xf32> -> vector<512x8xf32>
    %13 = vector.shape_cast %12 : vector<512x8xf32> to vector<32x16x8xf32>
    %14 = vector.extract_strided_slice %7 {offsets = [0, 32], sizes = [128, 8], strides = [1, 1]} : vector<128x96xf32> to vector<128x8xf32>
    %15 = vector.extract_strided_slice %7 {offsets = [0, 40], sizes = [128, 8], strides = [1, 1]} : vector<128x96xf32> to vector<128x8xf32>
    %16 = vector.extract_strided_slice %7 {offsets = [0, 48], sizes = [128, 8], strides = [1, 1]} : vector<128x96xf32> to vector<128x8xf32>
    %17 = vector.extract_strided_slice %7 {offsets = [0, 56], sizes = [128, 8], strides = [1, 1]} : vector<128x96xf32> to vector<128x8xf32>
    %18 = tpu.concatenate %14, %15, %16, %17 in 0 : vector<128x8xf32>, vector<128x8xf32>, vector<128x8xf32>, vector<128x8xf32> -> vector<512x8xf32>
    %19 = vector.shape_cast %18 : vector<512x8xf32> to vector<32x16x8xf32>
    %20 = vector.extract_strided_slice %7 {offsets = [0, 64], sizes = [128, 8], strides = [1, 1]} : vector<128x96xf32> to vector<128x8xf32>
    %21 = vector.extract_strided_slice %7 {offsets = [0, 72], sizes = [128, 8], strides = [1, 1]} : vector<128x96xf32> to vector<128x8xf32>
    %22 = vector.extract_strided_slice %7 {offsets = [0, 80], sizes = [128, 8], strides = [1, 1]} : vector<128x96xf32> to vector<128x8xf32>
    %23 = vector.extract_strided_slice %7 {offsets = [0, 88], sizes = [128, 8], strides = [1, 1]} : vector<128x96xf32> to vector<128x8xf32>
    %24 = tpu.concatenate %20, %21, %22, %23 in 0 : vector<128x8xf32>, vector<128x8xf32>, vector<128x8xf32>, vector<128x8xf32> -> vector<512x8xf32>
    %25 = vector.shape_cast %24 : vector<512x8xf32> to vector<32x16x8xf32>
    "tpu.trace_start"() <{level = 10 : i32, message = "nld,nmd->nlm"}> : () -> ()
    %cst_5 = arith.constant dense<0.000000e+00> : vector<32x16x16xf32>
    %26 = tpu.matmul %13, %19, %cst_5 {dimension_numbers = #tpu.dot_dimension_numbers<[2], [2], [1], [1], [0, 0, 0, 1, 1, 1], [0], [0]>} : vector<32x16x8xf32>, vector<32x16x8xf32>, vector<32x16x16xf32> -> vector<32x16x16xf32>
    "tpu.trace_stop"() : () -> ()
    %cst_6 = arith.constant dense<0xFF800000> : vector<32x16xf32>
    %27 = vector.multi_reduction <maximumf>, %26, %cst_6 [2] : vector<32x16x16xf32> to vector<32x16xf32>
    %28 = vector.shape_cast %27 : vector<32x16xf32> to vector<32x16x1xf32>
    %29 = vector.broadcast %28 : vector<32x16x1xf32> to vector<32x16x16xf32>
    %30 = arith.subf %26, %29 : vector<32x16x16xf32>
    %31 = math.exp %30 : vector<32x16x16xf32>
    %cst_7 = arith.constant dense<0.000000e+00> : vector<32x16xf32>
    %32 = vector.multi_reduction <add>, %31, %cst_7 [2] : vector<32x16x16xf32> to vector<32x16xf32>
    %33 = vector.shape_cast %32 : vector<32x16xf32> to vector<32x16x1xf32>
    %34 = tpu.reciprocal %33 : vector<32x16x1xf32> -> vector<32x16x1xf32>
    %35 = vector.broadcast %34 : vector<32x16x1xf32> to vector<32x16x16xf32>
    %36 = arith.mulf %31, %35 : vector<32x16x16xf32>
    %37 = vector.extract_strided_slice %36 {offsets = [0, 0, 0], sizes = [8, 16, 16], strides = [1, 1, 1]} : vector<32x16x16xf32> to vector<8x16x16xf32>
    %38 = vector.extract_strided_slice %36 {offsets = [8, 0, 0], sizes = [8, 16, 16], strides = [1, 1, 1]} : vector<32x16x16xf32> to vector<8x16x16xf32>
    %39 = arith.addf %37, %38 : vector<8x16x16xf32>
    %40 = vector.extract_strided_slice %36 {offsets = [16, 0, 0], sizes = [8, 16, 16], strides = [1, 1, 1]} : vector<32x16x16xf32> to vector<8x16x16xf32>
    %41 = arith.addf %39, %40 : vector<8x16x16xf32>
    %42 = vector.extract_strided_slice %36 {offsets = [24, 0, 0], sizes = [8, 16, 16], strides = [1, 1, 1]} : vector<32x16x16xf32> to vector<8x16x16xf32>
    %43 = arith.addf %41, %42 : vector<8x16x16xf32>
    %cst_8 = arith.constant 2.500000e-01 : f32
    %44 = vector.broadcast %cst_8 : f32 to vector<8x16x16xf32>
    %45 = arith.mulf %43, %44 : vector<8x16x16xf32>
    %c0_9 = arith.constant 0 : index
    %c0_10 = arith.constant 0 : index
    %c0_11 = arith.constant 0 : index
    %46 = vector.load %arg7[%c0_9, %c0_10, %c0_11] : memref<8x16x16xf32, #tpu.memory_space<vmem>>, vector<8x16x16xf32>
    tpu.vector_store %arg7[%c0_9, %c0_10, %c0_11], %45 {strides = array<i32>} : memref<8x16x16xf32, #tpu.memory_space<vmem>>, vector<8x16x16xf32>,
    "tpu.trace_start"() <{level = 10 : i32, message = "nlm,nmd->nld"}> : () -> ()
    %cst_12 = arith.constant dense<0.000000e+00> : vector<32x16x8xf32>
    %47 = tpu.matmul %36, %25, %cst_12 {dimension_numbers = #tpu.dot_dimension_numbers<[2], [1], [1], [2], [0, 0, 0, 1, 1, 2], [0], [0]>} : vector<32x16x16xf32>, vector<32x16x8xf32>, vector<32x16x8xf32> -> vector<32x16x8xf32>
    "tpu.trace_stop"() : () -> ()
    %48 = vector.shape_cast %47 : vector<32x16x8xf32> to vector<4x128x8xf32>
    %49 = vector.extract_strided_slice %48 {offsets = [0, 0, 0], sizes = [1, 128, 8], strides = [1, 1, 1]} : vector<4x128x8xf32> to vector<1x128x8xf32>
    %50 = vector.shape_cast %49 : vector<1x128x8xf32> to vector<128x8xf32>
    %51 = vector.extract_strided_slice %48 {offsets = [1, 0, 0], sizes = [1, 128, 8], strides = [1, 1, 1]} : vector<4x128x8xf32> to vector<1x128x8xf32>
    %52 = vector.shape_cast %51 : vector<1x128x8xf32> to vector<128x8xf32>
    %53 = vector.extract_strided_slice %48 {offsets = [2, 0, 0], sizes = [1, 128, 8], strides = [1, 1, 1]} : vector<4x128x8xf32> to vector<1x128x8xf32>
    %54 = vector.shape_cast %53 : vector<1x128x8xf32> to vector<128x8xf32>
    %55 = vector.extract_strided_slice %48 {offsets = [3, 0, 0], sizes = [1, 128, 8], strides = [1, 1, 1]} : vector<4x128x8xf32> to vector<1x128x8xf32>
    %56 = vector.shape_cast %55 : vector<1x128x8xf32> to vector<128x8xf32>
    %57 = tpu.concatenate %50, %52, %54, %56 in 1 : vector<128x8xf32>, vector<128x8xf32>, vector<128x8xf32>, vector<128x8xf32> -> vector<128x32xf32>
    %c0_13 = arith.constant 0 : index
    %c0_14 = arith.constant 0 : index
    %58 = vector.load %arg4[%c0_13, %c0_14] : memref<32x32xf32, #tpu.memory_space<vmem>>, vector<32x32xf32>
    %cst_15 = arith.constant dense<0.000000e+00> : vector<128x32xf32>
    %59 = tpu.matmul %57, %58, %cst_15 {dimension_numbers = #tpu.dot_dimension_numbers<[1], [0], [0], [1], [0, 0, 1, 1], [], []>} : vector<128x32xf32>, vector<32x32xf32>, vector<128x32xf32> -> vector<128x32xf32>
    %c0_16 = arith.constant 0 : index
    %c0_17 = arith.constant 0 : index
    %60 = vector.load %arg5[%c0_16, %c0_17] : memref<1x32xf32, #tpu.memory_space<vmem>>, vector<1x32xf32>
    %61 = vector.shape_cast %60 : vector<1x32xf32> to vector<32xf32>
    %62 = vector.shape_cast %61 : vector<32xf32> to vector<1x32xf32>
    %63 = vector.broadcast %62 : vector<1x32xf32> to vector<128x32xf32>
    %64 = arith.addf %59, %63 : vector<128x32xf32>
    %65 = vector.shape_cast %64 : vector<128x32xf32> to vector<8x16x32xf32>
    %c0_18 = arith.constant 0 : index
    %c0_19 = arith.constant 0 : index
    %c0_20 = arith.constant 0 : index
    %66 = vector.load %arg6[%c0_18, %c0_19, %c0_20] : memref<8x16x32xf32, #tpu.memory_space<vmem>>, vector<8x16x32xf32>
    tpu.vector_store %arg6[%c0_18, %c0_19, %c0_20], %65 {strides = array<i32>} : memref<8x16x32xf32, #tpu.memory_space<vmem>>, vector<8x16x32xf32>,
    return
  }
  func.func @transform_0(%arg0: i32) -> (i32, i32) {
    %c0_i32 = arith.constant 0 : i32
    %c0_i32_0 = arith.constant 0 : i32
    return %arg0, %c0_i32 : i32, i32
  }
  func.func @transform_1(%arg0: i32) -> (i32, i32) {
    %c0_i32 = arith.constant 0 : i32
    %c0_i32_0 = arith.constant 0 : i32
    %c0_i32_1 = arith.constant 0 : i32
    return %c0_i32, %c0_i32_0 : i32, i32
  }
  func.func @transform_2(%arg0: i32) -> (i32, i32) {
    %c0_i32 = arith.constant 0 : i32
    %c0_i32_0 = arith.constant 0 : i32
    %c0_i32_1 = arith.constant 0 : i32
    return %c0_i32, %c0_i32_0 : i32, i32
  }
  func.func @transform_3(%arg0: i32) -> (i32, i32) {
    %c0_i32 = arith.constant 0 : i32
    %c0_i32_0 = arith.constant 0 : i32
    %c0_i32_1 = arith.constant 0 : i32
    return %c0_i32, %c0_i32_0 : i32, i32
  }
  func.func @transform_4(%arg0: i32) -> (i32, i32) {
    %c0_i32 = arith.constant 0 : i32
    %c0_i32_0 = arith.constant 0 : i32
    %c0_i32_1 = arith.constant 0 : i32
    return %c0_i32, %c0_i32_0 : i32, i32
  }
  func.func @transform_5(%arg0: i32) -> (i32, i32, i32) {
    %c0_i32 = arith.constant 0 : i32
    %c0_i32_0 = arith.constant 0 : i32
    %c0_i32_1 = arith.constant 0 : i32
    return %arg0, %c0_i32, %c0_i32_0 : i32, i32, i32
  }
  func.func @transform_6(%arg0: i32) -> (i32, i32, i32) {
    %c0_i32 = arith.constant 0 : i32
    %c0_i32_0 = arith.constant 0 : i32
    %c0_i32_1 = arith.constant 0 : i32
    return %arg0, %c0_i32, %c0_i32_0 : i32, i32, i32
  }
}

</mosaic_0001>

<llo_original>
// kernel: tpu_custom_call.1
$region0: #{tpu_custom_call.1}
  #allocation0 [shape = 'u32[]', space=smem, size = 0x4, offset = 0x4, fixed_abs, tag = 'smem constant byte address 0x4 - core index']
  #allocation1 [shape = 'u32[144,128]{1,0:T(1,128)}', space=vmem, size = 0x12000, scoped, tag = 'internal scratch']
  %s0 = inlined_call_operand.vmem [shape: f32[128,32], index: 0, kind: input, shape index: {}]
  %s1 = inlined_call_operand.vmem [shape: f32[32,96], index: 1, kind: input, shape index: {}]
  %s2 = inlined_call_operand.vmem [shape: f32[1,96], index: 2, kind: input, shape index: {}]
  %s3 = inlined_call_operand.vmem [shape: f32[32,32], index: 3, kind: input, shape index: {}]
  %s4 = inlined_call_operand.vmem [shape: f32[1,32], index: 4, kind: input, shape index: {}]
  %s5 = inlined_call_operand.hbm [shape: f32[8,16,32], index: 5, kind: output, shape index: {0}]
  %s6 = inlined_call_operand.hbm [shape: f32[8,16,16], index: 6, kind: output, shape index: {1}]
  %7 = xla_tuple %s5, %s6
  %s8 = sld [smem:[#allocation0]]
  $region38: #{tpu_custom_call.1} parent=0
    _
  %s10 = ssub.s32 1, %s8
  %s11 = scalar_select 0, %s10, %s8
  $region1: #{tpu_custom_call.1} parent=0
    #allocation2 [shape = 'u8[65536]{0}', space=vmem, size = 0x10000, scoped, tag = 'output window, operand 0, single buffered']
    #allocation3 [shape = 's32[1]{0}', space=sflag, size = 0x4, scoped, tag = 'scoped memory for tpu_custom_call.1']
    #allocation4 [shape = 'u8[65536]{0}', space=vmem, size = 0x10000, scoped, tag = 'output window, operand 1, single buffered']
    #allocation5 [shape = 's32[1]{0}', space=sflag, size = 0x4, scoped, tag = 'scoped memory for tpu_custom_call.1']
    %12 = vsyncpa [#allocation3], 0
    %13 = vsyncpa [#allocation5], 0
    // Predicated region
    $region2: #{tpu_custom_call.1} parent=1 // pred_check
      _
    $region3: #{tpu_custom_call.1} parent=1 // pred_check_branch
      %15 = sbr.rel (0) target = $region5
    $region4: #{tpu_custom_call.1} parent=1 // pred_region
      _
    $region5: #{tpu_custom_call.1} parent=1 // pred_fallthru
      _
    // Predicated region
    $region6: #{tpu_custom_call.1} parent=1 // pred_check
      _
    $region7: #{tpu_custom_call.1} parent=1 // pred_check_branch
      %17 = sbr.rel (0) target = $region9
    $region8: #{tpu_custom_call.1} parent=1 // pred_region
      _
    $region9: #{tpu_custom_call.1} parent=1 // pred_fallthru
      _
    // Predicated region
    $region10: #{tpu_custom_call.1} parent=1 // pred_check
      _
    $region11: #{tpu_custom_call.1} parent=1 // pred_check_branch
      %19 = sbr.rel (0) target = $region13
    $region12: #{tpu_custom_call.1} parent=1 // pred_region
      _
    $region13: #{tpu_custom_call.1} parent=1 // pred_fallthru
      _
    // Predicated region
    $region14: #{tpu_custom_call.1} parent=1 // pred_check
      _
    $region15: #{tpu_custom_call.1} parent=1 // pred_check_branch
      %21 = sbr.rel (0) target = $region17
    $region16: #{tpu_custom_call.1} parent=1 // pred_region
      _
    $region17: #{tpu_custom_call.1} parent=1 // pred_fallthru
      _
    // Predicated region
    $region18: #{tpu_custom_call.1} parent=1 // pred_check
      _
    $region19: #{tpu_custom_call.1} parent=1 // pred_check_branch
      %23 = sbr.rel (0) target = $region21
    $region20: #{tpu_custom_call.1} parent=1 // pred_region
      _
    $region21: #{tpu_custom_call.1} parent=1 // pred_fallthru
      _
    %v24 = vld [vmem:[%s0] sm:$0xff]
    %v25 = vld [vmem:[%s0 + $0x8] sm:$0xff]
    %v26 = vld [vmem:[%s0 + $0x10] sm:$0xff]
    %v27 = vld [vmem:[%s0 + $0x18] sm:$0xff]
    %v28 = vld [vmem:[%s0 + $0x20] sm:$0xff]
    %v29 = vld [vmem:[%s0 + $0x28] sm:$0xff]
    %v30 = vld [vmem:[%s0 + $0x30] sm:$0xff]
    %v31 = vld [vmem:[%s0 + $0x38] sm:$0xff]
    %v32 = vld [vmem:[%s0 + $0x40] sm:$0xff]
    %v33 = vld [vmem:[%s0 + $0x48] sm:$0xff]
    %v34 = vld [vmem:[%s0 + $0x50] sm:$0xff]
    %v35 = vld [vmem:[%s0 + $0x58] sm:$0xff]
    %v36 = vld [vmem:[%s0 + $0x60] sm:$0xff]
    %v37 = vld [vmem:[%s0 + $0x68] sm:$0xff]
    %v38 = vld [vmem:[%s0 + $0x70] sm:$0xff]
    %v39 = vld [vmem:[%s0 + $0x78] sm:$0xff]
    %v40 = vld [vmem:[%s1] sm:$0xff]
    %v41 = vld [vmem:[%s1 + $0x8] sm:$0xff]
    %v42 = vld [vmem:[%s1 + $0x10] sm:$0xff]
    %v43 = vld [vmem:[%s1 + $0x18] sm:$0xff]
    %v44 = vld [vmem:[%s2] sm:$0x1]
    %v46 = vlaneseq
    %v47 = vshrl.u32 %v46, 7
    %v48 = vsub.s32 0, %v47
    %v49 = vrot.slane %v44, %v48
    %vm51 = vcmask 261120
    %v53 = vsel %vm51, %v24, 0
    %v56 = vsel %vm51, %v25, 0
    %v59 = vsel %vm51, %v26, 0
    %v62 = vsel %vm51, %v27, 0
    %v65 = vsel %vm51, %v28, 0
    %v68 = vsel %vm51, %v29, 0
    %v71 = vsel %vm51, %v30, 0
    %v74 = vsel %vm51, %v31, 0
    %v77 = vsel %vm51, %v32, 0
    %v80 = vsel %vm51, %v33, 0
    %v83 = vsel %vm51, %v34, 0
    %v86 = vsel %vm51, %v35, 0
    %v89 = vsel %vm51, %v36, 0
    %v92 = vsel %vm51, %v37, 0
    %v95 = vsel %vm51, %v38, 0
    %v98 = vsel %vm51, %v39, 0
    %100 = vmatprep.subr.mxu0 0.0
    %101 = vmatpush1.msra.mxu0 %v40
    %102 = vmatprep.subr.mxu0 0.0
    %103 = vmatpush1.msra.mxu0 %v41
    %104 = vmatprep.subr.mxu0 0.0
    %105 = vmatpush1.msra.mxu0 %v42
    %106 = vmatprep.subr.mxu0 0.0
    %107 = vmatpush1.msra.mxu0 %v43
    %108 = vmatprep.subr.mxu0 0.0
    %109 = vmatpush1.msra.mxu0 0.0
    %110 = vmatprep.subr.mxu0 0.0
    %111 = vmatpush1.msra.mxu0 0.0
    %112 = vmatprep.subr.mxu0 0.0
    %113 = vmatpush1.msra.mxu0 0.0
    %114 = vmatprep.subr.mxu0 0.0
    %115 = vmatpush1.msra.mxu0 0.0
    %116 = vmatprep.subr.mxu0 0.0
    %117 = vmatpush1.msra.mxu0 0.0
    %118 = vmatprep.subr.mxu0 0.0
    %119 = vmatpush1.msra.mxu0 0.0
    %120 = vmatprep.subr.mxu0 0.0
    %121 = vmatpush1.msra.mxu0 0.0
    %122 = vmatprep.subr.mxu0 0.0
    %123 = vmatpush1.msra.mxu0 0.0
    %124 = vmatprep.subr.mxu0 0.0
    %125 = vmatpush1.msra.mxu0 0.0
    %126 = vmatprep.subr.mxu0 0.0
    %127 = vmatpush1.msra.mxu0 0.0
    %128 = vmatprep.subr.mxu0 0.0
    %129 = vmatpush1.msra.mxu0 0.0
    %130 = vmatprep.subr.mxu0 0.0
    %131 = vmatpush1.msra.mxu0 0.0
    %132 = vmatprep.subr.mxu0 0.0
    %133 = vmatpush1.msra.mxu0 0.0
    %134 = vmatprep.subr.mxu0 0.0
    %135 = vmatpush1.msra.mxu0 0.0
    %136 = vmatprep.subr.mxu0 0.0
    %137 = vmatpush1.msra.mxu0 0.0
    %138 = vmatprep.subr.mxu0 0.0
    %139 = vmatpush1.msra.mxu0 0.0
    %140 = vmatprep.subr.mxu0 0.0
    %141 = vmatpush1.msra.mxu0 0.0
    %142 = vmatprep.subr.mxu0 0.0
    %143 = vmatpush1.msra.mxu0 0.0
    %144 = vmatprep.subr.mxu0 0.0
    %145 = vmatpush1.msra.mxu0 0.0
    %146 = vmatprep.subr.mxu0 0.0
    %147 = vmatpush1.msra.mxu0 0.0
    %148 = vmatprep.subr.mxu0 0.0
    %149 = vmatpush1.msra.mxu0 0.0
    %150 = vmatprep.subr.mxu0 0.0
    %151 = vmatpush1.msra.mxu0 0.0
    %152 = vmatprep.subr.mxu0 0.0
    %153 = vmatpush1.msra.mxu0 0.0
    %154 = vmatprep.subr.mxu0 0.0
    %155 = vmatpush1.msra.mxu0 0.0
    %156 = vmatprep.subr.mxu0 0.0
    %157 = vmatpush1.msra.mxu0 0.0
    %158 = vmatprep.subr.mxu0 0.0
    %159 = vmatpush1.msra.mxu0 0.0
    %160 = vmatprep.subr.mxu0 0.0
    %161 = vmatpush1.msra.mxu0 0.0
    %162 = vmatprep.subr.mxu0 0.0
    %163 = vmatpush1.msra.mxu0 0.0
    %164 = vmatprep.mubr.f32.mxu0 0.0
    %165 = vmatmul.mubr.f32.gmra.mrb[0].mxu0 %v53
    %v166 = vpop.f32.mrb[0].mxu0
    %v167 = vadd.f32 %v49, %v166
    %v168 = vpop.f32.mrb[0].mxu0
    %169 = vmatprep.mubr.f32.mxu0 0.0
    %170 = vmatmul.mubr.f32.gmra.mrb[0].mxu0 %v56
    %v171 = vpop.f32.mrb[0].mxu0
    %v172 = vadd.f32 %v49, %v171
    %v173 = vpop.f32.mrb[0].mxu0
    %174 = vmatprep.mubr.f32.mxu0 0.0
    %175 = vmatmul.mubr.f32.gmra.mrb[0].mxu0 %v59
    %v176 = vpop.f32.mrb[0].mxu0
    %v177 = vadd.f32 %v49, %v176
    %v178 = vpop.f32.mrb[0].mxu0
    %179 = vmatprep.mubr.f32.mxu0 0.0
    %180 = vmatmul.mubr.f32.gmra.mrb[0].mxu0 %v62
    %v181 = vpop.f32.mrb[0].mxu0
    %v182 = vadd.f32 %v49, %v181
    %v183 = vpop.f32.mrb[0].mxu0
    %184 = vmatprep.mubr.f32.mxu0 0.0
    %185 = vmatmul.mubr.f32.gmra.mrb[0].mxu0 %v65
    %v186 = vpop.f32.mrb[0].mxu0
    %v187 = vadd.f32 %v49, %v186
    %v188 = vpop.f32.mrb[0].mxu0
    %189 = vmatprep.mubr.f32.mxu0 0.0
    %190 = vmatmul.mubr.f32.gmra.mrb[0].mxu0 %v68
    %v191 = vpop.f32.mrb[0].mxu0
    %v192 = vadd.f32 %v49, %v191
    %v193 = vpop.f32.mrb[0].mxu0
    %194 = vmatprep.mubr.f32.mxu0 0.0
    %195 = vmatmul.mubr.f32.gmra.mrb[0].mxu0 %v71
    %v196 = vpop.f32.mrb[0].mxu0
    %v197 = vadd.f32 %v49, %v196
    %v198 = vpop.f32.mrb[0].mxu0
    %199 = vmatprep.mubr.f32.mxu0 0.0
    %200 = vmatmul.mubr.f32.gmra.mrb[0].mxu0 %v74
    %v201 = vpop.f32.mrb[0].mxu0
    %v202 = vadd.f32 %v49, %v201
    %v203 = vpop.f32.mrb[0].mxu0
    %204 = vmatprep.mubr.f32.mxu0 0.0
    %205 = vmatmul.mubr.f32.gmra.mrb[0].mxu0 %v77
    %v206 = vpop.f32.mrb[0].mxu0
    %v207 = vadd.f32 %v49, %v206
    %v208 = vpop.f32.mrb[0].mxu0
    %209 = vmatprep.mubr.f32.mxu0 0.0
    %210 = vmatmul.mubr.f32.gmra.mrb[0].mxu0 %v80
    %v211 = vpop.f32.mrb[0].mxu0
    %v212 = vadd.f32 %v49, %v211
    %v213 = vpop.f32.mrb[0].mxu0
    %214 = vmatprep.mubr.f32.mxu0 0.0
    %215 = vmatmul.mubr.f32.gmra.mrb[0].mxu0 %v83
    %v216 = vpop.f32.mrb[0].mxu0
    %v217 = vadd.f32 %v49, %v216
    %v218 = vpop.f32.mrb[0].mxu0
    %219 = vmatprep.mubr.f32.mxu0 0.0
    %220 = vmatmul.mubr.f32.gmra.mrb[0].mxu0 %v86
    %v221 = vpop.f32.mrb[0].mxu0
    %v222 = vadd.f32 %v49, %v221
    %v223 = vpop.f32.mrb[0].mxu0
    %224 = vmatprep.mubr.f32.mxu0 0.0
    %225 = vmatmul.mubr.f32.gmra.mrb[0].mxu0 %v89
    %v226 = vpop.f32.mrb[0].mxu0
    %v227 = vadd.f32 %v49, %v226
    %v228 = vpop.f32.mrb[0].mxu0
    %229 = vmatprep.mubr.f32.mxu0 0.0
    %230 = vmatmul.mubr.f32.gmra.mrb[0].mxu0 %v92
    %v231 = vpop.f32.mrb[0].mxu0
    %v232 = vadd.f32 %v49, %v231
    %v233 = vpop.f32.mrb[0].mxu0
    %234 = vmatprep.mubr.f32.mxu0 0.0
    %235 = vmatmul.mubr.f32.gmra.mrb[0].mxu0 %v95
    %v236 = vpop.f32.mrb[0].mxu0
    %v237 = vadd.f32 %v49, %v236
    %v238 = vpop.f32.mrb[0].mxu0
    %239 = vmatprep.mubr.f32.mxu0 0.0
    %240 = vmatmul.mubr.f32.gmra.mrb[0].mxu0 %v98
    %v241 = vpop.f32.mrb[0].mxu0
    %v242 = vadd.f32 %v49, %v241
    %v243 = vpop.f32.mrb[0].mxu0
    %244 = vdwg.mxu0
    %261 = vrot.lane.b32.xlu0 %v167, 120
    %v262 = vpop.permute.xlu0 %261
    %263 = vrot.lane.b32.xlu0 %v172, 120
    %v264 = vpop.permute.xlu0 %263
    %265 = vrot.lane.b32.xlu0 %v177, 120
    %v266 = vpop.permute.xlu0 %265
    %267 = vrot.lane.b32.xlu0 %v182, 120
    %v268 = vpop.permute.xlu0 %267
    %269 = vrot.lane.b32.xlu0 %v187, 120
    %v270 = vpop.permute.xlu0 %269
    %271 = vrot.lane.b32.xlu0 %v192, 120
    %v272 = vpop.permute.xlu0 %271
    %273 = vrot.lane.b32.xlu0 %v197, 120
    %v274 = vpop.permute.xlu0 %273
    %275 = vrot.lane.b32.xlu0 %v202, 120
    %v276 = vpop.permute.xlu0 %275
    %277 = vrot.lane.b32.xlu0 %v207, 120
    %v278 = vpop.permute.xlu0 %277
    %279 = vrot.lane.b32.xlu0 %v212, 120
    %v280 = vpop.permute.xlu0 %279
    %281 = vrot.lane.b32.xlu0 %v217, 120
    %v282 = vpop.permute.xlu0 %281
    %283 = vrot.lane.b32.xlu0 %v222, 120
    %v284 = vpop.permute.xlu0 %283
    %285 = vrot.lane.b32.xlu0 %v227, 120
    %v286 = vpop.permute.xlu0 %285
    %287 = vrot.lane.b32.xlu0 %v232, 120
    %v288 = vpop.permute.xlu0 %287
    %289 = vrot.lane.b32.xlu0 %v237, 120
    %v290 = vpop.permute.xlu0 %289
    %291 = vrot.lane.b32.xlu0 %v242, 120
    %v292 = vpop.permute.xlu0 %291
    %293 = vrot.lane.b32.xlu0 %v167, 112
    %v294 = vpop.permute.xlu0 %293
    %295 = vrot.lane.b32.xlu0 %v172, 112
    %v296 = vpop.permute.xlu0 %295
    %297 = vrot.lane.b32.xlu0 %v177, 112
    %v298 = vpop.permute.xlu0 %297
    %299 = vrot.lane.b32.xlu0 %v182, 112
    %v300 = vpop.permute.xlu0 %299
    %301 = vrot.lane.b32.xlu0 %v187, 112
    %v302 = vpop.permute.xlu0 %301
    %303 = vrot.lane.b32.xlu0 %v192, 112
    %v304 = vpop.permute.xlu0 %303
    %305 = vrot.lane.b32.xlu0 %v197, 112
    %v306 = vpop.permute.xlu0 %305
    %307 = vrot.lane.b32.xlu0 %v202, 112
    %v308 = vpop.permute.xlu0 %307
    %309 = vrot.lane.b32.xlu0 %v207, 112
    %v310 = vpop.permute.xlu0 %309
    %311 = vrot.lane.b32.xlu0 %v212, 112
    %v312 = vpop.permute.xlu0 %311
    %313 = vrot.lane.b32.xlu0 %v217, 112
    %v314 = vpop.permute.xlu0 %313
    %315 = vrot.lane.b32.xlu0 %v222, 112
    %v316 = vpop.permute.xlu0 %315
    %317 = vrot.lane.b32.xlu0 %v227, 112
    %v318 = vpop.permute.xlu0 %317
    %319 = vrot.lane.b32.xlu0 %v232, 112
    %v320 = vpop.permute.xlu0 %319
    %321 = vrot.lane.b32.xlu0 %v237, 112
    %v322 = vpop.permute.xlu0 %321
    %323 = vrot.lane.b32.xlu0 %v242, 112
    %v324 = vpop.permute.xlu0 %323
    %325 = vrot.lane.b32.xlu0 %v167, 104
    %v326 = vpop.permute.xlu0 %325
    %327 = vrot.lane.b32.xlu0 %v172, 104
    %v328 = vpop.permute.xlu0 %327
    %329 = vrot.lane.b32.xlu0 %v177, 104
    %v330 = vpop.permute.xlu0 %329
    %331 = vrot.lane.b32.xlu0 %v182, 104
    %v332 = vpop.permute.xlu0 %331
    %333 = vrot.lane.b32.xlu0 %v187, 104
    %v334 = vpop.permute.xlu0 %333
    %335 = vrot.lane.b32.xlu0 %v192, 104
    %v336 = vpop.permute.xlu0 %335
    %337 = vrot.lane.b32.xlu0 %v197, 104
    %v338 = vpop.permute.xlu0 %337
    %339 = vrot.lane.b32.xlu0 %v202, 104
    %v340 = vpop.permute.xlu0 %339
    %341 = vrot.lane.b32.xlu0 %v207, 104
    %v342 = vpop.permute.xlu0 %341
    %343 = vrot.lane.b32.xlu0 %v212, 104
    %v344 = vpop.permute.xlu0 %343
    %345 = vrot.lane.b32.xlu0 %v217, 104
    %v346 = vpop.permute.xlu0 %345
    %347 = vrot.lane.b32.xlu0 %v222, 104
    %v348 = vpop.permute.xlu0 %347
    %349 = vrot.lane.b32.xlu0 %v227, 104
    %v350 = vpop.permute.xlu0 %349
    %351 = vrot.lane.b32.xlu0 %v232, 104
    %v352 = vpop.permute.xlu0 %351
    %353 = vrot.lane.b32.xlu0 %v237, 104
    %v354 = vpop.permute.xlu0 %353
    %355 = vrot.lane.b32.xlu0 %v242, 104
    %v356 = vpop.permute.xlu0 %355
    %357 = vrot.lane.b32.xlu0 %v167, 96
    %v358 = vpop.permute.xlu0 %357
    %359 = vrot.lane.b32.xlu0 %v172, 96
    %v360 = vpop.permute.xlu0 %359
    %vm361 = vcmask 64512
    %v362 = vsel %vm361, %v167, 0
    %v364 = vsel %vm361, %v172, 0
    %v366 = vsel %vm361, %v358, 0
    %v368 = vsel %vm361, %v360, 0
    %370 = vmatprep.subr.mxu0 0.0
    %371 = vmatpush1.xpose.msra.mxu0 %v366
    %372 = vmatprep.subr.mxu0 0.0
    %373 = vmatpush1.xpose.msra.mxu0 %v368
    %374 = vmatprep.subr.mxu0 0.0
    %375 = vmatpush1.xpose.msra.mxu0 0.0
    %376 = vmatprep.subr.mxu0 0.0
    %377 = vmatpush1.xpose.msra.mxu0 0.0
    %378 = vmatprep.subr.mxu0 0.0
    %379 = vmatpush1.xpose.msra.mxu0 0.0
    %380 = vmatprep.subr.mxu0 0.0
    %381 = vmatpush1.xpose.msra.mxu0 0.0
    %382 = vmatprep.subr.mxu0 0.0
    %383 = vmatpush1.xpose.msra.mxu0 0.0
    %384 = vmatprep.subr.mxu0 0.0
    %385 = vmatpush1.xpose.msra.mxu0 0.0
    %386 = vmatprep.subr.mxu0 0.0
    %387 = vmatpush1.xpose.msra.mxu0 0.0
    %388 = vmatprep.subr.mxu0 0.0
    %389 = vmatpush1.xpose.msra.mxu0 0.0
    %390 = vmatprep.subr.mxu0 0.0
    %391 = vmatpush1.xpose.msra.mxu0 0.0
    %392 = vmatprep.subr.mxu0 0.0
    %393 = vmatpush1.xpose.msra.mxu0 0.0
    %394 = vmatprep.subr.mxu0 0.0
    %395 = vmatpush1.xpose.msra.mxu0 0.0
    %396 = vmatprep.subr.mxu0 0.0
    %397 = vmatpush1.xpose.msra.mxu0 0.0
    %398 = vmatprep.subr.mxu0 0.0
    %399 = vmatpush1.xpose.msra.mxu0 0.0
    %400 = vmatprep.subr.mxu0 0.0
    %401 = vmatpush1.xpose.msra.mxu0 0.0
    %402 = vmatprep.subr.mxu0 0.0
    %403 = vmatpush1.xpose.msra.mxu0 0.0
    %404 = vmatprep.subr.mxu0 0.0
    %405 = vmatpush1.xpose.msra.mxu0 0.0
    %406 = vmatprep.subr.mxu0 0.0
    %407 = vmatpush1.xpose.msra.mxu0 0.0
    %408 = vmatprep.subr.mxu0 0.0
    %409 = vmatpush1.xpose.msra.mxu0 0.0
    %410 = vmatprep.subr.mxu0 0.0
    %411 = vmatpush1.xpose.msra.mxu0 0.0
    %412 = vmatprep.subr.mxu0 0.0
    %413 = vmatpush1.xpose.msra.mxu0 0.0
    %414 = vmatprep.subr.mxu0 0.0
    %415 = vmatpush1.xpose.msra.mxu0 0.0
    %416 = vmatprep.subr.mxu0 0.0
    %417 = vmatpush1.xpose.msra.mxu0 0.0
    %418 = vmatprep.subr.mxu0 0.0
    %419 = vmatpush1.xpose.msra.mxu0 0.0
    %420 = vmatprep.subr.mxu0 0.0
    %421 = vmatpush1.xpose.msra.mxu0 0.0
    %422 = vmatprep.subr.mxu0 0.0
    %423 = vmatpush1.xpose.msra.mxu0 0.0
    %424 = vmatprep.subr.mxu0 0.0
    %425 = vmatpush1.xpose.msra.mxu0 0.0
    %426 = vmatprep.subr.mxu0 0.0
    %427 = vmatpush1.xpose.msra.mxu0 0.0
    %428 = vmatprep.subr.mxu0 0.0
    %429 = vmatpush1.xpose.msra.mxu0 0.0
    %430 = vmatprep.subr.mxu0 0.0
    %431 = vmatpush1.xpose.msra.mxu0 0.0
    %432 = vmatprep.subr.mxu0 0.0
    %433 = vmatpush1.xpose.msra.mxu0 0.0
    %434 = vmatprep.mubr.f32.mxu0 0.0
    %435 = vmatmul.mubr.f32.gmra.mrb[0].mxu0 %v362
    %v436 = vpop.f32.mrb[0].mxu0
    %v437 = vadd.f32 0.0, %v436
    %v438 = vpop.f32.mrb[0].mxu0
    %439 = vmatprep.mubr.f32.mxu0 0.0
    %440 = vmatmul.mubr.f32.gmra.mrb[0].mxu0 %v364
    %v441 = vpop.f32.mrb[0].mxu0
    %v442 = vadd.f32 0.0, %v441
    %v443 = vpop.f32.mrb[0].mxu0
    %444 = vdwg.mxu0
    %445 = vrot.lane.b32.xlu0 %v177, 96
    %v446 = vpop.permute.xlu0 %445
    %447 = vrot.lane.b32.xlu0 %v182, 96
    %v448 = vpop.permute.xlu0 %447
    %v449 = vsel %vm361, %v177, 0
    %v451 = vsel %vm361, %v182, 0
    %v453 = vsel %vm361, %v446, 0
    %v455 = vsel %vm361, %v448, 0
    %457 = vmatprep.subr.mxu0 0.0
    %458 = vmatpush1.xpose.msra.mxu0 %v453
    %459 = vmatprep.subr.mxu0 0.0
    %460 = vmatpush1.xpose.msra.mxu0 %v455
    %461 = vmatprep.subr.mxu0 0.0
    %462 = vmatpush1.xpose.msra.mxu0 0.0
    %463 = vmatprep.subr.mxu0 0.0
    %464 = vmatpush1.xpose.msra.mxu0 0.0
    %465 = vmatprep.subr.mxu0 0.0
    %466 = vmatpush1.xpose.msra.mxu0 0.0
    %467 = vmatprep.subr.mxu0 0.0
    %468 = vmatpush1.xpose.msra.mxu0 0.0
    %469 = vmatprep.subr.mxu0 0.0
    %470 = vmatpush1.xpose.msra.mxu0 0.0
    %471 = vmatprep.subr.mxu0 0.0
    %472 = vmatpush1.xpose.msra.mxu0 0.0
    %473 = vmatprep.subr.mxu0 0.0
    %474 = vmatpush1.xpose.msra.mxu0 0.0
    %475 = vmatprep.subr.mxu0 0.0
    %476 = vmatpush1.xpose.msra.mxu0 0.0
    %477 = vmatprep.subr.mxu0 0.0
    %478 = vmatpush1.xpose.msra.mxu0 0.0
    %479 = vmatprep.subr.mxu0 0.0
    %480 = vmatpush1.xpose.msra.mxu0 0.0
    %481 = vmatprep.subr.mxu0 0.0
    %482 = vmatpush1.xpose.msra.mxu0 0.0
    %483 = vmatprep.subr.mxu0 0.0
    %484 = vmatpush1.xpose.msra.mxu0 0.0
    %485 = vmatprep.subr.mxu0 0.0
    %486 = vmatpush1.xpose.msra.mxu0 0.0
    %487 = vmatprep.subr.mxu0 0.0
    %488 = vmatpush1.xpose.msra.mxu0 0.0
    %489 = vmatprep.subr.mxu0 0.0
    %490 = vmatpush1.xpose.msra.mxu0 0.0
    %491 = vmatprep.subr.mxu0 0.0
    %492 = vmatpush1.xpose.msra.mxu0 0.0
    %493 = vmatprep.subr.mxu0 0.0
    %494 = vmatpush1.xpose.msra.mxu0 0.0
    %495 = vmatprep.subr.mxu0 0.0
    %496 = vmatpush1.xpose.msra.mxu0 0.0
    %497 = vmatprep.subr.mxu0 0.0
    %498 = vmatpush1.xpose.msra.mxu0 0.0
    %499 = vmatprep.subr.mxu0 0.0
    %500 = vmatpush1.xpose.msra.mxu0 0.0
    %501 = vmatprep.subr.mxu0 0.0
    %502 = vmatpush1.xpose.msra.mxu0 0.0
    %503 = vmatprep.subr.mxu0 0.0
    %504 = vmatpush1.xpose.msra.mxu0 0.0
    %505 = vmatprep.subr.mxu0 0.0
    %506 = vmatpush1.xpose.msra.mxu0 0.0
    %507 = vmatprep.subr.mxu0 0.0
    %508 = vmatpush1.xpose.msra.mxu0 0.0
    %509 = vmatprep.subr.mxu0 0.0
    %510 = vmatpush1.xpose.msra.mxu0 0.0
    %511 = vmatprep.subr.mxu0 0.0
    %512 = vmatpush1.xpose.msra.mxu0 0.0
    %513 = vmatprep.subr.mxu0 0.0
    %514 = vmatpush1.xpose.msra.mxu0 0.0
    %515 = vmatprep.subr.mxu0 0.0
    %516 = vmatpush1.xpose.msra.mxu0 0.0
    %517 = vmatprep.subr.mxu0 0.0
    %518 = vmatpush1.xpose.msra.mxu0 0.0
    %519 = vmatprep.subr.mxu0 0.0
    %520 = vmatpush1.xpose.msra.mxu0 0.0
    %521 = vmatprep.mubr.f32.mxu0 0.0
    %522 = vmatmul.mubr.f32.gmra.mrb[0].mxu0 %v449
    %v523 = vpop.f32.mrb[0].mxu0
    %v524 = vadd.f32 0.0, %v523
    %v525 = vpop.f32.mrb[0].mxu0
    %526 = vmatprep.mubr.f32.mxu0 0.0
    %527 = vmatmul.mubr.f32.gmra.mrb[0].mxu0 %v451
    %v528 = vpop.f32.mrb[0].mxu0
    %v529 = vadd.f32 0.0, %v528
    %v530 = vpop.f32.mrb[0].mxu0
    %531 = vdwg.mxu0
    %532 = vrot.lane.b32.xlu0 %v187, 96
    %v533 = vpop.permute.xlu0 %532
    %534 = vrot.lane.b32.xlu0 %v192, 96
    %v535 = vpop.permute.xlu0 %534
    %v536 = vsel %vm361, %v187, 0
    %v538 = vsel %vm361, %v192, 0
    %v540 = vsel %vm361, %v533, 0
    %v542 = vsel %vm361, %v535, 0
    %544 = vmatprep.subr.mxu0 0.0
    %545 = vmatpush1.xpose.msra.mxu0 %v540
    %546 = vmatprep.subr.mxu0 0.0
    %547 = vmatpush1.xpose.msra.mxu0 %v542
    %548 = vmatprep.subr.mxu0 0.0
    %549 = vmatpush1.xpose.msra.mxu0 0.0
    %550 = vmatprep.subr.mxu0 0.0
    %551 = vmatpush1.xpose.msra.mxu0 0.0
    %552 = vmatprep.subr.mxu0 0.0
    %553 = vmatpush1.xpose.msra.mxu0 0.0
    %554 = vmatprep.subr.mxu0 0.0
    %555 = vmatpush1.xpose.msra.mxu0 0.0
    %556 = vmatprep.subr.mxu0 0.0
    %557 = vmatpush1.xpose.msra.mxu0 0.0
    %558 = vmatprep.subr.mxu0 0.0
    %559 = vmatpush1.xpose.msra.mxu0 0.0
    %560 = vmatprep.subr.mxu0 0.0
    %561 = vmatpush1.xpose.msra.mxu0 0.0
    %562 = vmatprep.subr.mxu0 0.0
    %563 = vmatpush1.xpose.msra.mxu0 0.0
    %564 = vmatprep.subr.mxu0 0.0
    %565 = vmatpush1.xpose.msra.mxu0 0.0
    %566 = vmatprep.subr.mxu0 0.0
    %567 = vmatpush1.xpose.msra.mxu0 0.0
    %568 = vmatprep.subr.mxu0 0.0
    %569 = vmatpush1.xpose.msra.mxu0 0.0
    %570 = vmatprep.subr.mxu0 0.0
    %571 = vmatpush1.xpose.msra.mxu0 0.0
    %572 = vmatprep.subr.mxu0 0.0
    %573 = vmatpush1.xpose.msra.mxu0 0.0
    %574 = vmatprep.subr.mxu0 0.0
    %575 = vmatpush1.xpose.msra.mxu0 0.0
    %576 = vmatprep.subr.mxu0 0.0
    %577 = vmatpush1.xpose.msra.mxu0 0.0
    %578 = vmatprep.subr.mxu0 0.0
    %579 = vmatpush1.xpose.msra.mxu0 0.0
    %580 = vmatprep.subr.mxu0 0.0
    %581 = vmatpush1.xpose.msra.mxu0 0.0
    %582 = vmatprep.subr.mxu0 0.0
    %583 = vmatpush1.xpose.msra.mxu0 0.0
    %584 = vmatprep.subr.mxu0 0.0
    %585 = vmatpush1.xpose.msra.mxu0 0.0
    %586 = vmatprep.subr.mxu0 0.0
    %587 = vmatpush1.xpose.msra.mxu0 0.0
    %588 = vmatprep.subr.mxu0 0.0
    %589 = vmatpush1.xpose.msra.mxu0 0.0
    %590 = vmatprep.subr.mxu0 0.0
    %591 = vmatpush1.xpose.msra.mxu0 0.0
    %592 = vmatprep.subr.mxu0 0.0
    %593 = vmatpush1.xpose.msra.mxu0 0.0
    %594 = vmatprep.subr.mxu0 0.0
    %595 = vmatpush1.xpose.msra.mxu0 0.0
    %596 = vmatprep.subr.mxu0 0.0
    %597 = vmatpush1.xpose.msra.mxu0 0.0
    %598 = vmatprep.subr.mxu0 0.0
    %599 = vmatpush1.xpose.msra.mxu0 0.0
    %600 = vmatprep.subr.mxu0 0.0
    %601 = vmatpush1.xpose.msra.mxu0 0.0
    %602 = vmatprep.subr.mxu0 0.0
    %603 = vmatpush1.xpose.msra.mxu0 0.0
    %604 = vmatprep.subr.mxu0 0.0
    %605 = vmatpush1.xpose.msra.mxu0 0.0
    %606 = vmatprep.subr.mxu0 0.0
    %607 = vmatpush1.xpose.msra.mxu0 0.0
    %608 = vmatprep.mubr.f32.mxu0 0.0
    %609 = vmatmul.mubr.f32.gmra.mrb[0].mxu0 %v536
    %v610 = vpop.f32.mrb[0].mxu0
    %v611 = vadd.f32 0.0, %v610
    %v612 = vpop.f32.mrb[0].mxu0
    %613 = vmatprep.mubr.f32.mxu0 0.0
    %614 = vmatmul.mubr.f32.gmra.mrb[0].mxu0 %v538
    %v615 = vpop.f32.mrb[0].mxu0
    %v616 = vadd.f32 0.0, %v615
    %v617 = vpop.f32.mrb[0].mxu0
    %618 = vdwg.mxu0
    %619 = vrot.lane.b32.xlu0 %v197, 96
    %v620 = vpop.permute.xlu0 %619
    %621 = vrot.lane.b32.xlu0 %v202, 96
    %v622 = vpop.permute.xlu0 %621
    %v623 = vsel %vm361, %v197, 0
    %v625 = vsel %vm361, %v202, 0
    %v627 = vsel %vm361, %v620, 0
    %v629 = vsel %vm361, %v622, 0
    %631 = vmatprep.subr.mxu0 0.0
    %632 = vmatpush1.xpose.msra.mxu0 %v627
    %633 = vmatprep.subr.mxu0 0.0
    %634 = vmatpush1.xpose.msra.mxu0 %v629
    %635 = vmatprep.subr.mxu0 0.0
    %636 = vmatpush1.xpose.msra.mxu0 0.0
    %637 = vmatprep.subr.mxu0 0.0
    %638 = vmatpush1.xpose.msra.mxu0 0.0
    %639 = vmatprep.subr.mxu0 0.0
    %640 = vmatpush1.xpose.msra.mxu0 0.0
    %641 = vmatprep.subr.mxu0 0.0
    %642 = vmatpush1.xpose.msra.mxu0 0.0
    %643 = vmatprep.subr.mxu0 0.0
    %644 = vmatpush1.xpose.msra.mxu0 0.0
    %645 = vmatprep.subr.mxu0 0.0
    %646 = vmatpush1.xpose.msra.mxu0 0.0
    %647 = vmatprep.subr.mxu0 0.0
    %648 = vmatpush1.xpose.msra.mxu0 0.0
    %649 = vmatprep.subr.mxu0 0.0
    %650 = vmatpush1.xpose.msra.mxu0 0.0
    %651 = vmatprep.subr.mxu0 0.0
    %652 = vmatpush1.xpose.msra.mxu0 0.0
    %653 = vmatprep.subr.mxu0 0.0
    %654 = vmatpush1.xpose.msra.mxu0 0.0
    %655 = vmatprep.subr.mxu0 0.0
    %656 = vmatpush1.xpose.msra.mxu0 0.0
    %657 = vmatprep.subr.mxu0 0.0
    %658 = vmatpush1.xpose.msra.mxu0 0.0
    %659 = vmatprep.subr.mxu0 0.0
    %660 = vmatpush1.xpose.msra.mxu0 0.0
    %661 = vmatprep.subr.mxu0 0.0
    %662 = vmatpush1.xpose.msra.mxu0 0.0
    %663 = vmatprep.subr.mxu0 0.0
    %664 = vmatpush1.xpose.msra.mxu0 0.0
    %665 = vmatprep.subr.mxu0 0.0
    %666 = vmatpush1.xpose.msra.mxu0 0.0
    %667 = vmatprep.subr.mxu0 0.0
    %668 = vmatpush1.xpose.msra.mxu0 0.0
    %669 = vmatprep.subr.mxu0 0.0
    %670 = vmatpush1.xpose.msra.mxu0 0.0
    %671 = vmatprep.subr.mxu0 0.0
    %672 = vmatpush1.xpose.msra.mxu0 0.0
    %673 = vmatprep.subr.mxu0 0.0
    %674 = vmatpush1.xpose.msra.mxu0 0.0
    %675 = vmatprep.subr.mxu0 0.0
    %676 = vmatpush1.xpose.msra.mxu0 0.0
    %677 = vmatprep.subr.mxu0 0.0
    %678 = vmatpush1.xpose.msra.mxu0 0.0
    %679 = vmatprep.subr.mxu0 0.0
    %680 = vmatpush1.xpose.msra.mxu0 0.0
    %681 = vmatprep.subr.mxu0 0.0
    %682 = vmatpush1.xpose.msra.mxu0 0.0
    %683 = vmatprep.subr.mxu0 0.0
    %684 = vmatpush1.xpose.msra.mxu0 0.0
    %685 = vmatprep.subr.mxu0 0.0
    %686 = vmatpush1.xpose.msra.mxu0 0.0
    %687 = vmatprep.subr.mxu0 0.0
    %688 = vmatpush1.xpose.msra.mxu0 0.0
    %689 = vmatprep.subr.mxu0 0.0
    %690 = vmatpush1.xpose.msra.mxu0 0.0
    %691 = vmatprep.subr.mxu0 0.0
    %692 = vmatpush1.xpose.msra.mxu0 0.0
    %693 = vmatprep.subr.mxu0 0.0
    %694 = vmatpush1.xpose.msra.mxu0 0.0
    %695 = vmatprep.mubr.f32.mxu0 0.0
    %696 = vmatmul.mubr.f32.gmra.mrb[0].mxu0 %v623
    %v697 = vpop.f32.mrb[0].mxu0
    %v698 = vadd.f32 0.0, %v697
    %v699 = vpop.f32.mrb[0].mxu0
    %700 = vmatprep.mubr.f32.mxu0 0.0
    %701 = vmatmul.mubr.f32.gmra.mrb[0].mxu0 %v625
    %v702 = vpop.f32.mrb[0].mxu0
    %v703 = vadd.f32 0.0, %v702
    %v704 = vpop.f32.mrb[0].mxu0
    %705 = vdwg.mxu0
    %706 = vrot.lane.b32.xlu0 %v207, 96
    %v707 = vpop.permute.xlu0 %706
    %708 = vrot.lane.b32.xlu0 %v212, 96
    %v709 = vpop.permute.xlu0 %708
    %v710 = vsel %vm361, %v207, 0
    %v712 = vsel %vm361, %v212, 0
    %v714 = vsel %vm361, %v707, 0
    %v716 = vsel %vm361, %v709, 0
    %718 = vmatprep.subr.mxu0 0.0
    %719 = vmatpush1.xpose.msra.mxu0 %v714
    %720 = vmatprep.subr.mxu0 0.0
    %721 = vmatpush1.xpose.msra.mxu0 %v716
    %722 = vmatprep.subr.mxu0 0.0
    %723 = vmatpush1.xpose.msra.mxu0 0.0
    %724 = vmatprep.subr.mxu0 0.0
    %725 = vmatpush1.xpose.msra.mxu0 0.0
    %726 = vmatprep.subr.mxu0 0.0
    %727 = vmatpush1.xpose.msra.mxu0 0.0
    %728 = vmatprep.subr.mxu0 0.0
    %729 = vmatpush1.xpose.msra.mxu0 0.0
    %730 = vmatprep.subr.mxu0 0.0
    %731 = vmatpush1.xpose.msra.mxu0 0.0
    %732 = vmatprep.subr.mxu0 0.0
    %733 = vmatpush1.xpose.msra.mxu0 0.0
    %734 = vmatprep.subr.mxu0 0.0
    %735 = vmatpush1.xpose.msra.mxu0 0.0
    %736 = vmatprep.subr.mxu0 0.0
    %737 = vmatpush1.xpose.msra.mxu0 0.0
    %738 = vmatprep.subr.mxu0 0.0
    %739 = vmatpush1.xpose.msra.mxu0 0.0
    %740 = vmatprep.subr.mxu0 0.0
    %741 = vmatpush1.xpose.msra.mxu0 0.0
    %742 = vmatprep.subr.mxu0 0.0
    %743 = vmatpush1.xpose.msra.mxu0 0.0
    %744 = vmatprep.subr.mxu0 0.0
    %745 = vmatpush1.xpose.msra.mxu0 0.0
    %746 = vmatprep.subr.mxu0 0.0
    %747 = vmatpush1.xpose.msra.mxu0 0.0
    %748 = vmatprep.subr.mxu0 0.0
    %749 = vmatpush1.xpose.msra.mxu0 0.0
    %750 = vmatprep.subr.mxu0 0.0
    %751 = vmatpush1.xpose.msra.mxu0 0.0
    %752 = vmatprep.subr.mxu0 0.0
    %753 = vmatpush1.xpose.msra.mxu0 0.0
    %754 = vmatprep.subr.mxu0 0.0
    %755 = vmatpush1.xpose.msra.mxu0 0.0
    %756 = vmatprep.subr.mxu0 0.0
    %757 = vmatpush1.xpose.msra.mxu0 0.0
    %758 = vmatprep.subr.mxu0 0.0
    %759 = vmatpush1.xpose.msra.mxu0 0.0
    %760 = vmatprep.subr.mxu0 0.0
    %761 = vmatpush1.xpose.msra.mxu0 0.0
    %762 = vmatprep.subr.mxu0 0.0
    %763 = vmatpush1.xpose.msra.mxu0 0.0
    %764 = vmatprep.subr.mxu0 0.0
    %765 = vmatpush1.xpose.msra.mxu0 0.0
    %766 = vmatprep.subr.mxu0 0.0
    %767 = vmatpush1.xpose.msra.mxu0 0.0
    %768 = vmatprep.subr.mxu0 0.0
    %769 = vmatpush1.xpose.msra.mxu0 0.0
    %770 = vmatprep.subr.mxu0 0.0
    %771 = vmatpush1.xpose.msra.mxu0 0.0
    %772 = vmatprep.subr.mxu0 0.0
    %773 = vmatpush1.xpose.msra.mxu0 0.0
    %774 = vmatprep.subr.mxu0 0.0
    %775 = vmatpush1.xpose.msra.mxu0 0.0
    %776 = vmatprep.subr.mxu0 0.0
    %777 = vmatpush1.xpose.msra.mxu0 0.0
    %778 = vmatprep.subr.mxu0 0.0
    %779 = vmatpush1.xpose.msra.mxu0 0.0
    %780 = vmatprep.subr.mxu0 0.0
    %781 = vmatpush1.xpose.msra.mxu0 0.0
    %782 = vmatprep.mubr.f32.mxu0 0.0
    %783 = vmatmul.mubr.f32.gmra.mrb[0].mxu0 %v710
    %v784 = vpop.f32.mrb[0].mxu0
    %v785 = vadd.f32 0.0, %v784
    %v786 = vpop.f32.mrb[0].mxu0
    %787 = vmatprep.mubr.f32.mxu0 0.0
    %788 = vmatmul.mubr.f32.gmra.mrb[0].mxu0 %v712
    %v789 = vpop.f32.mrb[0].mxu0
    %v790 = vadd.f32 0.0, %v789
    %v791 = vpop.f32.mrb[0].mxu0
    %792 = vdwg.mxu0
    %793 = vrot.lane.b32.xlu0 %v217, 96
    %v794 = vpop.permute.xlu0 %793
    %795 = vrot.lane.b32.xlu0 %v222, 96
    %v796 = vpop.permute.xlu0 %795
    %v797 = vsel %vm361, %v217, 0
    %v799 = vsel %vm361, %v222, 0
    %v801 = vsel %vm361, %v794, 0
    %v803 = vsel %vm361, %v796, 0
    %805 = vmatprep.subr.mxu0 0.0
    %806 = vmatpush1.xpose.msra.mxu0 %v801
    %807 = vmatprep.subr.mxu0 0.0
    %808 = vmatpush1.xpose.msra.mxu0 %v803
    %809 = vmatprep.subr.mxu0 0.0
    %810 = vmatpush1.xpose.msra.mxu0 0.0
    %811 = vmatprep.subr.mxu0 0.0
    %812 = vmatpush1.xpose.msra.mxu0 0.0
    %813 = vmatprep.subr.mxu0 0.0
    %814 = vmatpush1.xpose.msra.mxu0 0.0
    %815 = vmatprep.subr.mxu0 0.0
    %816 = vmatpush1.xpose.msra.mxu0 0.0
    %817 = vmatprep.subr.mxu0 0.0
    %818 = vmatpush1.xpose.msra.mxu0 0.0
    %819 = vmatprep.subr.mxu0 0.0
    %820 = vmatpush1.xpose.msra.mxu0 0.0
    %821 = vmatprep.subr.mxu0 0.0
    %822 = vmatpush1.xpose.msra.mxu0 0.0
    %823 = vmatprep.subr.mxu0 0.0
    %824 = vmatpush1.xpose.msra.mxu0 0.0
    %825 = vmatprep.subr.mxu0 0.0
    %826 = vmatpush1.xpose.msra.mxu0 0.0
    %827 = vmatprep.subr.mxu0 0.0
    %828 = vmatpush1.xpose.msra.mxu0 0.0
    %829 = vmatprep.subr.mxu0 0.0
    %830 = vmatpush1.xpose.msra.mxu0 0.0
    %831 = vmatprep.subr.mxu0 0.0
    %832 = vmatpush1.xpose.msra.mxu0 0.0
    %833 = vmatprep.subr.mxu0 0.0
    %834 = vmatpush1.xpose.msra.mxu0 0.0
    %835 = vmatprep.subr.mxu0 0.0
    %836 = vmatpush1.xpose.msra.mxu0 0.0
    %837 = vmatprep.subr.mxu0 0.0
    %838 = vmatpush1.xpose.msra.mxu0 0.0
    %839 = vmatprep.subr.mxu0 0.0
    %840 = vmatpush1.xpose.msra.mxu0 0.0
    %841 = vmatprep.subr.mxu0 0.0
    %842 = vmatpush1.xpose.msra.mxu0 0.0
    %843 = vmatprep.subr.mxu0 0.0
    %844 = vmatpush1.xpose.msra.mxu0 0.0
    %845 = vmatprep.subr.mxu0 0.0
    %846 = vmatpush1.xpose.msra.mxu0 0.0
    %847 = vmatprep.subr.mxu0 0.0
    %848 = vmatpush1.xpose.msra.mxu0 0.0
    %849 = vmatprep.subr.mxu0 0.0
    %850 = vmatpush1.xpose.msra.mxu0 0.0
    %851 = vmatprep.subr.mxu0 0.0
    %852 = vmatpush1.xpose.msra.mxu0 0.0
    %853 = vmatprep.subr.mxu0 0.0
    %854 = vmatpush1.xpose.msra.mxu0 0.0
    %855 = vmatprep.subr.mxu0 0.0
    %856 = vmatpush1.xpose.msra.mxu0 0.0
    %857 = vmatprep.subr.mxu0 0.0
    %858 = vmatpush1.xpose.msra.mxu0 0.0
    %859 = vmatprep.subr.mxu0 0.0
    %860 = vmatpush1.xpose.msra.mxu0 0.0
    %861 = vmatprep.subr.mxu0 0.0
    %862 = vmatpush1.xpose.msra.mxu0 0.0
    %863 = vmatprep.subr.mxu0 0.0
    %864 = vmatpush1.xpose.msra.mxu0 0.0
    %865 = vmatprep.subr.mxu0 0.0
    %866 = vmatpush1.xpose.msra.mxu0 0.0
    %867 = vmatprep.subr.mxu0 0.0
    %868 = vmatpush1.xpose.msra.mxu0 0.0
    %869 = vmatprep.mubr.f32.mxu0 0.0
    %870 = vmatmul.mubr.f32.gmra.mrb[0].mxu0 %v797
    %v871 = vpop.f32.mrb[0].mxu0
    %v872 = vadd.f32 0.0, %v871
    %v873 = vpop.f32.mrb[0].mxu0
    %874 = vmatprep.mubr.f32.mxu0 0.0
    %875 = vmatmul.mubr.f32.gmra.mrb[0].mxu0 %v799
    %v876 = vpop.f32.mrb[0].mxu0
    %v877 = vadd.f32 0.0, %v876
    %v878 = vpop.f32.mrb[0].mxu0
    %879 = vdwg.mxu0
    %880 = vrot.lane.b32.xlu0 %v227, 96
    %v881 = vpop.permute.xlu0 %880
    %882 = vrot.lane.b32.xlu0 %v232, 96
    %v883 = vpop.permute.xlu0 %882
    %v884 = vsel %vm361, %v227, 0
    %v886 = vsel %vm361, %v232, 0
    %v888 = vsel %vm361, %v881, 0
    %v890 = vsel %vm361, %v883, 0
    %892 = vmatprep.subr.mxu0 0.0
    %893 = vmatpush1.xpose.msra.mxu0 %v888
    %894 = vmatprep.subr.mxu0 0.0
    %895 = vmatpush1.xpose.msra.mxu0 %v890
    %896 = vmatprep.subr.mxu0 0.0
    %897 = vmatpush1.xpose.msra.mxu0 0.0
    %898 = vmatprep.subr.mxu0 0.0
    %899 = vmatpush1.xpose.msra.mxu0 0.0
    %900 = vmatprep.subr.mxu0 0.0
    %901 = vmatpush1.xpose.msra.mxu0 0.0
    %902 = vmatprep.subr.mxu0 0.0
    %903 = vmatpush1.xpose.msra.mxu0 0.0
    %904 = vmatprep.subr.mxu0 0.0
    %905 = vmatpush1.xpose.msra.mxu0 0.0
    %906 = vmatprep.subr.mxu0 0.0
    %907 = vmatpush1.xpose.msra.mxu0 0.0
    %908 = vmatprep.subr.mxu0 0.0
    %909 = vmatpush1.xpose.msra.mxu0 0.0
    %910 = vmatprep.subr.mxu0 0.0
    %911 = vmatpush1.xpose.msra.mxu0 0.0
    %912 = vmatprep.subr.mxu0 0.0
    %913 = vmatpush1.xpose.msra.mxu0 0.0
    %914 = vmatprep.subr.mxu0 0.0
    %915 = vmatpush1.xpose.msra.mxu0 0.0
    %916 = vmatprep.subr.mxu0 0.0
    %917 = vmatpush1.xpose.msra.mxu0 0.0
    %918 = vmatprep.subr.mxu0 0.0
    %919 = vmatpush1.xpose.msra.mxu0 0.0
    %920 = vmatprep.subr.mxu0 0.0
    %921 = vmatpush1.xpose.msra.mxu0 0.0
    %922 = vmatprep.subr.mxu0 0.0
    %923 = vmatpush1.xpose.msra.mxu0 0.0
    %924 = vmatprep.subr.mxu0 0.0
    %925 = vmatpush1.xpose.msra.mxu0 0.0
    %926 = vmatprep.subr.mxu0 0.0
    %927 = vmatpush1.xpose.msra.mxu0 0.0
    %928 = vmatprep.subr.mxu0 0.0
    %929 = vmatpush1.xpose.msra.mxu0 0.0
    %930 = vmatprep.subr.mxu0 0.0
    %931 = vmatpush1.xpose.msra.mxu0 0.0
    %932 = vmatprep.subr.mxu0 0.0
    %933 = vmatpush1.xpose.msra.mxu0 0.0
    %934 = vmatprep.subr.mxu0 0.0
    %935 = vmatpush1.xpose.msra.mxu0 0.0
    %936 = vmatprep.subr.mxu0 0.0
    %937 = vmatpush1.xpose.msra.mxu0 0.0
    %938 = vmatprep.subr.mxu0 0.0
    %939 = vmatpush1.xpose.msra.mxu0 0.0
    %940 = vmatprep.subr.mxu0 0.0
    %941 = vmatpush1.xpose.msra.mxu0 0.0
    %942 = vmatprep.subr.mxu0 0.0
    %943 = vmatpush1.xpose.msra.mxu0 0.0
    %944 = vmatprep.subr.mxu0 0.0
    %945 = vmatpush1.xpose.msra.mxu0 0.0
    %946 = vmatprep.subr.mxu0 0.0
    %947 = vmatpush1.xpose.msra.mxu0 0.0
    %948 = vmatprep.subr.mxu0 0.0
    %949 = vmatpush1.xpose.msra.mxu0 0.0
    %950 = vmatprep.subr.mxu0 0.0
    %951 = vmatpush1.xpose.msra.mxu0 0.0
    %952 = vmatprep.subr.mxu0 0.0
    %953 = vmatpush1.xpose.msra.mxu0 0.0
    %954 = vmatprep.subr.mxu0 0.0
    %955 = vmatpush1.xpose.msra.mxu0 0.0
    %956 = vmatprep.mubr.f32.mxu0 0.0
    %957 = vmatmul.mubr.f32.gmra.mrb[0].mxu0 %v884
    %v958 = vpop.f32.mrb[0].mxu0
    %v959 = vadd.f32 0.0, %v958
    %v960 = vpop.f32.mrb[0].mxu0
    %961 = vmatprep.mubr.f32.mxu0 0.0
    %962 = vmatmul.mubr.f32.gmra.mrb[0].mxu0 %v886
    %v963 = vpop.f32.mrb[0].mxu0
    %v964 = vadd.f32 0.0, %v963
    %v965 = vpop.f32.mrb[0].mxu0
    %966 = vdwg.mxu0
    %967 = vrot.lane.b32.xlu0 %v237, 96
    %v968 = vpop.permute.xlu0 %967
    %969 = vrot.lane.b32.xlu0 %v242, 96
    %v970 = vpop.permute.xlu0 %969
    %v971 = vsel %vm361, %v237, 0
    %v973 = vsel %vm361, %v242, 0
    %v975 = vsel %vm361, %v968, 0
    %v977 = vsel %vm361, %v970, 0
    %979 = vmatprep.subr.mxu0 0.0
    %980 = vmatpush1.xpose.msra.mxu0 %v975
    %981 = vmatprep.subr.mxu0 0.0
    %982 = vmatpush1.xpose.msra.mxu0 %v977
    %983 = vmatprep.subr.mxu0 0.0
    %984 = vmatpush1.xpose.msra.mxu0 0.0
    %985 = vmatprep.subr.mxu0 0.0
    %986 = vmatpush1.xpose.msra.mxu0 0.0
    %987 = vmatprep.subr.mxu0 0.0
    %988 = vmatpush1.xpose.msra.mxu0 0.0
    %989 = vmatprep.subr.mxu0 0.0
    %990 = vmatpush1.xpose.msra.mxu0 0.0
    %991 = vmatprep.subr.mxu0 0.0
    %992 = vmatpush1.xpose.msra.mxu0 0.0
    %993 = vmatprep.subr.mxu0 0.0
    %994 = vmatpush1.xpose.msra.mxu0 0.0
    %995 = vmatprep.subr.mxu0 0.0
    %996 = vmatpush1.xpose.msra.mxu0 0.0
    %997 = vmatprep.subr.mxu0 0.0
    %998 = vmatpush1.xpose.msra.mxu0 0.0
    %999 = vmatprep.subr.mxu0 0.0
    %1000 = vmatpush1.xpose.msra.mxu0 0.0
    %1001 = vmatprep.subr.mxu0 0.0
    %1002 = vmatpush1.xpose.msra.mxu0 0.0
    %1003 = vmatprep.subr.mxu0 0.0
    %1004 = vmatpush1.xpose.msra.mxu0 0.0
    %1005 = vmatprep.subr.mxu0 0.0
    %1006 = vmatpush1.xpose.msra.mxu0 0.0
    %1007 = vmatprep.subr.mxu0 0.0
    %1008 = vmatpush1.xpose.msra.mxu0 0.0
    %1009 = vmatprep.subr.mxu0 0.0
    %1010 = vmatpush1.xpose.msra.mxu0 0.0
    %1011 = vmatprep.subr.mxu0 0.0
    %1012 = vmatpush1.xpose.msra.mxu0 0.0
    %1013 = vmatprep.subr.mxu0 0.0
    %1014 = vmatpush1.xpose.msra.mxu0 0.0
    %1015 = vmatprep.subr.mxu0 0.0
    %1016 = vmatpush1.xpose.msra.mxu0 0.0
    %1017 = vmatprep.subr.mxu0 0.0
    %1018 = vmatpush1.xpose.msra.mxu0 0.0
    %1019 = vmatprep.subr.mxu0 0.0
    %1020 = vmatpush1.xpose.msra.mxu0 0.0
    %1021 = vmatprep.subr.mxu0 0.0
    %1022 = vmatpush1.xpose.msra.mxu0 0.0
    %1023 = vmatprep.subr.mxu0 0.0
    %1024 = vmatpush1.xpose.msra.mxu0 0.0
    %1025 = vmatprep.subr.mxu0 0.0
    %1026 = vmatpush1.xpose.msra.mxu0 0.0
    %1027 = vmatprep.subr.mxu0 0.0
    %1028 = vmatpush1.xpose.msra.mxu0 0.0
    %1029 = vmatprep.subr.mxu0 0.0
    %1030 = vmatpush1.xpose.msra.mxu0 0.0
    %1031 = vmatprep.subr.mxu0 0.0
    %1032 = vmatpush1.xpose.msra.mxu0 0.0
    %1033 = vmatprep.subr.mxu0 0.0
    %1034 = vmatpush1.xpose.msra.mxu0 0.0
    %1035 = vmatprep.subr.mxu0 0.0
    %1036 = vmatpush1.xpose.msra.mxu0 0.0
    %1037 = vmatprep.subr.mxu0 0.0
    %1038 = vmatpush1.xpose.msra.mxu0 0.0
    %1039 = vmatprep.subr.mxu0 0.0
    %1040 = vmatpush1.xpose.msra.mxu0 0.0
    %1041 = vmatprep.subr.mxu0 0.0
    %1042 = vmatpush1.xpose.msra.mxu0 0.0
    %1043 = vmatprep.mubr.f32.mxu0 0.0
    %1044 = vmatmul.mubr.f32.gmra.mrb[0].mxu0 %v971
    %v1045 = vpop.f32.mrb[0].mxu0
    %v1046 = vadd.f32 0.0, %v1045
    %v1047 = vpop.f32.mrb[0].mxu0
    %1048 = vmatprep.mubr.f32.mxu0 0.0
    %1049 = vmatmul.mubr.f32.gmra.mrb[0].mxu0 %v973
    %v1050 = vpop.f32.mrb[0].mxu0
    %v1051 = vadd.f32 0.0, %v1050
    %v1052 = vpop.f32.mrb[0].mxu0
    %1053 = vdwg.mxu0
    %1054 = vrot.lane.b32.xlu0 %v262, 96
    %v1055 = vpop.permute.xlu0 %1054
    %1056 = vrot.lane.b32.xlu0 %v264, 96
    %v1057 = vpop.permute.xlu0 %1056
    %v1058 = vsel %vm361, %v262, 0
    %v1060 = vsel %vm361, %v264, 0
    %v1062 = vsel %vm361, %v1055, 0
    %v1064 = vsel %vm361, %v1057, 0
    %1066 = vmatprep.subr.mxu0 0.0
    %1067 = vmatpush1.xpose.msra.mxu0 %v1062
    %1068 = vmatprep.subr.mxu0 0.0
    %1069 = vmatpush1.xpose.msra.mxu0 %v1064
    %1070 = vmatprep.subr.mxu0 0.0
    %1071 = vmatpush1.xpose.msra.mxu0 0.0
    %1072 = vmatprep.subr.mxu0 0.0
    %1073 = vmatpush1.xpose.msra.mxu0 0.0
    %1074 = vmatprep.subr.mxu0 0.0
    %1075 = vmatpush1.xpose.msra.mxu0 0.0
    %1076 = vmatprep.subr.mxu0 0.0
    %1077 = vmatpush1.xpose.msra.mxu0 0.0
    %1078 = vmatprep.subr.mxu0 0.0
    %1079 = vmatpush1.xpose.msra.mxu0 0.0
    %1080 = vmatprep.subr.mxu0 0.0
    %1081 = vmatpush1.xpose.msra.mxu0 0.0
    %1082 = vmatprep.subr.mxu0 0.0
    %1083 = vmatpush1.xpose.msra.mxu0 0.0
    %1084 = vmatprep.subr.mxu0 0.0
    %1085 = vmatpush1.xpose.msra.mxu0 0.0
    %1086 = vmatprep.subr.mxu0 0.0
    %1087 = vmatpush1.xpose.msra.mxu0 0.0
    %1088 = vmatprep.subr.mxu0 0.0
    %1089 = vmatpush1.xpose.msra.mxu0 0.0
    %1090 = vmatprep.subr.mxu0 0.0
    %1091 = vmatpush1.xpose.msra.mxu0 0.0
    %1092 = vmatprep.subr.mxu0 0.0
    %1093 = vmatpush1.xpose.msra.mxu0 0.0
    %1094 = vmatprep.subr.mxu0 0.0
    %1095 = vmatpush1.xpose.msra.mxu0 0.0
    %1096 = vmatprep.subr.mxu0 0.0
    %1097 = vmatpush1.xpose.msra.mxu0 0.0
    %1098 = vmatprep.subr.mxu0 0.0
    %1099 = vmatpush1.xpose.msra.mxu0 0.0
    %1100 = vmatprep.subr.mxu0 0.0
    %1101 = vmatpush1.xpose.msra.mxu0 0.0
    %1102 = vmatprep.subr.mxu0 0.0
    %1103 = vmatpush1.xpose.msra.mxu0 0.0
    %1104 = vmatprep.subr.mxu0 0.0
    %1105 = vmatpush1.xpose.msra.mxu0 0.0
    %1106 = vmatprep.subr.mxu0 0.0
    %1107 = vmatpush1.xpose.msra.mxu0 0.0
    %1108 = vmatprep.subr.mxu0 0.0
    %1109 = vmatpush1.xpose.msra.mxu0 0.0
    %1110 = vmatprep.subr.mxu0 0.0
    %1111 = vmatpush1.xpose.msra.mxu0 0.0
    %1112 = vmatprep.subr.mxu0 0.0
    %1113 = vmatpush1.xpose.msra.mxu0 0.0
    %1114 = vmatprep.subr.mxu0 0.0
    %1115 = vmatpush1.xpose.msra.mxu0 0.0
    %1116 = vmatprep.subr.mxu0 0.0
    %1117 = vmatpush1.xpose.msra.mxu0 0.0
    %1118 = vmatprep.subr.mxu0 0.0
    %1119 = vmatpush1.xpose.msra.mxu0 0.0
    %1120 = vmatprep.subr.mxu0 0.0
    %1121 = vmatpush1.xpose.msra.mxu0 0.0
    %1122 = vmatprep.subr.mxu0 0.0
    %1123 = vmatpush1.xpose.msra.mxu0 0.0
    %1124 = vmatprep.subr.mxu0 0.0
    %1125 = vmatpush1.xpose.msra.mxu0 0.0
    %1126 = vmatprep.subr.mxu0 0.0
    %1127 = vmatpush1.xpose.msra.mxu0 0.0
    %1128 = vmatprep.subr.mxu0 0.0
    %1129 = vmatpush1.xpose.msra.mxu0 0.0
    %1130 = vmatprep.mubr.f32.mxu0 0.0
    %1131 = vmatmul.mubr.f32.gmra.mrb[0].mxu0 %v1058
    %v1132 = vpop.f32.mrb[0].mxu0
    %v1133 = vadd.f32 0.0, %v1132
    %v1134 = vpop.f32.mrb[0].mxu0
    %1135 = vmatprep.mubr.f32.mxu0 0.0
    %1136 = vmatmul.mubr.f32.gmra.mrb[0].mxu0 %v1060
    %v1137 = vpop.f32.mrb[0].mxu0
    %v1138 = vadd.f32 0.0, %v1137
    %v1139 = vpop.f32.mrb[0].mxu0
    %1140 = vdwg.mxu0
    %1141 = vrot.lane.b32.xlu0 %v266, 96
    %v1142 = vpop.permute.xlu0 %1141
    %1143 = vrot.lane.b32.xlu0 %v268, 96
    %v1144 = vpop.permute.xlu0 %1143
    %v1145 = vsel %vm361, %v266, 0
    %v1147 = vsel %vm361, %v268, 0
    %v1149 = vsel %vm361, %v1142, 0
    %v1151 = vsel %vm361, %v1144, 0
    %1153 = vmatprep.subr.mxu0 0.0
    %1154 = vmatpush1.xpose.msra.mxu0 %v1149
    %1155 = vmatprep.subr.mxu0 0.0
    %1156 = vmatpush1.xpose.msra.mxu0 %v1151
    %1157 = vmatprep.subr.mxu0 0.0
    %1158 = vmatpush1.xpose.msra.mxu0 0.0
    %1159 = vmatprep.subr.mxu0 0.0
    %1160 = vmatpush1.xpose.msra.mxu0 0.0
    %1161 = vmatprep.subr.mxu0 0.0
    %1162 = vmatpush1.xpose.msra.mxu0 0.0
    %1163 = vmatprep.subr.mxu0 0.0
    %1164 = vmatpush1.xpose.msra.mxu0 0.0
    %1165 = vmatprep.subr.mxu0 0.0
    %1166 = vmatpush1.xpose.msra.mxu0 0.0
    %1167 = vmatprep.subr.mxu0 0.0
    %1168 = vmatpush1.xpose.msra.mxu0 0.0
    %1169 = vmatprep.subr.mxu0 0.0
    %1170 = vmatpush1.xpose.msra.mxu0 0.0
    %1171 = vmatprep.subr.mxu0 0.0
    %1172 = vmatpush1.xpose.msra.mxu0 0.0
    %1173 = vmatprep.subr.mxu0 0.0
    %1174 = vmatpush1.xpose.msra.mxu0 0.0
    %1175 = vmatprep.subr.mxu0 0.0
    %1176 = vmatpush1.xpose.msra.mxu0 0.0
    %1177 = vmatprep.subr.mxu0 0.0
    %1178 = vmatpush1.xpose.msra.mxu0 0.0
    %1179 = vmatprep.subr.mxu0 0.0
    %1180 = vmatpush1.xpose.msra.mxu0 0.0
    %1181 = vmatprep.subr.mxu0 0.0
    %1182 = vmatpush1.xpose.msra.mxu0 0.0
    %1183 = vmatprep.subr.mxu0 0.0
    %1184 = vmatpush1.xpose.msra.mxu0 0.0
    %1185 = vmatprep.subr.mxu0 0.0
    %1186 = vmatpush1.xpose.msra.mxu0 0.0
    %1187 = vmatprep.subr.mxu0 0.0
    %1188 = vmatpush1.xpose.msra.mxu0 0.0
    %1189 = vmatprep.subr.mxu0 0.0
    %1190 = vmatpush1.xpose.msra.mxu0 0.0
    %1191 = vmatprep.subr.mxu0 0.0
    %1192 = vmatpush1.xpose.msra.mxu0 0.0
    %1193 = vmatprep.subr.mxu0 0.0
    %1194 = vmatpush1.xpose.msra.mxu0 0.0
    %1195 = vmatprep.subr.mxu0 0.0
    %1196 = vmatpush1.xpose.msra.mxu0 0.0
    %1197 = vmatprep.subr.mxu0 0.0
    %1198 = vmatpush1.xpose.msra.mxu0 0.0
    %1199 = vmatprep.subr.mxu0 0.0
    %1200 = vmatpush1.xpose.msra.mxu0 0.0
    %1201 = vmatprep.subr.mxu0 0.0
    %1202 = vmatpush1.xpose.msra.mxu0 0.0
    %1203 = vmatprep.subr.mxu0 0.0
    %1204 = vmatpush1.xpose.msra.mxu0 0.0
    %1205 = vmatprep.subr.mxu0 0.0
    %1206 = vmatpush1.xpose.msra.mxu0 0.0
    %1207 = vmatprep.subr.mxu0 0.0
    %1208 = vmatpush1.xpose.msra.mxu0 0.0
    %1209 = vmatprep.subr.mxu0 0.0
    %1210 = vmatpush1.xpose.msra.mxu0 0.0
    %1211 = vmatprep.subr.mxu0 0.0
    %1212 = vmatpush1.xpose.msra.mxu0 0.0
    %1213 = vmatprep.subr.mxu0 0.0
    %1214 = vmatpush1.xpose.msra.mxu0 0.0
    %1215 = vmatprep.subr.mxu0 0.0
    %1216 = vmatpush1.xpose.msra.mxu0 0.0
    %1217 = vmatprep.mubr.f32.mxu0 0.0
    %1218 = vmatmul.mubr.f32.gmra.mrb[0].mxu0 %v1145
    %v1219 = vpop.f32.mrb[0].mxu0
    %v1220 = vadd.f32 0.0, %v1219
    %v1221 = vpop.f32.mrb[0].mxu0
    %1222 = vmatprep.mubr.f32.mxu0 0.0
    %1223 = vmatmul.mubr.f32.gmra.mrb[0].mxu0 %v1147
    %v1224 = vpop.f32.mrb[0].mxu0
    %v1225 = vadd.f32 0.0, %v1224
    %v1226 = vpop.f32.mrb[0].mxu0
    %1227 = vdwg.mxu0
    %1228 = vrot.lane.b32.xlu0 %v270, 96
    %v1229 = vpop.permute.xlu0 %1228
    %1230 = vrot.lane.b32.xlu0 %v272, 96
    %v1231 = vpop.permute.xlu0 %1230
    %v1232 = vsel %vm361, %v270, 0
    %v1234 = vsel %vm361, %v272, 0
    %v1236 = vsel %vm361, %v1229, 0
    %v1238 = vsel %vm361, %v1231, 0
    %1240 = vmatprep.subr.mxu0 0.0
    %1241 = vmatpush1.xpose.msra.mxu0 %v1236
    %1242 = vmatprep.subr.mxu0 0.0
    %1243 = vmatpush1.xpose.msra.mxu0 %v1238
    %1244 = vmatprep.subr.mxu0 0.0
    %1245 = vmatpush1.xpose.msra.mxu0 0.0
    %1246 = vmatprep.subr.mxu0 0.0
    %1247 = vmatpush1.xpose.msra.mxu0 0.0
    %1248 = vmatprep.subr.mxu0 0.0
    %1249 = vmatpush1.xpose.msra.mxu0 0.0
    %1250 = vmatprep.subr.mxu0 0.0
    %1251 = vmatpush1.xpose.msra.mxu0 0.0
    %1252 = vmatprep.subr.mxu0 0.0
    %1253 = vmatpush1.xpose.msra.mxu0 0.0
    %1254 = vmatprep.subr.mxu0 0.0
    %1255 = vmatpush1.xpose.msra.mxu0 0.0
    %1256 = vmatprep.subr.mxu0 0.0
    %1257 = vmatpush1.xpose.msra.mxu0 0.0
    %1258 = vmatprep.subr.mxu0 0.0
    %1259 = vmatpush1.xpose.msra.mxu0 0.0
    %1260 = vmatprep.subr.mxu0 0.0
    %1261 = vmatpush1.xpose.msra.mxu0 0.0
    %1262 = vmatprep.subr.mxu0 0.0
    %1263 = vmatpush1.xpose.msra.mxu0 0.0
    %1264 = vmatprep.subr.mxu0 0.0
    %1265 = vmatpush1.xpose.msra.mxu0 0.0
    %1266 = vmatprep.subr.mxu0 0.0
    %1267 = vmatpush1.xpose.msra.mxu0 0.0
    %1268 = vmatprep.subr.mxu0 0.0
    %1269 = vmatpush1.xpose.msra.mxu0 0.0
    %1270 = vmatprep.subr.mxu0 0.0
    %1271 = vmatpush1.xpose.msra.mxu0 0.0
    %1272 = vmatprep.subr.mxu0 0.0
    %1273 = vmatpush1.xpose.msra.mxu0 0.0
    %1274 = vmatprep.subr.mxu0 0.0
    %1275 = vmatpush1.xpose.msra.mxu0 0.0
    %1276 = vmatprep.subr.mxu0 0.0
    %1277 = vmatpush1.xpose.msra.mxu0 0.0
    %1278 = vmatprep.subr.mxu0 0.0
    %1279 = vmatpush1.xpose.msra.mxu0 0.0
    %1280 = vmatprep.subr.mxu0 0.0
    %1281 = vmatpush1.xpose.msra.mxu0 0.0
    %1282 = vmatprep.subr.mxu0 0.0
    %1283 = vmatpush1.xpose.msra.mxu0 0.0
    %1284 = vmatprep.subr.mxu0 0.0
    %1285 = vmatpush1.xpose.msra.mxu0 0.0
    %1286 = vmatprep.subr.mxu0 0.0
    %1287 = vmatpush1.xpose.msra.mxu0 0.0
    %1288 = vmatprep.subr.mxu0 0.0
    %1289 = vmatpush1.xpose.msra.mxu0 0.0
    %1290 = vmatprep.subr.mxu0 0.0
    %1291 = vmatpush1.xpose.msra.mxu0 0.0
    %1292 = vmatprep.subr.mxu0 0.0
    %1293 = vmatpush1.xpose.msra.mxu0 0.0
    %1294 = vmatprep.subr.mxu0 0.0
    %1295 = vmatpush1.xpose.msra.mxu0 0.0
    %1296 = vmatprep.subr.mxu0 0.0
    %1297 = vmatpush1.xpose.msra.mxu0 0.0
    %1298 = vmatprep.subr.mxu0 0.0
    %1299 = vmatpush1.xpose.msra.mxu0 0.0
    %1300 = vmatprep.subr.mxu0 0.0
    %1301 = vmatpush1.xpose.msra.mxu0 0.0
    %1302 = vmatprep.subr.mxu0 0.0
    %1303 = vmatpush1.xpose.msra.mxu0 0.0
    %1304 = vmatprep.mubr.f32.mxu0 0.0
    %1305 = vmatmul.mubr.f32.gmra.mrb[0].mxu0 %v1232
    %v1306 = vpop.f32.mrb[0].mxu0
    %v1307 = vadd.f32 0.0, %v1306
    %v1308 = vpop.f32.mrb[0].mxu0
    %1309 = vmatprep.mubr.f32.mxu0 0.0
    %1310 = vmatmul.mubr.f32.gmra.mrb[0].mxu0 %v1234
    %v1311 = vpop.f32.mrb[0].mxu0
    %v1312 = vadd.f32 0.0, %v1311
    %v1313 = vpop.f32.mrb[0].mxu0
    %1314 = vdwg.mxu0
    %1315 = vrot.lane.b32.xlu0 %v274, 96
    %v1316 = vpop.permute.xlu0 %1315
    %1317 = vrot.lane.b32.xlu0 %v276, 96
    %v1318 = vpop.permute.xlu0 %1317
    %v1319 = vsel %vm361, %v274, 0
    %v1321 = vsel %vm361, %v276, 0
    %v1323 = vsel %vm361, %v1316, 0
    %v1325 = vsel %vm361, %v1318, 0
    %1327 = vmatprep.subr.mxu0 0.0
    %1328 = vmatpush1.xpose.msra.mxu0 %v1323
    %1329 = vmatprep.subr.mxu0 0.0
    %1330 = vmatpush1.xpose.msra.mxu0 %v1325
    %1331 = vmatprep.subr.mxu0 0.0
    %1332 = vmatpush1.xpose.msra.mxu0 0.0
    %1333 = vmatprep.subr.mxu0 0.0
    %1334 = vmatpush1.xpose.msra.mxu0 0.0
    %1335 = vmatprep.subr.mxu0 0.0
    %1336 = vmatpush1.xpose.msra.mxu0 0.0
    %1337 = vmatprep.subr.mxu0 0.0
    %1338 = vmatpush1.xpose.msra.mxu0 0.0
    %1339 = vmatprep.subr.mxu0 0.0
    %1340 = vmatpush1.xpose.msra.mxu0 0.0
    %1341 = vmatprep.subr.mxu0 0.0
    %1342 = vmatpush1.xpose.msra.mxu0 0.0
    %1343 = vmatprep.subr.mxu0 0.0
    %1344 = vmatpush1.xpose.msra.mxu0 0.0
    %1345 = vmatprep.subr.mxu0 0.0
    %1346 = vmatpush1.xpose.msra.mxu0 0.0
    %1347 = vmatprep.subr.mxu0 0.0
    %1348 = vmatpush1.xpose.msra.mxu0 0.0
    %1349 = vmatprep.subr.mxu0 0.0
    %1350 = vmatpush1.xpose.msra.mxu0 0.0
    %1351 = vmatprep.subr.mxu0 0.0
    %1352 = vmatpush1.xpose.msra.mxu0 0.0
    %1353 = vmatprep.subr.mxu0 0.0
    %1354 = vmatpush1.xpose.msra.mxu0 0.0
    %1355 = vmatprep.subr.mxu0 0.0
    %1356 = vmatpush1.xpose.msra.mxu0 0.0
    %1357 = vmatprep.subr.mxu0 0.0
    %1358 = vmatpush1.xpose.msra.mxu0 0.0
    %1359 = vmatprep.subr.mxu0 0.0
    %1360 = vmatpush1.xpose.msra.mxu0 0.0
    %1361 = vmatprep.subr.mxu0 0.0
    %1362 = vmatpush1.xpose.msra.mxu0 0.0
    %1363 = vmatprep.subr.mxu0 0.0
    %1364 = vmatpush1.xpose.msra.mxu0 0.0
    %1365 = vmatprep.subr.mxu0 0.0
    %1366 = vmatpush1.xpose.msra.mxu0 0.0
    %1367 = vmatprep.subr.mxu0 0.0
    %1368 = vmatpush1.xpose.msra.mxu0 0.0
    %1369 = vmatprep.subr.mxu0 0.0
    %1370 = vmatpush1.xpose.msra.mxu0 0.0
    %1371 = vmatprep.subr.mxu0 0.0
    %1372 = vmatpush1.xpose.msra.mxu0 0.0
    %1373 = vmatprep.subr.mxu0 0.0
    %1374 = vmatpush1.xpose.msra.mxu0 0.0
    %1375 = vmatprep.subr.mxu0 0.0
    %1376 = vmatpush1.xpose.msra.mxu0 0.0
    %1377 = vmatprep.subr.mxu0 0.0
    %1378 = vmatpush1.xpose.msra.mxu0 0.0
    %1379 = vmatprep.subr.mxu0 0.0
    %1380 = vmatpush1.xpose.msra.mxu0 0.0
    %1381 = vmatprep.subr.mxu0 0.0
    %1382 = vmatpush1.xpose.msra.mxu0 0.0
    %1383 = vmatprep.subr.mxu0 0.0
    %1384 = vmatpush1.xpose.msra.mxu0 0.0
    %1385 = vmatprep.subr.mxu0 0.0
    %1386 = vmatpush1.xpose.msra.mxu0 0.0
    %1387 = vmatprep.subr.mxu0 0.0
    %1388 = vmatpush1.xpose.msra.mxu0 0.0
    %1389 = vmatprep.subr.mxu0 0.0
    %1390 = vmatpush1.xpose.msra.mxu0 0.0
    %1391 = vmatprep.mubr.f32.mxu0 0.0
    %1392 = vmatmul.mubr.f32.gmra.mrb[0].mxu0 %v1319
    %v1393 = vpop.f32.mrb[0].mxu0
    %v1394 = vadd.f32 0.0, %v1393
    %v1395 = vpop.f32.mrb[0].mxu0
    %1396 = vmatprep.mubr.f32.mxu0 0.0
    %1397 = vmatmul.mubr.f32.gmra.mrb[0].mxu0 %v1321
    %v1398 = vpop.f32.mrb[0].mxu0
    %v1399 = vadd.f32 0.0, %v1398
    %v1400 = vpop.f32.mrb[0].mxu0
    %1401 = vdwg.mxu0
    %1402 = vrot.lane.b32.xlu0 %v278, 96
    %v1403 = vpop.permute.xlu0 %1402
    %1404 = vrot.lane.b32.xlu0 %v280, 96
    %v1405 = vpop.permute.xlu0 %1404
    %v1406 = vsel %vm361, %v278, 0
    %v1408 = vsel %vm361, %v280, 0
    %v1410 = vsel %vm361, %v1403, 0
    %v1412 = vsel %vm361, %v1405, 0
    %1414 = vmatprep.subr.mxu0 0.0
    %1415 = vmatpush1.xpose.msra.mxu0 %v1410
    %1416 = vmatprep.subr.mxu0 0.0
    %1417 = vmatpush1.xpose.msra.mxu0 %v1412
    %1418 = vmatprep.subr.mxu0 0.0
    %1419 = vmatpush1.xpose.msra.mxu0 0.0
    %1420 = vmatprep.subr.mxu0 0.0
    %1421 = vmatpush1.xpose.msra.mxu0 0.0
    %1422 = vmatprep.subr.mxu0 0.0
    %1423 = vmatpush1.xpose.msra.mxu0 0.0
    %1424 = vmatprep.subr.mxu0 0.0
    %1425 = vmatpush1.xpose.msra.mxu0 0.0
    %1426 = vmatprep.subr.mxu0 0.0
    %1427 = vmatpush1.xpose.msra.mxu0 0.0
    %1428 = vmatprep.subr.mxu0 0.0
    %1429 = vmatpush1.xpose.msra.mxu0 0.0
    %1430 = vmatprep.subr.mxu0 0.0
    %1431 = vmatpush1.xpose.msra.mxu0 0.0
    %1432 = vmatprep.subr.mxu0 0.0
    %1433 = vmatpush1.xpose.msra.mxu0 0.0
    %1434 = vmatprep.subr.mxu0 0.0
    %1435 = vmatpush1.xpose.msra.mxu0 0.0
    %1436 = vmatprep.subr.mxu0 0.0
    %1437 = vmatpush1.xpose.msra.mxu0 0.0
    %1438 = vmatprep.subr.mxu0 0.0
    %1439 = vmatpush1.xpose.msra.mxu0 0.0
    %1440 = vmatprep.subr.mxu0 0.0
    %1441 = vmatpush1.xpose.msra.mxu0 0.0
    %1442 = vmatprep.subr.mxu0 0.0
    %1443 = vmatpush1.xpose.msra.mxu0 0.0
    %1444 = vmatprep.subr.mxu0 0.0
    %1445 = vmatpush1.xpose.msra.mxu0 0.0
    %1446 = vmatprep.subr.mxu0 0.0
    %1447 = vmatpush1.xpose.msra.mxu0 0.0
    %1448 = vmatprep.subr.mxu0 0.0
    %1449 = vmatpush1.xpose.msra.mxu0 0.0
    %1450 = vmatprep.subr.mxu0 0.0
    %1451 = vmatpush1.xpose.msra.mxu0 0.0
    %1452 = vmatprep.subr.mxu0 0.0
    %1453 = vmatpush1.xpose.msra.mxu0 0.0
    %1454 = vmatprep.subr.mxu0 0.0
    %1455 = vmatpush1.xpose.msra.mxu0 0.0
    %1456 = vmatprep.subr.mxu0 0.0
    %1457 = vmatpush1.xpose.msra.mxu0 0.0
    %1458 = vmatprep.subr.mxu0 0.0
    %1459 = vmatpush1.xpose.msra.mxu0 0.0
    %1460 = vmatprep.subr.mxu0 0.0
    %1461 = vmatpush1.xpose.msra.mxu0 0.0
    %1462 = vmatprep.subr.mxu0 0.0
    %1463 = vmatpush1.xpose.msra.mxu0 0.0
    %1464 = vmatprep.subr.mxu0 0.0
    %1465 = vmatpush1.xpose.msra.mxu0 0.0
    %1466 = vmatprep.subr.mxu0 0.0
    %1467 = vmatpush1.xpose.msra.mxu0 0.0
    %1468 = vmatprep.subr.mxu0 0.0
    %1469 = vmatpush1.xpose.msra.mxu0 0.0
    %1470 = vmatprep.subr.mxu0 0.0
    %1471 = vmatpush1.xpose.msra.mxu0 0.0
    %1472 = vmatprep.subr.mxu0 0.0
    %1473 = vmatpush1.xpose.msra.mxu0 0.0
    %1474 = vmatprep.subr.mxu0 0.0
    %1475 = vmatpush1.xpose.msra.mxu0 0.0
    %1476 = vmatprep.subr.mxu0 0.0
    %1477 = vmatpush1.xpose.msra.mxu0 0.0
    %1478 = vmatprep.mubr.f32.mxu0 0.0
    %1479 = vmatmul.mubr.f32.gmra.mrb[0].mxu0 %v1406
    %v1480 = vpop.f32.mrb[0].mxu0
    %v1481 = vadd.f32 0.0, %v1480
    %v1482 = vpop.f32.mrb[0].mxu0
    %1483 = vmatprep.mubr.f32.mxu0 0.0
    %1484 = vmatmul.mubr.f32.gmra.mrb[0].mxu0 %v1408
    %v1485 = vpop.f32.mrb[0].mxu0
    %v1486 = vadd.f32 0.0, %v1485
    %v1487 = vpop.f32.mrb[0].mxu0
    %1488 = vdwg.mxu0
    %1489 = vrot.lane.b32.xlu0 %v282, 96
    %v1490 = vpop.permute.xlu0 %1489
    %1491 = vrot.lane.b32.xlu0 %v284, 96
    %v1492 = vpop.permute.xlu0 %1491
    %v1493 = vsel %vm361, %v282, 0
    %v1495 = vsel %vm361, %v284, 0
    %v1497 = vsel %vm361, %v1490, 0
    %v1499 = vsel %vm361, %v1492, 0
    %1501 = vmatprep.subr.mxu0 0.0
    %1502 = vmatpush1.xpose.msra.mxu0 %v1497
    %1503 = vmatprep.subr.mxu0 0.0
    %1504 = vmatpush1.xpose.msra.mxu0 %v1499
    %1505 = vmatprep.subr.mxu0 0.0
    %1506 = vmatpush1.xpose.msra.mxu0 0.0
    %1507 = vmatprep.subr.mxu0 0.0
    %1508 = vmatpush1.xpose.msra.mxu0 0.0
    %1509 = vmatprep.subr.mxu0 0.0
    %1510 = vmatpush1.xpose.msra.mxu0 0.0
    %1511 = vmatprep.subr.mxu0 0.0
    %1512 = vmatpush1.xpose.msra.mxu0 0.0
    %1513 = vmatprep.subr.mxu0 0.0
    %1514 = vmatpush1.xpose.msra.mxu0 0.0
    %1515 = vmatprep.subr.mxu0 0.0
    %1516 = vmatpush1.xpose.msra.mxu0 0.0
    %1517 = vmatprep.subr.mxu0 0.0
    %1518 = vmatpush1.xpose.msra.mxu0 0.0
    %1519 = vmatprep.subr.mxu0 0.0
    %1520 = vmatpush1.xpose.msra.mxu0 0.0
    %1521 = vmatprep.subr.mxu0 0.0
    %1522 = vmatpush1.xpose.msra.mxu0 0.0
    %1523 = vmatprep.subr.mxu0 0.0
    %1524 = vmatpush1.xpose.msra.mxu0 0.0
    %1525 = vmatprep.subr.mxu0 0.0
    %1526 = vmatpush1.xpose.msra.mxu0 0.0
    %1527 = vmatprep.subr.mxu0 0.0
    %1528 = vmatpush1.xpose.msra.mxu0 0.0
    %1529 = vmatprep.subr.mxu0 0.0
    %1530 = vmatpush1.xpose.msra.mxu0 0.0
    %1531 = vmatprep.subr.mxu0 0.0
    %1532 = vmatpush1.xpose.msra.mxu0 0.0
    %1533 = vmatprep.subr.mxu0 0.0
    %1534 = vmatpush1.xpose.msra.mxu0 0.0
    %1535 = vmatprep.subr.mxu0 0.0
    %1536 = vmatpush1.xpose.msra.mxu0 0.0
    %1537 = vmatprep.subr.mxu0 0.0
    %1538 = vmatpush1.xpose.msra.mxu0 0.0
    %1539 = vmatprep.subr.mxu0 0.0
    %1540 = vmatpush1.xpose.msra.mxu0 0.0
    %1541 = vmatprep.subr.mxu0 0.0
    %1542 = vmatpush1.xpose.msra.mxu0 0.0
    %1543 = vmatprep.subr.mxu0 0.0
    %1544 = vmatpush1.xpose.msra.mxu0 0.0
    %1545 = vmatprep.subr.mxu0 0.0
    %1546 = vmatpush1.xpose.msra.mxu0 0.0
    %1547 = vmatprep.subr.mxu0 0.0
    %1548 = vmatpush1.xpose.msra.mxu0 0.0
    %1549 = vmatprep.subr.mxu0 0.0
    %1550 = vmatpush1.xpose.msra.mxu0 0.0
    %1551 = vmatprep.subr.mxu0 0.0
    %1552 = vmatpush1.xpose.msra.mxu0 0.0
    %1553 = vmatprep.subr.mxu0 0.0
    %1554 = vmatpush1.xpose.msra.mxu0 0.0
    %1555 = vmatprep.subr.mxu0 0.0
    %1556 = vmatpush1.xpose.msra.mxu0 0.0
    %1557 = vmatprep.subr.mxu0 0.0
    %1558 = vmatpush1.xpose.msra.mxu0 0.0
    %1559 = vmatprep.subr.mxu0 0.0
    %1560 = vmatpush1.xpose.msra.mxu0 0.0
    %1561 = vmatprep.subr.mxu0 0.0
    %1562 = vmatpush1.xpose.msra.mxu0 0.0
    %1563 = vmatprep.subr.mxu0 0.0
    %1564 = vmatpush1.xpose.msra.mxu0 0.0
    %1565 = vmatprep.mubr.f32.mxu0 0.0
    %1566 = vmatmul.mubr.f32.gmra.mrb[0].mxu0 %v1493
    %v1567 = vpop.f32.mrb[0].mxu0
    %v1568 = vadd.f32 0.0, %v1567
    %v1569 = vpop.f32.mrb[0].mxu0
    %1570 = vmatprep.mubr.f32.mxu0 0.0
    %1571 = vmatmul.mubr.f32.gmra.mrb[0].mxu0 %v1495
    %v1572 = vpop.f32.mrb[0].mxu0
    %v1573 = vadd.f32 0.0, %v1572
    %v1574 = vpop.f32.mrb[0].mxu0
    %1575 = vdwg.mxu0
    %1576 = vrot.lane.b32.xlu0 %v286, 96
    %v1577 = vpop.permute.xlu0 %1576
    %1578 = vrot.lane.b32.xlu0 %v288, 96
    %v1579 = vpop.permute.xlu0 %1578
    %v1580 = vsel %vm361, %v286, 0
    %v1582 = vsel %vm361, %v288, 0
    %v1584 = vsel %vm361, %v1577, 0
    %v1586 = vsel %vm361, %v1579, 0
    %1588 = vmatprep.subr.mxu0 0.0
    %1589 = vmatpush1.xpose.msra.mxu0 %v1584
    %1590 = vmatprep.subr.mxu0 0.0
    %1591 = vmatpush1.xpose.msra.mxu0 %v1586
    %1592 = vmatprep.subr.mxu0 0.0
    %1593 = vmatpush1.xpose.msra.mxu0 0.0
    %1594 = vmatprep.subr.mxu0 0.0
    %1595 = vmatpush1.xpose.msra.mxu0 0.0
    %1596 = vmatprep.subr.mxu0 0.0
    %1597 = vmatpush1.xpose.msra.mxu0 0.0
    %1598 = vmatprep.subr.mxu0 0.0
    %1599 = vmatpush1.xpose.msra.mxu0 0.0
    %1600 = vmatprep.subr.mxu0 0.0
    %1601 = vmatpush1.xpose.msra.mxu0 0.0
    %1602 = vmatprep.subr.mxu0 0.0
    %1603 = vmatpush1.xpose.msra.mxu0 0.0
    %1604 = vmatprep.subr.mxu0 0.0
    %1605 = vmatpush1.xpose.msra.mxu0 0.0
    %1606 = vmatprep.subr.mxu0 0.0
    %1607 = vmatpush1.xpose.msra.mxu0 0.0
    %1608 = vmatprep.subr.mxu0 0.0
    %1609 = vmatpush1.xpose.msra.mxu0 0.0
    %1610 = vmatprep.subr.mxu0 0.0
    %1611 = vmatpush1.xpose.msra.mxu0 0.0
    %1612 = vmatprep.subr.mxu0 0.0
    %1613 = vmatpush1.xpose.msra.mxu0 0.0
    %1614 = vmatprep.subr.mxu0 0.0
    %1615 = vmatpush1.xpose.msra.mxu0 0.0
    %1616 = vmatprep.subr.mxu0 0.0
    %1617 = vmatpush1.xpose.msra.mxu0 0.0
    %1618 = vmatprep.subr.mxu0 0.0
    %1619 = vmatpush1.xpose.msra.mxu0 0.0
    %1620 = vmatprep.subr.mxu0 0.0
    %1621 = vmatpush1.xpose.msra.mxu0 0.0
    %1622 = vmatprep.subr.mxu0 0.0
    %1623 = vmatpush1.xpose.msra.mxu0 0.0
    %1624 = vmatprep.subr.mxu0 0.0
    %1625 = vmatpush1.xpose.msra.mxu0 0.0
    %1626 = vmatprep.subr.mxu0 0.0
    %1627 = vmatpush1.xpose.msra.mxu0 0.0
    %1628 = vmatprep.subr.mxu0 0.0
    %1629 = vmatpush1.xpose.msra.mxu0 0.0
    %1630 = vmatprep.subr.mxu0 0.0
    %1631 = vmatpush1.xpose.msra.mxu0 0.0
    %1632 = vmatprep.subr.mxu0 0.0
    %1633 = vmatpush1.xpose.msra.mxu0 0.0
    %1634 = vmatprep.subr.mxu0 0.0
    %1635 = vmatpush1.xpose.msra.mxu0 0.0
    %1636 = vmatprep.subr.mxu0 0.0
    %1637 = vmatpush1.xpose.msra.mxu0 0.0
    %1638 = vmatprep.subr.mxu0 0.0
    %1639 = vmatpush1.xpose.msra.mxu0 0.0
    %1640 = vmatprep.subr.mxu0 0.0
    %1641 = vmatpush1.xpose.msra.mxu0 0.0
    %1642 = vmatprep.subr.mxu0 0.0
    %1643 = vmatpush1.xpose.msra.mxu0 0.0
    %1644 = vmatprep.subr.mxu0 0.0
    %1645 = vmatpush1.xpose.msra.mxu0 0.0
    %1646 = vmatprep.subr.mxu0 0.0
    %1647 = vmatpush1.xpose.msra.mxu0 0.0
    %1648 = vmatprep.subr.mxu0 0.0
    %1649 = vmatpush1.xpose.msra.mxu0 0.0
    %1650 = vmatprep.subr.mxu0 0.0
    %1651 = vmatpush1.xpose.msra.mxu0 0.0
    %1652 = vmatprep.mubr.f32.mxu0 0.0
    %1653 = vmatmul.mubr.f32.gmra.mrb[0].mxu0 %v1580
    %v1654 = vpop.f32.mrb[0].mxu0
    %v1655 = vadd.f32 0.0, %v1654
    %v1656 = vpop.f32.mrb[0].mxu0
    %1657 = vmatprep.mubr.f32.mxu0 0.0
    %1658 = vmatmul.mubr.f32.gmra.mrb[0].mxu0 %v1582
    %v1659 = vpop.f32.mrb[0].mxu0
    %v1660 = vadd.f32 0.0, %v1659
    %v1661 = vpop.f32.mrb[0].mxu0
    %1662 = vdwg.mxu0
    %1663 = vrot.lane.b32.xlu0 %v290, 96
    %v1664 = vpop.permute.xlu0 %1663
    %1665 = vrot.lane.b32.xlu0 %v292, 96
    %v1666 = vpop.permute.xlu0 %1665
    %v1667 = vsel %vm361, %v290, 0
    %v1669 = vsel %vm361, %v292, 0
    %v1671 = vsel %vm361, %v1664, 0
    %v1673 = vsel %vm361, %v1666, 0
    %1675 = vmatprep.subr.mxu0 0.0
    %1676 = vmatpush1.xpose.msra.mxu0 %v1671
    %1677 = vmatprep.subr.mxu0 0.0
    %1678 = vmatpush1.xpose.msra.mxu0 %v1673
    %1679 = vmatprep.subr.mxu0 0.0
    %1680 = vmatpush1.xpose.msra.mxu0 0.0
    %1681 = vmatprep.subr.mxu0 0.0
    %1682 = vmatpush1.xpose.msra.mxu0 0.0
    %1683 = vmatprep.subr.mxu0 0.0
    %1684 = vmatpush1.xpose.msra.mxu0 0.0
    %1685 = vmatprep.subr.mxu0 0.0
    %1686 = vmatpush1.xpose.msra.mxu0 0.0
    %1687 = vmatprep.subr.mxu0 0.0
    %1688 = vmatpush1.xpose.msra.mxu0 0.0
    %1689 = vmatprep.subr.mxu0 0.0
    %1690 = vmatpush1.xpose.msra.mxu0 0.0
    %1691 = vmatprep.subr.mxu0 0.0
    %1692 = vmatpush1.xpose.msra.mxu0 0.0
    %1693 = vmatprep.subr.mxu0 0.0
    %1694 = vmatpush1.xpose.msra.mxu0 0.0
    %1695 = vmatprep.subr.mxu0 0.0
    %1696 = vmatpush1.xpose.msra.mxu0 0.0
    %1697 = vmatprep.subr.mxu0 0.0
    %1698 = vmatpush1.xpose.msra.mxu0 0.0
    %1699 = vmatprep.subr.mxu0 0.0
    %1700 = vmatpush1.xpose.msra.mxu0 0.0
    %1701 = vmatprep.subr.mxu0 0.0
    %1702 = vmatpush1.xpose.msra.mxu0 0.0
    %1703 = vmatprep.subr.mxu0 0.0
    %1704 = vmatpush1.xpose.msra.mxu0 0.0
    %1705 = vmatprep.subr.mxu0 0.0
    %1706 = vmatpush1.xpose.msra.mxu0 0.0
    %1707 = vmatprep.subr.mxu0 0.0
    %1708 = vmatpush1.xpose.msra.mxu0 0.0
    %1709 = vmatprep.subr.mxu0 0.0
    %1710 = vmatpush1.xpose.msra.mxu0 0.0
    %1711 = vmatprep.subr.mxu0 0.0
    %1712 = vmatpush1.xpose.msra.mxu0 0.0
    %1713 = vmatprep.subr.mxu0 0.0
    %1714 = vmatpush1.xpose.msra.mxu0 0.0
    %1715 = vmatprep.subr.mxu0 0.0
    %1716 = vmatpush1.xpose.msra.mxu0 0.0
    %1717 = vmatprep.subr.mxu0 0.0
    %1718 = vmatpush1.xpose.msra.mxu0 0.0
    %1719 = vmatprep.subr.mxu0 0.0
    %1720 = vmatpush1.xpose.msra.mxu0 0.0
    %1721 = vmatprep.subr.mxu0 0.0
    %1722 = vmatpush1.xpose.msra.mxu0 0.0
    %1723 = vmatprep.subr.mxu0 0.0
    %1724 = vmatpush1.xpose.msra.mxu0 0.0
    %1725 = vmatprep.subr.mxu0 0.0
    %1726 = vmatpush1.xpose.msra.mxu0 0.0
    %1727 = vmatprep.subr.mxu0 0.0
    %1728 = vmatpush1.xpose.msra.mxu0 0.0
    %1729 = vmatprep.subr.mxu0 0.0
    %1730 = vmatpush1.xpose.msra.mxu0 0.0
    %1731 = vmatprep.subr.mxu0 0.0
    %1732 = vmatpush1.xpose.msra.mxu0 0.0
    %1733 = vmatprep.subr.mxu0 0.0
    %1734 = vmatpush1.xpose.msra.mxu0 0.0
    %1735 = vmatprep.subr.mxu0 0.0
    %1736 = vmatpush1.xpose.msra.mxu0 0.0
    %1737 = vmatprep.subr.mxu0 0.0
    %1738 = vmatpush1.xpose.msra.mxu0 0.0
    %1739 = vmatprep.mubr.f32.mxu0 0.0
    %1740 = vmatmul.mubr.f32.gmra.mrb[0].mxu0 %v1667
    %v1741 = vpop.f32.mrb[0].mxu0
    %v1742 = vadd.f32 0.0, %v1741
    %v1743 = vpop.f32.mrb[0].mxu0
    %1744 = vmatprep.mubr.f32.mxu0 0.0
    %1745 = vmatmul.mubr.f32.gmra.mrb[0].mxu0 %v1669
    %v1746 = vpop.f32.mrb[0].mxu0
    %v1747 = vadd.f32 0.0, %v1746
    %v1748 = vpop.f32.mrb[0].mxu0
    %1749 = vdwg.mxu0
    %1750 = vrot.lane.b32.xlu0 %v294, 96
    %v1751 = vpop.permute.xlu0 %1750
    %1752 = vrot.lane.b32.xlu0 %v296, 96
    %v1753 = vpop.permute.xlu0 %1752
    %v1754 = vsel %vm361, %v294, 0
    %v1756 = vsel %vm361, %v296, 0
    %v1758 = vsel %vm361, %v1751, 0
    %v1760 = vsel %vm361, %v1753, 0
    %1762 = vmatprep.subr.mxu0 0.0
    %1763 = vmatpush1.xpose.msra.mxu0 %v1758
    %1764 = vmatprep.subr.mxu0 0.0
    %1765 = vmatpush1.xpose.msra.mxu0 %v1760
    %1766 = vmatprep.subr.mxu0 0.0
    %1767 = vmatpush1.xpose.msra.mxu0 0.0
    %1768 = vmatprep.subr.mxu0 0.0
    %1769 = vmatpush1.xpose.msra.mxu0 0.0
    %1770 = vmatprep.subr.mxu0 0.0
    %1771 = vmatpush1.xpose.msra.mxu0 0.0
    %1772 = vmatprep.subr.mxu0 0.0
    %1773 = vmatpush1.xpose.msra.mxu0 0.0
    %1774 = vmatprep.subr.mxu0 0.0
    %1775 = vmatpush1.xpose.msra.mxu0 0.0
    %1776 = vmatprep.subr.mxu0 0.0
    %1777 = vmatpush1.xpose.msra.mxu0 0.0
    %1778 = vmatprep.subr.mxu0 0.0
    %1779 = vmatpush1.xpose.msra.mxu0 0.0
    %1780 = vmatprep.subr.mxu0 0.0
    %1781 = vmatpush1.xpose.msra.mxu0 0.0
    %1782 = vmatprep.subr.mxu0 0.0
    %1783 = vmatpush1.xpose.msra.mxu0 0.0
    %1784 = vmatprep.subr.mxu0 0.0
    %1785 = vmatpush1.xpose.msra.mxu0 0.0
    %1786 = vmatprep.subr.mxu0 0.0
    %1787 = vmatpush1.xpose.msra.mxu0 0.0
    %1788 = vmatprep.subr.mxu0 0.0
    %1789 = vmatpush1.xpose.msra.mxu0 0.0
    %1790 = vmatprep.subr.mxu0 0.0
    %1791 = vmatpush1.xpose.msra.mxu0 0.0
    %1792 = vmatprep.subr.mxu0 0.0
    %1793 = vmatpush1.xpose.msra.mxu0 0.0
    %1794 = vmatprep.subr.mxu0 0.0
    %1795 = vmatpush1.xpose.msra.mxu0 0.0
    %1796 = vmatprep.subr.mxu0 0.0
    %1797 = vmatpush1.xpose.msra.mxu0 0.0
    %1798 = vmatprep.subr.mxu0 0.0
    %1799 = vmatpush1.xpose.msra.mxu0 0.0
    %1800 = vmatprep.subr.mxu0 0.0
    %1801 = vmatpush1.xpose.msra.mxu0 0.0
    %1802 = vmatprep.subr.mxu0 0.0
    %1803 = vmatpush1.xpose.msra.mxu0 0.0
    %1804 = vmatprep.subr.mxu0 0.0
    %1805 = vmatpush1.xpose.msra.mxu0 0.0
    %1806 = vmatprep.subr.mxu0 0.0
    %1807 = vmatpush1.xpose.msra.mxu0 0.0
    %1808 = vmatprep.subr.mxu0 0.0
    %1809 = vmatpush1.xpose.msra.mxu0 0.0
    %1810 = vmatprep.subr.mxu0 0.0
    %1811 = vmatpush1.xpose.msra.mxu0 0.0
    %1812 = vmatprep.subr.mxu0 0.0
    %1813 = vmatpush1.xpose.msra.mxu0 0.0
    %1814 = vmatprep.subr.mxu0 0.0
    %1815 = vmatpush1.xpose.msra.mxu0 0.0
    %1816 = vmatprep.subr.mxu0 0.0
    %1817 = vmatpush1.xpose.msra.mxu0 0.0
    %1818 = vmatprep.subr.mxu0 0.0
    %1819 = vmatpush1.xpose.msra.mxu0 0.0
    %1820 = vmatprep.subr.mxu0 0.0
    %1821 = vmatpush1.xpose.msra.mxu0 0.0
    %1822 = vmatprep.subr.mxu0 0.0
    %1823 = vmatpush1.xpose.msra.mxu0 0.0
    %1824 = vmatprep.subr.mxu0 0.0
    %1825 = vmatpush1.xpose.msra.mxu0 0.0
    %1826 = vmatprep.mubr.f32.mxu0 0.0
    %1827 = vmatmul.mubr.f32.gmra.mrb[0].mxu0 %v1754
    %v1828 = vpop.f32.mrb[0].mxu0
    %v1829 = vadd.f32 0.0, %v1828
    %v1830 = vpop.f32.mrb[0].mxu0
    %1831 = vmatprep.mubr.f32.mxu0 0.0
    %1832 = vmatmul.mubr.f32.gmra.mrb[0].mxu0 %v1756
    %v1833 = vpop.f32.mrb[0].mxu0
    %v1834 = vadd.f32 0.0, %v1833
    %v1835 = vpop.f32.mrb[0].mxu0
    %1836 = vdwg.mxu0
    %1837 = vrot.lane.b32.xlu0 %v298, 96
    %v1838 = vpop.permute.xlu0 %1837
    %1839 = vrot.lane.b32.xlu0 %v300, 96
    %v1840 = vpop.permute.xlu0 %1839
    %v1841 = vsel %vm361, %v298, 0
    %v1843 = vsel %vm361, %v300, 0
    %v1845 = vsel %vm361, %v1838, 0
    %v1847 = vsel %vm361, %v1840, 0
    %1849 = vmatprep.subr.mxu0 0.0
    %1850 = vmatpush1.xpose.msra.mxu0 %v1845
    %1851 = vmatprep.subr.mxu0 0.0
    %1852 = vmatpush1.xpose.msra.mxu0 %v1847
    %1853 = vmatprep.subr.mxu0 0.0
    %1854 = vmatpush1.xpose.msra.mxu0 0.0
    %1855 = vmatprep.subr.mxu0 0.0
    %1856 = vmatpush1.xpose.msra.mxu0 0.0
    %1857 = vmatprep.subr.mxu0 0.0
    %1858 = vmatpush1.xpose.msra.mxu0 0.0
    %1859 = vmatprep.subr.mxu0 0.0
    %1860 = vmatpush1.xpose.msra.mxu0 0.0
    %1861 = vmatprep.subr.mxu0 0.0
    %1862 = vmatpush1.xpose.msra.mxu0 0.0
    %1863 = vmatprep.subr.mxu0 0.0
    %1864 = vmatpush1.xpose.msra.mxu0 0.0
    %1865 = vmatprep.subr.mxu0 0.0
    %1866 = vmatpush1.xpose.msra.mxu0 0.0
    %1867 = vmatprep.subr.mxu0 0.0
    %1868 = vmatpush1.xpose.msra.mxu0 0.0
    %1869 = vmatprep.subr.mxu0 0.0
    %1870 = vmatpush1.xpose.msra.mxu0 0.0
    %1871 = vmatprep.subr.mxu0 0.0
    %1872 = vmatpush1.xpose.msra.mxu0 0.0
    %1873 = vmatprep.subr.mxu0 0.0
    %1874 = vmatpush1.xpose.msra.mxu0 0.0
    %1875 = vmatprep.subr.mxu0 0.0
    %1876 = vmatpush1.xpose.msra.mxu0 0.0
    %1877 = vmatprep.subr.mxu0 0.0
    %1878 = vmatpush1.xpose.msra.mxu0 0.0
    %1879 = vmatprep.subr.mxu0 0.0
    %1880 = vmatpush1.xpose.msra.mxu0 0.0
    %1881 = vmatprep.subr.mxu0 0.0
    %1882 = vmatpush1.xpose.msra.mxu0 0.0
    %1883 = vmatprep.subr.mxu0 0.0
    %1884 = vmatpush1.xpose.msra.mxu0 0.0
    %1885 = vmatprep.subr.mxu0 0.0
    %1886 = vmatpush1.xpose.msra.mxu0 0.0
    %1887 = vmatprep.subr.mxu0 0.0
    %1888 = vmatpush1.xpose.msra.mxu0 0.0
    %1889 = vmatprep.subr.mxu0 0.0
    %1890 = vmatpush1.xpose.msra.mxu0 0.0
    %1891 = vmatprep.subr.mxu0 0.0
    %1892 = vmatpush1.xpose.msra.mxu0 0.0
    %1893 = vmatprep.subr.mxu0 0.0
    %1894 = vmatpush1.xpose.msra.mxu0 0.0
    %1895 = vmatprep.subr.mxu0 0.0
    %1896 = vmatpush1.xpose.msra.mxu0 0.0
    %1897 = vmatprep.subr.mxu0 0.0
    %1898 = vmatpush1.xpose.msra.mxu0 0.0
    %1899 = vmatprep.subr.mxu0 0.0
    %1900 = vmatpush1.xpose.msra.mxu0 0.0
    %1901 = vmatprep.subr.mxu0 0.0
    %1902 = vmatpush1.xpose.msra.mxu0 0.0
    %1903 = vmatprep.subr.mxu0 0.0
    %1904 = vmatpush1.xpose.msra.mxu0 0.0
    %1905 = vmatprep.subr.mxu0 0.0
    %1906 = vmatpush1.xpose.msra.mxu0 0.0
    %1907 = vmatprep.subr.mxu0 0.0
    %1908 = vmatpush1.xpose.msra.mxu0 0.0
    %1909 = vmatprep.subr.mxu0 0.0
    %1910 = vmatpush1.xpose.msra.mxu0 0.0
    %1911 = vmatprep.subr.mxu0 0.0
    %1912 = vmatpush1.xpose.msra.mxu0 0.0
    %1913 = vmatprep.mubr.f32.mxu0 0.0
    %1914 = vmatmul.mubr.f32.gmra.mrb[0].mxu0 %v1841
    %v1915 = vpop.f32.mrb[0].mxu0
    %v1916 = vadd.f32 0.0, %v1915
    %v1917 = vpop.f32.mrb[0].mxu0
    %1918 = vmatprep.mubr.f32.mxu0 0.0
    %1919 = vmatmul.mubr.f32.gmra.mrb[0].mxu0 %v1843
    %v1920 = vpop.f32.mrb[0].mxu0
    %v1921 = vadd.f32 0.0, %v1920
    %v1922 = vpop.f32.mrb[0].mxu0
    %1923 = vdwg.mxu0
    %1924 = vrot.lane.b32.xlu0 %v302, 96
    %v1925 = vpop.permute.xlu0 %1924
    %1926 = vrot.lane.b32.xlu0 %v304, 96
    %v1927 = vpop.permute.xlu0 %1926
    %v1928 = vsel %vm361, %v302, 0
    %v1930 = vsel %vm361, %v304, 0
    %v1932 = vsel %vm361, %v1925, 0
    %v1934 = vsel %vm361, %v1927, 0
    %1936 = vmatprep.subr.mxu0 0.0
    %1937 = vmatpush1.xpose.msra.mxu0 %v1932
    %1938 = vmatprep.subr.mxu0 0.0
    %1939 = vmatpush1.xpose.msra.mxu0 %v1934
    %1940 = vmatprep.subr.mxu0 0.0
    %1941 = vmatpush1.xpose.msra.mxu0 0.0
    %1942 = vmatprep.subr.mxu0 0.0
    %1943 = vmatpush1.xpose.msra.mxu0 0.0
    %1944 = vmatprep.subr.mxu0 0.0
    %1945 = vmatpush1.xpose.msra.mxu0 0.0
    %1946 = vmatprep.subr.mxu0 0.0
    %1947 = vmatpush1.xpose.msra.mxu0 0.0
    %1948 = vmatprep.subr.mxu0 0.0
    %1949 = vmatpush1.xpose.msra.mxu0 0.0
    %1950 = vmatprep.subr.mxu0 0.0
    %1951 = vmatpush1.xpose.msra.mxu0 0.0
    %1952 = vmatprep.subr.mxu0 0.0
    %1953 = vmatpush1.xpose.msra.mxu0 0.0
    %1954 = vmatprep.subr.mxu0 0.0
    %1955 = vmatpush1.xpose.msra.mxu0 0.0
    %1956 = vmatprep.subr.mxu0 0.0
    %1957 = vmatpush1.xpose.msra.mxu0 0.0
    %1958 = vmatprep.subr.mxu0 0.0
    %1959 = vmatpush1.xpose.msra.mxu0 0.0
    %1960 = vmatprep.subr.mxu0 0.0
    %1961 = vmatpush1.xpose.msra.mxu0 0.0
    %1962 = vmatprep.subr.mxu0 0.0
    %1963 = vmatpush1.xpose.msra.mxu0 0.0
    %1964 = vmatprep.subr.mxu0 0.0
    %1965 = vmatpush1.xpose.msra.mxu0 0.0
    %1966 = vmatprep.subr.mxu0 0.0
    %1967 = vmatpush1.xpose.msra.mxu0 0.0
    %1968 = vmatprep.subr.mxu0 0.0
    %1969 = vmatpush1.xpose.msra.mxu0 0.0
    %1970 = vmatprep.subr.mxu0 0.0
    %1971 = vmatpush1.xpose.msra.mxu0 0.0
    %1972 = vmatprep.subr.mxu0 0.0
    %1973 = vmatpush1.xpose.msra.mxu0 0.0
    %1974 = vmatprep.subr.mxu0 0.0
    %1975 = vmatpush1.xpose.msra.mxu0 0.0
    %1976 = vmatprep.subr.mxu0 0.0
    %1977 = vmatpush1.xpose.msra.mxu0 0.0
    %1978 = vmatprep.subr.mxu0 0.0
    %1979 = vmatpush1.xpose.msra.mxu0 0.0
    %1980 = vmatprep.subr.mxu0 0.0
    %1981 = vmatpush1.xpose.msra.mxu0 0.0
    %1982 = vmatprep.subr.mxu0 0.0
    %1983 = vmatpush1.xpose.msra.mxu0 0.0
    %1984 = vmatprep.subr.mxu0 0.0
    %1985 = vmatpush1.xpose.msra.mxu0 0.0
    %1986 = vmatprep.subr.mxu0 0.0
    %1987 = vmatpush1.xpose.msra.mxu0 0.0
    %1988 = vmatprep.subr.mxu0 0.0
    %1989 = vmatpush1.xpose.msra.mxu0 0.0
    %1990 = vmatprep.subr.mxu0 0.0
    %1991 = vmatpush1.xpose.msra.mxu0 0.0
    %1992 = vmatprep.subr.mxu0 0.0
    %1993 = vmatpush1.xpose.msra.mxu0 0.0
    %1994 = vmatprep.subr.mxu0 0.0
    %1995 = vmatpush1.xpose.msra.mxu0 0.0
    %1996 = vmatprep.subr.mxu0 0.0
    %1997 = vmatpush1.xpose.msra.mxu0 0.0
    %1998 = vmatprep.subr.mxu0 0.0
    %1999 = vmatpush1.xpose.msra.mxu0 0.0
    %2000 = vmatprep.mubr.f32.mxu0 0.0
    %2001 = vmatmul.mubr.f32.gmra.mrb[0].mxu0 %v1928
    %v2002 = vpop.f32.mrb[0].mxu0
    %v2003 = vadd.f32 0.0, %v2002
    %v2004 = vpop.f32.mrb[0].mxu0
    %2005 = vmatprep.mubr.f32.mxu0 0.0
    %2006 = vmatmul.mubr.f32.gmra.mrb[0].mxu0 %v1930
    %v2007 = vpop.f32.mrb[0].mxu0
    %v2008 = vadd.f32 0.0, %v2007
    %v2009 = vpop.f32.mrb[0].mxu0
    %2010 = vdwg.mxu0
    %2011 = vrot.lane.b32.xlu0 %v306, 96
    %v2012 = vpop.permute.xlu0 %2011
    %2013 = vrot.lane.b32.xlu0 %v308, 96
    %v2014 = vpop.permute.xlu0 %2013
    %v2015 = vsel %vm361, %v306, 0
    %v2017 = vsel %vm361, %v308, 0
    %v2019 = vsel %vm361, %v2012, 0
    %v2021 = vsel %vm361, %v2014, 0
    %2023 = vmatprep.subr.mxu0 0.0
    %2024 = vmatpush1.xpose.msra.mxu0 %v2019
    %2025 = vmatprep.subr.mxu0 0.0
    %2026 = vmatpush1.xpose.msra.mxu0 %v2021
    %2027 = vmatprep.subr.mxu0 0.0
    %2028 = vmatpush1.xpose.msra.mxu0 0.0
    %2029 = vmatprep.subr.mxu0 0.0
    %2030 = vmatpush1.xpose.msra.mxu0 0.0
    %2031 = vmatprep.subr.mxu0 0.0
    %2032 = vmatpush1.xpose.msra.mxu0 0.0
    %2033 = vmatprep.subr.mxu0 0.0
    %2034 = vmatpush1.xpose.msra.mxu0 0.0
    %2035 = vmatprep.subr.mxu0 0.0
    %2036 = vmatpush1.xpose.msra.mxu0 0.0
    %2037 = vmatprep.subr.mxu0 0.0
    %2038 = vmatpush1.xpose.msra.mxu0 0.0
    %2039 = vmatprep.subr.mxu0 0.0
    %2040 = vmatpush1.xpose.msra.mxu0 0.0
    %2041 = vmatprep.subr.mxu0 0.0
    %2042 = vmatpush1.xpose.msra.mxu0 0.0
    %2043 = vmatprep.subr.mxu0 0.0
    %2044 = vmatpush1.xpose.msra.mxu0 0.0
    %2045 = vmatprep.subr.mxu0 0.0
    %2046 = vmatpush1.xpose.msra.mxu0 0.0
    %2047 = vmatprep.subr.mxu0 0.0
    %2048 = vmatpush1.xpose.msra.mxu0 0.0
    %2049 = vmatprep.subr.mxu0 0.0
    %2050 = vmatpush1.xpose.msra.mxu0 0.0
    %2051 = vmatprep.subr.mxu0 0.0
    %2052 = vmatpush1.xpose.msra.mxu0 0.0
    %2053 = vmatprep.subr.mxu0 0.0
    %2054 = vmatpush1.xpose.msra.mxu0 0.0
    %2055 = vmatprep.subr.mxu0 0.0
    %2056 = vmatpush1.xpose.msra.mxu0 0.0
    %2057 = vmatprep.subr.mxu0 0.0
    %2058 = vmatpush1.xpose.msra.mxu0 0.0
    %2059 = vmatprep.subr.mxu0 0.0
    %2060 = vmatpush1.xpose.msra.mxu0 0.0
    %2061 = vmatprep.subr.mxu0 0.0
    %2062 = vmatpush1.xpose.msra.mxu0 0.0
    %2063 = vmatprep.subr.mxu0 0.0
    %2064 = vmatpush1.xpose.msra.mxu0 0.0
    %2065 = vmatprep.subr.mxu0 0.0
    %2066 = vmatpush1.xpose.msra.mxu0 0.0
    %2067 = vmatprep.subr.mxu0 0.0
    %2068 = vmatpush1.xpose.msra.mxu0 0.0
    %2069 = vmatprep.subr.mxu0 0.0
    %2070 = vmatpush1.xpose.msra.mxu0 0.0
    %2071 = vmatprep.subr.mxu0 0.0
    %2072 = vmatpush1.xpose.msra.mxu0 0.0
    %2073 = vmatprep.subr.mxu0 0.0
    %2074 = vmatpush1.xpose.msra.mxu0 0.0
    %2075 = vmatprep.subr.mxu0 0.0
    %2076 = vmatpush1.xpose.msra.mxu0 0.0
    %2077 = vmatprep.subr.mxu0 0.0
    %2078 = vmatpush1.xpose.msra.mxu0 0.0
    %2079 = vmatprep.subr.mxu0 0.0
    %2080 = vmatpush1.xpose.msra.mxu0 0.0
    %2081 = vmatprep.subr.mxu0 0.0
    %2082 = vmatpush1.xpose.msra.mxu0 0.0
    %2083 = vmatprep.subr.mxu0 0.0
    %2084 = vmatpush1.xpose.msra.mxu0 0.0
    %2085 = vmatprep.subr.mxu0 0.0
    %2086 = vmatpush1.xpose.msra.mxu0 0.0
    %2087 = vmatprep.mubr.f32.mxu0 0.0
    %2088 = vmatmul.mubr.f32.gmra.mrb[0].mxu0 %v2015
    %v2089 = vpop.f32.mrb[0].mxu0
    %v2090 = vadd.f32 0.0, %v2089
    %v2091 = vpop.f32.mrb[0].mxu0
    %2092 = vmatprep.mubr.f32.mxu0 0.0
    %2093 = vmatmul.mubr.f32.gmra.mrb[0].mxu0 %v2017
    %v2094 = vpop.f32.mrb[0].mxu0
    %v2095 = vadd.f32 0.0, %v2094
    %v2096 = vpop.f32.mrb[0].mxu0
    %2097 = vdwg.mxu0
    %2098 = vrot.lane.b32.xlu0 %v310, 96
    %v2099 = vpop.permute.xlu0 %2098
    %2100 = vrot.lane.b32.xlu0 %v312, 96
    %v2101 = vpop.permute.xlu0 %2100
    %v2102 = vsel %vm361, %v310, 0
    %v2104 = vsel %vm361, %v312, 0
    %v2106 = vsel %vm361, %v2099, 0
    %v2108 = vsel %vm361, %v2101, 0
    %2110 = vmatprep.subr.mxu0 0.0
    %2111 = vmatpush1.xpose.msra.mxu0 %v2106
    %2112 = vmatprep.subr.mxu0 0.0
    %2113 = vmatpush1.xpose.msra.mxu0 %v2108
    %2114 = vmatprep.subr.mxu0 0.0
    %2115 = vmatpush1.xpose.msra.mxu0 0.0
    %2116 = vmatprep.subr.mxu0 0.0
    %2117 = vmatpush1.xpose.msra.mxu0 0.0
    %2118 = vmatprep.subr.mxu0 0.0
    %2119 = vmatpush1.xpose.msra.mxu0 0.0
    %2120 = vmatprep.subr.mxu0 0.0
    %2121 = vmatpush1.xpose.msra.mxu0 0.0
    %2122 = vmatprep.subr.mxu0 0.0
    %2123 = vmatpush1.xpose.msra.mxu0 0.0
    %2124 = vmatprep.subr.mxu0 0.0
    %2125 = vmatpush1.xpose.msra.mxu0 0.0
    %2126 = vmatprep.subr.mxu0 0.0
    %2127 = vmatpush1.xpose.msra.mxu0 0.0
    %2128 = vmatprep.subr.mxu0 0.0
    %2129 = vmatpush1.xpose.msra.mxu0 0.0
    %2130 = vmatprep.subr.mxu0 0.0
    %2131 = vmatpush1.xpose.msra.mxu0 0.0
    %2132 = vmatprep.subr.mxu0 0.0
    %2133 = vmatpush1.xpose.msra.mxu0 0.0
    %2134 = vmatprep.subr.mxu0 0.0
    %2135 = vmatpush1.xpose.msra.mxu0 0.0
    %2136 = vmatprep.subr.mxu0 0.0
    %2137 = vmatpush1.xpose.msra.mxu0 0.0
    %2138 = vmatprep.subr.mxu0 0.0
    %2139 = vmatpush1.xpose.msra.mxu0 0.0
    %2140 = vmatprep.subr.mxu0 0.0
    %2141 = vmatpush1.xpose.msra.mxu0 0.0
    %2142 = vmatprep.subr.mxu0 0.0
    %2143 = vmatpush1.xpose.msra.mxu0 0.0
    %2144 = vmatprep.subr.mxu0 0.0
    %2145 = vmatpush1.xpose.msra.mxu0 0.0
    %2146 = vmatprep.subr.mxu0 0.0
    %2147 = vmatpush1.xpose.msra.mxu0 0.0
    %2148 = vmatprep.subr.mxu0 0.0
    %2149 = vmatpush1.xpose.msra.mxu0 0.0
    %2150 = vmatprep.subr.mxu0 0.0
    %2151 = vmatpush1.xpose.msra.mxu0 0.0
    %2152 = vmatprep.subr.mxu0 0.0
    %2153 = vmatpush1.xpose.msra.mxu0 0.0
    %2154 = vmatprep.subr.mxu0 0.0
    %2155 = vmatpush1.xpose.msra.mxu0 0.0
    %2156 = vmatprep.subr.mxu0 0.0
    %2157 = vmatpush1.xpose.msra.mxu0 0.0
    %2158 = vmatprep.subr.mxu0 0.0
    %2159 = vmatpush1.xpose.msra.mxu0 0.0
    %2160 = vmatprep.subr.mxu0 0.0
    %2161 = vmatpush1.xpose.msra.mxu0 0.0
    %2162 = vmatprep.subr.mxu0 0.0
    %2163 = vmatpush1.xpose.msra.mxu0 0.0
    %2164 = vmatprep.subr.mxu0 0.0
    %2165 = vmatpush1.xpose.msra.mxu0 0.0
    %2166 = vmatprep.subr.mxu0 0.0
    %2167 = vmatpush1.xpose.msra.mxu0 0.0
    %2168 = vmatprep.subr.mxu0 0.0
    %2169 = vmatpush1.xpose.msra.mxu0 0.0
    %2170 = vmatprep.subr.mxu0 0.0
    %2171 = vmatpush1.xpose.msra.mxu0 0.0
    %2172 = vmatprep.subr.mxu0 0.0
    %2173 = vmatpush1.xpose.msra.mxu0 0.0
    %2174 = vmatprep.mubr.f32.mxu0 0.0
    %2175 = vmatmul.mubr.f32.gmra.mrb[0].mxu0 %v2102
    %v2176 = vpop.f32.mrb[0].mxu0
    %v2177 = vadd.f32 0.0, %v2176
    %v2178 = vpop.f32.mrb[0].mxu0
    %2179 = vmatprep.mubr.f32.mxu0 0.0
    %2180 = vmatmul.mubr.f32.gmra.mrb[0].mxu0 %v2104
    %v2181 = vpop.f32.mrb[0].mxu0
    %v2182 = vadd.f32 0.0, %v2181
    %v2183 = vpop.f32.mrb[0].mxu0
    %2184 = vdwg.mxu0
    %2185 = vrot.lane.b32.xlu0 %v314, 96
    %v2186 = vpop.permute.xlu0 %2185
    %2187 = vrot.lane.b32.xlu0 %v316, 96
    %v2188 = vpop.permute.xlu0 %2187
    %v2189 = vsel %vm361, %v314, 0
    %v2191 = vsel %vm361, %v316, 0
    %v2193 = vsel %vm361, %v2186, 0
    %v2195 = vsel %vm361, %v2188, 0
    %2197 = vmatprep.subr.mxu0 0.0
    %2198 = vmatpush1.xpose.msra.mxu0 %v2193
    %2199 = vmatprep.subr.mxu0 0.0
    %2200 = vmatpush1.xpose.msra.mxu0 %v2195
    %2201 = vmatprep.subr.mxu0 0.0
    %2202 = vmatpush1.xpose.msra.mxu0 0.0
    %2203 = vmatprep.subr.mxu0 0.0
    %2204 = vmatpush1.xpose.msra.mxu0 0.0
    %2205 = vmatprep.subr.mxu0 0.0
    %2206 = vmatpush1.xpose.msra.mxu0 0.0
    %2207 = vmatprep.subr.mxu0 0.0
    %2208 = vmatpush1.xpose.msra.mxu0 0.0
    %2209 = vmatprep.subr.mxu0 0.0
    %2210 = vmatpush1.xpose.msra.mxu0 0.0
    %2211 = vmatprep.subr.mxu0 0.0
    %2212 = vmatpush1.xpose.msra.mxu0 0.0
    %2213 = vmatprep.subr.mxu0 0.0
    %2214 = vmatpush1.xpose.msra.mxu0 0.0
    %2215 = vmatprep.subr.mxu0 0.0
    %2216 = vmatpush1.xpose.msra.mxu0 0.0
    %2217 = vmatprep.subr.mxu0 0.0
    %2218 = vmatpush1.xpose.msra.mxu0 0.0
    %2219 = vmatprep.subr.mxu0 0.0
    %2220 = vmatpush1.xpose.msra.mxu0 0.0
    %2221 = vmatprep.subr.mxu0 0.0
    %2222 = vmatpush1.xpose.msra.mxu0 0.0
    %2223 = vmatprep.subr.mxu0 0.0
    %2224 = vmatpush1.xpose.msra.mxu0 0.0
    %2225 = vmatprep.subr.mxu0 0.0
    %2226 = vmatpush1.xpose.msra.mxu0 0.0
    %2227 = vmatprep.subr.mxu0 0.0
    %2228 = vmatpush1.xpose.msra.mxu0 0.0
    %2229 = vmatprep.subr.mxu0 0.0
    %2230 = vmatpush1.xpose.msra.mxu0 0.0
    %2231 = vmatprep.subr.mxu0 0.0
    %2232 = vmatpush1.xpose.msra.mxu0 0.0
    %2233 = vmatprep.subr.mxu0 0.0
    %2234 = vmatpush1.xpose.msra.mxu0 0.0
    %2235 = vmatprep.subr.mxu0 0.0
    %2236 = vmatpush1.xpose.msra.mxu0 0.0
    %2237 = vmatprep.subr.mxu0 0.0
    %2238 = vmatpush1.xpose.msra.mxu0 0.0
    %2239 = vmatprep.subr.mxu0 0.0
    %2240 = vmatpush1.xpose.msra.mxu0 0.0
    %2241 = vmatprep.subr.mxu0 0.0
    %2242 = vmatpush1.xpose.msra.mxu0 0.0
    %2243 = vmatprep.subr.mxu0 0.0
    %2244 = vmatpush1.xpose.msra.mxu0 0.0
    %2245 = vmatprep.subr.mxu0 0.0
    %2246 = vmatpush1.xpose.msra.mxu0 0.0
    %2247 = vmatprep.subr.mxu0 0.0
    %2248 = vmatpush1.xpose.msra.mxu0 0.0
    %2249 = vmatprep.subr.mxu0 0.0
    %2250 = vmatpush1.xpose.msra.mxu0 0.0
    %2251 = vmatprep.subr.mxu0 0.0
    %2252 = vmatpush1.xpose.msra.mxu0 0.0
    %2253 = vmatprep.subr.mxu0 0.0
    %2254 = vmatpush1.xpose.msra.mxu0 0.0
    %2255 = vmatprep.subr.mxu0 0.0
    %2256 = vmatpush1.xpose.msra.mxu0 0.0
    %2257 = vmatprep.subr.mxu0 0.0
    %2258 = vmatpush1.xpose.msra.mxu0 0.0
    %2259 = vmatprep.subr.mxu0 0.0
    %2260 = vmatpush1.xpose.msra.mxu0 0.0
    %2261 = vmatprep.mubr.f32.mxu0 0.0
    %2262 = vmatmul.mubr.f32.gmra.mrb[0].mxu0 %v2189
    %v2263 = vpop.f32.mrb[0].mxu0
    %v2264 = vadd.f32 0.0, %v2263
    %v2265 = vpop.f32.mrb[0].mxu0
    %2266 = vmatprep.mubr.f32.mxu0 0.0
    %2267 = vmatmul.mubr.f32.gmra.mrb[0].mxu0 %v2191
    %v2268 = vpop.f32.mrb[0].mxu0
    %v2269 = vadd.f32 0.0, %v2268
    %v2270 = vpop.f32.mrb[0].mxu0
    %2271 = vdwg.mxu0
    %2272 = vrot.lane.b32.xlu0 %v318, 96
    %v2273 = vpop.permute.xlu0 %2272
    %2274 = vrot.lane.b32.xlu0 %v320, 96
    %v2275 = vpop.permute.xlu0 %2274
    %v2276 = vsel %vm361, %v318, 0
    %v2278 = vsel %vm361, %v320, 0
    %v2280 = vsel %vm361, %v2273, 0
    %v2282 = vsel %vm361, %v2275, 0
    %2284 = vmatprep.subr.mxu0 0.0
    %2285 = vmatpush1.xpose.msra.mxu0 %v2280
    %2286 = vmatprep.subr.mxu0 0.0
    %2287 = vmatpush1.xpose.msra.mxu0 %v2282
    %2288 = vmatprep.subr.mxu0 0.0
    %2289 = vmatpush1.xpose.msra.mxu0 0.0
    %2290 = vmatprep.subr.mxu0 0.0
    %2291 = vmatpush1.xpose.msra.mxu0 0.0
    %2292 = vmatprep.subr.mxu0 0.0
    %2293 = vmatpush1.xpose.msra.mxu0 0.0
    %2294 = vmatprep.subr.mxu0 0.0
    %2295 = vmatpush1.xpose.msra.mxu0 0.0
    %2296 = vmatprep.subr.mxu0 0.0
    %2297 = vmatpush1.xpose.msra.mxu0 0.0
    %2298 = vmatprep.subr.mxu0 0.0
    %2299 = vmatpush1.xpose.msra.mxu0 0.0
    %2300 = vmatprep.subr.mxu0 0.0
    %2301 = vmatpush1.xpose.msra.mxu0 0.0
    %2302 = vmatprep.subr.mxu0 0.0
    %2303 = vmatpush1.xpose.msra.mxu0 0.0
    %2304 = vmatprep.subr.mxu0 0.0
    %2305 = vmatpush1.xpose.msra.mxu0 0.0
    %2306 = vmatprep.subr.mxu0 0.0
    %2307 = vmatpush1.xpose.msra.mxu0 0.0
    %2308 = vmatprep.subr.mxu0 0.0
    %2309 = vmatpush1.xpose.msra.mxu0 0.0
    %2310 = vmatprep.subr.mxu0 0.0
    %2311 = vmatpush1.xpose.msra.mxu0 0.0
    %2312 = vmatprep.subr.mxu0 0.0
    %2313 = vmatpush1.xpose.msra.mxu0 0.0
    %2314 = vmatprep.subr.mxu0 0.0
    %2315 = vmatpush1.xpose.msra.mxu0 0.0
    %2316 = vmatprep.subr.mxu0 0.0
    %2317 = vmatpush1.xpose.msra.mxu0 0.0
    %2318 = vmatprep.subr.mxu0 0.0
    %2319 = vmatpush1.xpose.msra.mxu0 0.0
    %2320 = vmatprep.subr.mxu0 0.0
    %2321 = vmatpush1.xpose.msra.mxu0 0.0
    %2322 = vmatprep.subr.mxu0 0.0
    %2323 = vmatpush1.xpose.msra.mxu0 0.0
    %2324 = vmatprep.subr.mxu0 0.0
    %2325 = vmatpush1.xpose.msra.mxu0 0.0
    %2326 = vmatprep.subr.mxu0 0.0
    %2327 = vmatpush1.xpose.msra.mxu0 0.0
    %2328 = vmatprep.subr.mxu0 0.0
    %2329 = vmatpush1.xpose.msra.mxu0 0.0
    %2330 = vmatprep.subr.mxu0 0.0
    %2331 = vmatpush1.xpose.msra.mxu0 0.0
    %2332 = vmatprep.subr.mxu0 0.0
    %2333 = vmatpush1.xpose.msra.mxu0 0.0
    %2334 = vmatprep.subr.mxu0 0.0
    %2335 = vmatpush1.xpose.msra.mxu0 0.0
    %2336 = vmatprep.subr.mxu0 0.0
    %2337 = vmatpush1.xpose.msra.mxu0 0.0
    %2338 = vmatprep.subr.mxu0 0.0
    %2339 = vmatpush1.xpose.msra.mxu0 0.0
    %2340 = vmatprep.subr.mxu0 0.0
    %2341 = vmatpush1.xpose.msra.mxu0 0.0
    %2342 = vmatprep.subr.mxu0 0.0
    %2343 = vmatpush1.xpose.msra.mxu0 0.0
    %2344 = vmatprep.subr.mxu0 0.0
    %2345 = vmatpush1.xpose.msra.mxu0 0.0
    %2346 = vmatprep.subr.mxu0 0.0
    %2347 = vmatpush1.xpose.msra.mxu0 0.0
    %2348 = vmatprep.mubr.f32.mxu0 0.0
    %2349 = vmatmul.mubr.f32.gmra.mrb[0].mxu0 %v2276
    %v2350 = vpop.f32.mrb[0].mxu0
    %v2351 = vadd.f32 0.0, %v2350
    %v2352 = vpop.f32.mrb[0].mxu0
    %2353 = vmatprep.mubr.f32.mxu0 0.0
    %2354 = vmatmul.mubr.f32.gmra.mrb[0].mxu0 %v2278
    %v2355 = vpop.f32.mrb[0].mxu0
    %v2356 = vadd.f32 0.0, %v2355
    %v2357 = vpop.f32.mrb[0].mxu0
    %2358 = vdwg.mxu0
    %2359 = vrot.lane.b32.xlu0 %v322, 96
    %v2360 = vpop.permute.xlu0 %2359
    %2361 = vrot.lane.b32.xlu0 %v324, 96
    %v2362 = vpop.permute.xlu0 %2361
    %v2363 = vsel %vm361, %v322, 0
    %v2365 = vsel %vm361, %v324, 0
    %v2367 = vsel %vm361, %v2360, 0
    %v2369 = vsel %vm361, %v2362, 0
    %2371 = vmatprep.subr.mxu0 0.0
    %2372 = vmatpush1.xpose.msra.mxu0 %v2367
    %2373 = vmatprep.subr.mxu0 0.0
    %2374 = vmatpush1.xpose.msra.mxu0 %v2369
    %2375 = vmatprep.subr.mxu0 0.0
    %2376 = vmatpush1.xpose.msra.mxu0 0.0
    %2377 = vmatprep.subr.mxu0 0.0
    %2378 = vmatpush1.xpose.msra.mxu0 0.0
    %2379 = vmatprep.subr.mxu0 0.0
    %2380 = vmatpush1.xpose.msra.mxu0 0.0
    %2381 = vmatprep.subr.mxu0 0.0
    %2382 = vmatpush1.xpose.msra.mxu0 0.0
    %2383 = vmatprep.subr.mxu0 0.0
    %2384 = vmatpush1.xpose.msra.mxu0 0.0
    %2385 = vmatprep.subr.mxu0 0.0
    %2386 = vmatpush1.xpose.msra.mxu0 0.0
    %2387 = vmatprep.subr.mxu0 0.0
    %2388 = vmatpush1.xpose.msra.mxu0 0.0
    %2389 = vmatprep.subr.mxu0 0.0
    %2390 = vmatpush1.xpose.msra.mxu0 0.0
    %2391 = vmatprep.subr.mxu0 0.0
    %2392 = vmatpush1.xpose.msra.mxu0 0.0
    %2393 = vmatprep.subr.mxu0 0.0
    %2394 = vmatpush1.xpose.msra.mxu0 0.0
    %2395 = vmatprep.subr.mxu0 0.0
    %2396 = vmatpush1.xpose.msra.mxu0 0.0
    %2397 = vmatprep.subr.mxu0 0.0
    %2398 = vmatpush1.xpose.msra.mxu0 0.0
    %2399 = vmatprep.subr.mxu0 0.0
    %2400 = vmatpush1.xpose.msra.mxu0 0.0
    %2401 = vmatprep.subr.mxu0 0.0
    %2402 = vmatpush1.xpose.msra.mxu0 0.0
    %2403 = vmatprep.subr.mxu0 0.0
    %2404 = vmatpush1.xpose.msra.mxu0 0.0
    %2405 = vmatprep.subr.mxu0 0.0
    %2406 = vmatpush1.xpose.msra.mxu0 0.0
    %2407 = vmatprep.subr.mxu0 0.0
    %2408 = vmatpush1.xpose.msra.mxu0 0.0
    %2409 = vmatprep.subr.mxu0 0.0
    %2410 = vmatpush1.xpose.msra.mxu0 0.0
    %2411 = vmatprep.subr.mxu0 0.0
    %2412 = vmatpush1.xpose.msra.mxu0 0.0
    %2413 = vmatprep.subr.mxu0 0.0
    %2414 = vmatpush1.xpose.msra.mxu0 0.0
    %2415 = vmatprep.subr.mxu0 0.0
    %2416 = vmatpush1.xpose.msra.mxu0 0.0
    %2417 = vmatprep.subr.mxu0 0.0
    %2418 = vmatpush1.xpose.msra.mxu0 0.0
    %2419 = vmatprep.subr.mxu0 0.0
    %2420 = vmatpush1.xpose.msra.mxu0 0.0
    %2421 = vmatprep.subr.mxu0 0.0
    %2422 = vmatpush1.xpose.msra.mxu0 0.0
    %2423 = vmatprep.subr.mxu0 0.0
    %2424 = vmatpush1.xpose.msra.mxu0 0.0
    %2425 = vmatprep.subr.mxu0 0.0
    %2426 = vmatpush1.xpose.msra.mxu0 0.0
    %2427 = vmatprep.subr.mxu0 0.0
    %2428 = vmatpush1.xpose.msra.mxu0 0.0
    %2429 = vmatprep.subr.mxu0 0.0
    %2430 = vmatpush1.xpose.msra.mxu0 0.0
    %2431 = vmatprep.subr.mxu0 0.0
    %2432 = vmatpush1.xpose.msra.mxu0 0.0
    %2433 = vmatprep.subr.mxu0 0.0
    %2434 = vmatpush1.xpose.msra.mxu0 0.0
    %2435 = vmatprep.mubr.f32.mxu0 0.0
    %2436 = vmatmul.mubr.f32.gmra.mrb[0].mxu0 %v2363
    %v2437 = vpop.f32.mrb[0].mxu0
    %v2438 = vadd.f32 0.0, %v2437
    %v2439 = vpop.f32.mrb[0].mxu0
    %2440 = vmatprep.mubr.f32.mxu0 0.0
    %2441 = vmatmul.mubr.f32.gmra.mrb[0].mxu0 %v2365
    %v2442 = vpop.f32.mrb[0].mxu0
    %v2443 = vadd.f32 0.0, %v2442
    %v2444 = vpop.f32.mrb[0].mxu0
    %2445 = vdwg.mxu0
    %2446 = vrot.lane.b32.xlu0 %v326, 96
    %v2447 = vpop.permute.xlu0 %2446
    %2448 = vrot.lane.b32.xlu0 %v328, 96
    %v2449 = vpop.permute.xlu0 %2448
    %v2450 = vsel %vm361, %v326, 0
    %v2452 = vsel %vm361, %v328, 0
    %v2454 = vsel %vm361, %v2447, 0
    %v2456 = vsel %vm361, %v2449, 0
    %2458 = vmatprep.subr.mxu0 0.0
    %2459 = vmatpush1.xpose.msra.mxu0 %v2454
    %2460 = vmatprep.subr.mxu0 0.0
    %2461 = vmatpush1.xpose.msra.mxu0 %v2456
    %2462 = vmatprep.subr.mxu0 0.0
    %2463 = vmatpush1.xpose.msra.mxu0 0.0
    %2464 = vmatprep.subr.mxu0 0.0
    %2465 = vmatpush1.xpose.msra.mxu0 0.0
    %2466 = vmatprep.subr.mxu0 0.0
    %2467 = vmatpush1.xpose.msra.mxu0 0.0
    %2468 = vmatprep.subr.mxu0 0.0
    %2469 = vmatpush1.xpose.msra.mxu0 0.0
    %2470 = vmatprep.subr.mxu0 0.0
    %2471 = vmatpush1.xpose.msra.mxu0 0.0
    %2472 = vmatprep.subr.mxu0 0.0
    %2473 = vmatpush1.xpose.msra.mxu0 0.0
    %2474 = vmatprep.subr.mxu0 0.0
    %2475 = vmatpush1.xpose.msra.mxu0 0.0
    %2476 = vmatprep.subr.mxu0 0.0
    %2477 = vmatpush1.xpose.msra.mxu0 0.0
    %2478 = vmatprep.subr.mxu0 0.0
    %2479 = vmatpush1.xpose.msra.mxu0 0.0
    %2480 = vmatprep.subr.mxu0 0.0
    %2481 = vmatpush1.xpose.msra.mxu0 0.0
    %2482 = vmatprep.subr.mxu0 0.0
    %2483 = vmatpush1.xpose.msra.mxu0 0.0
    %2484 = vmatprep.subr.mxu0 0.0
    %2485 = vmatpush1.xpose.msra.mxu0 0.0
    %2486 = vmatprep.subr.mxu0 0.0
    %2487 = vmatpush1.xpose.msra.mxu0 0.0
    %2488 = vmatprep.subr.mxu0 0.0
    %2489 = vmatpush1.xpose.msra.mxu0 0.0
    %2490 = vmatprep.subr.mxu0 0.0
    %2491 = vmatpush1.xpose.msra.mxu0 0.0
    %2492 = vmatprep.subr.mxu0 0.0
    %2493 = vmatpush1.xpose.msra.mxu0 0.0
    %2494 = vmatprep.subr.mxu0 0.0
    %2495 = vmatpush1.xpose.msra.mxu0 0.0
    %2496 = vmatprep.subr.mxu0 0.0
    %2497 = vmatpush1.xpose.msra.mxu0 0.0
    %2498 = vmatprep.subr.mxu0 0.0
    %2499 = vmatpush1.xpose.msra.mxu0 0.0
    %2500 = vmatprep.subr.mxu0 0.0
    %2501 = vmatpush1.xpose.msra.mxu0 0.0
    %2502 = vmatprep.subr.mxu0 0.0
    %2503 = vmatpush1.xpose.msra.mxu0 0.0
    %2504 = vmatprep.subr.mxu0 0.0
    %2505 = vmatpush1.xpose.msra.mxu0 0.0
    %2506 = vmatprep.subr.mxu0 0.0
    %2507 = vmatpush1.xpose.msra.mxu0 0.0
    %2508 = vmatprep.subr.mxu0 0.0
    %2509 = vmatpush1.xpose.msra.mxu0 0.0
    %2510 = vmatprep.subr.mxu0 0.0
    %2511 = vmatpush1.xpose.msra.mxu0 0.0
    %2512 = vmatprep.subr.mxu0 0.0
    %2513 = vmatpush1.xpose.msra.mxu0 0.0
    %2514 = vmatprep.subr.mxu0 0.0
    %2515 = vmatpush1.xpose.msra.mxu0 0.0
    %2516 = vmatprep.subr.mxu0 0.0
    %2517 = vmatpush1.xpose.msra.mxu0 0.0
    %2518 = vmatprep.subr.mxu0 0.0
    %2519 = vmatpush1.xpose.msra.mxu0 0.0
    %2520 = vmatprep.subr.mxu0 0.0
    %2521 = vmatpush1.xpose.msra.mxu0 0.0
    %2522 = vmatprep.mubr.f32.mxu0 0.0
    %2523 = vmatmul.mubr.f32.gmra.mrb[0].mxu0 %v2450
    %v2524 = vpop.f32.mrb[0].mxu0
    %v2525 = vadd.f32 0.0, %v2524
    %v2526 = vpop.f32.mrb[0].mxu0
    %2527 = vmatprep.mubr.f32.mxu0 0.0
    %2528 = vmatmul.mubr.f32.gmra.mrb[0].mxu0 %v2452
    %v2529 = vpop.f32.mrb[0].mxu0
    %v2530 = vadd.f32 0.0, %v2529
    %v2531 = vpop.f32.mrb[0].mxu0
    %2532 = vdwg.mxu0
    %2533 = vrot.lane.b32.xlu0 %v330, 96
    %v2534 = vpop.permute.xlu0 %2533
    %2535 = vrot.lane.b32.xlu0 %v332, 96
    %v2536 = vpop.permute.xlu0 %2535
    %v2537 = vsel %vm361, %v330, 0
    %v2539 = vsel %vm361, %v332, 0
    %v2541 = vsel %vm361, %v2534, 0
    %v2543 = vsel %vm361, %v2536, 0
    %2545 = vmatprep.subr.mxu0 0.0
    %2546 = vmatpush1.xpose.msra.mxu0 %v2541
    %2547 = vmatprep.subr.mxu0 0.0
    %2548 = vmatpush1.xpose.msra.mxu0 %v2543
    %2549 = vmatprep.subr.mxu0 0.0
    %2550 = vmatpush1.xpose.msra.mxu0 0.0
    %2551 = vmatprep.subr.mxu0 0.0
    %2552 = vmatpush1.xpose.msra.mxu0 0.0
    %2553 = vmatprep.subr.mxu0 0.0
    %2554 = vmatpush1.xpose.msra.mxu0 0.0
    %2555 = vmatprep.subr.mxu0 0.0
    %2556 = vmatpush1.xpose.msra.mxu0 0.0
    %2557 = vmatprep.subr.mxu0 0.0
    %2558 = vmatpush1.xpose.msra.mxu0 0.0
    %2559 = vmatprep.subr.mxu0 0.0
    %2560 = vmatpush1.xpose.msra.mxu0 0.0
    %2561 = vmatprep.subr.mxu0 0.0
    %2562 = vmatpush1.xpose.msra.mxu0 0.0
    %2563 = vmatprep.subr.mxu0 0.0
    %2564 = vmatpush1.xpose.msra.mxu0 0.0
    %2565 = vmatprep.subr.mxu0 0.0
    %2566 = vmatpush1.xpose.msra.mxu0 0.0
    %2567 = vmatprep.subr.mxu0 0.0
    %2568 = vmatpush1.xpose.msra.mxu0 0.0
    %2569 = vmatprep.subr.mxu0 0.0
    %2570 = vmatpush1.xpose.msra.mxu0 0.0
    %2571 = vmatprep.subr.mxu0 0.0
    %2572 = vmatpush1.xpose.msra.mxu0 0.0
    %2573 = vmatprep.subr.mxu0 0.0
    %2574 = vmatpush1.xpose.msra.mxu0 0.0
    %2575 = vmatprep.subr.mxu0 0.0
    %2576 = vmatpush1.xpose.msra.mxu0 0.0
    %2577 = vmatprep.subr.mxu0 0.0
    %2578 = vmatpush1.xpose.msra.mxu0 0.0
    %2579 = vmatprep.subr.mxu0 0.0
    %2580 = vmatpush1.xpose.msra.mxu0 0.0
    %2581 = vmatprep.subr.mxu0 0.0
    %2582 = vmatpush1.xpose.msra.mxu0 0.0
    %2583 = vmatprep.subr.mxu0 0.0
    %2584 = vmatpush1.xpose.msra.mxu0 0.0
    %2585 = vmatprep.subr.mxu0 0.0
    %2586 = vmatpush1.xpose.msra.mxu0 0.0
    %2587 = vmatprep.subr.mxu0 0.0
    %2588 = vmatpush1.xpose.msra.mxu0 0.0
    %2589 = vmatprep.subr.mxu0 0.0
    %2590 = vmatpush1.xpose.msra.mxu0 0.0
    %2591 = vmatprep.subr.mxu0 0.0
    %2592 = vmatpush1.xpose.msra.mxu0 0.0
    %2593 = vmatprep.subr.mxu0 0.0
    %2594 = vmatpush1.xpose.msra.mxu0 0.0
    %2595 = vmatprep.subr.mxu0 0.0
    %2596 = vmatpush1.xpose.msra.mxu0 0.0
    %2597 = vmatprep.subr.mxu0 0.0
    %2598 = vmatpush1.xpose.msra.mxu0 0.0
    %2599 = vmatprep.subr.mxu0 0.0
    %2600 = vmatpush1.xpose.msra.mxu0 0.0
    %2601 = vmatprep.subr.mxu0 0.0
    %2602 = vmatpush1.xpose.msra.mxu0 0.0
    %2603 = vmatprep.subr.mxu0 0.0
    %2604 = vmatpush1.xpose.msra.mxu0 0.0
    %2605 = vmatprep.subr.mxu0 0.0
    %2606 = vmatpush1.xpose.msra.mxu0 0.0
    %2607 = vmatprep.subr.mxu0 0.0
    %2608 = vmatpush1.xpose.msra.mxu0 0.0
    %2609 = vmatprep.mubr.f32.mxu0 0.0
    %2610 = vmatmul.mubr.f32.gmra.mrb[0].mxu0 %v2537
    %v2611 = vpop.f32.mrb[0].mxu0
    %v2612 = vadd.f32 0.0, %v2611
    %v2613 = vpop.f32.mrb[0].mxu0
    %2614 = vmatprep.mubr.f32.mxu0 0.0
    %2615 = vmatmul.mubr.f32.gmra.mrb[0].mxu0 %v2539
    %v2616 = vpop.f32.mrb[0].mxu0
    %v2617 = vadd.f32 0.0, %v2616
    %v2618 = vpop.f32.mrb[0].mxu0
    %2619 = vdwg.mxu0
    %2620 = vrot.lane.b32.xlu0 %v334, 96
    %v2621 = vpop.permute.xlu0 %2620
    %2622 = vrot.lane.b32.xlu0 %v336, 96
    %v2623 = vpop.permute.xlu0 %2622
    %v2624 = vsel %vm361, %v334, 0
    %v2626 = vsel %vm361, %v336, 0
    %v2628 = vsel %vm361, %v2621, 0
    %v2630 = vsel %vm361, %v2623, 0
    %2632 = vmatprep.subr.mxu0 0.0
    %2633 = vmatpush1.xpose.msra.mxu0 %v2628
    %2634 = vmatprep.subr.mxu0 0.0
    %2635 = vmatpush1.xpose.msra.mxu0 %v2630
    %2636 = vmatprep.subr.mxu0 0.0
    %2637 = vmatpush1.xpose.msra.mxu0 0.0
    %2638 = vmatprep.subr.mxu0 0.0
    %2639 = vmatpush1.xpose.msra.mxu0 0.0
    %2640 = vmatprep.subr.mxu0 0.0
    %2641 = vmatpush1.xpose.msra.mxu0 0.0
    %2642 = vmatprep.subr.mxu0 0.0
    %2643 = vmatpush1.xpose.msra.mxu0 0.0
    %2644 = vmatprep.subr.mxu0 0.0
    %2645 = vmatpush1.xpose.msra.mxu0 0.0
    %2646 = vmatprep.subr.mxu0 0.0
    %2647 = vmatpush1.xpose.msra.mxu0 0.0
    %2648 = vmatprep.subr.mxu0 0.0
    %2649 = vmatpush1.xpose.msra.mxu0 0.0
    %2650 = vmatprep.subr.mxu0 0.0
    %2651 = vmatpush1.xpose.msra.mxu0 0.0
    %2652 = vmatprep.subr.mxu0 0.0
    %2653 = vmatpush1.xpose.msra.mxu0 0.0
    %2654 = vmatprep.subr.mxu0 0.0
    %2655 = vmatpush1.xpose.msra.mxu0 0.0
    %2656 = vmatprep.subr.mxu0 0.0
    %2657 = vmatpush1.xpose.msra.mxu0 0.0
    %2658 = vmatprep.subr.mxu0 0.0
    %2659 = vmatpush1.xpose.msra.mxu0 0.0
    %2660 = vmatprep.subr.mxu0 0.0
    %2661 = vmatpush1.xpose.msra.mxu0 0.0
    %2662 = vmatprep.subr.mxu0 0.0
    %2663 = vmatpush1.xpose.msra.mxu0 0.0
    %2664 = vmatprep.subr.mxu0 0.0
    %2665 = vmatpush1.xpose.msra.mxu0 0.0
    %2666 = vmatprep.subr.mxu0 0.0
    %2667 = vmatpush1.xpose.msra.mxu0 0.0
    %2668 = vmatprep.subr.mxu0 0.0
    %2669 = vmatpush1.xpose.msra.mxu0 0.0
    %2670 = vmatprep.subr.mxu0 0.0
    %2671 = vmatpush1.xpose.msra.mxu0 0.0
    %2672 = vmatprep.subr.mxu0 0.0
    %2673 = vmatpush1.xpose.msra.mxu0 0.0
    %2674 = vmatprep.subr.mxu0 0.0
    %2675 = vmatpush1.xpose.msra.mxu0 0.0
    %2676 = vmatprep.subr.mxu0 0.0
    %2677 = vmatpush1.xpose.msra.mxu0 0.0
    %2678 = vmatprep.subr.mxu0 0.0
    %2679 = vmatpush1.xpose.msra.mxu0 0.0
    %2680 = vmatprep.subr.mxu0 0.0
    %2681 = vmatpush1.xpose.msra.mxu0 0.0
    %2682 = vmatprep.subr.mxu0 0.0
    %2683 = vmatpush1.xpose.msra.mxu0 0.0
    %2684 = vmatprep.subr.mxu0 0.0
    %2685 = vmatpush1.xpose.msra.mxu0 0.0
    %2686 = vmatprep.subr.mxu0 0.0
    %2687 = vmatpush1.xpose.msra.mxu0 0.0
    %2688 = vmatprep.subr.mxu0 0.0
    %2689 = vmatpush1.xpose.msra.mxu0 0.0
    %2690 = vmatprep.subr.mxu0 0.0
    %2691 = vmatpush1.xpose.msra.mxu0 0.0
    %2692 = vmatprep.subr.mxu0 0.0
    %2693 = vmatpush1.xpose.msra.mxu0 0.0
    %2694 = vmatprep.subr.mxu0 0.0
    %2695 = vmatpush1.xpose.msra.mxu0 0.0
    %2696 = vmatprep.mubr.f32.mxu0 0.0
    %2697 = vmatmul.mubr.f32.gmra.mrb[0].mxu0 %v2624
    %v2698 = vpop.f32.mrb[0].mxu0
    %v2699 = vadd.f32 0.0, %v2698
    %v2700 = vpop.f32.mrb[0].mxu0
    %2701 = vmatprep.mubr.f32.mxu0 0.0
    %2702 = vmatmul.mubr.f32.gmra.mrb[0].mxu0 %v2626
    %v2703 = vpop.f32.mrb[0].mxu0
    %v2704 = vadd.f32 0.0, %v2703
    %v2705 = vpop.f32.mrb[0].mxu0
    %2706 = vdwg.mxu0
    %2707 = vrot.lane.b32.xlu0 %v338, 96
    %v2708 = vpop.permute.xlu0 %2707
    %2709 = vrot.lane.b32.xlu0 %v340, 96
    %v2710 = vpop.permute.xlu0 %2709
    %v2711 = vsel %vm361, %v338, 0
    %v2713 = vsel %vm361, %v340, 0
    %v2715 = vsel %vm361, %v2708, 0
    %v2717 = vsel %vm361, %v2710, 0
    %2719 = vmatprep.subr.mxu0 0.0
    %2720 = vmatpush1.xpose.msra.mxu0 %v2715
    %2721 = vmatprep.subr.mxu0 0.0
    %2722 = vmatpush1.xpose.msra.mxu0 %v2717
    %2723 = vmatprep.subr.mxu0 0.0
    %2724 = vmatpush1.xpose.msra.mxu0 0.0
    %2725 = vmatprep.subr.mxu0 0.0
    %2726 = vmatpush1.xpose.msra.mxu0 0.0
    %2727 = vmatprep.subr.mxu0 0.0
    %2728 = vmatpush1.xpose.msra.mxu0 0.0
    %2729 = vmatprep.subr.mxu0 0.0
    %2730 = vmatpush1.xpose.msra.mxu0 0.0
    %2731 = vmatprep.subr.mxu0 0.0
    %2732 = vmatpush1.xpose.msra.mxu0 0.0
    %2733 = vmatprep.subr.mxu0 0.0
    %2734 = vmatpush1.xpose.msra.mxu0 0.0
    %2735 = vmatprep.subr.mxu0 0.0
    %2736 = vmatpush1.xpose.msra.mxu0 0.0
    %2737 = vmatprep.subr.mxu0 0.0
    %2738 = vmatpush1.xpose.msra.mxu0 0.0
    %2739 = vmatprep.subr.mxu0 0.0
    %2740 = vmatpush1.xpose.msra.mxu0 0.0
    %2741 = vmatprep.subr.mxu0 0.0
    %2742 = vmatpush1.xpose.msra.mxu0 0.0
    %2743 = vmatprep.subr.mxu0 0.0
    %2744 = vmatpush1.xpose.msra.mxu0 0.0
    %2745 = vmatprep.subr.mxu0 0.0
    %2746 = vmatpush1.xpose.msra.mxu0 0.0
    %2747 = vmatprep.subr.mxu0 0.0
    %2748 = vmatpush1.xpose.msra.mxu0 0.0
    %2749 = vmatprep.subr.mxu0 0.0
    %2750 = vmatpush1.xpose.msra.mxu0 0.0
    %2751 = vmatprep.subr.mxu0 0.0
    %2752 = vmatpush1.xpose.msra.mxu0 0.0
    %2753 = vmatprep.subr.mxu0 0.0
    %2754 = vmatpush1.xpose.msra.mxu0 0.0
    %2755 = vmatprep.subr.mxu0 0.0
    %2756 = vmatpush1.xpose.msra.mxu0 0.0
    %2757 = vmatprep.subr.mxu0 0.0
    %2758 = vmatpush1.xpose.msra.mxu0 0.0
    %2759 = vmatprep.subr.mxu0 0.0
    %2760 = vmatpush1.xpose.msra.mxu0 0.0
    %2761 = vmatprep.subr.mxu0 0.0
    %2762 = vmatpush1.xpose.msra.mxu0 0.0
    %2763 = vmatprep.subr.mxu0 0.0
    %2764 = vmatpush1.xpose.msra.mxu0 0.0
    %2765 = vmatprep.subr.mxu0 0.0
    %2766 = vmatpush1.xpose.msra.mxu0 0.0
    %2767 = vmatprep.subr.mxu0 0.0
    %2768 = vmatpush1.xpose.msra.mxu0 0.0
    %2769 = vmatprep.subr.mxu0 0.0
    %2770 = vmatpush1.xpose.msra.mxu0 0.0
    %2771 = vmatprep.subr.mxu0 0.0
    %2772 = vmatpush1.xpose.msra.mxu0 0.0
    %2773 = vmatprep.subr.mxu0 0.0
    %2774 = vmatpush1.xpose.msra.mxu0 0.0
    %2775 = vmatprep.subr.mxu0 0.0
    %2776 = vmatpush1.xpose.msra.mxu0 0.0
    %2777 = vmatprep.subr.mxu0 0.0
    %2778 = vmatpush1.xpose.msra.mxu0 0.0
    %2779 = vmatprep.subr.mxu0 0.0
    %2780 = vmatpush1.xpose.msra.mxu0 0.0
    %2781 = vmatprep.subr.mxu0 0.0
    %2782 = vmatpush1.xpose.msra.mxu0 0.0
    %2783 = vmatprep.mubr.f32.mxu0 0.0
    %2784 = vmatmul.mubr.f32.gmra.mrb[0].mxu0 %v2711
    %v2785 = vpop.f32.mrb[0].mxu0
    %v2786 = vadd.f32 0.0, %v2785
    %v2787 = vpop.f32.mrb[0].mxu0
    %2788 = vmatprep.mubr.f32.mxu0 0.0
    %2789 = vmatmul.mubr.f32.gmra.mrb[0].mxu0 %v2713
    %v2790 = vpop.f32.mrb[0].mxu0
    %v2791 = vadd.f32 0.0, %v2790
    %v2792 = vpop.f32.mrb[0].mxu0
    %2793 = vdwg.mxu0
    %2794 = vrot.lane.b32.xlu0 %v342, 96
    %v2795 = vpop.permute.xlu0 %2794
    %2796 = vrot.lane.b32.xlu0 %v344, 96
    %v2797 = vpop.permute.xlu0 %2796
    %v2798 = vsel %vm361, %v342, 0
    %v2800 = vsel %vm361, %v344, 0
    %v2802 = vsel %vm361, %v2795, 0
    %v2804 = vsel %vm361, %v2797, 0
    %2806 = vmatprep.subr.mxu0 0.0
    %2807 = vmatpush1.xpose.msra.mxu0 %v2802
    %2808 = vmatprep.subr.mxu0 0.0
    %2809 = vmatpush1.xpose.msra.mxu0 %v2804
    %2810 = vmatprep.subr.mxu0 0.0
    %2811 = vmatpush1.xpose.msra.mxu0 0.0
    %2812 = vmatprep.subr.mxu0 0.0
    %2813 = vmatpush1.xpose.msra.mxu0 0.0
    %2814 = vmatprep.subr.mxu0 0.0
    %2815 = vmatpush1.xpose.msra.mxu0 0.0
    %2816 = vmatprep.subr.mxu0 0.0
    %2817 = vmatpush1.xpose.msra.mxu0 0.0
    %2818 = vmatprep.subr.mxu0 0.0
    %2819 = vmatpush1.xpose.msra.mxu0 0.0
    %2820 = vmatprep.subr.mxu0 0.0
    %2821 = vmatpush1.xpose.msra.mxu0 0.0
    %2822 = vmatprep.subr.mxu0 0.0
    %2823 = vmatpush1.xpose.msra.mxu0 0.0
    %2824 = vmatprep.subr.mxu0 0.0
    %2825 = vmatpush1.xpose.msra.mxu0 0.0
    %2826 = vmatprep.subr.mxu0 0.0
    %2827 = vmatpush1.xpose.msra.mxu0 0.0
    %2828 = vmatprep.subr.mxu0 0.0
    %2829 = vmatpush1.xpose.msra.mxu0 0.0
    %2830 = vmatprep.subr.mxu0 0.0
    %2831 = vmatpush1.xpose.msra.mxu0 0.0
    %2832 = vmatprep.subr.mxu0 0.0
    %2833 = vmatpush1.xpose.msra.mxu0 0.0
    %2834 = vmatprep.subr.mxu0 0.0
    %2835 = vmatpush1.xpose.msra.mxu0 0.0
    %2836 = vmatprep.subr.mxu0 0.0
    %2837 = vmatpush1.xpose.msra.mxu0 0.0
    %2838 = vmatprep.subr.mxu0 0.0
    %2839 = vmatpush1.xpose.msra.mxu0 0.0
    %2840 = vmatprep.subr.mxu0 0.0
    %2841 = vmatpush1.xpose.msra.mxu0 0.0
    %2842 = vmatprep.subr.mxu0 0.0
    %2843 = vmatpush1.xpose.msra.mxu0 0.0
    %2844 = vmatprep.subr.mxu0 0.0
    %2845 = vmatpush1.xpose.msra.mxu0 0.0
    %2846 = vmatprep.subr.mxu0 0.0
    %2847 = vmatpush1.xpose.msra.mxu0 0.0
    %2848 = vmatprep.subr.mxu0 0.0
    %2849 = vmatpush1.xpose.msra.mxu0 0.0
    %2850 = vmatprep.subr.mxu0 0.0
    %2851 = vmatpush1.xpose.msra.mxu0 0.0
    %2852 = vmatprep.subr.mxu0 0.0
    %2853 = vmatpush1.xpose.msra.mxu0 0.0
    %2854 = vmatprep.subr.mxu0 0.0
    %2855 = vmatpush1.xpose.msra.mxu0 0.0
    %2856 = vmatprep.subr.mxu0 0.0
    %2857 = vmatpush1.xpose.msra.mxu0 0.0
    %2858 = vmatprep.subr.mxu0 0.0
    %2859 = vmatpush1.xpose.msra.mxu0 0.0
    %2860 = vmatprep.subr.mxu0 0.0
    %2861 = vmatpush1.xpose.msra.mxu0 0.0
    %2862 = vmatprep.subr.mxu0 0.0
    %2863 = vmatpush1.xpose.msra.mxu0 0.0
    %2864 = vmatprep.subr.mxu0 0.0
    %2865 = vmatpush1.xpose.msra.mxu0 0.0
    %2866 = vmatprep.subr.mxu0 0.0
    %2867 = vmatpush1.xpose.msra.mxu0 0.0
    %2868 = vmatprep.subr.mxu0 0.0
    %2869 = vmatpush1.xpose.msra.mxu0 0.0
    %2870 = vmatprep.mubr.f32.mxu0 0.0
    %2871 = vmatmul.mubr.f32.gmra.mrb[0].mxu0 %v2798
    %v2872 = vpop.f32.mrb[0].mxu0
    %v2873 = vadd.f32 0.0, %v2872
    %v2874 = vpop.f32.mrb[0].mxu0
    %2875 = vmatprep.mubr.f32.mxu0 0.0
    %2876 = vmatmul.mubr.f32.gmra.mrb[0].mxu0 %v2800
    %v2877 = vpop.f32.mrb[0].mxu0
    %v2878 = vadd.f32 0.0, %v2877
    %v2879 = vpop.f32.mrb[0].mxu0
    %2880 = vdwg.mxu0
    %2881 = vrot.lane.b32.xlu0 %v346, 96
    %v2882 = vpop.permute.xlu0 %2881
    %2883 = vrot.lane.b32.xlu0 %v348, 96
    %v2884 = vpop.permute.xlu0 %2883
    %v2885 = vsel %vm361, %v346, 0
    %v2887 = vsel %vm361, %v348, 0
    %v2889 = vsel %vm361, %v2882, 0
    %v2891 = vsel %vm361, %v2884, 0
    %2893 = vmatprep.subr.mxu0 0.0
    %2894 = vmatpush1.xpose.msra.mxu0 %v2889
    %2895 = vmatprep.subr.mxu0 0.0
    %2896 = vmatpush1.xpose.msra.mxu0 %v2891
    %2897 = vmatprep.subr.mxu0 0.0
    %2898 = vmatpush1.xpose.msra.mxu0 0.0
    %2899 = vmatprep.subr.mxu0 0.0
    %2900 = vmatpush1.xpose.msra.mxu0 0.0
    %2901 = vmatprep.subr.mxu0 0.0
    %2902 = vmatpush1.xpose.msra.mxu0 0.0
    %2903 = vmatprep.subr.mxu0 0.0
    %2904 = vmatpush1.xpose.msra.mxu0 0.0
    %2905 = vmatprep.subr.mxu0 0.0
    %2906 = vmatpush1.xpose.msra.mxu0 0.0
    %2907 = vmatprep.subr.mxu0 0.0
    %2908 = vmatpush1.xpose.msra.mxu0 0.0
    %2909 = vmatprep.subr.mxu0 0.0
    %2910 = vmatpush1.xpose.msra.mxu0 0.0
    %2911 = vmatprep.subr.mxu0 0.0
    %2912 = vmatpush1.xpose.msra.mxu0 0.0
    %2913 = vmatprep.subr.mxu0 0.0
    %2914 = vmatpush1.xpose.msra.mxu0 0.0
    %2915 = vmatprep.subr.mxu0 0.0
    %2916 = vmatpush1.xpose.msra.mxu0 0.0
    %2917 = vmatprep.subr.mxu0 0.0
    %2918 = vmatpush1.xpose.msra.mxu0 0.0
    %2919 = vmatprep.subr.mxu0 0.0
    %2920 = vmatpush1.xpose.msra.mxu0 0.0
    %2921 = vmatprep.subr.mxu0 0.0
    %2922 = vmatpush1.xpose.msra.mxu0 0.0
    %2923 = vmatprep.subr.mxu0 0.0
    %2924 = vmatpush1.xpose.msra.mxu0 0.0
    %2925 = vmatprep.subr.mxu0 0.0
    %2926 = vmatpush1.xpose.msra.mxu0 0.0
    %2927 = vmatprep.subr.mxu0 0.0
    %2928 = vmatpush1.xpose.msra.mxu0 0.0
    %2929 = vmatprep.subr.mxu0 0.0
    %2930 = vmatpush1.xpose.msra.mxu0 0.0
    %2931 = vmatprep.subr.mxu0 0.0
    %2932 = vmatpush1.xpose.msra.mxu0 0.0
    %2933 = vmatprep.subr.mxu0 0.0
    %2934 = vmatpush1.xpose.msra.mxu0 0.0
    %2935 = vmatprep.subr.mxu0 0.0
    %2936 = vmatpush1.xpose.msra.mxu0 0.0
    %2937 = vmatprep.subr.mxu0 0.0
    %2938 = vmatpush1.xpose.msra.mxu0 0.0
    %2939 = vmatprep.subr.mxu0 0.0
    %2940 = vmatpush1.xpose.msra.mxu0 0.0
    %2941 = vmatprep.subr.mxu0 0.0
    %2942 = vmatpush1.xpose.msra.mxu0 0.0
    %2943 = vmatprep.subr.mxu0 0.0
    %2944 = vmatpush1.xpose.msra.mxu0 0.0
    %2945 = vmatprep.subr.mxu0 0.0
    %2946 = vmatpush1.xpose.msra.mxu0 0.0
    %2947 = vmatprep.subr.mxu0 0.0
    %2948 = vmatpush1.xpose.msra.mxu0 0.0
    %2949 = vmatprep.subr.mxu0 0.0
    %2950 = vmatpush1.xpose.msra.mxu0 0.0
    %2951 = vmatprep.subr.mxu0 0.0
    %2952 = vmatpush1.xpose.msra.mxu0 0.0
    %2953 = vmatprep.subr.mxu0 0.0
    %2954 = vmatpush1.xpose.msra.mxu0 0.0
    %2955 = vmatprep.subr.mxu0 0.0
    %2956 = vmatpush1.xpose.msra.mxu0 0.0
    %2957 = vmatprep.mubr.f32.mxu0 0.0
    %2958 = vmatmul.mubr.f32.gmra.mrb[0].mxu0 %v2885
    %v2959 = vpop.f32.mrb[0].mxu0
    %v2960 = vadd.f32 0.0, %v2959
    %v2961 = vpop.f32.mrb[0].mxu0
    %2962 = vmatprep.mubr.f32.mxu0 0.0
    %2963 = vmatmul.mubr.f32.gmra.mrb[0].mxu0 %v2887
    %v2964 = vpop.f32.mrb[0].mxu0
    %v2965 = vadd.f32 0.0, %v2964
    %v2966 = vpop.f32.mrb[0].mxu0
    %2967 = vdwg.mxu0
    %2968 = vrot.lane.b32.xlu0 %v350, 96
    %v2969 = vpop.permute.xlu0 %2968
    %2970 = vrot.lane.b32.xlu0 %v352, 96
    %v2971 = vpop.permute.xlu0 %2970
    %v2972 = vsel %vm361, %v350, 0
    %v2974 = vsel %vm361, %v352, 0
    %v2976 = vsel %vm361, %v2969, 0
    %v2978 = vsel %vm361, %v2971, 0
    %2980 = vmatprep.subr.mxu0 0.0
    %2981 = vmatpush1.xpose.msra.mxu0 %v2976
    %2982 = vmatprep.subr.mxu0 0.0
    %2983 = vmatpush1.xpose.msra.mxu0 %v2978
    %2984 = vmatprep.subr.mxu0 0.0
    %2985 = vmatpush1.xpose.msra.mxu0 0.0
    %2986 = vmatprep.subr.mxu0 0.0
    %2987 = vmatpush1.xpose.msra.mxu0 0.0
    %2988 = vmatprep.subr.mxu0 0.0
    %2989 = vmatpush1.xpose.msra.mxu0 0.0
    %2990 = vmatprep.subr.mxu0 0.0
    %2991 = vmatpush1.xpose.msra.mxu0 0.0
    %2992 = vmatprep.subr.mxu0 0.0
    %2993 = vmatpush1.xpose.msra.mxu0 0.0
    %2994 = vmatprep.subr.mxu0 0.0
    %2995 = vmatpush1.xpose.msra.mxu0 0.0
    %2996 = vmatprep.subr.mxu0 0.0
    %2997 = vmatpush1.xpose.msra.mxu0 0.0
    %2998 = vmatprep.subr.mxu0 0.0
    %2999 = vmatpush1.xpose.msra.mxu0 0.0
    %3000 = vmatprep.subr.mxu0 0.0
    %3001 = vmatpush1.xpose.msra.mxu0 0.0
    %3002 = vmatprep.subr.mxu0 0.0
    %3003 = vmatpush1.xpose.msra.mxu0 0.0
    %3004 = vmatprep.subr.mxu0 0.0
    %3005 = vmatpush1.xpose.msra.mxu0 0.0
    %3006 = vmatprep.subr.mxu0 0.0
    %3007 = vmatpush1.xpose.msra.mxu0 0.0
    %3008 = vmatprep.subr.mxu0 0.0
    %3009 = vmatpush1.xpose.msra.mxu0 0.0
    %3010 = vmatprep.subr.mxu0 0.0
    %3011 = vmatpush1.xpose.msra.mxu0 0.0
    %3012 = vmatprep.subr.mxu0 0.0
    %3013 = vmatpush1.xpose.msra.mxu0 0.0
    %3014 = vmatprep.subr.mxu0 0.0
    %3015 = vmatpush1.xpose.msra.mxu0 0.0
    %3016 = vmatprep.subr.mxu0 0.0
    %3017 = vmatpush1.xpose.msra.mxu0 0.0
    %3018 = vmatprep.subr.mxu0 0.0
    %3019 = vmatpush1.xpose.msra.mxu0 0.0
    %3020 = vmatprep.subr.mxu0 0.0
    %3021 = vmatpush1.xpose.msra.mxu0 0.0
    %3022 = vmatprep.subr.mxu0 0.0
    %3023 = vmatpush1.xpose.msra.mxu0 0.0
    %3024 = vmatprep.subr.mxu0 0.0
    %3025 = vmatpush1.xpose.msra.mxu0 0.0
    %3026 = vmatprep.subr.mxu0 0.0
    %3027 = vmatpush1.xpose.msra.mxu0 0.0
    %3028 = vmatprep.subr.mxu0 0.0
    %3029 = vmatpush1.xpose.msra.mxu0 0.0
    %3030 = vmatprep.subr.mxu0 0.0
    %3031 = vmatpush1.xpose.msra.mxu0 0.0
    %3032 = vmatprep.subr.mxu0 0.0
    %3033 = vmatpush1.xpose.msra.mxu0 0.0
    %3034 = vmatprep.subr.mxu0 0.0
    %3035 = vmatpush1.xpose.msra.mxu0 0.0
    %3036 = vmatprep.subr.mxu0 0.0
    %3037 = vmatpush1.xpose.msra.mxu0 0.0
    %3038 = vmatprep.subr.mxu0 0.0
    %3039 = vmatpush1.xpose.msra.mxu0 0.0
    %3040 = vmatprep.subr.mxu0 0.0
    %3041 = vmatpush1.xpose.msra.mxu0 0.0
    %3042 = vmatprep.subr.mxu0 0.0
    %3043 = vmatpush1.xpose.msra.mxu0 0.0
    %3044 = vmatprep.mubr.f32.mxu0 0.0
    %3045 = vmatmul.mubr.f32.gmra.mrb[0].mxu0 %v2972
    %v3046 = vpop.f32.mrb[0].mxu0
    %v3047 = vadd.f32 0.0, %v3046
    %v3048 = vpop.f32.mrb[0].mxu0
    %3049 = vmatprep.mubr.f32.mxu0 0.0
    %3050 = vmatmul.mubr.f32.gmra.mrb[0].mxu0 %v2974
    %v3051 = vpop.f32.mrb[0].mxu0
    %v3052 = vadd.f32 0.0, %v3051
    %v3053 = vpop.f32.mrb[0].mxu0
    %3054 = vdwg.mxu0
    %3055 = vrot.lane.b32.xlu0 %v354, 96
    %v3056 = vpop.permute.xlu0 %3055
    %3057 = vrot.lane.b32.xlu0 %v356, 96
    %v3058 = vpop.permute.xlu0 %3057
    %v3059 = vsel %vm361, %v354, 0
    %v3061 = vsel %vm361, %v356, 0
    %v3063 = vsel %vm361, %v3056, 0
    %v3065 = vsel %vm361, %v3058, 0
    %3067 = vmatprep.subr.mxu0 0.0
    %3068 = vmatpush1.xpose.msra.mxu0 %v3063
    %3069 = vmatprep.subr.mxu0 0.0
    %3070 = vmatpush1.xpose.msra.mxu0 %v3065
    %3071 = vmatprep.subr.mxu0 0.0
    %3072 = vmatpush1.xpose.msra.mxu0 0.0
    %3073 = vmatprep.subr.mxu0 0.0
    %3074 = vmatpush1.xpose.msra.mxu0 0.0
    %3075 = vmatprep.subr.mxu0 0.0
    %3076 = vmatpush1.xpose.msra.mxu0 0.0
    %3077 = vmatprep.subr.mxu0 0.0
    %3078 = vmatpush1.xpose.msra.mxu0 0.0
    %3079 = vmatprep.subr.mxu0 0.0
    %3080 = vmatpush1.xpose.msra.mxu0 0.0
    %3081 = vmatprep.subr.mxu0 0.0
    %3082 = vmatpush1.xpose.msra.mxu0 0.0
    %3083 = vmatprep.subr.mxu0 0.0
    %3084 = vmatpush1.xpose.msra.mxu0 0.0
    %3085 = vmatprep.subr.mxu0 0.0
    %3086 = vmatpush1.xpose.msra.mxu0 0.0
    %3087 = vmatprep.subr.mxu0 0.0
    %3088 = vmatpush1.xpose.msra.mxu0 0.0
    %3089 = vmatprep.subr.mxu0 0.0
    %3090 = vmatpush1.xpose.msra.mxu0 0.0
    %3091 = vmatprep.subr.mxu0 0.0
    %3092 = vmatpush1.xpose.msra.mxu0 0.0
    %3093 = vmatprep.subr.mxu0 0.0
    %3094 = vmatpush1.xpose.msra.mxu0 0.0
    %3095 = vmatprep.subr.mxu0 0.0
    %3096 = vmatpush1.xpose.msra.mxu0 0.0
    %3097 = vmatprep.subr.mxu0 0.0
    %3098 = vmatpush1.xpose.msra.mxu0 0.0
    %3099 = vmatprep.subr.mxu0 0.0
    %3100 = vmatpush1.xpose.msra.mxu0 0.0
    %3101 = vmatprep.subr.mxu0 0.0
    %3102 = vmatpush1.xpose.msra.mxu0 0.0
    %3103 = vmatprep.subr.mxu0 0.0
    %3104 = vmatpush1.xpose.msra.mxu0 0.0
    %3105 = vmatprep.subr.mxu0 0.0
    %3106 = vmatpush1.xpose.msra.mxu0 0.0
    %3107 = vmatprep.subr.mxu0 0.0
    %3108 = vmatpush1.xpose.msra.mxu0 0.0
    %3109 = vmatprep.subr.mxu0 0.0
    %3110 = vmatpush1.xpose.msra.mxu0 0.0
    %3111 = vmatprep.subr.mxu0 0.0
    %3112 = vmatpush1.xpose.msra.mxu0 0.0
    %3113 = vmatprep.subr.mxu0 0.0
    %3114 = vmatpush1.xpose.msra.mxu0 0.0
    %3115 = vmatprep.subr.mxu0 0.0
    %3116 = vmatpush1.xpose.msra.mxu0 0.0
    %3117 = vmatprep.subr.mxu0 0.0
    %3118 = vmatpush1.xpose.msra.mxu0 0.0
    %3119 = vmatprep.subr.mxu0 0.0
    %3120 = vmatpush1.xpose.msra.mxu0 0.0
    %3121 = vmatprep.subr.mxu0 0.0
    %3122 = vmatpush1.xpose.msra.mxu0 0.0
    %3123 = vmatprep.subr.mxu0 0.0
    %3124 = vmatpush1.xpose.msra.mxu0 0.0
    %3125 = vmatprep.subr.mxu0 0.0
    %3126 = vmatpush1.xpose.msra.mxu0 0.0
    %3127 = vmatprep.subr.mxu0 0.0
    %3128 = vmatpush1.xpose.msra.mxu0 0.0
    %3129 = vmatprep.subr.mxu0 0.0
    %3130 = vmatpush1.xpose.msra.mxu0 0.0
    %3131 = vmatprep.mubr.f32.mxu0 0.0
    %3132 = vmatmul.mubr.f32.gmra.mrb[0].mxu0 %v3059
    %v3133 = vpop.f32.mrb[0].mxu0
    %v3134 = vadd.f32 0.0, %v3133
    %v3135 = vpop.f32.mrb[0].mxu0
    %3136 = vmatprep.mubr.f32.mxu0 0.0
    %3137 = vmatmul.mubr.f32.gmra.mrb[0].mxu0 %v3061
    %v3138 = vpop.f32.mrb[0].mxu0
    %v3139 = vadd.f32 0.0, %v3138
    %v3140 = vpop.f32.mrb[0].mxu0
    %3141 = vdwg.mxu0
    %vm3142 = vcmask 130048
    %v3143 = vsel %vm3142, %v437, -inf
    %3144 = vmax.xlane.f32.xlu0 %v3143
    %v3145 = vpop.xlane.xlu0 %3144
    %v3146 = vsel %vm3142, %v442, -inf
    %3147 = vmax.xlane.f32.xlu0 %v3146
    %v3148 = vpop.xlane.xlu0 %3147
    %v3149 = vsel %vm3142, %v524, -inf
    %3150 = vmax.xlane.f32.xlu0 %v3149
    %v3151 = vpop.xlane.xlu0 %3150
    %v3152 = vsel %vm3142, %v529, -inf
    %3153 = vmax.xlane.f32.xlu0 %v3152
    %v3154 = vpop.xlane.xlu0 %3153
    %v3155 = vsel %vm3142, %v611, -inf
    %3156 = vmax.xlane.f32.xlu0 %v3155
    %v3157 = vpop.xlane.xlu0 %3156
    %v3158 = vsel %vm3142, %v616, -inf
    %3159 = vmax.xlane.f32.xlu0 %v3158
    %v3160 = vpop.xlane.xlu0 %3159
    %v3161 = vsel %vm3142, %v698, -inf
    %3162 = vmax.xlane.f32.xlu0 %v3161
    %v3163 = vpop.xlane.xlu0 %3162
    %v3164 = vsel %vm3142, %v703, -inf
    %3165 = vmax.xlane.f32.xlu0 %v3164
    %v3166 = vpop.xlane.xlu0 %3165
    %v3167 = vsel %vm3142, %v785, -inf
    %3168 = vmax.xlane.f32.xlu0 %v3167
    %v3169 = vpop.xlane.xlu0 %3168
    %v3170 = vsel %vm3142, %v790, -inf
    %3171 = vmax.xlane.f32.xlu0 %v3170
    %v3172 = vpop.xlane.xlu0 %3171
    %v3173 = vsel %vm3142, %v872, -inf
    %3174 = vmax.xlane.f32.xlu0 %v3173
    %v3175 = vpop.xlane.xlu0 %3174
    %v3176 = vsel %vm3142, %v877, -inf
    %3177 = vmax.xlane.f32.xlu0 %v3176
    %v3178 = vpop.xlane.xlu0 %3177
    %v3179 = vsel %vm3142, %v959, -inf
    %3180 = vmax.xlane.f32.xlu0 %v3179
    %v3181 = vpop.xlane.xlu0 %3180
    %v3182 = vsel %vm3142, %v964, -inf
    %3183 = vmax.xlane.f32.xlu0 %v3182
    %v3184 = vpop.xlane.xlu0 %3183
    %v3185 = vsel %vm3142, %v1046, -inf
    %3186 = vmax.xlane.f32.xlu0 %v3185
    %v3187 = vpop.xlane.xlu0 %3186
    %v3188 = vsel %vm3142, %v1051, -inf
    %3189 = vmax.xlane.f32.xlu0 %v3188
    %v3190 = vpop.xlane.xlu0 %3189
    %v3191 = vsel %vm3142, %v1133, -inf
    %3192 = vmax.xlane.f32.xlu0 %v3191
    %v3193 = vpop.xlane.xlu0 %3192
    %v3194 = vsel %vm3142, %v1138, -inf
    %3195 = vmax.xlane.f32.xlu0 %v3194
    %v3196 = vpop.xlane.xlu0 %3195
    %v3197 = vsel %vm3142, %v1220, -inf
    %3198 = vmax.xlane.f32.xlu0 %v3197
    %v3199 = vpop.xlane.xlu0 %3198
    %v3200 = vsel %vm3142, %v1225, -inf
    %3201 = vmax.xlane.f32.xlu0 %v3200
    %v3202 = vpop.xlane.xlu0 %3201
    %v3203 = vsel %vm3142, %v1307, -inf
    %3204 = vmax.xlane.f32.xlu0 %v3203
    %v3205 = vpop.xlane.xlu0 %3204
    %v3206 = vsel %vm3142, %v1312, -inf
    %3207 = vmax.xlane.f32.xlu0 %v3206
    %v3208 = vpop.xlane.xlu0 %3207
    %v3209 = vsel %vm3142, %v1394, -inf
    %3210 = vmax.xlane.f32.xlu0 %v3209
    %v3211 = vpop.xlane.xlu0 %3210
    %v3212 = vsel %vm3142, %v1399, -inf
    %3213 = vmax.xlane.f32.xlu0 %v3212
    %v3214 = vpop.xlane.xlu0 %3213
    %v3215 = vsel %vm3142, %v1481, -inf
    %3216 = vmax.xlane.f32.xlu0 %v3215
    %v3217 = vpop.xlane.xlu0 %3216
    %v3218 = vsel %vm3142, %v1486, -inf
    %3219 = vmax.xlane.f32.xlu0 %v3218
    %v3220 = vpop.xlane.xlu0 %3219
    %v3221 = vsel %vm3142, %v1568, -inf
    %3222 = vmax.xlane.f32.xlu0 %v3221
    %v3223 = vpop.xlane.xlu0 %3222
    %v3224 = vsel %vm3142, %v1573, -inf
    %3225 = vmax.xlane.f32.xlu0 %v3224
    %v3226 = vpop.xlane.xlu0 %3225
    %v3227 = vsel %vm3142, %v1655, -inf
    %3228 = vmax.xlane.f32.xlu0 %v3227
    %v3229 = vpop.xlane.xlu0 %3228
    %v3230 = vsel %vm3142, %v1660, -inf
    %3231 = vmax.xlane.f32.xlu0 %v3230
    %v3232 = vpop.xlane.xlu0 %3231
    %v3233 = vsel %vm3142, %v1742, -inf
    %3234 = vmax.xlane.f32.xlu0 %v3233
    %v3235 = vpop.xlane.xlu0 %3234
    %v3236 = vsel %vm3142, %v1747, -inf
    %3237 = vmax.xlane.f32.xlu0 %v3236
    %v3238 = vpop.xlane.xlu0 %3237
    %v3239 = vsel %vm3142, %v1829, -inf
    %3240 = vmax.xlane.f32.xlu0 %v3239
    %v3241 = vpop.xlane.xlu0 %3240
    %v3242 = vsel %vm3142, %v1834, -inf
    %3243 = vmax.xlane.f32.xlu0 %v3242
    %v3244 = vpop.xlane.xlu0 %3243
    %v3245 = vsel %vm3142, %v1916, -inf
    %3246 = vmax.xlane.f32.xlu0 %v3245
    %v3247 = vpop.xlane.xlu0 %3246
    %v3248 = vsel %vm3142, %v1921, -inf
    %3249 = vmax.xlane.f32.xlu0 %v3248
    %v3250 = vpop.xlane.xlu0 %3249
    %v3251 = vsel %vm3142, %v2003, -inf
    %3252 = vmax.xlane.f32.xlu0 %v3251
    %v3253 = vpop.xlane.xlu0 %3252
    %v3254 = vsel %vm3142, %v2008, -inf
    %3255 = vmax.xlane.f32.xlu0 %v3254
    %v3256 = vpop.xlane.xlu0 %3255
    %v3257 = vsel %vm3142, %v2090, -inf
    %3258 = vmax.xlane.f32.xlu0 %v3257
    %v3259 = vpop.xlane.xlu0 %3258
    %v3260 = vsel %vm3142, %v2095, -inf
    %3261 = vmax.xlane.f32.xlu0 %v3260
    %v3262 = vpop.xlane.xlu0 %3261
    %v3263 = vsel %vm3142, %v2177, -inf
    %3264 = vmax.xlane.f32.xlu0 %v3263
    %v3265 = vpop.xlane.xlu0 %3264
    %v3266 = vsel %vm3142, %v2182, -inf
    %3267 = vmax.xlane.f32.xlu0 %v3266
    %v3268 = vpop.xlane.xlu0 %3267
    %v3269 = vsel %vm3142, %v2264, -inf
    %3270 = vmax.xlane.f32.xlu0 %v3269
    %v3271 = vpop.xlane.xlu0 %3270
    %v3272 = vsel %vm3142, %v2269, -inf
    %3273 = vmax.xlane.f32.xlu0 %v3272
    %v3274 = vpop.xlane.xlu0 %3273
    %v3275 = vsel %vm3142, %v2351, -inf
    %3276 = vmax.xlane.f32.xlu0 %v3275
    %v3277 = vpop.xlane.xlu0 %3276
    %v3278 = vsel %vm3142, %v2356, -inf
    %3279 = vmax.xlane.f32.xlu0 %v3278
    %v3280 = vpop.xlane.xlu0 %3279
    %v3281 = vsel %vm3142, %v2438, -inf
    %3282 = vmax.xlane.f32.xlu0 %v3281
    %v3283 = vpop.xlane.xlu0 %3282
    %v3284 = vsel %vm3142, %v2443, -inf
    %3285 = vmax.xlane.f32.xlu0 %v3284
    %v3286 = vpop.xlane.xlu0 %3285
    %v3287 = vsel %vm3142, %v2525, -inf
    %3288 = vmax.xlane.f32.xlu0 %v3287
    %v3289 = vpop.xlane.xlu0 %3288
    %v3290 = vsel %vm3142, %v2530, -inf
    %3291 = vmax.xlane.f32.xlu0 %v3290
    %v3292 = vpop.xlane.xlu0 %3291
    %v3293 = vsel %vm3142, %v2612, -inf
    %3294 = vmax.xlane.f32.xlu0 %v3293
    %v3295 = vpop.xlane.xlu0 %3294
    %v3296 = vsel %vm3142, %v2617, -inf
    %3297 = vmax.xlane.f32.xlu0 %v3296
    %v3298 = vpop.xlane.xlu0 %3297
    %v3299 = vsel %vm3142, %v2699, -inf
    %3300 = vmax.xlane.f32.xlu0 %v3299
    %v3301 = vpop.xlane.xlu0 %3300
    %v3302 = vsel %vm3142, %v2704, -inf
    %3303 = vmax.xlane.f32.xlu0 %v3302
    %v3304 = vpop.xlane.xlu0 %3303
    %v3305 = vsel %vm3142, %v2786, -inf
    %3306 = vmax.xlane.f32.xlu0 %v3305
    %v3307 = vpop.xlane.xlu0 %3306
    %v3308 = vsel %vm3142, %v2791, -inf
    %3309 = vmax.xlane.f32.xlu0 %v3308
    %v3310 = vpop.xlane.xlu0 %3309
    %v3311 = vsel %vm3142, %v2873, -inf
    %3312 = vmax.xlane.f32.xlu0 %v3311
    %v3313 = vpop.xlane.xlu0 %3312
    %v3314 = vsel %vm3142, %v2878, -inf
    %3315 = vmax.xlane.f32.xlu0 %v3314
    %v3316 = vpop.xlane.xlu0 %3315
    %v3317 = vsel %vm3142, %v2960, -inf
    %3318 = vmax.xlane.f32.xlu0 %v3317
    %v3319 = vpop.xlane.xlu0 %3318
    %v3320 = vsel %vm3142, %v2965, -inf
    %3321 = vmax.xlane.f32.xlu0 %v3320
    %v3322 = vpop.xlane.xlu0 %3321
    %v3323 = vsel %vm3142, %v3047, -inf
    %3324 = vmax.xlane.f32.xlu0 %v3323
    %v3325 = vpop.xlane.xlu0 %3324
    %v3326 = vsel %vm3142, %v3052, -inf
    %3327 = vmax.xlane.f32.xlu0 %v3326
    %v3328 = vpop.xlane.xlu0 %3327
    %v3329 = vsel %vm3142, %v3134, -inf
    %3330 = vmax.xlane.f32.xlu0 %v3329
    %v3331 = vpop.xlane.xlu0 %3330
    %v3332 = vsel %vm3142, %v3139, -inf
    %3333 = vmax.xlane.f32.xlu0 %v3332
    %v3334 = vpop.xlane.xlu0 %3333
    %v3335 = vsub.f32 %v437, %v3145
    %v3336 = vsub.f32 %v442, %v3148
    %v3337 = vsub.f32 %v524, %v3151
    %v3338 = vsub.f32 %v529, %v3154
    %v3339 = vsub.f32 %v611, %v3157
    %v3340 = vsub.f32 %v616, %v3160
    %v3341 = vsub.f32 %v698, %v3163
    %v3342 = vsub.f32 %v703, %v3166
    %v3343 = vsub.f32 %v785, %v3169
    %v3344 = vsub.f32 %v790, %v3172
    %v3345 = vsub.f32 %v872, %v3175
    %v3346 = vsub.f32 %v877, %v3178
    %v3347 = vsub.f32 %v959, %v3181
    %v3348 = vsub.f32 %v964, %v3184
    %v3349 = vsub.f32 %v1046, %v3187
    %v3350 = vsub.f32 %v1051, %v3190
    %v3351 = vsub.f32 %v1133, %v3193
    %v3352 = vsub.f32 %v1138, %v3196
    %v3353 = vsub.f32 %v1220, %v3199
    %v3354 = vsub.f32 %v1225, %v3202
    %v3355 = vsub.f32 %v1307, %v3205
    %v3356 = vsub.f32 %v1312, %v3208
    %v3357 = vsub.f32 %v1394, %v3211
    %v3358 = vsub.f32 %v1399, %v3214
    %v3359 = vsub.f32 %v1481, %v3217
    %v3360 = vsub.f32 %v1486, %v3220
    %v3361 = vsub.f32 %v1568, %v3223
    %v3362 = vsub.f32 %v1573, %v3226
    %v3363 = vsub.f32 %v1655, %v3229
    %v3364 = vsub.f32 %v1660, %v3232
    %v3365 = vsub.f32 %v1742, %v3235
    %v3366 = vsub.f32 %v1747, %v3238
    %v3367 = vsub.f32 %v1829, %v3241
    %v3368 = vsub.f32 %v1834, %v3244
    %v3369 = vsub.f32 %v1916, %v3247
    %v3370 = vsub.f32 %v1921, %v3250
    %v3371 = vsub.f32 %v2003, %v3253
    %v3372 = vsub.f32 %v2008, %v3256
    %v3373 = vsub.f32 %v2090, %v3259
    %v3374 = vsub.f32 %v2095, %v3262
    %v3375 = vsub.f32 %v2177, %v3265
    %v3376 = vsub.f32 %v2182, %v3268
    %v3377 = vsub.f32 %v2264, %v3271
    %v3378 = vsub.f32 %v2269, %v3274
    %v3379 = vsub.f32 %v2351, %v3277
    %v3380 = vsub.f32 %v2356, %v3280
    %v3381 = vsub.f32 %v2438, %v3283
    %v3382 = vsub.f32 %v2443, %v3286
    %v3383 = vsub.f32 %v2525, %v3289
    %v3384 = vsub.f32 %v2530, %v3292
    %v3385 = vsub.f32 %v2612, %v3295
    %v3386 = vsub.f32 %v2617, %v3298
    %v3387 = vsub.f32 %v2699, %v3301
    %v3388 = vsub.f32 %v2704, %v3304
    %v3389 = vsub.f32 %v2786, %v3307
    %v3390 = vsub.f32 %v2791, %v3310
    %v3391 = vsub.f32 %v2873, %v3313
    %v3392 = vsub.f32 %v2878, %v3316
    %v3393 = vsub.f32 %v2960, %v3319
    %v3394 = vsub.f32 %v2965, %v3322
    %v3395 = vsub.f32 %v3047, %v3325
    %v3396 = vsub.f32 %v3052, %v3328
    %v3397 = vsub.f32 %v3134, %v3331
    %v3398 = vsub.f32 %v3139, %v3334
    %v3399 = vmul.f32 %v3335, 1.442695
    %v3400 = vpow.pop %v3399
    %v3401 = vmul.f32 %v3336, 1.442695
    %v3402 = vpow.pop %v3401
    %v3403 = vmul.f32 %v3337, 1.442695
    %v3404 = vpow.pop %v3403
    %v3405 = vmul.f32 %v3338, 1.442695
    %v3406 = vpow.pop %v3405
    %v3407 = vmul.f32 %v3339, 1.442695
    %v3408 = vpow.pop %v3407
    %v3409 = vmul.f32 %v3340, 1.442695
    %v3410 = vpow.pop %v3409
    %v3411 = vmul.f32 %v3341, 1.442695
    %v3412 = vpow.pop %v3411
    %v3413 = vmul.f32 %v3342, 1.442695
    %v3414 = vpow.pop %v3413
    %v3415 = vmul.f32 %v3343, 1.442695
    %v3416 = vpow.pop %v3415
    %v3417 = vmul.f32 %v3344, 1.442695
    %v3418 = vpow.pop %v3417
    %v3419 = vmul.f32 %v3345, 1.442695
    %v3420 = vpow.pop %v3419
    %v3421 = vmul.f32 %v3346, 1.442695
    %v3422 = vpow.pop %v3421
    %v3423 = vmul.f32 %v3347, 1.442695
    %v3424 = vpow.pop %v3423
    %v3425 = vmul.f32 %v3348, 1.442695
    %v3426 = vpow.pop %v3425
    %v3427 = vmul.f32 %v3349, 1.442695
    %v3428 = vpow.pop %v3427
    %v3429 = vmul.f32 %v3350, 1.442695
    %v3430 = vpow.pop %v3429
    %v3431 = vmul.f32 %v3351, 1.442695
    %v3432 = vpow.pop %v3431
    %v3433 = vmul.f32 %v3352, 1.442695
    %v3434 = vpow.pop %v3433
    %v3435 = vmul.f32 %v3353, 1.442695
    %v3436 = vpow.pop %v3435
    %v3437 = vmul.f32 %v3354, 1.442695
    %v3438 = vpow.pop %v3437
    %v3439 = vmul.f32 %v3355, 1.442695
    %v3440 = vpow.pop %v3439
    %v3441 = vmul.f32 %v3356, 1.442695
    %v3442 = vpow.pop %v3441
    %v3443 = vmul.f32 %v3357, 1.442695
    %v3444 = vpow.pop %v3443
    %v3445 = vmul.f32 %v3358, 1.442695
    %v3446 = vpow.pop %v3445
    %v3447 = vmul.f32 %v3359, 1.442695
    %v3448 = vpow.pop %v3447
    %v3449 = vmul.f32 %v3360, 1.442695
    %v3450 = vpow.pop %v3449
    %v3451 = vmul.f32 %v3361, 1.442695
    %v3452 = vpow.pop %v3451
    %v3453 = vmul.f32 %v3362, 1.442695
    %v3454 = vpow.pop %v3453
    %v3455 = vmul.f32 %v3363, 1.442695
    %v3456 = vpow.pop %v3455
    %v3457 = vmul.f32 %v3364, 1.442695
    %v3458 = vpow.pop %v3457
    %v3459 = vmul.f32 %v3365, 1.442695
    %v3460 = vpow.pop %v3459
    %v3461 = vmul.f32 %v3366, 1.442695
    %v3462 = vpow.pop %v3461
    %v3463 = vmul.f32 %v3367, 1.442695
    %v3464 = vpow.pop %v3463
    %v3465 = vmul.f32 %v3368, 1.442695
    %v3466 = vpow.pop %v3465
    %v3467 = vmul.f32 %v3369, 1.442695
    %v3468 = vpow.pop %v3467
    %v3469 = vmul.f32 %v3370, 1.442695
    %v3470 = vpow.pop %v3469
    %v3471 = vmul.f32 %v3371, 1.442695
    %v3472 = vpow.pop %v3471
    %v3473 = vmul.f32 %v3372, 1.442695
    %v3474 = vpow.pop %v3473
    %v3475 = vmul.f32 %v3373, 1.442695
    %v3476 = vpow.pop %v3475
    %v3477 = vmul.f32 %v3374, 1.442695
    %v3478 = vpow.pop %v3477
    %v3479 = vmul.f32 %v3375, 1.442695
    %v3480 = vpow.pop %v3479
    %v3481 = vmul.f32 %v3376, 1.442695
    %v3482 = vpow.pop %v3481
    %v3483 = vmul.f32 %v3377, 1.442695
    %v3484 = vpow.pop %v3483
    %v3485 = vmul.f32 %v3378, 1.442695
    %v3486 = vpow.pop %v3485
    %v3487 = vmul.f32 %v3379, 1.442695
    %v3488 = vpow.pop %v3487
    %v3489 = vmul.f32 %v3380, 1.442695
    %v3490 = vpow.pop %v3489
    %v3491 = vmul.f32 %v3381, 1.442695
    %v3492 = vpow.pop %v3491
    %v3493 = vmul.f32 %v3382, 1.442695
    %v3494 = vpow.pop %v3493
    %v3495 = vmul.f32 %v3383, 1.442695
    %v3496 = vpow.pop %v3495
    %v3497 = vmul.f32 %v3384, 1.442695
    %v3498 = vpow.pop %v3497
    %v3499 = vmul.f32 %v3385, 1.442695
    %v3500 = vpow.pop %v3499
    %v3501 = vmul.f32 %v3386, 1.442695
    %v3502 = vpow.pop %v3501
    %v3503 = vmul.f32 %v3387, 1.442695
    %v3504 = vpow.pop %v3503
    %v3505 = vmul.f32 %v3388, 1.442695
    %v3506 = vpow.pop %v3505
    %v3507 = vmul.f32 %v3389, 1.442695
    %v3508 = vpow.pop %v3507
    %v3509 = vmul.f32 %v3390, 1.442695
    %v3510 = vpow.pop %v3509
    %v3511 = vmul.f32 %v3391, 1.442695
    %v3512 = vpow.pop %v3511
    %v3513 = vmul.f32 %v3392, 1.442695
    %v3514 = vpow.pop %v3513
    %v3515 = vmul.f32 %v3393, 1.442695
    %v3516 = vpow.pop %v3515
    %v3517 = vmul.f32 %v3394, 1.442695
    %v3518 = vpow.pop %v3517
    %v3519 = vmul.f32 %v3395, 1.442695
    %v3520 = vpow.pop %v3519
    %v3521 = vmul.f32 %v3396, 1.442695
    %v3522 = vpow.pop %v3521
    %v3523 = vmul.f32 %v3397, 1.442695
    %v3524 = vpow.pop %v3523
    %v3525 = vmul.f32 %v3398, 1.442695
    %v3526 = vpow.pop %v3525
    %v3527 = vsel %vm3142, %v3400, 0.0
    %3528 = vadd.xlane.f32.xlu0 %v3527
    %v3529 = vpop.xlane.xlu0 %3528
    %v3530 = vsel %vm3142, %v3402, 0.0
    %3531 = vadd.xlane.f32.xlu0 %v3530
    %v3532 = vpop.xlane.xlu0 %3531
    %v3533 = vsel %vm3142, %v3404, 0.0
    %3534 = vadd.xlane.f32.xlu0 %v3533
    %v3535 = vpop.xlane.xlu0 %3534
    %v3536 = vsel %vm3142, %v3406, 0.0
    %3537 = vadd.xlane.f32.xlu0 %v3536
    %v3538 = vpop.xlane.xlu0 %3537
    %v3539 = vsel %vm3142, %v3408, 0.0
    %3540 = vadd.xlane.f32.xlu0 %v3539
    %v3541 = vpop.xlane.xlu0 %3540
    %v3542 = vsel %vm3142, %v3410, 0.0
    %3543 = vadd.xlane.f32.xlu0 %v3542
    %v3544 = vpop.xlane.xlu0 %3543
    %v3545 = vsel %vm3142, %v3412, 0.0
    %3546 = vadd.xlane.f32.xlu0 %v3545
    %v3547 = vpop.xlane.xlu0 %3546
    %v3548 = vsel %vm3142, %v3414, 0.0
    %3549 = vadd.xlane.f32.xlu0 %v3548
    %v3550 = vpop.xlane.xlu0 %3549
    %v3551 = vsel %vm3142, %v3416, 0.0
    %3552 = vadd.xlane.f32.xlu0 %v3551
    %v3553 = vpop.xlane.xlu0 %3552
    %v3554 = vsel %vm3142, %v3418, 0.0
    %3555 = vadd.xlane.f32.xlu0 %v3554
    %v3556 = vpop.xlane.xlu0 %3555
    %v3557 = vsel %vm3142, %v3420, 0.0
    %3558 = vadd.xlane.f32.xlu0 %v3557
    %v3559 = vpop.xlane.xlu0 %3558
    %v3560 = vsel %vm3142, %v3422, 0.0
    %3561 = vadd.xlane.f32.xlu0 %v3560
    %v3562 = vpop.xlane.xlu0 %3561
    %v3563 = vsel %vm3142, %v3424, 0.0
    %3564 = vadd.xlane.f32.xlu0 %v3563
    %v3565 = vpop.xlane.xlu0 %3564
    %v3566 = vsel %vm3142, %v3426, 0.0
    %3567 = vadd.xlane.f32.xlu0 %v3566
    %v3568 = vpop.xlane.xlu0 %3567
    %v3569 = vsel %vm3142, %v3428, 0.0
    %3570 = vadd.xlane.f32.xlu0 %v3569
    %v3571 = vpop.xlane.xlu0 %3570
    %v3572 = vsel %vm3142, %v3430, 0.0
    %3573 = vadd.xlane.f32.xlu0 %v3572
    %v3574 = vpop.xlane.xlu0 %3573
    %v3575 = vsel %vm3142, %v3432, 0.0
    %3576 = vadd.xlane.f32.xlu0 %v3575
    %v3577 = vpop.xlane.xlu0 %3576
    %v3578 = vsel %vm3142, %v3434, 0.0
    %3579 = vadd.xlane.f32.xlu0 %v3578
    %v3580 = vpop.xlane.xlu0 %3579
    %v3581 = vsel %vm3142, %v3436, 0.0
    %3582 = vadd.xlane.f32.xlu0 %v3581
    %v3583 = vpop.xlane.xlu0 %3582
    %v3584 = vsel %vm3142, %v3438, 0.0
    %3585 = vadd.xlane.f32.xlu0 %v3584
    %v3586 = vpop.xlane.xlu0 %3585
    %v3587 = vsel %vm3142, %v3440, 0.0
    %3588 = vadd.xlane.f32.xlu0 %v3587
    %v3589 = vpop.xlane.xlu0 %3588
    %v3590 = vsel %vm3142, %v3442, 0.0
    %3591 = vadd.xlane.f32.xlu0 %v3590
    %v3592 = vpop.xlane.xlu0 %3591
    %v3593 = vsel %vm3142, %v3444, 0.0
    %3594 = vadd.xlane.f32.xlu0 %v3593
    %v3595 = vpop.xlane.xlu0 %3594
    %v3596 = vsel %vm3142, %v3446, 0.0
    %3597 = vadd.xlane.f32.xlu0 %v3596
    %v3598 = vpop.xlane.xlu0 %3597
    %v3599 = vsel %vm3142, %v3448, 0.0
    %3600 = vadd.xlane.f32.xlu0 %v3599
    %v3601 = vpop.xlane.xlu0 %3600
    %v3602 = vsel %vm3142, %v3450, 0.0
    %3603 = vadd.xlane.f32.xlu0 %v3602
    %v3604 = vpop.xlane.xlu0 %3603
    %v3605 = vsel %vm3142, %v3452, 0.0
    %3606 = vadd.xlane.f32.xlu0 %v3605
    %v3607 = vpop.xlane.xlu0 %3606
    %v3608 = vsel %vm3142, %v3454, 0.0
    %3609 = vadd.xlane.f32.xlu0 %v3608
    %v3610 = vpop.xlane.xlu0 %3609
    %v3611 = vsel %vm3142, %v3456, 0.0
    %3612 = vadd.xlane.f32.xlu0 %v3611
    %v3613 = vpop.xlane.xlu0 %3612
    %v3614 = vsel %vm3142, %v3458, 0.0
    %3615 = vadd.xlane.f32.xlu0 %v3614
    %v3616 = vpop.xlane.xlu0 %3615
    %v3617 = vsel %vm3142, %v3460, 0.0
    %3618 = vadd.xlane.f32.xlu0 %v3617
    %v3619 = vpop.xlane.xlu0 %3618
    %v3620 = vsel %vm3142, %v3462, 0.0
    %3621 = vadd.xlane.f32.xlu0 %v3620
    %v3622 = vpop.xlane.xlu0 %3621
    %v3623 = vsel %vm3142, %v3464, 0.0
    %3624 = vadd.xlane.f32.xlu0 %v3623
    %v3625 = vpop.xlane.xlu0 %3624
    %v3626 = vsel %vm3142, %v3466, 0.0
    %3627 = vadd.xlane.f32.xlu0 %v3626
    %v3628 = vpop.xlane.xlu0 %3627
    %v3629 = vsel %vm3142, %v3468, 0.0
    %3630 = vadd.xlane.f32.xlu0 %v3629
    %v3631 = vpop.xlane.xlu0 %3630
    %v3632 = vsel %vm3142, %v3470, 0.0
    %3633 = vadd.xlane.f32.xlu0 %v3632
    %v3634 = vpop.xlane.xlu0 %3633
    %v3635 = vsel %vm3142, %v3472, 0.0
    %3636 = vadd.xlane.f32.xlu0 %v3635
    %v3637 = vpop.xlane.xlu0 %3636
    %v3638 = vsel %vm3142, %v3474, 0.0
    %3639 = vadd.xlane.f32.xlu0 %v3638
    %v3640 = vpop.xlane.xlu0 %3639
    %v3641 = vsel %vm3142, %v3476, 0.0
    %3642 = vadd.xlane.f32.xlu0 %v3641
    %v3643 = vpop.xlane.xlu0 %3642
    %v3644 = vsel %vm3142, %v3478, 0.0
    %3645 = vadd.xlane.f32.xlu0 %v3644
    %v3646 = vpop.xlane.xlu0 %3645
    %v3647 = vsel %vm3142, %v3480, 0.0
    %3648 = vadd.xlane.f32.xlu0 %v3647
    %v3649 = vpop.xlane.xlu0 %3648
    %v3650 = vsel %vm3142, %v3482, 0.0
    %3651 = vadd.xlane.f32.xlu0 %v3650
    %v3652 = vpop.xlane.xlu0 %3651
    %v3653 = vsel %vm3142, %v3484, 0.0
    %3654 = vadd.xlane.f32.xlu0 %v3653
    %v3655 = vpop.xlane.xlu0 %3654
    %v3656 = vsel %vm3142, %v3486, 0.0
    %3657 = vadd.xlane.f32.xlu0 %v3656
    %v3658 = vpop.xlane.xlu0 %3657
    %v3659 = vsel %vm3142, %v3488, 0.0
    %3660 = vadd.xlane.f32.xlu0 %v3659
    %v3661 = vpop.xlane.xlu0 %3660
    %v3662 = vsel %vm3142, %v3490, 0.0
    %3663 = vadd.xlane.f32.xlu0 %v3662
    %v3664 = vpop.xlane.xlu0 %3663
    %v3665 = vsel %vm3142, %v3492, 0.0
    %3666 = vadd.xlane.f32.xlu0 %v3665
    %v3667 = vpop.xlane.xlu0 %3666
    %v3668 = vsel %vm3142, %v3494, 0.0
    %3669 = vadd.xlane.f32.xlu0 %v3668
    %v3670 = vpop.xlane.xlu0 %3669
    %v3671 = vsel %vm3142, %v3496, 0.0
    %3672 = vadd.xlane.f32.xlu0 %v3671
    %v3673 = vpop.xlane.xlu0 %3672
    %v3674 = vsel %vm3142, %v3498, 0.0
    %3675 = vadd.xlane.f32.xlu0 %v3674
    %v3676 = vpop.xlane.xlu0 %3675
    %v3677 = vsel %vm3142, %v3500, 0.0
    %3678 = vadd.xlane.f32.xlu0 %v3677
    %v3679 = vpop.xlane.xlu0 %3678
    %v3680 = vsel %vm3142, %v3502, 0.0
    %3681 = vadd.xlane.f32.xlu0 %v3680
    %v3682 = vpop.xlane.xlu0 %3681
    %v3683 = vsel %vm3142, %v3504, 0.0
    %3684 = vadd.xlane.f32.xlu0 %v3683
    %v3685 = vpop.xlane.xlu0 %3684
    %v3686 = vsel %vm3142, %v3506, 0.0
    %3687 = vadd.xlane.f32.xlu0 %v3686
    %v3688 = vpop.xlane.xlu0 %3687
    %v3689 = vsel %vm3142, %v3508, 0.0
    %3690 = vadd.xlane.f32.xlu0 %v3689
    %v3691 = vpop.xlane.xlu0 %3690
    %v3692 = vsel %vm3142, %v3510, 0.0
    %3693 = vadd.xlane.f32.xlu0 %v3692
    %v3694 = vpop.xlane.xlu0 %3693
    %v3695 = vsel %vm3142, %v3512, 0.0
    %3696 = vadd.xlane.f32.xlu0 %v3695
    %v3697 = vpop.xlane.xlu0 %3696
    %v3698 = vsel %vm3142, %v3514, 0.0
    %3699 = vadd.xlane.f32.xlu0 %v3698
    %v3700 = vpop.xlane.xlu0 %3699
    %v3701 = vsel %vm3142, %v3516, 0.0
    %3702 = vadd.xlane.f32.xlu0 %v3701
    %v3703 = vpop.xlane.xlu0 %3702
    %v3704 = vsel %vm3142, %v3518, 0.0
    %3705 = vadd.xlane.f32.xlu0 %v3704
    %v3706 = vpop.xlane.xlu0 %3705
    %v3707 = vsel %vm3142, %v3520, 0.0
    %3708 = vadd.xlane.f32.xlu0 %v3707
    %v3709 = vpop.xlane.xlu0 %3708
    %v3710 = vsel %vm3142, %v3522, 0.0
    %3711 = vadd.xlane.f32.xlu0 %v3710
    %v3712 = vpop.xlane.xlu0 %3711
    %v3713 = vsel %vm3142, %v3524, 0.0
    %3714 = vadd.xlane.f32.xlu0 %v3713
    %v3715 = vpop.xlane.xlu0 %3714
    %v3716 = vsel %vm3142, %v3526, 0.0
    %3717 = vadd.xlane.f32.xlu0 %v3716
    %v3718 = vpop.xlane.xlu0 %3717
    %v3719 = vrcp.pop %v3529
    %v3720 = vrcp.pop %v3532
    %v3721 = vrcp.pop %v3535
    %v3722 = vrcp.pop %v3538
    %v3723 = vrcp.pop %v3541
    %v3724 = vrcp.pop %v3544
    %v3725 = vrcp.pop %v3547
    %v3726 = vrcp.pop %v3550
    %v3727 = vrcp.pop %v3553
    %v3728 = vrcp.pop %v3556
    %v3729 = vrcp.pop %v3559
    %v3730 = vrcp.pop %v3562
    %v3731 = vrcp.pop %v3565
    %v3732 = vrcp.pop %v3568
    %v3733 = vrcp.pop %v3571
    %v3734 = vrcp.pop %v3574
    %v3735 = vrcp.pop %v3577
    %v3736 = vrcp.pop %v3580
    %v3737 = vrcp.pop %v3583
    %v3738 = vrcp.pop %v3586
    %v3739 = vrcp.pop %v3589
    %v3740 = vrcp.pop %v3592
    %v3741 = vrcp.pop %v3595
    %v3742 = vrcp.pop %v3598
    %v3743 = vrcp.pop %v3601
    %v3744 = vrcp.pop %v3604
    %v3745 = vrcp.pop %v3607
    %v3746 = vrcp.pop %v3610
    %v3747 = vrcp.pop %v3613
    %v3748 = vrcp.pop %v3616
    %v3749 = vrcp.pop %v3619
    %v3750 = vrcp.pop %v3622
    %v3751 = vrcp.pop %v3625
    %v3752 = vrcp.pop %v3628
    %v3753 = vrcp.pop %v3631
    %v3754 = vrcp.pop %v3634
    %v3755 = vrcp.pop %v3637
    %v3756 = vrcp.pop %v3640
    %v3757 = vrcp.pop %v3643
    %v3758 = vrcp.pop %v3646
    %v3759 = vrcp.pop %v3649
    %v3760 = vrcp.pop %v3652
    %v3761 = vrcp.pop %v3655
    %v3762 = vrcp.pop %v3658
    %v3763 = vrcp.pop %v3661
    %v3764 = vrcp.pop %v3664
    %v3765 = vrcp.pop %v3667
    %v3766 = vrcp.pop %v3670
    %v3767 = vrcp.pop %v3673
    %v3768 = vrcp.pop %v3676
    %v3769 = vrcp.pop %v3679
    %v3770 = vrcp.pop %v3682
    %v3771 = vrcp.pop %v3685
    %v3772 = vrcp.pop %v3688
    %v3773 = vrcp.pop %v3691
    %v3774 = vrcp.pop %v3694
    %v3775 = vrcp.pop %v3697
    %v3776 = vrcp.pop %v3700
    %v3777 = vrcp.pop %v3703
    %v3778 = vrcp.pop %v3706
    %v3779 = vrcp.pop %v3709
    %v3780 = vrcp.pop %v3712
    %v3781 = vrcp.pop %v3715
    %v3782 = vrcp.pop %v3718
    %v3783 = vmul.f32 %v3400, %v3719
    %v3784 = vmul.f32 %v3402, %v3720
    %v3785 = vmul.f32 %v3404, %v3721
    %v3786 = vmul.f32 %v3406, %v3722
    %v3787 = vmul.f32 %v3408, %v3723
    %v3788 = vmul.f32 %v3410, %v3724
    %v3789 = vmul.f32 %v3412, %v3725
    %v3790 = vmul.f32 %v3414, %v3726
    %v3791 = vmul.f32 %v3416, %v3727
    %v3792 = vmul.f32 %v3418, %v3728
    %v3793 = vmul.f32 %v3420, %v3729
    %v3794 = vmul.f32 %v3422, %v3730
    %v3795 = vmul.f32 %v3424, %v3731
    %v3796 = vmul.f32 %v3426, %v3732
    %v3797 = vmul.f32 %v3428, %v3733
    %v3798 = vmul.f32 %v3430, %v3734
    %v3799 = vmul.f32 %v3432, %v3735
    %v3800 = vmul.f32 %v3434, %v3736
    %v3801 = vmul.f32 %v3436, %v3737
    %v3802 = vmul.f32 %v3438, %v3738
    %v3803 = vmul.f32 %v3440, %v3739
    %v3804 = vmul.f32 %v3442, %v3740
    %v3805 = vmul.f32 %v3444, %v3741
    %v3806 = vmul.f32 %v3446, %v3742
    %v3807 = vmul.f32 %v3448, %v3743
    %v3808 = vmul.f32 %v3450, %v3744
    %v3809 = vmul.f32 %v3452, %v3745
    %v3810 = vmul.f32 %v3454, %v3746
    %v3811 = vmul.f32 %v3456, %v3747
    %v3812 = vmul.f32 %v3458, %v3748
    %v3813 = vmul.f32 %v3460, %v3749
    %v3814 = vmul.f32 %v3462, %v3750
    %v3815 = vmul.f32 %v3464, %v3751
    %v3816 = vmul.f32 %v3466, %v3752
    %v3817 = vmul.f32 %v3468, %v3753
    %v3818 = vmul.f32 %v3470, %v3754
    %v3819 = vmul.f32 %v3472, %v3755
    %v3820 = vmul.f32 %v3474, %v3756
    %v3821 = vmul.f32 %v3476, %v3757
    %v3822 = vmul.f32 %v3478, %v3758
    %v3823 = vmul.f32 %v3480, %v3759
    %v3824 = vmul.f32 %v3482, %v3760
    %v3825 = vmul.f32 %v3484, %v3761
    %v3826 = vmul.f32 %v3486, %v3762
    %v3827 = vmul.f32 %v3488, %v3763
    %v3828 = vmul.f32 %v3490, %v3764
    %v3829 = vmul.f32 %v3492, %v3765
    %v3830 = vmul.f32 %v3494, %v3766
    %v3831 = vmul.f32 %v3496, %v3767
    %v3832 = vmul.f32 %v3498, %v3768
    %v3833 = vmul.f32 %v3500, %v3769
    %v3834 = vmul.f32 %v3502, %v3770
    %v3835 = vmul.f32 %v3504, %v3771
    %v3836 = vmul.f32 %v3506, %v3772
    %v3837 = vmul.f32 %v3508, %v3773
    %v3838 = vmul.f32 %v3510, %v3774
    %v3839 = vmul.f32 %v3512, %v3775
    %v3840 = vmul.f32 %v3514, %v3776
    %v3841 = vmul.f32 %v3516, %v3777
    %v3842 = vmul.f32 %v3518, %v3778
    %v3843 = vmul.f32 %v3520, %v3779
    %v3844 = vmul.f32 %v3522, %v3780
    %v3845 = vmul.f32 %v3524, %v3781
    %v3846 = vmul.f32 %v3526, %v3782
    %v3847 = vadd.f32 %v3783, %v3799
    %v3848 = vadd.f32 %v3784, %v3800
    %v3849 = vadd.f32 %v3785, %v3801
    %v3850 = vadd.f32 %v3786, %v3802
    %v3851 = vadd.f32 %v3787, %v3803
    %v3852 = vadd.f32 %v3788, %v3804
    %v3853 = vadd.f32 %v3789, %v3805
    %v3854 = vadd.f32 %v3790, %v3806
    %v3855 = vadd.f32 %v3791, %v3807
    %v3856 = vadd.f32 %v3792, %v3808
    %v3857 = vadd.f32 %v3793, %v3809
    %v3858 = vadd.f32 %v3794, %v3810
    %v3859 = vadd.f32 %v3795, %v3811
    %v3860 = vadd.f32 %v3796, %v3812
    %v3861 = vadd.f32 %v3797, %v3813
    %v3862 = vadd.f32 %v3798, %v3814
    %v3863 = vadd.f32 %v3847, %v3815
    %v3864 = vadd.f32 %v3848, %v3816
    %v3865 = vadd.f32 %v3849, %v3817
    %v3866 = vadd.f32 %v3850, %v3818
    %v3867 = vadd.f32 %v3851, %v3819
    %v3868 = vadd.f32 %v3852, %v3820
    %v3869 = vadd.f32 %v3853, %v3821
    %v3870 = vadd.f32 %v3854, %v3822
    %v3871 = vadd.f32 %v3855, %v3823
    %v3872 = vadd.f32 %v3856, %v3824
    %v3873 = vadd.f32 %v3857, %v3825
    %v3874 = vadd.f32 %v3858, %v3826
    %v3875 = vadd.f32 %v3859, %v3827
    %v3876 = vadd.f32 %v3860, %v3828
    %v3877 = vadd.f32 %v3861, %v3829
    %v3878 = vadd.f32 %v3862, %v3830
    %v3879 = vadd.f32 %v3863, %v3831
    %v3880 = vadd.f32 %v3864, %v3832
    %v3881 = vadd.f32 %v3865, %v3833
    %v3882 = vadd.f32 %v3866, %v3834
    %v3883 = vadd.f32 %v3867, %v3835
    %v3884 = vadd.f32 %v3868, %v3836
    %v3885 = vadd.f32 %v3869, %v3837
    %v3886 = vadd.f32 %v3870, %v3838
    %v3887 = vadd.f32 %v3871, %v3839
    %v3888 = vadd.f32 %v3872, %v3840
    %v3889 = vadd.f32 %v3873, %v3841
    %v3890 = vadd.f32 %v3874, %v3842
    %v3891 = vadd.f32 %v3875, %v3843
    %v3892 = vadd.f32 %v3876, %v3844
    %v3893 = vadd.f32 %v3877, %v3845
    %v3894 = vadd.f32 %v3878, %v3846
    %v3895 = vmul.f32 %v3879, 0.25
    %v3896 = vmul.f32 %v3880, 0.25
    %v3897 = vmul.f32 %v3881, 0.25
    %v3898 = vmul.f32 %v3882, 0.25
    %v3899 = vmul.f32 %v3883, 0.25
    %v3900 = vmul.f32 %v3884, 0.25
    %v3901 = vmul.f32 %v3885, 0.25
    %v3902 = vmul.f32 %v3886, 0.25
    %v3903 = vmul.f32 %v3887, 0.25
    %v3904 = vmul.f32 %v3888, 0.25
    %v3905 = vmul.f32 %v3889, 0.25
    %v3906 = vmul.f32 %v3890, 0.25
    %v3907 = vmul.f32 %v3891, 0.25
    %v3908 = vmul.f32 %v3892, 0.25
    %v3909 = vmul.f32 %v3893, 0.25
    %v3910 = vmul.f32 %v3894, 0.25
    %3911 = vst.msk [vmem:[#allocation4] sm:$0xff] %vm3142, %v3895
    %3912 = vst.msk [vmem:[#allocation4 + $0x8] sm:$0xff] %vm3142, %v3896
    %3913 = vst.msk [vmem:[#allocation4 + $0x10] sm:$0xff] %vm3142, %v3897
    %3914 = vst.msk [vmem:[#allocation4 + $0x18] sm:$0xff] %vm3142, %v3898
    %3915 = vst.msk [vmem:[#allocation4 + $0x20] sm:$0xff] %vm3142, %v3899
    %3916 = vst.msk [vmem:[#allocation4 + $0x28] sm:$0xff] %vm3142, %v3900
    %3917 = vst.msk [vmem:[#allocation4 + $0x30] sm:$0xff] %vm3142, %v3901
    %3918 = vst.msk [vmem:[#allocation4 + $0x38] sm:$0xff] %vm3142, %v3902
    %3919 = vst.msk [vmem:[#allocation4 + $0x40] sm:$0xff] %vm3142, %v3903
    %3920 = vst.msk [vmem:[#allocation4 + $0x48] sm:$0xff] %vm3142, %v3904
    %3921 = vst.msk [vmem:[#allocation4 + $0x50] sm:$0xff] %vm3142, %v3905
    %3922 = vst.msk [vmem:[#allocation4 + $0x58] sm:$0xff] %vm3142, %v3906
    %3923 = vst.msk [vmem:[#allocation4 + $0x60] sm:$0xff] %vm3142, %v3907
    %3924 = vst.msk [vmem:[#allocation4 + $0x68] sm:$0xff] %vm3142, %v3908
    %3925 = vst.msk [vmem:[#allocation4 + $0x70] sm:$0xff] %vm3142, %v3909
    %3926 = vst.msk [vmem:[#allocation4 + $0x78] sm:$0xff] %vm3142, %v3910
    %3927 = vrot.lane.b32.xlu0 %v167, 64
    %v3928 = vpop.permute.xlu0 %3927
    %3929 = vrot.lane.b32.xlu0 %v172, 64
    %v3930 = vpop.permute.xlu0 %3929
    %v3934 = vsel %vm3142, %v3783, 0
    %v3937 = vsel %vm3142, %v3784, 0
    %3939 = vmatprep.subr.mxu0 0.0
    %3940 = vmatpush1.msra.mxu0 %v3928
    %3941 = vmatprep.subr.mxu0 0.0
    %3942 = vmatpush1.msra.mxu0 %v3930
    %3943 = vmatprep.subr.mxu0 0.0
    %3944 = vmatpush1.msra.mxu0 0.0
    %3945 = vmatprep.subr.mxu0 0.0
    %3946 = vmatpush1.msra.mxu0 0.0
    %3947 = vmatprep.subr.mxu0 0.0
    %3948 = vmatpush1.msra.mxu0 0.0
    %3949 = vmatprep.subr.mxu0 0.0
    %3950 = vmatpush1.msra.mxu0 0.0
    %3951 = vmatprep.subr.mxu0 0.0
    %3952 = vmatpush1.msra.mxu0 0.0
    %3953 = vmatprep.subr.mxu0 0.0
    %3954 = vmatpush1.msra.mxu0 0.0
    %3955 = vmatprep.subr.mxu0 0.0
    %3956 = vmatpush1.msra.mxu0 0.0
    %3957 = vmatprep.subr.mxu0 0.0
    %3958 = vmatpush1.msra.mxu0 0.0
    %3959 = vmatprep.subr.mxu0 0.0
    %3960 = vmatpush1.msra.mxu0 0.0
    %3961 = vmatprep.subr.mxu0 0.0
    %3962 = vmatpush1.msra.mxu0 0.0
    %3963 = vmatprep.subr.mxu0 0.0
    %3964 = vmatpush1.msra.mxu0 0.0
    %3965 = vmatprep.subr.mxu0 0.0
    %3966 = vmatpush1.msra.mxu0 0.0
    %3967 = vmatprep.subr.mxu0 0.0
    %3968 = vmatpush1.msra.mxu0 0.0
    %3969 = vmatprep.subr.mxu0 0.0
    %3970 = vmatpush1.msra.mxu0 0.0
    %3971 = vmatprep.subr.mxu0 0.0
    %3972 = vmatpush1.msra.mxu0 0.0
    %3973 = vmatprep.subr.mxu0 0.0
    %3974 = vmatpush1.msra.mxu0 0.0
    %3975 = vmatprep.subr.mxu0 0.0
    %3976 = vmatpush1.msra.mxu0 0.0
    %3977 = vmatprep.subr.mxu0 0.0
    %3978 = vmatpush1.msra.mxu0 0.0
    %3979 = vmatprep.subr.mxu0 0.0
    %3980 = vmatpush1.msra.mxu0 0.0
    %3981 = vmatprep.subr.mxu0 0.0
    %3982 = vmatpush1.msra.mxu0 0.0
    %3983 = vmatprep.subr.mxu0 0.0
    %3984 = vmatpush1.msra.mxu0 0.0
    %3985 = vmatprep.subr.mxu0 0.0
    %3986 = vmatpush1.msra.mxu0 0.0
    %3987 = vmatprep.subr.mxu0 0.0
    %3988 = vmatpush1.msra.mxu0 0.0
    %3989 = vmatprep.subr.mxu0 0.0
    %3990 = vmatpush1.msra.mxu0 0.0
    %3991 = vmatprep.subr.mxu0 0.0
    %3992 = vmatpush1.msra.mxu0 0.0
    %3993 = vmatprep.subr.mxu0 0.0
    %3994 = vmatpush1.msra.mxu0 0.0
    %3995 = vmatprep.subr.mxu0 0.0
    %3996 = vmatpush1.msra.mxu0 0.0
    %3997 = vmatprep.subr.mxu0 0.0
    %3998 = vmatpush1.msra.mxu0 0.0
    %3999 = vmatprep.subr.mxu0 0.0
    %4000 = vmatpush1.msra.mxu0 0.0
    %4001 = vmatprep.subr.mxu0 0.0
    %4002 = vmatpush1.msra.mxu0 0.0
    %4003 = vmatprep.mubr.f32.mxu0 0.0
    %4004 = vmatmul.mubr.f32.gmra.mrb[0].mxu0 %v3934
    %v4005 = vpop.f32.mrb[0].mxu0
    %v4006 = vadd.f32 0.0, %v4005
    %v4007 = vpop.f32.mrb[0].mxu0
    %4008 = vmatprep.mubr.f32.mxu0 0.0
    %4009 = vmatmul.mubr.f32.gmra.mrb[0].mxu0 %v3937
    %v4010 = vpop.f32.mrb[0].mxu0
    %v4011 = vadd.f32 0.0, %v4010
    %v4012 = vpop.f32.mrb[0].mxu0
    %4013 = vdwg.mxu0
    %4014 = vrot.lane.b32.xlu0 %v177, 64
    %v4015 = vpop.permute.xlu0 %4014
    %4016 = vrot.lane.b32.xlu0 %v182, 64
    %v4017 = vpop.permute.xlu0 %4016
    %v4021 = vsel %vm3142, %v3785, 0
    %v4024 = vsel %vm3142, %v3786, 0
    %4026 = vmatprep.subr.mxu0 0.0
    %4027 = vmatpush1.msra.mxu0 %v4015
    %4028 = vmatprep.subr.mxu0 0.0
    %4029 = vmatpush1.msra.mxu0 %v4017
    %4030 = vmatprep.subr.mxu0 0.0
    %4031 = vmatpush1.msra.mxu0 0.0
    %4032 = vmatprep.subr.mxu0 0.0
    %4033 = vmatpush1.msra.mxu0 0.0
    %4034 = vmatprep.subr.mxu0 0.0
    %4035 = vmatpush1.msra.mxu0 0.0
    %4036 = vmatprep.subr.mxu0 0.0
    %4037 = vmatpush1.msra.mxu0 0.0
    %4038 = vmatprep.subr.mxu0 0.0
    %4039 = vmatpush1.msra.mxu0 0.0
    %4040 = vmatprep.subr.mxu0 0.0
    %4041 = vmatpush1.msra.mxu0 0.0
    %4042 = vmatprep.subr.mxu0 0.0
    %4043 = vmatpush1.msra.mxu0 0.0
    %4044 = vmatprep.subr.mxu0 0.0
    %4045 = vmatpush1.msra.mxu0 0.0
    %4046 = vmatprep.subr.mxu0 0.0
    %4047 = vmatpush1.msra.mxu0 0.0
    %4048 = vmatprep.subr.mxu0 0.0
    %4049 = vmatpush1.msra.mxu0 0.0
    %4050 = vmatprep.subr.mxu0 0.0
    %4051 = vmatpush1.msra.mxu0 0.0
    %4052 = vmatprep.subr.mxu0 0.0
    %4053 = vmatpush1.msra.mxu0 0.0
    %4054 = vmatprep.subr.mxu0 0.0
    %4055 = vmatpush1.msra.mxu0 0.0
    %4056 = vmatprep.subr.mxu0 0.0
    %4057 = vmatpush1.msra.mxu0 0.0
    %4058 = vmatprep.subr.mxu0 0.0
    %4059 = vmatpush1.msra.mxu0 0.0
    %4060 = vmatprep.subr.mxu0 0.0
    %4061 = vmatpush1.msra.mxu0 0.0
    %4062 = vmatprep.subr.mxu0 0.0
    %4063 = vmatpush1.msra.mxu0 0.0
    %4064 = vmatprep.subr.mxu0 0.0
    %4065 = vmatpush1.msra.mxu0 0.0
    %4066 = vmatprep.subr.mxu0 0.0
    %4067 = vmatpush1.msra.mxu0 0.0
    %4068 = vmatprep.subr.mxu0 0.0
    %4069 = vmatpush1.msra.mxu0 0.0
    %4070 = vmatprep.subr.mxu0 0.0
    %4071 = vmatpush1.msra.mxu0 0.0
    %4072 = vmatprep.subr.mxu0 0.0
    %4073 = vmatpush1.msra.mxu0 0.0
    %4074 = vmatprep.subr.mxu0 0.0
    %4075 = vmatpush1.msra.mxu0 0.0
    %4076 = vmatprep.subr.mxu0 0.0
    %4077 = vmatpush1.msra.mxu0 0.0
    %4078 = vmatprep.subr.mxu0 0.0
    %4079 = vmatpush1.msra.mxu0 0.0
    %4080 = vmatprep.subr.mxu0 0.0
    %4081 = vmatpush1.msra.mxu0 0.0
    %4082 = vmatprep.subr.mxu0 0.0
    %4083 = vmatpush1.msra.mxu0 0.0
    %4084 = vmatprep.subr.mxu0 0.0
    %4085 = vmatpush1.msra.mxu0 0.0
    %4086 = vmatprep.subr.mxu0 0.0
    %4087 = vmatpush1.msra.mxu0 0.0
    %4088 = vmatprep.subr.mxu0 0.0
    %4089 = vmatpush1.msra.mxu0 0.0
    %4090 = vmatprep.mubr.f32.mxu0 0.0
    %4091 = vmatmul.mubr.f32.gmra.mrb[0].mxu0 %v4021
    %v4092 = vpop.f32.mrb[0].mxu0
    %v4093 = vadd.f32 0.0, %v4092
    %v4094 = vpop.f32.mrb[0].mxu0
    %4095 = vmatprep.mubr.f32.mxu0 0.0
    %4096 = vmatmul.mubr.f32.gmra.mrb[0].mxu0 %v4024
    %v4097 = vpop.f32.mrb[0].mxu0
    %v4098 = vadd.f32 0.0, %v4097
    %v4099 = vpop.f32.mrb[0].mxu0
    %4100 = vdwg.mxu0
    %4101 = vrot.lane.b32.xlu0 %v187, 64
    %v4102 = vpop.permute.xlu0 %4101
    %4103 = vrot.lane.b32.xlu0 %v192, 64
    %v4104 = vpop.permute.xlu0 %4103
    %v4108 = vsel %vm3142, %v3787, 0
    %v4111 = vsel %vm3142, %v3788, 0
    %4113 = vmatprep.subr.mxu0 0.0
    %4114 = vmatpush1.msra.mxu0 %v4102
    %4115 = vmatprep.subr.mxu0 0.0
    %4116 = vmatpush1.msra.mxu0 %v4104
    %4117 = vmatprep.subr.mxu0 0.0
    %4118 = vmatpush1.msra.mxu0 0.0
    %4119 = vmatprep.subr.mxu0 0.0
    %4120 = vmatpush1.msra.mxu0 0.0
    %4121 = vmatprep.subr.mxu0 0.0
    %4122 = vmatpush1.msra.mxu0 0.0
    %4123 = vmatprep.subr.mxu0 0.0
    %4124 = vmatpush1.msra.mxu0 0.0
    %4125 = vmatprep.subr.mxu0 0.0
    %4126 = vmatpush1.msra.mxu0 0.0
    %4127 = vmatprep.subr.mxu0 0.0
    %4128 = vmatpush1.msra.mxu0 0.0
    %4129 = vmatprep.subr.mxu0 0.0
    %4130 = vmatpush1.msra.mxu0 0.0
    %4131 = vmatprep.subr.mxu0 0.0
    %4132 = vmatpush1.msra.mxu0 0.0
    %4133 = vmatprep.subr.mxu0 0.0
    %4134 = vmatpush1.msra.mxu0 0.0
    %4135 = vmatprep.subr.mxu0 0.0
    %4136 = vmatpush1.msra.mxu0 0.0
    %4137 = vmatprep.subr.mxu0 0.0
    %4138 = vmatpush1.msra.mxu0 0.0
    %4139 = vmatprep.subr.mxu0 0.0
    %4140 = vmatpush1.msra.mxu0 0.0
    %4141 = vmatprep.subr.mxu0 0.0
    %4142 = vmatpush1.msra.mxu0 0.0
    %4143 = vmatprep.subr.mxu0 0.0
    %4144 = vmatpush1.msra.mxu0 0.0
    %4145 = vmatprep.subr.mxu0 0.0
    %4146 = vmatpush1.msra.mxu0 0.0
    %4147 = vmatprep.subr.mxu0 0.0
    %4148 = vmatpush1.msra.mxu0 0.0
    %4149 = vmatprep.subr.mxu0 0.0
    %4150 = vmatpush1.msra.mxu0 0.0
    %4151 = vmatprep.subr.mxu0 0.0
    %4152 = vmatpush1.msra.mxu0 0.0
    %4153 = vmatprep.subr.mxu0 0.0
    %4154 = vmatpush1.msra.mxu0 0.0
    %4155 = vmatprep.subr.mxu0 0.0
    %4156 = vmatpush1.msra.mxu0 0.0
    %4157 = vmatprep.subr.mxu0 0.0
    %4158 = vmatpush1.msra.mxu0 0.0
    %4159 = vmatprep.subr.mxu0 0.0
    %4160 = vmatpush1.msra.mxu0 0.0
    %4161 = vmatprep.subr.mxu0 0.0
    %4162 = vmatpush1.msra.mxu0 0.0
    %4163 = vmatprep.subr.mxu0 0.0
    %4164 = vmatpush1.msra.mxu0 0.0
    %4165 = vmatprep.subr.mxu0 0.0
    %4166 = vmatpush1.msra.mxu0 0.0
    %4167 = vmatprep.subr.mxu0 0.0
    %4168 = vmatpush1.msra.mxu0 0.0
    %4169 = vmatprep.subr.mxu0 0.0
    %4170 = vmatpush1.msra.mxu0 0.0
    %4171 = vmatprep.subr.mxu0 0.0
    %4172 = vmatpush1.msra.mxu0 0.0
    %4173 = vmatprep.subr.mxu0 0.0
    %4174 = vmatpush1.msra.mxu0 0.0
    %4175 = vmatprep.subr.mxu0 0.0
    %4176 = vmatpush1.msra.mxu0 0.0
    %4177 = vmatprep.mubr.f32.mxu0 0.0
    %4178 = vmatmul.mubr.f32.gmra.mrb[0].mxu0 %v4108
    %v4179 = vpop.f32.mrb[0].mxu0
    %v4180 = vadd.f32 0.0, %v4179
    %v4181 = vpop.f32.mrb[0].mxu0
    %4182 = vmatprep.mubr.f32.mxu0 0.0
    %4183 = vmatmul.mubr.f32.gmra.mrb[0].mxu0 %v4111
    %v4184 = vpop.f32.mrb[0].mxu0
    %v4185 = vadd.f32 0.0, %v4184
    %v4186 = vpop.f32.mrb[0].mxu0
    %4187 = vdwg.mxu0
    %4188 = vrot.lane.b32.xlu0 %v197, 64
    %v4189 = vpop.permute.xlu0 %4188
    %4190 = vrot.lane.b32.xlu0 %v202, 64
    %v4191 = vpop.permute.xlu0 %4190
    %v4195 = vsel %vm3142, %v3789, 0
    %v4198 = vsel %vm3142, %v3790, 0
    %4200 = vmatprep.subr.mxu0 0.0
    %4201 = vmatpush1.msra.mxu0 %v4189
    %4202 = vmatprep.subr.mxu0 0.0
    %4203 = vmatpush1.msra.mxu0 %v4191
    %4204 = vmatprep.subr.mxu0 0.0
    %4205 = vmatpush1.msra.mxu0 0.0
    %4206 = vmatprep.subr.mxu0 0.0
    %4207 = vmatpush1.msra.mxu0 0.0
    %4208 = vmatprep.subr.mxu0 0.0
    %4209 = vmatpush1.msra.mxu0 0.0
    %4210 = vmatprep.subr.mxu0 0.0
    %4211 = vmatpush1.msra.mxu0 0.0
    %4212 = vmatprep.subr.mxu0 0.0
    %4213 = vmatpush1.msra.mxu0 0.0
    %4214 = vmatprep.subr.mxu0 0.0
    %4215 = vmatpush1.msra.mxu0 0.0
    %4216 = vmatprep.subr.mxu0 0.0
    %4217 = vmatpush1.msra.mxu0 0.0
    %4218 = vmatprep.subr.mxu0 0.0
    %4219 = vmatpush1.msra.mxu0 0.0
    %4220 = vmatprep.subr.mxu0 0.0
    %4221 = vmatpush1.msra.mxu0 0.0
    %4222 = vmatprep.subr.mxu0 0.0
    %4223 = vmatpush1.msra.mxu0 0.0
    %4224 = vmatprep.subr.mxu0 0.0
    %4225 = vmatpush1.msra.mxu0 0.0
    %4226 = vmatprep.subr.mxu0 0.0
    %4227 = vmatpush1.msra.mxu0 0.0
    %4228 = vmatprep.subr.mxu0 0.0
    %4229 = vmatpush1.msra.mxu0 0.0
    %4230 = vmatprep.subr.mxu0 0.0
    %4231 = vmatpush1.msra.mxu0 0.0
    %4232 = vmatprep.subr.mxu0 0.0
    %4233 = vmatpush1.msra.mxu0 0.0
    %4234 = vmatprep.subr.mxu0 0.0
    %4235 = vmatpush1.msra.mxu0 0.0
    %4236 = vmatprep.subr.mxu0 0.0
    %4237 = vmatpush1.msra.mxu0 0.0
    %4238 = vmatprep.subr.mxu0 0.0
    %4239 = vmatpush1.msra.mxu0 0.0
    %4240 = vmatprep.subr.mxu0 0.0
    %4241 = vmatpush1.msra.mxu0 0.0
    %4242 = vmatprep.subr.mxu0 0.0
    %4243 = vmatpush1.msra.mxu0 0.0
    %4244 = vmatprep.subr.mxu0 0.0
    %4245 = vmatpush1.msra.mxu0 0.0
    %4246 = vmatprep.subr.mxu0 0.0
    %4247 = vmatpush1.msra.mxu0 0.0
    %4248 = vmatprep.subr.mxu0 0.0
    %4249 = vmatpush1.msra.mxu0 0.0
    %4250 = vmatprep.subr.mxu0 0.0
    %4251 = vmatpush1.msra.mxu0 0.0
    %4252 = vmatprep.subr.mxu0 0.0
    %4253 = vmatpush1.msra.mxu0 0.0
    %4254 = vmatprep.subr.mxu0 0.0
    %4255 = vmatpush1.msra.mxu0 0.0
    %4256 = vmatprep.subr.mxu0 0.0
    %4257 = vmatpush1.msra.mxu0 0.0
    %4258 = vmatprep.subr.mxu0 0.0
    %4259 = vmatpush1.msra.mxu0 0.0
    %4260 = vmatprep.subr.mxu0 0.0
    %4261 = vmatpush1.msra.mxu0 0.0
    %4262 = vmatprep.subr.mxu0 0.0
    %4263 = vmatpush1.msra.mxu0 0.0
    %4264 = vmatprep.mubr.f32.mxu0 0.0
    %4265 = vmatmul.mubr.f32.gmra.mrb[0].mxu0 %v4195
    %v4266 = vpop.f32.mrb[0].mxu0
    %v4267 = vadd.f32 0.0, %v4266
    %v4268 = vpop.f32.mrb[0].mxu0
    %4269 = vmatprep.mubr.f32.mxu0 0.0
    %4270 = vmatmul.mubr.f32.gmra.mrb[0].mxu0 %v4198
    %v4271 = vpop.f32.mrb[0].mxu0
    %v4272 = vadd.f32 0.0, %v4271
    %v4273 = vpop.f32.mrb[0].mxu0
    %4274 = vdwg.mxu0
    %4275 = vrot.lane.b32.xlu0 %v207, 64
    %v4276 = vpop.permute.xlu0 %4275
    %4277 = vrot.lane.b32.xlu0 %v212, 64
    %v4278 = vpop.permute.xlu0 %4277
    %v4282 = vsel %vm3142, %v3791, 0
    %v4285 = vsel %vm3142, %v3792, 0
    %4287 = vmatprep.subr.mxu0 0.0
    %4288 = vmatpush1.msra.mxu0 %v4276
    %4289 = vmatprep.subr.mxu0 0.0
    %4290 = vmatpush1.msra.mxu0 %v4278
    %4291 = vmatprep.subr.mxu0 0.0
    %4292 = vmatpush1.msra.mxu0 0.0
    %4293 = vmatprep.subr.mxu0 0.0
    %4294 = vmatpush1.msra.mxu0 0.0
    %4295 = vmatprep.subr.mxu0 0.0
    %4296 = vmatpush1.msra.mxu0 0.0
    %4297 = vmatprep.subr.mxu0 0.0
    %4298 = vmatpush1.msra.mxu0 0.0
    %4299 = vmatprep.subr.mxu0 0.0
    %4300 = vmatpush1.msra.mxu0 0.0
    %4301 = vmatprep.subr.mxu0 0.0
    %4302 = vmatpush1.msra.mxu0 0.0
    %4303 = vmatprep.subr.mxu0 0.0
    %4304 = vmatpush1.msra.mxu0 0.0
    %4305 = vmatprep.subr.mxu0 0.0
    %4306 = vmatpush1.msra.mxu0 0.0
    %4307 = vmatprep.subr.mxu0 0.0
    %4308 = vmatpush1.msra.mxu0 0.0
    %4309 = vmatprep.subr.mxu0 0.0
    %4310 = vmatpush1.msra.mxu0 0.0
    %4311 = vmatprep.subr.mxu0 0.0
    %4312 = vmatpush1.msra.mxu0 0.0
    %4313 = vmatprep.subr.mxu0 0.0
    %4314 = vmatpush1.msra.mxu0 0.0
    %4315 = vmatprep.subr.mxu0 0.0
    %4316 = vmatpush1.msra.mxu0 0.0
    %4317 = vmatprep.subr.mxu0 0.0
    %4318 = vmatpush1.msra.mxu0 0.0
    %4319 = vmatprep.subr.mxu0 0.0
    %4320 = vmatpush1.msra.mxu0 0.0
    %4321 = vmatprep.subr.mxu0 0.0
    %4322 = vmatpush1.msra.mxu0 0.0
    %4323 = vmatprep.subr.mxu0 0.0
    %4324 = vmatpush1.msra.mxu0 0.0
    %4325 = vmatprep.subr.mxu0 0.0
    %4326 = vmatpush1.msra.mxu0 0.0
    %4327 = vmatprep.subr.mxu0 0.0
    %4328 = vmatpush1.msra.mxu0 0.0
    %4329 = vmatprep.subr.mxu0 0.0
    %4330 = vmatpush1.msra.mxu0 0.0
    %4331 = vmatprep.subr.mxu0 0.0
    %4332 = vmatpush1.msra.mxu0 0.0
    %4333 = vmatprep.subr.mxu0 0.0
    %4334 = vmatpush1.msra.mxu0 0.0
    %4335 = vmatprep.subr.mxu0 0.0
    %4336 = vmatpush1.msra.mxu0 0.0
    %4337 = vmatprep.subr.mxu0 0.0
    %4338 = vmatpush1.msra.mxu0 0.0
    %4339 = vmatprep.subr.mxu0 0.0
    %4340 = vmatpush1.msra.mxu0 0.0
    %4341 = vmatprep.subr.mxu0 0.0
    %4342 = vmatpush1.msra.mxu0 0.0
    %4343 = vmatprep.subr.mxu0 0.0
    %4344 = vmatpush1.msra.mxu0 0.0
    %4345 = vmatprep.subr.mxu0 0.0
    %4346 = vmatpush1.msra.mxu0 0.0
    %4347 = vmatprep.subr.mxu0 0.0
    %4348 = vmatpush1.msra.mxu0 0.0
    %4349 = vmatprep.subr.mxu0 0.0
    %4350 = vmatpush1.msra.mxu0 0.0
    %4351 = vmatprep.mubr.f32.mxu0 0.0
    %4352 = vmatmul.mubr.f32.gmra.mrb[0].mxu0 %v4282
    %v4353 = vpop.f32.mrb[0].mxu0
    %v4354 = vadd.f32 0.0, %v4353
    %v4355 = vpop.f32.mrb[0].mxu0
    %4356 = vmatprep.mubr.f32.mxu0 0.0
    %4357 = vmatmul.mubr.f32.gmra.mrb[0].mxu0 %v4285
    %v4358 = vpop.f32.mrb[0].mxu0
    %v4359 = vadd.f32 0.0, %v4358
    %v4360 = vpop.f32.mrb[0].mxu0
    %4361 = vdwg.mxu0
    %4362 = vrot.lane.b32.xlu0 %v217, 64
    %v4363 = vpop.permute.xlu0 %4362
    %4364 = vrot.lane.b32.xlu0 %v222, 64
    %v4365 = vpop.permute.xlu0 %4364
    %v4369 = vsel %vm3142, %v3793, 0
    %v4372 = vsel %vm3142, %v3794, 0
    %4374 = vmatprep.subr.mxu0 0.0
    %4375 = vmatpush1.msra.mxu0 %v4363
    %4376 = vmatprep.subr.mxu0 0.0
    %4377 = vmatpush1.msra.mxu0 %v4365
    %4378 = vmatprep.subr.mxu0 0.0
    %4379 = vmatpush1.msra.mxu0 0.0
    %4380 = vmatprep.subr.mxu0 0.0
    %4381 = vmatpush1.msra.mxu0 0.0
    %4382 = vmatprep.subr.mxu0 0.0
    %4383 = vmatpush1.msra.mxu0 0.0
    %4384 = vmatprep.subr.mxu0 0.0
    %4385 = vmatpush1.msra.mxu0 0.0
    %4386 = vmatprep.subr.mxu0 0.0
    %4387 = vmatpush1.msra.mxu0 0.0
    %4388 = vmatprep.subr.mxu0 0.0
    %4389 = vmatpush1.msra.mxu0 0.0
    %4390 = vmatprep.subr.mxu0 0.0
    %4391 = vmatpush1.msra.mxu0 0.0
    %4392 = vmatprep.subr.mxu0 0.0
    %4393 = vmatpush1.msra.mxu0 0.0
    %4394 = vmatprep.subr.mxu0 0.0
    %4395 = vmatpush1.msra.mxu0 0.0
    %4396 = vmatprep.subr.mxu0 0.0
    %4397 = vmatpush1.msra.mxu0 0.0
    %4398 = vmatprep.subr.mxu0 0.0
    %4399 = vmatpush1.msra.mxu0 0.0
    %4400 = vmatprep.subr.mxu0 0.0
    %4401 = vmatpush1.msra.mxu0 0.0
    %4402 = vmatprep.subr.mxu0 0.0
    %4403 = vmatpush1.msra.mxu0 0.0
    %4404 = vmatprep.subr.mxu0 0.0
    %4405 = vmatpush1.msra.mxu0 0.0
    %4406 = vmatprep.subr.mxu0 0.0
    %4407 = vmatpush1.msra.mxu0 0.0
    %4408 = vmatprep.subr.mxu0 0.0
    %4409 = vmatpush1.msra.mxu0 0.0
    %4410 = vmatprep.subr.mxu0 0.0
    %4411 = vmatpush1.msra.mxu0 0.0
    %4412 = vmatprep.subr.mxu0 0.0
    %4413 = vmatpush1.msra.mxu0 0.0
    %4414 = vmatprep.subr.mxu0 0.0
    %4415 = vmatpush1.msra.mxu0 0.0
    %4416 = vmatprep.subr.mxu0 0.0
    %4417 = vmatpush1.msra.mxu0 0.0
    %4418 = vmatprep.subr.mxu0 0.0
    %4419 = vmatpush1.msra.mxu0 0.0
    %4420 = vmatprep.subr.mxu0 0.0
    %4421 = vmatpush1.msra.mxu0 0.0
    %4422 = vmatprep.subr.mxu0 0.0
    %4423 = vmatpush1.msra.mxu0 0.0
    %4424 = vmatprep.subr.mxu0 0.0
    %4425 = vmatpush1.msra.mxu0 0.0
    %4426 = vmatprep.subr.mxu0 0.0
    %4427 = vmatpush1.msra.mxu0 0.0
    %4428 = vmatprep.subr.mxu0 0.0
    %4429 = vmatpush1.msra.mxu0 0.0
    %4430 = vmatprep.subr.mxu0 0.0
    %4431 = vmatpush1.msra.mxu0 0.0
    %4432 = vmatprep.subr.mxu0 0.0
    %4433 = vmatpush1.msra.mxu0 0.0
    %4434 = vmatprep.subr.mxu0 0.0
    %4435 = vmatpush1.msra.mxu0 0.0
    %4436 = vmatprep.subr.mxu0 0.0
    %4437 = vmatpush1.msra.mxu0 0.0
    %4438 = vmatprep.mubr.f32.mxu0 0.0
    %4439 = vmatmul.mubr.f32.gmra.mrb[0].mxu0 %v4369
    %v4440 = vpop.f32.mrb[0].mxu0
    %v4441 = vadd.f32 0.0, %v4440
    %v4442 = vpop.f32.mrb[0].mxu0
    %4443 = vmatprep.mubr.f32.mxu0 0.0
    %4444 = vmatmul.mubr.f32.gmra.mrb[0].mxu0 %v4372
    %v4445 = vpop.f32.mrb[0].mxu0
    %v4446 = vadd.f32 0.0, %v4445
    %v4447 = vpop.f32.mrb[0].mxu0
    %4448 = vdwg.mxu0
    %4449 = vrot.lane.b32.xlu0 %v227, 64
    %v4450 = vpop.permute.xlu0 %4449
    %4451 = vrot.lane.b32.xlu0 %v232, 64
    %v4452 = vpop.permute.xlu0 %4451
    %v4456 = vsel %vm3142, %v3795, 0
    %v4459 = vsel %vm3142, %v3796, 0
    %4461 = vmatprep.subr.mxu0 0.0
    %4462 = vmatpush1.msra.mxu0 %v4450
    %4463 = vmatprep.subr.mxu0 0.0
    %4464 = vmatpush1.msra.mxu0 %v4452
    %4465 = vmatprep.subr.mxu0 0.0
    %4466 = vmatpush1.msra.mxu0 0.0
    %4467 = vmatprep.subr.mxu0 0.0
    %4468 = vmatpush1.msra.mxu0 0.0
    %4469 = vmatprep.subr.mxu0 0.0
    %4470 = vmatpush1.msra.mxu0 0.0
    %4471 = vmatprep.subr.mxu0 0.0
    %4472 = vmatpush1.msra.mxu0 0.0
    %4473 = vmatprep.subr.mxu0 0.0
    %4474 = vmatpush1.msra.mxu0 0.0
    %4475 = vmatprep.subr.mxu0 0.0
    %4476 = vmatpush1.msra.mxu0 0.0
    %4477 = vmatprep.subr.mxu0 0.0
    %4478 = vmatpush1.msra.mxu0 0.0
    %4479 = vmatprep.subr.mxu0 0.0
    %4480 = vmatpush1.msra.mxu0 0.0
    %4481 = vmatprep.subr.mxu0 0.0
    %4482 = vmatpush1.msra.mxu0 0.0
    %4483 = vmatprep.subr.mxu0 0.0
    %4484 = vmatpush1.msra.mxu0 0.0
    %4485 = vmatprep.subr.mxu0 0.0
    %4486 = vmatpush1.msra.mxu0 0.0
    %4487 = vmatprep.subr.mxu0 0.0
    %4488 = vmatpush1.msra.mxu0 0.0
    %4489 = vmatprep.subr.mxu0 0.0
    %4490 = vmatpush1.msra.mxu0 0.0
    %4491 = vmatprep.subr.mxu0 0.0
    %4492 = vmatpush1.msra.mxu0 0.0
    %4493 = vmatprep.subr.mxu0 0.0
    %4494 = vmatpush1.msra.mxu0 0.0
    %4495 = vmatprep.subr.mxu0 0.0
    %4496 = vmatpush1.msra.mxu0 0.0
    %4497 = vmatprep.subr.mxu0 0.0
    %4498 = vmatpush1.msra.mxu0 0.0
    %4499 = vmatprep.subr.mxu0 0.0
    %4500 = vmatpush1.msra.mxu0 0.0
    %4501 = vmatprep.subr.mxu0 0.0
    %4502 = vmatpush1.msra.mxu0 0.0
    %4503 = vmatprep.subr.mxu0 0.0
    %4504 = vmatpush1.msra.mxu0 0.0
    %4505 = vmatprep.subr.mxu0 0.0
    %4506 = vmatpush1.msra.mxu0 0.0
    %4507 = vmatprep.subr.mxu0 0.0
    %4508 = vmatpush1.msra.mxu0 0.0
    %4509 = vmatprep.subr.mxu0 0.0
    %4510 = vmatpush1.msra.mxu0 0.0
    %4511 = vmatprep.subr.mxu0 0.0
    %4512 = vmatpush1.msra.mxu0 0.0
    %4513 = vmatprep.subr.mxu0 0.0
    %4514 = vmatpush1.msra.mxu0 0.0
    %4515 = vmatprep.subr.mxu0 0.0
    %4516 = vmatpush1.msra.mxu0 0.0
    %4517 = vmatprep.subr.mxu0 0.0
    %4518 = vmatpush1.msra.mxu0 0.0
    %4519 = vmatprep.subr.mxu0 0.0
    %4520 = vmatpush1.msra.mxu0 0.0
    %4521 = vmatprep.subr.mxu0 0.0
    %4522 = vmatpush1.msra.mxu0 0.0
    %4523 = vmatprep.subr.mxu0 0.0
    %4524 = vmatpush1.msra.mxu0 0.0
    %4525 = vmatprep.mubr.f32.mxu0 0.0
    %4526 = vmatmul.mubr.f32.gmra.mrb[0].mxu0 %v4456
    %v4527 = vpop.f32.mrb[0].mxu0
    %v4528 = vadd.f32 0.0, %v4527
    %v4529 = vpop.f32.mrb[0].mxu0
    %4530 = vmatprep.mubr.f32.mxu0 0.0
    %4531 = vmatmul.mubr.f32.gmra.mrb[0].mxu0 %v4459
    %v4532 = vpop.f32.mrb[0].mxu0
    %v4533 = vadd.f32 0.0, %v4532
    %v4534 = vpop.f32.mrb[0].mxu0
    %4535 = vdwg.mxu0
    %4536 = vrot.lane.b32.xlu0 %v237, 64
    %v4537 = vpop.permute.xlu0 %4536
    %4538 = vrot.lane.b32.xlu0 %v242, 64
    %v4539 = vpop.permute.xlu0 %4538
    %v4543 = vsel %vm3142, %v3797, 0
    %v4546 = vsel %vm3142, %v3798, 0
    %4548 = vmatprep.subr.mxu0 0.0
    %4549 = vmatpush1.msra.mxu0 %v4537
    %4550 = vmatprep.subr.mxu0 0.0
    %4551 = vmatpush1.msra.mxu0 %v4539
    %4552 = vmatprep.subr.mxu0 0.0
    %4553 = vmatpush1.msra.mxu0 0.0
    %4554 = vmatprep.subr.mxu0 0.0
    %4555 = vmatpush1.msra.mxu0 0.0
    %4556 = vmatprep.subr.mxu0 0.0
    %4557 = vmatpush1.msra.mxu0 0.0
    %4558 = vmatprep.subr.mxu0 0.0
    %4559 = vmatpush1.msra.mxu0 0.0
    %4560 = vmatprep.subr.mxu0 0.0
    %4561 = vmatpush1.msra.mxu0 0.0
    %4562 = vmatprep.subr.mxu0 0.0
    %4563 = vmatpush1.msra.mxu0 0.0
    %4564 = vmatprep.subr.mxu0 0.0
    %4565 = vmatpush1.msra.mxu0 0.0
    %4566 = vmatprep.subr.mxu0 0.0
    %4567 = vmatpush1.msra.mxu0 0.0
    %4568 = vmatprep.subr.mxu0 0.0
    %4569 = vmatpush1.msra.mxu0 0.0
    %4570 = vmatprep.subr.mxu0 0.0
    %4571 = vmatpush1.msra.mxu0 0.0
    %4572 = vmatprep.subr.mxu0 0.0
    %4573 = vmatpush1.msra.mxu0 0.0
    %4574 = vmatprep.subr.mxu0 0.0
    %4575 = vmatpush1.msra.mxu0 0.0
    %4576 = vmatprep.subr.mxu0 0.0
    %4577 = vmatpush1.msra.mxu0 0.0
    %4578 = vmatprep.subr.mxu0 0.0
    %4579 = vmatpush1.msra.mxu0 0.0
    %4580 = vmatprep.subr.mxu0 0.0
    %4581 = vmatpush1.msra.mxu0 0.0
    %4582 = vmatprep.subr.mxu0 0.0
    %4583 = vmatpush1.msra.mxu0 0.0
    %4584 = vmatprep.subr.mxu0 0.0
    %4585 = vmatpush1.msra.mxu0 0.0
    %4586 = vmatprep.subr.mxu0 0.0
    %4587 = vmatpush1.msra.mxu0 0.0
    %4588 = vmatprep.subr.mxu0 0.0
    %4589 = vmatpush1.msra.mxu0 0.0
    %4590 = vmatprep.subr.mxu0 0.0
    %4591 = vmatpush1.msra.mxu0 0.0
    %4592 = vmatprep.subr.mxu0 0.0
    %4593 = vmatpush1.msra.mxu0 0.0
    %4594 = vmatprep.subr.mxu0 0.0
    %4595 = vmatpush1.msra.mxu0 0.0
    %4596 = vmatprep.subr.mxu0 0.0
    %4597 = vmatpush1.msra.mxu0 0.0
    %4598 = vmatprep.subr.mxu0 0.0
    %4599 = vmatpush1.msra.mxu0 0.0
    %4600 = vmatprep.subr.mxu0 0.0
    %4601 = vmatpush1.msra.mxu0 0.0
    %4602 = vmatprep.subr.mxu0 0.0
    %4603 = vmatpush1.msra.mxu0 0.0
    %4604 = vmatprep.subr.mxu0 0.0
    %4605 = vmatpush1.msra.mxu0 0.0
    %4606 = vmatprep.subr.mxu0 0.0
    %4607 = vmatpush1.msra.mxu0 0.0
    %4608 = vmatprep.subr.mxu0 0.0
    %4609 = vmatpush1.msra.mxu0 0.0
    %4610 = vmatprep.subr.mxu0 0.0
    %4611 = vmatpush1.msra.mxu0 0.0
    %4612 = vmatprep.mubr.f32.mxu0 0.0
    %4613 = vmatmul.mubr.f32.gmra.mrb[0].mxu0 %v4543
    %v4614 = vpop.f32.mrb[0].mxu0
    %v4615 = vadd.f32 0.0, %v4614
    %v4616 = vpop.f32.mrb[0].mxu0
    %4617 = vmatprep.mubr.f32.mxu0 0.0
    %4618 = vmatmul.mubr.f32.gmra.mrb[0].mxu0 %v4546
    %v4619 = vpop.f32.mrb[0].mxu0
    %v4620 = vadd.f32 0.0, %v4619
    %v4621 = vpop.f32.mrb[0].mxu0
    %4622 = vdwg.mxu0
    %4623 = vrot.lane.b32.xlu0 %v262, 64
    %v4624 = vpop.permute.xlu0 %4623
    %4625 = vrot.lane.b32.xlu0 %v264, 64
    %v4626 = vpop.permute.xlu0 %4625
    %v4630 = vsel %vm3142, %v3799, 0
    %v4633 = vsel %vm3142, %v3800, 0
    %4635 = vmatprep.subr.mxu0 0.0
    %4636 = vmatpush1.msra.mxu0 %v4624
    %4637 = vmatprep.subr.mxu0 0.0
    %4638 = vmatpush1.msra.mxu0 %v4626
    %4639 = vmatprep.subr.mxu0 0.0
    %4640 = vmatpush1.msra.mxu0 0.0
    %4641 = vmatprep.subr.mxu0 0.0
    %4642 = vmatpush1.msra.mxu0 0.0
    %4643 = vmatprep.subr.mxu0 0.0
    %4644 = vmatpush1.msra.mxu0 0.0
    %4645 = vmatprep.subr.mxu0 0.0
    %4646 = vmatpush1.msra.mxu0 0.0
    %4647 = vmatprep.subr.mxu0 0.0
    %4648 = vmatpush1.msra.mxu0 0.0
    %4649 = vmatprep.subr.mxu0 0.0
    %4650 = vmatpush1.msra.mxu0 0.0
    %4651 = vmatprep.subr.mxu0 0.0
    %4652 = vmatpush1.msra.mxu0 0.0
    %4653 = vmatprep.subr.mxu0 0.0
    %4654 = vmatpush1.msra.mxu0 0.0
    %4655 = vmatprep.subr.mxu0 0.0
    %4656 = vmatpush1.msra.mxu0 0.0
    %4657 = vmatprep.subr.mxu0 0.0
    %4658 = vmatpush1.msra.mxu0 0.0
    %4659 = vmatprep.subr.mxu0 0.0
    %4660 = vmatpush1.msra.mxu0 0.0
    %4661 = vmatprep.subr.mxu0 0.0
    %4662 = vmatpush1.msra.mxu0 0.0
    %4663 = vmatprep.subr.mxu0 0.0
    %4664 = vmatpush1.msra.mxu0 0.0
    %4665 = vmatprep.subr.mxu0 0.0
    %4666 = vmatpush1.msra.mxu0 0.0
    %4667 = vmatprep.subr.mxu0 0.0
    %4668 = vmatpush1.msra.mxu0 0.0
    %4669 = vmatprep.subr.mxu0 0.0
    %4670 = vmatpush1.msra.mxu0 0.0
    %4671 = vmatprep.subr.mxu0 0.0
    %4672 = vmatpush1.msra.mxu0 0.0
    %4673 = vmatprep.subr.mxu0 0.0
    %4674 = vmatpush1.msra.mxu0 0.0
    %4675 = vmatprep.subr.mxu0 0.0
    %4676 = vmatpush1.msra.mxu0 0.0
    %4677 = vmatprep.subr.mxu0 0.0
    %4678 = vmatpush1.msra.mxu0 0.0
    %4679 = vmatprep.subr.mxu0 0.0
    %4680 = vmatpush1.msra.mxu0 0.0
    %4681 = vmatprep.subr.mxu0 0.0
    %4682 = vmatpush1.msra.mxu0 0.0
    %4683 = vmatprep.subr.mxu0 0.0
    %4684 = vmatpush1.msra.mxu0 0.0
    %4685 = vmatprep.subr.mxu0 0.0
    %4686 = vmatpush1.msra.mxu0 0.0
    %4687 = vmatprep.subr.mxu0 0.0
    %4688 = vmatpush1.msra.mxu0 0.0
    %4689 = vmatprep.subr.mxu0 0.0
    %4690 = vmatpush1.msra.mxu0 0.0
    %4691 = vmatprep.subr.mxu0 0.0
    %4692 = vmatpush1.msra.mxu0 0.0
    %4693 = vmatprep.subr.mxu0 0.0
    %4694 = vmatpush1.msra.mxu0 0.0
    %4695 = vmatprep.subr.mxu0 0.0
    %4696 = vmatpush1.msra.mxu0 0.0
    %4697 = vmatprep.subr.mxu0 0.0
    %4698 = vmatpush1.msra.mxu0 0.0
    %4699 = vmatprep.mubr.f32.mxu0 0.0
    %4700 = vmatmul.mubr.f32.gmra.mrb[0].mxu0 %v4630
    %v4701 = vpop.f32.mrb[0].mxu0
    %v4702 = vadd.f32 0.0, %v4701
    %v4703 = vpop.f32.mrb[0].mxu0
    %4704 = vmatprep.mubr.f32.mxu0 0.0
    %4705 = vmatmul.mubr.f32.gmra.mrb[0].mxu0 %v4633
    %v4706 = vpop.f32.mrb[0].mxu0
    %v4707 = vadd.f32 0.0, %v4706
    %v4708 = vpop.f32.mrb[0].mxu0
    %4709 = vdwg.mxu0
    %4710 = vrot.lane.b32.xlu0 %v266, 64
    %v4711 = vpop.permute.xlu0 %4710
    %4712 = vrot.lane.b32.xlu0 %v268, 64
    %v4713 = vpop.permute.xlu0 %4712
    %v4717 = vsel %vm3142, %v3801, 0
    %v4720 = vsel %vm3142, %v3802, 0
    %4722 = vmatprep.subr.mxu0 0.0
    %4723 = vmatpush1.msra.mxu0 %v4711
    %4724 = vmatprep.subr.mxu0 0.0
    %4725 = vmatpush1.msra.mxu0 %v4713
    %4726 = vmatprep.subr.mxu0 0.0
    %4727 = vmatpush1.msra.mxu0 0.0
    %4728 = vmatprep.subr.mxu0 0.0
    %4729 = vmatpush1.msra.mxu0 0.0
    %4730 = vmatprep.subr.mxu0 0.0
    %4731 = vmatpush1.msra.mxu0 0.0
    %4732 = vmatprep.subr.mxu0 0.0
    %4733 = vmatpush1.msra.mxu0 0.0
    %4734 = vmatprep.subr.mxu0 0.0
    %4735 = vmatpush1.msra.mxu0 0.0
    %4736 = vmatprep.subr.mxu0 0.0
    %4737 = vmatpush1.msra.mxu0 0.0
    %4738 = vmatprep.subr.mxu0 0.0
    %4739 = vmatpush1.msra.mxu0 0.0
    %4740 = vmatprep.subr.mxu0 0.0
    %4741 = vmatpush1.msra.mxu0 0.0
    %4742 = vmatprep.subr.mxu0 0.0
    %4743 = vmatpush1.msra.mxu0 0.0
    %4744 = vmatprep.subr.mxu0 0.0
    %4745 = vmatpush1.msra.mxu0 0.0
    %4746 = vmatprep.subr.mxu0 0.0
    %4747 = vmatpush1.msra.mxu0 0.0
    %4748 = vmatprep.subr.mxu0 0.0
    %4749 = vmatpush1.msra.mxu0 0.0
    %4750 = vmatprep.subr.mxu0 0.0
    %4751 = vmatpush1.msra.mxu0 0.0
    %4752 = vmatprep.subr.mxu0 0.0
    %4753 = vmatpush1.msra.mxu0 0.0
    %4754 = vmatprep.subr.mxu0 0.0
    %4755 = vmatpush1.msra.mxu0 0.0
    %4756 = vmatprep.subr.mxu0 0.0
    %4757 = vmatpush1.msra.mxu0 0.0
    %4758 = vmatprep.subr.mxu0 0.0
    %4759 = vmatpush1.msra.mxu0 0.0
    %4760 = vmatprep.subr.mxu0 0.0
    %4761 = vmatpush1.msra.mxu0 0.0
    %4762 = vmatprep.subr.mxu0 0.0
    %4763 = vmatpush1.msra.mxu0 0.0
    %4764 = vmatprep.subr.mxu0 0.0
    %4765 = vmatpush1.msra.mxu0 0.0
    %4766 = vmatprep.subr.mxu0 0.0
    %4767 = vmatpush1.msra.mxu0 0.0
    %4768 = vmatprep.subr.mxu0 0.0
    %4769 = vmatpush1.msra.mxu0 0.0
    %4770 = vmatprep.subr.mxu0 0.0
    %4771 = vmatpush1.msra.mxu0 0.0
    %4772 = vmatprep.subr.mxu0 0.0
    %4773 = vmatpush1.msra.mxu0 0.0
    %4774 = vmatprep.subr.mxu0 0.0
    %4775 = vmatpush1.msra.mxu0 0.0
    %4776 = vmatprep.subr.mxu0 0.0
    %4777 = vmatpush1.msra.mxu0 0.0
    %4778 = vmatprep.subr.mxu0 0.0
    %4779 = vmatpush1.msra.mxu0 0.0
    %4780 = vmatprep.subr.mxu0 0.0
    %4781 = vmatpush1.msra.mxu0 0.0
    %4782 = vmatprep.subr.mxu0 0.0
    %4783 = vmatpush1.msra.mxu0 0.0
    %4784 = vmatprep.subr.mxu0 0.0
    %4785 = vmatpush1.msra.mxu0 0.0
    %4786 = vmatprep.mubr.f32.mxu0 0.0
    %4787 = vmatmul.mubr.f32.gmra.mrb[0].mxu0 %v4717
    %v4788 = vpop.f32.mrb[0].mxu0
    %v4789 = vadd.f32 0.0, %v4788
    %v4790 = vpop.f32.mrb[0].mxu0
    %4791 = vmatprep.mubr.f32.mxu0 0.0
    %4792 = vmatmul.mubr.f32.gmra.mrb[0].mxu0 %v4720
    %v4793 = vpop.f32.mrb[0].mxu0
    %v4794 = vadd.f32 0.0, %v4793
    %v4795 = vpop.f32.mrb[0].mxu0
    %4796 = vdwg.mxu0
    %4797 = vrot.lane.b32.xlu0 %v270, 64
    %v4798 = vpop.permute.xlu0 %4797
    %4799 = vrot.lane.b32.xlu0 %v272, 64
    %v4800 = vpop.permute.xlu0 %4799
    %v4804 = vsel %vm3142, %v3803, 0
    %v4807 = vsel %vm3142, %v3804, 0
    %4809 = vmatprep.subr.mxu0 0.0
    %4810 = vmatpush1.msra.mxu0 %v4798
    %4811 = vmatprep.subr.mxu0 0.0
    %4812 = vmatpush1.msra.mxu0 %v4800
    %4813 = vmatprep.subr.mxu0 0.0
    %4814 = vmatpush1.msra.mxu0 0.0
    %4815 = vmatprep.subr.mxu0 0.0
    %4816 = vmatpush1.msra.mxu0 0.0
    %4817 = vmatprep.subr.mxu0 0.0
    %4818 = vmatpush1.msra.mxu0 0.0
    %4819 = vmatprep.subr.mxu0 0.0
    %4820 = vmatpush1.msra.mxu0 0.0
    %4821 = vmatprep.subr.mxu0 0.0
    %4822 = vmatpush1.msra.mxu0 0.0
    %4823 = vmatprep.subr.mxu0 0.0
    %4824 = vmatpush1.msra.mxu0 0.0
    %4825 = vmatprep.subr.mxu0 0.0
    %4826 = vmatpush1.msra.mxu0 0.0
    %4827 = vmatprep.subr.mxu0 0.0
    %4828 = vmatpush1.msra.mxu0 0.0
    %4829 = vmatprep.subr.mxu0 0.0
    %4830 = vmatpush1.msra.mxu0 0.0
    %4831 = vmatprep.subr.mxu0 0.0
    %4832 = vmatpush1.msra.mxu0 0.0
    %4833 = vmatprep.subr.mxu0 0.0
    %4834 = vmatpush1.msra.mxu0 0.0
    %4835 = vmatprep.subr.mxu0 0.0
    %4836 = vmatpush1.msra.mxu0 0.0
    %4837 = vmatprep.subr.mxu0 0.0
    %4838 = vmatpush1.msra.mxu0 0.0
    %4839 = vmatprep.subr.mxu0 0.0
    %4840 = vmatpush1.msra.mxu0 0.0
    %4841 = vmatprep.subr.mxu0 0.0
    %4842 = vmatpush1.msra.mxu0 0.0
    %4843 = vmatprep.subr.mxu0 0.0
    %4844 = vmatpush1.msra.mxu0 0.0
    %4845 = vmatprep.subr.mxu0 0.0
    %4846 = vmatpush1.msra.mxu0 0.0
    %4847 = vmatprep.subr.mxu0 0.0
    %4848 = vmatpush1.msra.mxu0 0.0
    %4849 = vmatprep.subr.mxu0 0.0
    %4850 = vmatpush1.msra.mxu0 0.0
    %4851 = vmatprep.subr.mxu0 0.0
    %4852 = vmatpush1.msra.mxu0 0.0
    %4853 = vmatprep.subr.mxu0 0.0
    %4854 = vmatpush1.msra.mxu0 0.0
    %4855 = vmatprep.subr.mxu0 0.0
    %4856 = vmatpush1.msra.mxu0 0.0
    %4857 = vmatprep.subr.mxu0 0.0
    %4858 = vmatpush1.msra.mxu0 0.0
    %4859 = vmatprep.subr.mxu0 0.0
    %4860 = vmatpush1.msra.mxu0 0.0
    %4861 = vmatprep.subr.mxu0 0.0
    %4862 = vmatpush1.msra.mxu0 0.0
    %4863 = vmatprep.subr.mxu0 0.0
    %4864 = vmatpush1.msra.mxu0 0.0
    %4865 = vmatprep.subr.mxu0 0.0
    %4866 = vmatpush1.msra.mxu0 0.0
    %4867 = vmatprep.subr.mxu0 0.0
    %4868 = vmatpush1.msra.mxu0 0.0
    %4869 = vmatprep.subr.mxu0 0.0
    %4870 = vmatpush1.msra.mxu0 0.0
    %4871 = vmatprep.subr.mxu0 0.0
    %4872 = vmatpush1.msra.mxu0 0.0
    %4873 = vmatprep.mubr.f32.mxu0 0.0
    %4874 = vmatmul.mubr.f32.gmra.mrb[0].mxu0 %v4804
    %v4875 = vpop.f32.mrb[0].mxu0
    %v4876 = vadd.f32 0.0, %v4875
    %v4877 = vpop.f32.mrb[0].mxu0
    %4878 = vmatprep.mubr.f32.mxu0 0.0
    %4879 = vmatmul.mubr.f32.gmra.mrb[0].mxu0 %v4807
    %v4880 = vpop.f32.mrb[0].mxu0
    %v4881 = vadd.f32 0.0, %v4880
    %v4882 = vpop.f32.mrb[0].mxu0
    %4883 = vdwg.mxu0
    %4884 = vrot.lane.b32.xlu0 %v274, 64
    %v4885 = vpop.permute.xlu0 %4884
    %4886 = vrot.lane.b32.xlu0 %v276, 64
    %v4887 = vpop.permute.xlu0 %4886
    %v4891 = vsel %vm3142, %v3805, 0
    %v4894 = vsel %vm3142, %v3806, 0
    %4896 = vmatprep.subr.mxu0 0.0
    %4897 = vmatpush1.msra.mxu0 %v4885
    %4898 = vmatprep.subr.mxu0 0.0
    %4899 = vmatpush1.msra.mxu0 %v4887
    %4900 = vmatprep.subr.mxu0 0.0
    %4901 = vmatpush1.msra.mxu0 0.0
    %4902 = vmatprep.subr.mxu0 0.0
    %4903 = vmatpush1.msra.mxu0 0.0
    %4904 = vmatprep.subr.mxu0 0.0
    %4905 = vmatpush1.msra.mxu0 0.0
    %4906 = vmatprep.subr.mxu0 0.0
    %4907 = vmatpush1.msra.mxu0 0.0
    %4908 = vmatprep.subr.mxu0 0.0
    %4909 = vmatpush1.msra.mxu0 0.0
    %4910 = vmatprep.subr.mxu0 0.0
    %4911 = vmatpush1.msra.mxu0 0.0
    %4912 = vmatprep.subr.mxu0 0.0
    %4913 = vmatpush1.msra.mxu0 0.0
    %4914 = vmatprep.subr.mxu0 0.0
    %4915 = vmatpush1.msra.mxu0 0.0
    %4916 = vmatprep.subr.mxu0 0.0
    %4917 = vmatpush1.msra.mxu0 0.0
    %4918 = vmatprep.subr.mxu0 0.0
    %4919 = vmatpush1.msra.mxu0 0.0
    %4920 = vmatprep.subr.mxu0 0.0
    %4921 = vmatpush1.msra.mxu0 0.0
    %4922 = vmatprep.subr.mxu0 0.0
    %4923 = vmatpush1.msra.mxu0 0.0
    %4924 = vmatprep.subr.mxu0 0.0
    %4925 = vmatpush1.msra.mxu0 0.0
    %4926 = vmatprep.subr.mxu0 0.0
    %4927 = vmatpush1.msra.mxu0 0.0
    %4928 = vmatprep.subr.mxu0 0.0
    %4929 = vmatpush1.msra.mxu0 0.0
    %4930 = vmatprep.subr.mxu0 0.0
    %4931 = vmatpush1.msra.mxu0 0.0
    %4932 = vmatprep.subr.mxu0 0.0
    %4933 = vmatpush1.msra.mxu0 0.0
    %4934 = vmatprep.subr.mxu0 0.0
    %4935 = vmatpush1.msra.mxu0 0.0
    %4936 = vmatprep.subr.mxu0 0.0
    %4937 = vmatpush1.msra.mxu0 0.0
    %4938 = vmatprep.subr.mxu0 0.0
    %4939 = vmatpush1.msra.mxu0 0.0
    %4940 = vmatprep.subr.mxu0 0.0
    %4941 = vmatpush1.msra.mxu0 0.0
    %4942 = vmatprep.subr.mxu0 0.0
    %4943 = vmatpush1.msra.mxu0 0.0
    %4944 = vmatprep.subr.mxu0 0.0
    %4945 = vmatpush1.msra.mxu0 0.0
    %4946 = vmatprep.subr.mxu0 0.0
    %4947 = vmatpush1.msra.mxu0 0.0
    %4948 = vmatprep.subr.mxu0 0.0
    %4949 = vmatpush1.msra.mxu0 0.0
    %4950 = vmatprep.subr.mxu0 0.0
    %4951 = vmatpush1.msra.mxu0 0.0
    %4952 = vmatprep.subr.mxu0 0.0
    %4953 = vmatpush1.msra.mxu0 0.0
    %4954 = vmatprep.subr.mxu0 0.0
    %4955 = vmatpush1.msra.mxu0 0.0
    %4956 = vmatprep.subr.mxu0 0.0
    %4957 = vmatpush1.msra.mxu0 0.0
    %4958 = vmatprep.subr.mxu0 0.0
    %4959 = vmatpush1.msra.mxu0 0.0
    %4960 = vmatprep.mubr.f32.mxu0 0.0
    %4961 = vmatmul.mubr.f32.gmra.mrb[0].mxu0 %v4891
    %v4962 = vpop.f32.mrb[0].mxu0
    %v4963 = vadd.f32 0.0, %v4962
    %v4964 = vpop.f32.mrb[0].mxu0
    %4965 = vmatprep.mubr.f32.mxu0 0.0
    %4966 = vmatmul.mubr.f32.gmra.mrb[0].mxu0 %v4894
    %v4967 = vpop.f32.mrb[0].mxu0
    %v4968 = vadd.f32 0.0, %v4967
    %v4969 = vpop.f32.mrb[0].mxu0
    %4970 = vdwg.mxu0
    %4971 = vrot.lane.b32.xlu0 %v278, 64
    %v4972 = vpop.permute.xlu0 %4971
    %4973 = vrot.lane.b32.xlu0 %v280, 64
    %v4974 = vpop.permute.xlu0 %4973
    %v4978 = vsel %vm3142, %v3807, 0
    %v4981 = vsel %vm3142, %v3808, 0
    %4983 = vmatprep.subr.mxu0 0.0
    %4984 = vmatpush1.msra.mxu0 %v4972
    %4985 = vmatprep.subr.mxu0 0.0
    %4986 = vmatpush1.msra.mxu0 %v4974
    %4987 = vmatprep.subr.mxu0 0.0
    %4988 = vmatpush1.msra.mxu0 0.0
    %4989 = vmatprep.subr.mxu0 0.0
    %4990 = vmatpush1.msra.mxu0 0.0
    %4991 = vmatprep.subr.mxu0 0.0
    %4992 = vmatpush1.msra.mxu0 0.0
    %4993 = vmatprep.subr.mxu0 0.0
    %4994 = vmatpush1.msra.mxu0 0.0
    %4995 = vmatprep.subr.mxu0 0.0
    %4996 = vmatpush1.msra.mxu0 0.0
    %4997 = vmatprep.subr.mxu0 0.0
    %4998 = vmatpush1.msra.mxu0 0.0
    %4999 = vmatprep.subr.mxu0 0.0
    %5000 = vmatpush1.msra.mxu0 0.0
    %5001 = vmatprep.subr.mxu0 0.0
    %5002 = vmatpush1.msra.mxu0 0.0
    %5003 = vmatprep.subr.mxu0 0.0
    %5004 = vmatpush1.msra.mxu0 0.0
    %5005 = vmatprep.subr.mxu0 0.0
    %5006 = vmatpush1.msra.mxu0 0.0
    %5007 = vmatprep.subr.mxu0 0.0
    %5008 = vmatpush1.msra.mxu0 0.0
    %5009 = vmatprep.subr.mxu0 0.0
    %5010 = vmatpush1.msra.mxu0 0.0
    %5011 = vmatprep.subr.mxu0 0.0
    %5012 = vmatpush1.msra.mxu0 0.0
    %5013 = vmatprep.subr.mxu0 0.0
    %5014 = vmatpush1.msra.mxu0 0.0
    %5015 = vmatprep.subr.mxu0 0.0
    %5016 = vmatpush1.msra.mxu0 0.0
    %5017 = vmatprep.subr.mxu0 0.0
    %5018 = vmatpush1.msra.mxu0 0.0
    %5019 = vmatprep.subr.mxu0 0.0
    %5020 = vmatpush1.msra.mxu0 0.0
    %5021 = vmatprep.subr.mxu0 0.0
    %5022 = vmatpush1.msra.mxu0 0.0
    %5023 = vmatprep.subr.mxu0 0.0
    %5024 = vmatpush1.msra.mxu0 0.0
    %5025 = vmatprep.subr.mxu0 0.0
    %5026 = vmatpush1.msra.mxu0 0.0
    %5027 = vmatprep.subr.mxu0 0.0
    %5028 = vmatpush1.msra.mxu0 0.0
    %5029 = vmatprep.subr.mxu0 0.0
    %5030 = vmatpush1.msra.mxu0 0.0
    %5031 = vmatprep.subr.mxu0 0.0
    %5032 = vmatpush1.msra.mxu0 0.0
    %5033 = vmatprep.subr.mxu0 0.0
    %5034 = vmatpush1.msra.mxu0 0.0
    %5035 = vmatprep.subr.mxu0 0.0
    %5036 = vmatpush1.msra.mxu0 0.0
    %5037 = vmatprep.subr.mxu0 0.0
    %5038 = vmatpush1.msra.mxu0 0.0
    %5039 = vmatprep.subr.mxu0 0.0
    %5040 = vmatpush1.msra.mxu0 0.0
    %5041 = vmatprep.subr.mxu0 0.0
    %5042 = vmatpush1.msra.mxu0 0.0
    %5043 = vmatprep.subr.mxu0 0.0
    %5044 = vmatpush1.msra.mxu0 0.0
    %5045 = vmatprep.subr.mxu0 0.0
    %5046 = vmatpush1.msra.mxu0 0.0
    %5047 = vmatprep.mubr.f32.mxu0 0.0
    %5048 = vmatmul.mubr.f32.gmra.mrb[0].mxu0 %v4978
    %v5049 = vpop.f32.mrb[0].mxu0
    %v5050 = vadd.f32 0.0, %v5049
    %v5051 = vpop.f32.mrb[0].mxu0
    %5052 = vmatprep.mubr.f32.mxu0 0.0
    %5053 = vmatmul.mubr.f32.gmra.mrb[0].mxu0 %v4981
    %v5054 = vpop.f32.mrb[0].mxu0
    %v5055 = vadd.f32 0.0, %v5054
    %v5056 = vpop.f32.mrb[0].mxu0
    %5057 = vdwg.mxu0
    %5058 = vrot.lane.b32.xlu0 %v282, 64
    %v5059 = vpop.permute.xlu0 %5058
    %5060 = vrot.lane.b32.xlu0 %v284, 64
    %v5061 = vpop.permute.xlu0 %5060
    %v5065 = vsel %vm3142, %v3809, 0
    %v5068 = vsel %vm3142, %v3810, 0
    %5070 = vmatprep.subr.mxu0 0.0
    %5071 = vmatpush1.msra.mxu0 %v5059
    %5072 = vmatprep.subr.mxu0 0.0
    %5073 = vmatpush1.msra.mxu0 %v5061
    %5074 = vmatprep.subr.mxu0 0.0
    %5075 = vmatpush1.msra.mxu0 0.0
    %5076 = vmatprep.subr.mxu0 0.0
    %5077 = vmatpush1.msra.mxu0 0.0
    %5078 = vmatprep.subr.mxu0 0.0
    %5079 = vmatpush1.msra.mxu0 0.0
    %5080 = vmatprep.subr.mxu0 0.0
    %5081 = vmatpush1.msra.mxu0 0.0
    %5082 = vmatprep.subr.mxu0 0.0
    %5083 = vmatpush1.msra.mxu0 0.0
    %5084 = vmatprep.subr.mxu0 0.0
    %5085 = vmatpush1.msra.mxu0 0.0
    %5086 = vmatprep.subr.mxu0 0.0
    %5087 = vmatpush1.msra.mxu0 0.0
    %5088 = vmatprep.subr.mxu0 0.0
    %5089 = vmatpush1.msra.mxu0 0.0
    %5090 = vmatprep.subr.mxu0 0.0
    %5091 = vmatpush1.msra.mxu0 0.0
    %5092 = vmatprep.subr.mxu0 0.0
    %5093 = vmatpush1.msra.mxu0 0.0
    %5094 = vmatprep.subr.mxu0 0.0
    %5095 = vmatpush1.msra.mxu0 0.0
    %5096 = vmatprep.subr.mxu0 0.0
    %5097 = vmatpush1.msra.mxu0 0.0
    %5098 = vmatprep.subr.mxu0 0.0
    %5099 = vmatpush1.msra.mxu0 0.0
    %5100 = vmatprep.subr.mxu0 0.0
    %5101 = vmatpush1.msra.mxu0 0.0
    %5102 = vmatprep.subr.mxu0 0.0
    %5103 = vmatpush1.msra.mxu0 0.0
    %5104 = vmatprep.subr.mxu0 0.0
    %5105 = vmatpush1.msra.mxu0 0.0
    %5106 = vmatprep.subr.mxu0 0.0
    %5107 = vmatpush1.msra.mxu0 0.0
    %5108 = vmatprep.subr.mxu0 0.0
    %5109 = vmatpush1.msra.mxu0 0.0
    %5110 = vmatprep.subr.mxu0 0.0
    %5111 = vmatpush1.msra.mxu0 0.0
    %5112 = vmatprep.subr.mxu0 0.0
    %5113 = vmatpush1.msra.mxu0 0.0
    %5114 = vmatprep.subr.mxu0 0.0
    %5115 = vmatpush1.msra.mxu0 0.0
    %5116 = vmatprep.subr.mxu0 0.0
    %5117 = vmatpush1.msra.mxu0 0.0
    %5118 = vmatprep.subr.mxu0 0.0
    %5119 = vmatpush1.msra.mxu0 0.0
    %5120 = vmatprep.subr.mxu0 0.0
    %5121 = vmatpush1.msra.mxu0 0.0
    %5122 = vmatprep.subr.mxu0 0.0
    %5123 = vmatpush1.msra.mxu0 0.0
    %5124 = vmatprep.subr.mxu0 0.0
    %5125 = vmatpush1.msra.mxu0 0.0
    %5126 = vmatprep.subr.mxu0 0.0
    %5127 = vmatpush1.msra.mxu0 0.0
    %5128 = vmatprep.subr.mxu0 0.0
    %5129 = vmatpush1.msra.mxu0 0.0
    %5130 = vmatprep.subr.mxu0 0.0
    %5131 = vmatpush1.msra.mxu0 0.0
    %5132 = vmatprep.subr.mxu0 0.0
    %5133 = vmatpush1.msra.mxu0 0.0
    %5134 = vmatprep.mubr.f32.mxu0 0.0
    %5135 = vmatmul.mubr.f32.gmra.mrb[0].mxu0 %v5065
    %v5136 = vpop.f32.mrb[0].mxu0
    %v5137 = vadd.f32 0.0, %v5136
    %v5138 = vpop.f32.mrb[0].mxu0
    %5139 = vmatprep.mubr.f32.mxu0 0.0
    %5140 = vmatmul.mubr.f32.gmra.mrb[0].mxu0 %v5068
    %v5141 = vpop.f32.mrb[0].mxu0
    %v5142 = vadd.f32 0.0, %v5141
    %v5143 = vpop.f32.mrb[0].mxu0
    %5144 = vdwg.mxu0
    %5145 = vrot.lane.b32.xlu0 %v286, 64
    %v5146 = vpop.permute.xlu0 %5145
    %5147 = vrot.lane.b32.xlu0 %v288, 64
    %v5148 = vpop.permute.xlu0 %5147
    %v5152 = vsel %vm3142, %v3811, 0
    %v5155 = vsel %vm3142, %v3812, 0
    %5157 = vmatprep.subr.mxu0 0.0
    %5158 = vmatpush1.msra.mxu0 %v5146
    %5159 = vmatprep.subr.mxu0 0.0
    %5160 = vmatpush1.msra.mxu0 %v5148
    %5161 = vmatprep.subr.mxu0 0.0
    %5162 = vmatpush1.msra.mxu0 0.0
    %5163 = vmatprep.subr.mxu0 0.0
    %5164 = vmatpush1.msra.mxu0 0.0
    %5165 = vmatprep.subr.mxu0 0.0
    %5166 = vmatpush1.msra.mxu0 0.0
    %5167 = vmatprep.subr.mxu0 0.0
    %5168 = vmatpush1.msra.mxu0 0.0
    %5169 = vmatprep.subr.mxu0 0.0
    %5170 = vmatpush1.msra.mxu0 0.0
    %5171 = vmatprep.subr.mxu0 0.0
    %5172 = vmatpush1.msra.mxu0 0.0
    %5173 = vmatprep.subr.mxu0 0.0
    %5174 = vmatpush1.msra.mxu0 0.0
    %5175 = vmatprep.subr.mxu0 0.0
    %5176 = vmatpush1.msra.mxu0 0.0
    %5177 = vmatprep.subr.mxu0 0.0
    %5178 = vmatpush1.msra.mxu0 0.0
    %5179 = vmatprep.subr.mxu0 0.0
    %5180 = vmatpush1.msra.mxu0 0.0
    %5181 = vmatprep.subr.mxu0 0.0
    %5182 = vmatpush1.msra.mxu0 0.0
    %5183 = vmatprep.subr.mxu0 0.0
    %5184 = vmatpush1.msra.mxu0 0.0
    %5185 = vmatprep.subr.mxu0 0.0
    %5186 = vmatpush1.msra.mxu0 0.0
    %5187 = vmatprep.subr.mxu0 0.0
    %5188 = vmatpush1.msra.mxu0 0.0
    %5189 = vmatprep.subr.mxu0 0.0
    %5190 = vmatpush1.msra.mxu0 0.0
    %5191 = vmatprep.subr.mxu0 0.0
    %5192 = vmatpush1.msra.mxu0 0.0
    %5193 = vmatprep.subr.mxu0 0.0
    %5194 = vmatpush1.msra.mxu0 0.0
    %5195 = vmatprep.subr.mxu0 0.0
    %5196 = vmatpush1.msra.mxu0 0.0
    %5197 = vmatprep.subr.mxu0 0.0
    %5198 = vmatpush1.msra.mxu0 0.0
    %5199 = vmatprep.subr.mxu0 0.0
    %5200 = vmatpush1.msra.mxu0 0.0
    %5201 = vmatprep.subr.mxu0 0.0
    %5202 = vmatpush1.msra.mxu0 0.0
    %5203 = vmatprep.subr.mxu0 0.0
    %5204 = vmatpush1.msra.mxu0 0.0
    %5205 = vmatprep.subr.mxu0 0.0
    %5206 = vmatpush1.msra.mxu0 0.0
    %5207 = vmatprep.subr.mxu0 0.0
    %5208 = vmatpush1.msra.mxu0 0.0
    %5209 = vmatprep.subr.mxu0 0.0
    %5210 = vmatpush1.msra.mxu0 0.0
    %5211 = vmatprep.subr.mxu0 0.0
    %5212 = vmatpush1.msra.mxu0 0.0
    %5213 = vmatprep.subr.mxu0 0.0
    %5214 = vmatpush1.msra.mxu0 0.0
    %5215 = vmatprep.subr.mxu0 0.0
    %5216 = vmatpush1.msra.mxu0 0.0
    %5217 = vmatprep.subr.mxu0 0.0
    %5218 = vmatpush1.msra.mxu0 0.0
    %5219 = vmatprep.subr.mxu0 0.0
    %5220 = vmatpush1.msra.mxu0 0.0
    %5221 = vmatprep.mubr.f32.mxu0 0.0
    %5222 = vmatmul.mubr.f32.gmra.mrb[0].mxu0 %v5152
    %v5223 = vpop.f32.mrb[0].mxu0
    %v5224 = vadd.f32 0.0, %v5223
    %v5225 = vpop.f32.mrb[0].mxu0
    %5226 = vmatprep.mubr.f32.mxu0 0.0
    %5227 = vmatmul.mubr.f32.gmra.mrb[0].mxu0 %v5155
    %v5228 = vpop.f32.mrb[0].mxu0
    %v5229 = vadd.f32 0.0, %v5228
    %v5230 = vpop.f32.mrb[0].mxu0
    %5231 = vdwg.mxu0
    %5232 = vrot.lane.b32.xlu0 %v290, 64
    %v5233 = vpop.permute.xlu0 %5232
    %5234 = vrot.lane.b32.xlu0 %v292, 64
    %v5235 = vpop.permute.xlu0 %5234
    %v5239 = vsel %vm3142, %v3813, 0
    %v5242 = vsel %vm3142, %v3814, 0
    %5244 = vmatprep.subr.mxu0 0.0
    %5245 = vmatpush1.msra.mxu0 %v5233
    %5246 = vmatprep.subr.mxu0 0.0
    %5247 = vmatpush1.msra.mxu0 %v5235
    %5248 = vmatprep.subr.mxu0 0.0
    %5249 = vmatpush1.msra.mxu0 0.0
    %5250 = vmatprep.subr.mxu0 0.0
    %5251 = vmatpush1.msra.mxu0 0.0
    %5252 = vmatprep.subr.mxu0 0.0
    %5253 = vmatpush1.msra.mxu0 0.0
    %5254 = vmatprep.subr.mxu0 0.0
    %5255 = vmatpush1.msra.mxu0 0.0
    %5256 = vmatprep.subr.mxu0 0.0
    %5257 = vmatpush1.msra.mxu0 0.0
    %5258 = vmatprep.subr.mxu0 0.0
    %5259 = vmatpush1.msra.mxu0 0.0
    %5260 = vmatprep.subr.mxu0 0.0
    %5261 = vmatpush1.msra.mxu0 0.0
    %5262 = vmatprep.subr.mxu0 0.0
    %5263 = vmatpush1.msra.mxu0 0.0
    %5264 = vmatprep.subr.mxu0 0.0
    %5265 = vmatpush1.msra.mxu0 0.0
    %5266 = vmatprep.subr.mxu0 0.0
    %5267 = vmatpush1.msra.mxu0 0.0
    %5268 = vmatprep.subr.mxu0 0.0
    %5269 = vmatpush1.msra.mxu0 0.0
    %5270 = vmatprep.subr.mxu0 0.0
    %5271 = vmatpush1.msra.mxu0 0.0
    %5272 = vmatprep.subr.mxu0 0.0
    %5273 = vmatpush1.msra.mxu0 0.0
    %5274 = vmatprep.subr.mxu0 0.0
    %5275 = vmatpush1.msra.mxu0 0.0
    %5276 = vmatprep.subr.mxu0 0.0
    %5277 = vmatpush1.msra.mxu0 0.0
    %5278 = vmatprep.subr.mxu0 0.0
    %5279 = vmatpush1.msra.mxu0 0.0
    %5280 = vmatprep.subr.mxu0 0.0
    %5281 = vmatpush1.msra.mxu0 0.0
    %5282 = vmatprep.subr.mxu0 0.0
    %5283 = vmatpush1.msra.mxu0 0.0
    %5284 = vmatprep.subr.mxu0 0.0
    %5285 = vmatpush1.msra.mxu0 0.0
    %5286 = vmatprep.subr.mxu0 0.0
    %5287 = vmatpush1.msra.mxu0 0.0
    %5288 = vmatprep.subr.mxu0 0.0
    %5289 = vmatpush1.msra.mxu0 0.0
    %5290 = vmatprep.subr.mxu0 0.0
    %5291 = vmatpush1.msra.mxu0 0.0
    %5292 = vmatprep.subr.mxu0 0.0
    %5293 = vmatpush1.msra.mxu0 0.0
    %5294 = vmatprep.subr.mxu0 0.0
    %5295 = vmatpush1.msra.mxu0 0.0
    %5296 = vmatprep.subr.mxu0 0.0
    %5297 = vmatpush1.msra.mxu0 0.0
    %5298 = vmatprep.subr.mxu0 0.0
    %5299 = vmatpush1.msra.mxu0 0.0
    %5300 = vmatprep.subr.mxu0 0.0
    %5301 = vmatpush1.msra.mxu0 0.0
    %5302 = vmatprep.subr.mxu0 0.0
    %5303 = vmatpush1.msra.mxu0 0.0
    %5304 = vmatprep.subr.mxu0 0.0
    %5305 = vmatpush1.msra.mxu0 0.0
    %5306 = vmatprep.subr.mxu0 0.0
    %5307 = vmatpush1.msra.mxu0 0.0
    %5308 = vmatprep.mubr.f32.mxu0 0.0
    %5309 = vmatmul.mubr.f32.gmra.mrb[0].mxu0 %v5239
    %v5310 = vpop.f32.mrb[0].mxu0
    %v5311 = vadd.f32 0.0, %v5310
    %v5312 = vpop.f32.mrb[0].mxu0
    %5313 = vmatprep.mubr.f32.mxu0 0.0
    %5314 = vmatmul.mubr.f32.gmra.mrb[0].mxu0 %v5242
    %v5315 = vpop.f32.mrb[0].mxu0
    %v5316 = vadd.f32 0.0, %v5315
    %v5317 = vpop.f32.mrb[0].mxu0
    %5318 = vdwg.mxu0
    %5319 = vrot.lane.b32.xlu0 %v294, 64
    %v5320 = vpop.permute.xlu0 %5319
    %5321 = vrot.lane.b32.xlu0 %v296, 64
    %v5322 = vpop.permute.xlu0 %5321
    %v5326 = vsel %vm3142, %v3815, 0
    %v5329 = vsel %vm3142, %v3816, 0
    %5331 = vmatprep.subr.mxu0 0.0
    %5332 = vmatpush1.msra.mxu0 %v5320
    %5333 = vmatprep.subr.mxu0 0.0
    %5334 = vmatpush1.msra.mxu0 %v5322
    %5335 = vmatprep.subr.mxu0 0.0
    %5336 = vmatpush1.msra.mxu0 0.0
    %5337 = vmatprep.subr.mxu0 0.0
    %5338 = vmatpush1.msra.mxu0 0.0
    %5339 = vmatprep.subr.mxu0 0.0
    %5340 = vmatpush1.msra.mxu0 0.0
    %5341 = vmatprep.subr.mxu0 0.0
    %5342 = vmatpush1.msra.mxu0 0.0
    %5343 = vmatprep.subr.mxu0 0.0
    %5344 = vmatpush1.msra.mxu0 0.0
    %5345 = vmatprep.subr.mxu0 0.0
    %5346 = vmatpush1.msra.mxu0 0.0
    %5347 = vmatprep.subr.mxu0 0.0
    %5348 = vmatpush1.msra.mxu0 0.0
    %5349 = vmatprep.subr.mxu0 0.0
    %5350 = vmatpush1.msra.mxu0 0.0
    %5351 = vmatprep.subr.mxu0 0.0
    %5352 = vmatpush1.msra.mxu0 0.0
    %5353 = vmatprep.subr.mxu0 0.0
    %5354 = vmatpush1.msra.mxu0 0.0
    %5355 = vmatprep.subr.mxu0 0.0
    %5356 = vmatpush1.msra.mxu0 0.0
    %5357 = vmatprep.subr.mxu0 0.0
    %5358 = vmatpush1.msra.mxu0 0.0
    %5359 = vmatprep.subr.mxu0 0.0
    %5360 = vmatpush1.msra.mxu0 0.0
    %5361 = vmatprep.subr.mxu0 0.0
    %5362 = vmatpush1.msra.mxu0 0.0
    %5363 = vmatprep.subr.mxu0 0.0
    %5364 = vmatpush1.msra.mxu0 0.0
    %5365 = vmatprep.subr.mxu0 0.0
    %5366 = vmatpush1.msra.mxu0 0.0
    %5367 = vmatprep.subr.mxu0 0.0
    %5368 = vmatpush1.msra.mxu0 0.0
    %5369 = vmatprep.subr.mxu0 0.0
    %5370 = vmatpush1.msra.mxu0 0.0
    %5371 = vmatprep.subr.mxu0 0.0
    %5372 = vmatpush1.msra.mxu0 0.0
    %5373 = vmatprep.subr.mxu0 0.0
    %5374 = vmatpush1.msra.mxu0 0.0
    %5375 = vmatprep.subr.mxu0 0.0
    %5376 = vmatpush1.msra.mxu0 0.0
    %5377 = vmatprep.subr.mxu0 0.0
    %5378 = vmatpush1.msra.mxu0 0.0
    %5379 = vmatprep.subr.mxu0 0.0
    %5380 = vmatpush1.msra.mxu0 0.0
    %5381 = vmatprep.subr.mxu0 0.0
    %5382 = vmatpush1.msra.mxu0 0.0
    %5383 = vmatprep.subr.mxu0 0.0
    %5384 = vmatpush1.msra.mxu0 0.0
    %5385 = vmatprep.subr.mxu0 0.0
    %5386 = vmatpush1.msra.mxu0 0.0
    %5387 = vmatprep.subr.mxu0 0.0
    %5388 = vmatpush1.msra.mxu0 0.0
    %5389 = vmatprep.subr.mxu0 0.0
    %5390 = vmatpush1.msra.mxu0 0.0
    %5391 = vmatprep.subr.mxu0 0.0
    %5392 = vmatpush1.msra.mxu0 0.0
    %5393 = vmatprep.subr.mxu0 0.0
    %5394 = vmatpush1.msra.mxu0 0.0
    %5395 = vmatprep.mubr.f32.mxu0 0.0
    %5396 = vmatmul.mubr.f32.gmra.mrb[0].mxu0 %v5326
    %v5397 = vpop.f32.mrb[0].mxu0
    %v5398 = vadd.f32 0.0, %v5397
    %v5399 = vpop.f32.mrb[0].mxu0
    %5400 = vmatprep.mubr.f32.mxu0 0.0
    %5401 = vmatmul.mubr.f32.gmra.mrb[0].mxu0 %v5329
    %v5402 = vpop.f32.mrb[0].mxu0
    %v5403 = vadd.f32 0.0, %v5402
    %v5404 = vpop.f32.mrb[0].mxu0
    %5405 = vdwg.mxu0
    %5406 = vrot.lane.b32.xlu0 %v298, 64
    %v5407 = vpop.permute.xlu0 %5406
    %5408 = vrot.lane.b32.xlu0 %v300, 64
    %v5409 = vpop.permute.xlu0 %5408
    %v5413 = vsel %vm3142, %v3817, 0
    %v5416 = vsel %vm3142, %v3818, 0
    %5418 = vmatprep.subr.mxu0 0.0
    %5419 = vmatpush1.msra.mxu0 %v5407
    %5420 = vmatprep.subr.mxu0 0.0
    %5421 = vmatpush1.msra.mxu0 %v5409
    %5422 = vmatprep.subr.mxu0 0.0
    %5423 = vmatpush1.msra.mxu0 0.0
    %5424 = vmatprep.subr.mxu0 0.0
    %5425 = vmatpush1.msra.mxu0 0.0
    %5426 = vmatprep.subr.mxu0 0.0
    %5427 = vmatpush1.msra.mxu0 0.0
    %5428 = vmatprep.subr.mxu0 0.0
    %5429 = vmatpush1.msra.mxu0 0.0
    %5430 = vmatprep.subr.mxu0 0.0
    %5431 = vmatpush1.msra.mxu0 0.0
    %5432 = vmatprep.subr.mxu0 0.0
    %5433 = vmatpush1.msra.mxu0 0.0
    %5434 = vmatprep.subr.mxu0 0.0
    %5435 = vmatpush1.msra.mxu0 0.0
    %5436 = vmatprep.subr.mxu0 0.0
    %5437 = vmatpush1.msra.mxu0 0.0
    %5438 = vmatprep.subr.mxu0 0.0
    %5439 = vmatpush1.msra.mxu0 0.0
    %5440 = vmatprep.subr.mxu0 0.0
    %5441 = vmatpush1.msra.mxu0 0.0
    %5442 = vmatprep.subr.mxu0 0.0
    %5443 = vmatpush1.msra.mxu0 0.0
    %5444 = vmatprep.subr.mxu0 0.0
    %5445 = vmatpush1.msra.mxu0 0.0
    %5446 = vmatprep.subr.mxu0 0.0
    %5447 = vmatpush1.msra.mxu0 0.0
    %5448 = vmatprep.subr.mxu0 0.0
    %5449 = vmatpush1.msra.mxu0 0.0
    %5450 = vmatprep.subr.mxu0 0.0
    %5451 = vmatpush1.msra.mxu0 0.0
    %5452 = vmatprep.subr.mxu0 0.0
    %5453 = vmatpush1.msra.mxu0 0.0
    %5454 = vmatprep.subr.mxu0 0.0
    %5455 = vmatpush1.msra.mxu0 0.0
    %5456 = vmatprep.subr.mxu0 0.0
    %5457 = vmatpush1.msra.mxu0 0.0
    %5458 = vmatprep.subr.mxu0 0.0
    %5459 = vmatpush1.msra.mxu0 0.0
    %5460 = vmatprep.subr.mxu0 0.0
    %5461 = vmatpush1.msra.mxu0 0.0
    %5462 = vmatprep.subr.mxu0 0.0
    %5463 = vmatpush1.msra.mxu0 0.0
    %5464 = vmatprep.subr.mxu0 0.0
    %5465 = vmatpush1.msra.mxu0 0.0
    %5466 = vmatprep.subr.mxu0 0.0
    %5467 = vmatpush1.msra.mxu0 0.0
    %5468 = vmatprep.subr.mxu0 0.0
    %5469 = vmatpush1.msra.mxu0 0.0
    %5470 = vmatprep.subr.mxu0 0.0
    %5471 = vmatpush1.msra.mxu0 0.0
    %5472 = vmatprep.subr.mxu0 0.0
    %5473 = vmatpush1.msra.mxu0 0.0
    %5474 = vmatprep.subr.mxu0 0.0
    %5475 = vmatpush1.msra.mxu0 0.0
    %5476 = vmatprep.subr.mxu0 0.0
    %5477 = vmatpush1.msra.mxu0 0.0
    %5478 = vmatprep.subr.mxu0 0.0
    %5479 = vmatpush1.msra.mxu0 0.0
    %5480 = vmatprep.subr.mxu0 0.0
    %5481 = vmatpush1.msra.mxu0 0.0
    %5482 = vmatprep.mubr.f32.mxu0 0.0
    %5483 = vmatmul.mubr.f32.gmra.mrb[0].mxu0 %v5413
    %v5484 = vpop.f32.mrb[0].mxu0
    %v5485 = vadd.f32 0.0, %v5484
    %v5486 = vpop.f32.mrb[0].mxu0
    %5487 = vmatprep.mubr.f32.mxu0 0.0
    %5488 = vmatmul.mubr.f32.gmra.mrb[0].mxu0 %v5416
    %v5489 = vpop.f32.mrb[0].mxu0
    %v5490 = vadd.f32 0.0, %v5489
    %v5491 = vpop.f32.mrb[0].mxu0
    %5492 = vdwg.mxu0
    %5493 = vrot.lane.b32.xlu0 %v302, 64
    %v5494 = vpop.permute.xlu0 %5493
    %5495 = vrot.lane.b32.xlu0 %v304, 64
    %v5496 = vpop.permute.xlu0 %5495
    %v5500 = vsel %vm3142, %v3819, 0
    %v5503 = vsel %vm3142, %v3820, 0
    %5505 = vmatprep.subr.mxu0 0.0
    %5506 = vmatpush1.msra.mxu0 %v5494
    %5507 = vmatprep.subr.mxu0 0.0
    %5508 = vmatpush1.msra.mxu0 %v5496
    %5509 = vmatprep.subr.mxu0 0.0
    %5510 = vmatpush1.msra.mxu0 0.0
    %5511 = vmatprep.subr.mxu0 0.0
    %5512 = vmatpush1.msra.mxu0 0.0
    %5513 = vmatprep.subr.mxu0 0.0
    %5514 = vmatpush1.msra.mxu0 0.0
    %5515 = vmatprep.subr.mxu0 0.0
    %5516 = vmatpush1.msra.mxu0 0.0
    %5517 = vmatprep.subr.mxu0 0.0
    %5518 = vmatpush1.msra.mxu0 0.0
    %5519 = vmatprep.subr.mxu0 0.0
    %5520 = vmatpush1.msra.mxu0 0.0
    %5521 = vmatprep.subr.mxu0 0.0
    %5522 = vmatpush1.msra.mxu0 0.0
    %5523 = vmatprep.subr.mxu0 0.0
    %5524 = vmatpush1.msra.mxu0 0.0
    %5525 = vmatprep.subr.mxu0 0.0
    %5526 = vmatpush1.msra.mxu0 0.0
    %5527 = vmatprep.subr.mxu0 0.0
    %5528 = vmatpush1.msra.mxu0 0.0
    %5529 = vmatprep.subr.mxu0 0.0
    %5530 = vmatpush1.msra.mxu0 0.0
    %5531 = vmatprep.subr.mxu0 0.0
    %5532 = vmatpush1.msra.mxu0 0.0
    %5533 = vmatprep.subr.mxu0 0.0
    %5534 = vmatpush1.msra.mxu0 0.0
    %5535 = vmatprep.subr.mxu0 0.0
    %5536 = vmatpush1.msra.mxu0 0.0
    %5537 = vmatprep.subr.mxu0 0.0
    %5538 = vmatpush1.msra.mxu0 0.0
    %5539 = vmatprep.subr.mxu0 0.0
    %5540 = vmatpush1.msra.mxu0 0.0
    %5541 = vmatprep.subr.mxu0 0.0
    %5542 = vmatpush1.msra.mxu0 0.0
    %5543 = vmatprep.subr.mxu0 0.0
    %5544 = vmatpush1.msra.mxu0 0.0
    %5545 = vmatprep.subr.mxu0 0.0
    %5546 = vmatpush1.msra.mxu0 0.0
    %5547 = vmatprep.subr.mxu0 0.0
    %5548 = vmatpush1.msra.mxu0 0.0
    %5549 = vmatprep.subr.mxu0 0.0
    %5550 = vmatpush1.msra.mxu0 0.0
    %5551 = vmatprep.subr.mxu0 0.0
    %5552 = vmatpush1.msra.mxu0 0.0
    %5553 = vmatprep.subr.mxu0 0.0
    %5554 = vmatpush1.msra.mxu0 0.0
    %5555 = vmatprep.subr.mxu0 0.0
    %5556 = vmatpush1.msra.mxu0 0.0
    %5557 = vmatprep.subr.mxu0 0.0
    %5558 = vmatpush1.msra.mxu0 0.0
    %5559 = vmatprep.subr.mxu0 0.0
    %5560 = vmatpush1.msra.mxu0 0.0
    %5561 = vmatprep.subr.mxu0 0.0
    %5562 = vmatpush1.msra.mxu0 0.0
    %5563 = vmatprep.subr.mxu0 0.0
    %5564 = vmatpush1.msra.mxu0 0.0
    %5565 = vmatprep.subr.mxu0 0.0
    %5566 = vmatpush1.msra.mxu0 0.0
    %5567 = vmatprep.subr.mxu0 0.0
    %5568 = vmatpush1.msra.mxu0 0.0
    %5569 = vmatprep.mubr.f32.mxu0 0.0
    %5570 = vmatmul.mubr.f32.gmra.mrb[0].mxu0 %v5500
    %v5571 = vpop.f32.mrb[0].mxu0
    %v5572 = vadd.f32 0.0, %v5571
    %v5573 = vpop.f32.mrb[0].mxu0
    %5574 = vmatprep.mubr.f32.mxu0 0.0
    %5575 = vmatmul.mubr.f32.gmra.mrb[0].mxu0 %v5503
    %v5576 = vpop.f32.mrb[0].mxu0
    %v5577 = vadd.f32 0.0, %v5576
    %v5578 = vpop.f32.mrb[0].mxu0
    %5579 = vdwg.mxu0
    %5580 = vrot.lane.b32.xlu0 %v306, 64
    %v5581 = vpop.permute.xlu0 %5580
    %5582 = vrot.lane.b32.xlu0 %v308, 64
    %v5583 = vpop.permute.xlu0 %5582
    %v5587 = vsel %vm3142, %v3821, 0
    %v5590 = vsel %vm3142, %v3822, 0
    %5592 = vmatprep.subr.mxu0 0.0
    %5593 = vmatpush1.msra.mxu0 %v5581
    %5594 = vmatprep.subr.mxu0 0.0
    %5595 = vmatpush1.msra.mxu0 %v5583
    %5596 = vmatprep.subr.mxu0 0.0
    %5597 = vmatpush1.msra.mxu0 0.0
    %5598 = vmatprep.subr.mxu0 0.0
    %5599 = vmatpush1.msra.mxu0 0.0
    %5600 = vmatprep.subr.mxu0 0.0
    %5601 = vmatpush1.msra.mxu0 0.0
    %5602 = vmatprep.subr.mxu0 0.0
    %5603 = vmatpush1.msra.mxu0 0.0
    %5604 = vmatprep.subr.mxu0 0.0
    %5605 = vmatpush1.msra.mxu0 0.0
    %5606 = vmatprep.subr.mxu0 0.0
    %5607 = vmatpush1.msra.mxu0 0.0
    %5608 = vmatprep.subr.mxu0 0.0
    %5609 = vmatpush1.msra.mxu0 0.0
    %5610 = vmatprep.subr.mxu0 0.0
    %5611 = vmatpush1.msra.mxu0 0.0
    %5612 = vmatprep.subr.mxu0 0.0
    %5613 = vmatpush1.msra.mxu0 0.0
    %5614 = vmatprep.subr.mxu0 0.0
    %5615 = vmatpush1.msra.mxu0 0.0
    %5616 = vmatprep.subr.mxu0 0.0
    %5617 = vmatpush1.msra.mxu0 0.0
    %5618 = vmatprep.subr.mxu0 0.0
    %5619 = vmatpush1.msra.mxu0 0.0
    %5620 = vmatprep.subr.mxu0 0.0
    %5621 = vmatpush1.msra.mxu0 0.0
    %5622 = vmatprep.subr.mxu0 0.0
    %5623 = vmatpush1.msra.mxu0 0.0
    %5624 = vmatprep.subr.mxu0 0.0
    %5625 = vmatpush1.msra.mxu0 0.0
    %5626 = vmatprep.subr.mxu0 0.0
    %5627 = vmatpush1.msra.mxu0 0.0
    %5628 = vmatprep.subr.mxu0 0.0
    %5629 = vmatpush1.msra.mxu0 0.0
    %5630 = vmatprep.subr.mxu0 0.0
    %5631 = vmatpush1.msra.mxu0 0.0
    %5632 = vmatprep.subr.mxu0 0.0
    %5633 = vmatpush1.msra.mxu0 0.0
    %5634 = vmatprep.subr.mxu0 0.0
    %5635 = vmatpush1.msra.mxu0 0.0
    %5636 = vmatprep.subr.mxu0 0.0
    %5637 = vmatpush1.msra.mxu0 0.0
    %5638 = vmatprep.subr.mxu0 0.0
    %5639 = vmatpush1.msra.mxu0 0.0
    %5640 = vmatprep.subr.mxu0 0.0
    %5641 = vmatpush1.msra.mxu0 0.0
    %5642 = vmatprep.subr.mxu0 0.0
    %5643 = vmatpush1.msra.mxu0 0.0
    %5644 = vmatprep.subr.mxu0 0.0
    %5645 = vmatpush1.msra.mxu0 0.0
    %5646 = vmatprep.subr.mxu0 0.0
    %5647 = vmatpush1.msra.mxu0 0.0
    %5648 = vmatprep.subr.mxu0 0.0
    %5649 = vmatpush1.msra.mxu0 0.0
    %5650 = vmatprep.subr.mxu0 0.0
    %5651 = vmatpush1.msra.mxu0 0.0
    %5652 = vmatprep.subr.mxu0 0.0
    %5653 = vmatpush1.msra.mxu0 0.0
    %5654 = vmatprep.subr.mxu0 0.0
    %5655 = vmatpush1.msra.mxu0 0.0
    %5656 = vmatprep.mubr.f32.mxu0 0.0
    %5657 = vmatmul.mubr.f32.gmra.mrb[0].mxu0 %v5587
    %v5658 = vpop.f32.mrb[0].mxu0
    %v5659 = vadd.f32 0.0, %v5658
    %v5660 = vpop.f32.mrb[0].mxu0
    %5661 = vmatprep.mubr.f32.mxu0 0.0
    %5662 = vmatmul.mubr.f32.gmra.mrb[0].mxu0 %v5590
    %v5663 = vpop.f32.mrb[0].mxu0
    %v5664 = vadd.f32 0.0, %v5663
    %v5665 = vpop.f32.mrb[0].mxu0
    %5666 = vdwg.mxu0
    %5667 = vrot.lane.b32.xlu0 %v310, 64
    %v5668 = vpop.permute.xlu0 %5667
    %5669 = vrot.lane.b32.xlu0 %v312, 64
    %v5670 = vpop.permute.xlu0 %5669
    %v5674 = vsel %vm3142, %v3823, 0
    %v5677 = vsel %vm3142, %v3824, 0
    %5679 = vmatprep.subr.mxu0 0.0
    %5680 = vmatpush1.msra.mxu0 %v5668
    %5681 = vmatprep.subr.mxu0 0.0
    %5682 = vmatpush1.msra.mxu0 %v5670
    %5683 = vmatprep.subr.mxu0 0.0
    %5684 = vmatpush1.msra.mxu0 0.0
    %5685 = vmatprep.subr.mxu0 0.0
    %5686 = vmatpush1.msra.mxu0 0.0
    %5687 = vmatprep.subr.mxu0 0.0
    %5688 = vmatpush1.msra.mxu0 0.0
    %5689 = vmatprep.subr.mxu0 0.0
    %5690 = vmatpush1.msra.mxu0 0.0
    %5691 = vmatprep.subr.mxu0 0.0
    %5692 = vmatpush1.msra.mxu0 0.0
    %5693 = vmatprep.subr.mxu0 0.0
    %5694 = vmatpush1.msra.mxu0 0.0
    %5695 = vmatprep.subr.mxu0 0.0
    %5696 = vmatpush1.msra.mxu0 0.0
    %5697 = vmatprep.subr.mxu0 0.0
    %5698 = vmatpush1.msra.mxu0 0.0
    %5699 = vmatprep.subr.mxu0 0.0
    %5700 = vmatpush1.msra.mxu0 0.0
    %5701 = vmatprep.subr.mxu0 0.0
    %5702 = vmatpush1.msra.mxu0 0.0
    %5703 = vmatprep.subr.mxu0 0.0
    %5704 = vmatpush1.msra.mxu0 0.0
    %5705 = vmatprep.subr.mxu0 0.0
    %5706 = vmatpush1.msra.mxu0 0.0
    %5707 = vmatprep.subr.mxu0 0.0
    %5708 = vmatpush1.msra.mxu0 0.0
    %5709 = vmatprep.subr.mxu0 0.0
    %5710 = vmatpush1.msra.mxu0 0.0
    %5711 = vmatprep.subr.mxu0 0.0
    %5712 = vmatpush1.msra.mxu0 0.0
    %5713 = vmatprep.subr.mxu0 0.0
    %5714 = vmatpush1.msra.mxu0 0.0
    %5715 = vmatprep.subr.mxu0 0.0
    %5716 = vmatpush1.msra.mxu0 0.0
    %5717 = vmatprep.subr.mxu0 0.0
    %5718 = vmatpush1.msra.mxu0 0.0
    %5719 = vmatprep.subr.mxu0 0.0
    %5720 = vmatpush1.msra.mxu0 0.0
    %5721 = vmatprep.subr.mxu0 0.0
    %5722 = vmatpush1.msra.mxu0 0.0
    %5723 = vmatprep.subr.mxu0 0.0
    %5724 = vmatpush1.msra.mxu0 0.0
    %5725 = vmatprep.subr.mxu0 0.0
    %5726 = vmatpush1.msra.mxu0 0.0
    %5727 = vmatprep.subr.mxu0 0.0
    %5728 = vmatpush1.msra.mxu0 0.0
    %5729 = vmatprep.subr.mxu0 0.0
    %5730 = vmatpush1.msra.mxu0 0.0
    %5731 = vmatprep.subr.mxu0 0.0
    %5732 = vmatpush1.msra.mxu0 0.0
    %5733 = vmatprep.subr.mxu0 0.0
    %5734 = vmatpush1.msra.mxu0 0.0
    %5735 = vmatprep.subr.mxu0 0.0
    %5736 = vmatpush1.msra.mxu0 0.0
    %5737 = vmatprep.subr.mxu0 0.0
    %5738 = vmatpush1.msra.mxu0 0.0
    %5739 = vmatprep.subr.mxu0 0.0
    %5740 = vmatpush1.msra.mxu0 0.0
    %5741 = vmatprep.subr.mxu0 0.0
    %5742 = vmatpush1.msra.mxu0 0.0
    %5743 = vmatprep.mubr.f32.mxu0 0.0
    %5744 = vmatmul.mubr.f32.gmra.mrb[0].mxu0 %v5674
    %v5745 = vpop.f32.mrb[0].mxu0
    %v5746 = vadd.f32 0.0, %v5745
    %v5747 = vpop.f32.mrb[0].mxu0
    %5748 = vmatprep.mubr.f32.mxu0 0.0
    %5749 = vmatmul.mubr.f32.gmra.mrb[0].mxu0 %v5677
    %v5750 = vpop.f32.mrb[0].mxu0
    %v5751 = vadd.f32 0.0, %v5750
    %v5752 = vpop.f32.mrb[0].mxu0
    %5753 = vdwg.mxu0
    %5754 = vrot.lane.b32.xlu0 %v314, 64
    %v5755 = vpop.permute.xlu0 %5754
    %5756 = vrot.lane.b32.xlu0 %v316, 64
    %v5757 = vpop.permute.xlu0 %5756
    %v5761 = vsel %vm3142, %v3825, 0
    %v5764 = vsel %vm3142, %v3826, 0
    %5766 = vmatprep.subr.mxu0 0.0
    %5767 = vmatpush1.msra.mxu0 %v5755
    %5768 = vmatprep.subr.mxu0 0.0
    %5769 = vmatpush1.msra.mxu0 %v5757
    %5770 = vmatprep.subr.mxu0 0.0
    %5771 = vmatpush1.msra.mxu0 0.0
    %5772 = vmatprep.subr.mxu0 0.0
    %5773 = vmatpush1.msra.mxu0 0.0
    %5774 = vmatprep.subr.mxu0 0.0
    %5775 = vmatpush1.msra.mxu0 0.0
    %5776 = vmatprep.subr.mxu0 0.0
    %5777 = vmatpush1.msra.mxu0 0.0
    %5778 = vmatprep.subr.mxu0 0.0
    %5779 = vmatpush1.msra.mxu0 0.0
    %5780 = vmatprep.subr.mxu0 0.0
    %5781 = vmatpush1.msra.mxu0 0.0
    %5782 = vmatprep.subr.mxu0 0.0
    %5783 = vmatpush1.msra.mxu0 0.0
    %5784 = vmatprep.subr.mxu0 0.0
    %5785 = vmatpush1.msra.mxu0 0.0
    %5786 = vmatprep.subr.mxu0 0.0
    %5787 = vmatpush1.msra.mxu0 0.0
    %5788 = vmatprep.subr.mxu0 0.0
    %5789 = vmatpush1.msra.mxu0 0.0
    %5790 = vmatprep.subr.mxu0 0.0
    %5791 = vmatpush1.msra.mxu0 0.0
    %5792 = vmatprep.subr.mxu0 0.0
    %5793 = vmatpush1.msra.mxu0 0.0
    %5794 = vmatprep.subr.mxu0 0.0
    %5795 = vmatpush1.msra.mxu0 0.0
    %5796 = vmatprep.subr.mxu0 0.0
    %5797 = vmatpush1.msra.mxu0 0.0
    %5798 = vmatprep.subr.mxu0 0.0
    %5799 = vmatpush1.msra.mxu0 0.0
    %5800 = vmatprep.subr.mxu0 0.0
    %5801 = vmatpush1.msra.mxu0 0.0
    %5802 = vmatprep.subr.mxu0 0.0
    %5803 = vmatpush1.msra.mxu0 0.0
    %5804 = vmatprep.subr.mxu0 0.0
    %5805 = vmatpush1.msra.mxu0 0.0
    %5806 = vmatprep.subr.mxu0 0.0
    %5807 = vmatpush1.msra.mxu0 0.0
    %5808 = vmatprep.subr.mxu0 0.0
    %5809 = vmatpush1.msra.mxu0 0.0
    %5810 = vmatprep.subr.mxu0 0.0
    %5811 = vmatpush1.msra.mxu0 0.0
    %5812 = vmatprep.subr.mxu0 0.0
    %5813 = vmatpush1.msra.mxu0 0.0
    %5814 = vmatprep.subr.mxu0 0.0
    %5815 = vmatpush1.msra.mxu0 0.0
    %5816 = vmatprep.subr.mxu0 0.0
    %5817 = vmatpush1.msra.mxu0 0.0
    %5818 = vmatprep.subr.mxu0 0.0
    %5819 = vmatpush1.msra.mxu0 0.0
    %5820 = vmatprep.subr.mxu0 0.0
    %5821 = vmatpush1.msra.mxu0 0.0
    %5822 = vmatprep.subr.mxu0 0.0
    %5823 = vmatpush1.msra.mxu0 0.0
    %5824 = vmatprep.subr.mxu0 0.0
    %5825 = vmatpush1.msra.mxu0 0.0
    %5826 = vmatprep.subr.mxu0 0.0
    %5827 = vmatpush1.msra.mxu0 0.0
    %5828 = vmatprep.subr.mxu0 0.0
    %5829 = vmatpush1.msra.mxu0 0.0
    %5830 = vmatprep.mubr.f32.mxu0 0.0
    %5831 = vmatmul.mubr.f32.gmra.mrb[0].mxu0 %v5761
    %v5832 = vpop.f32.mrb[0].mxu0
    %v5833 = vadd.f32 0.0, %v5832
    %v5834 = vpop.f32.mrb[0].mxu0
    %5835 = vmatprep.mubr.f32.mxu0 0.0
    %5836 = vmatmul.mubr.f32.gmra.mrb[0].mxu0 %v5764
    %v5837 = vpop.f32.mrb[0].mxu0
    %v5838 = vadd.f32 0.0, %v5837
    %v5839 = vpop.f32.mrb[0].mxu0
    %5840 = vdwg.mxu0
    %5841 = vrot.lane.b32.xlu0 %v318, 64
    %v5842 = vpop.permute.xlu0 %5841
    %5843 = vrot.lane.b32.xlu0 %v320, 64
    %v5844 = vpop.permute.xlu0 %5843
    %v5848 = vsel %vm3142, %v3827, 0
    %v5851 = vsel %vm3142, %v3828, 0
    %5853 = vmatprep.subr.mxu0 0.0
    %5854 = vmatpush1.msra.mxu0 %v5842
    %5855 = vmatprep.subr.mxu0 0.0
    %5856 = vmatpush1.msra.mxu0 %v5844
    %5857 = vmatprep.subr.mxu0 0.0
    %5858 = vmatpush1.msra.mxu0 0.0
    %5859 = vmatprep.subr.mxu0 0.0
    %5860 = vmatpush1.msra.mxu0 0.0
    %5861 = vmatprep.subr.mxu0 0.0
    %5862 = vmatpush1.msra.mxu0 0.0
    %5863 = vmatprep.subr.mxu0 0.0
    %5864 = vmatpush1.msra.mxu0 0.0
    %5865 = vmatprep.subr.mxu0 0.0
    %5866 = vmatpush1.msra.mxu0 0.0
    %5867 = vmatprep.subr.mxu0 0.0
    %5868 = vmatpush1.msra.mxu0 0.0
    %5869 = vmatprep.subr.mxu0 0.0
    %5870 = vmatpush1.msra.mxu0 0.0
    %5871 = vmatprep.subr.mxu0 0.0
    %5872 = vmatpush1.msra.mxu0 0.0
    %5873 = vmatprep.subr.mxu0 0.0
    %5874 = vmatpush1.msra.mxu0 0.0
    %5875 = vmatprep.subr.mxu0 0.0
    %5876 = vmatpush1.msra.mxu0 0.0
    %5877 = vmatprep.subr.mxu0 0.0
    %5878 = vmatpush1.msra.mxu0 0.0
    %5879 = vmatprep.subr.mxu0 0.0
    %5880 = vmatpush1.msra.mxu0 0.0
    %5881 = vmatprep.subr.mxu0 0.0
    %5882 = vmatpush1.msra.mxu0 0.0
    %5883 = vmatprep.subr.mxu0 0.0
    %5884 = vmatpush1.msra.mxu0 0.0
    %5885 = vmatprep.subr.mxu0 0.0
    %5886 = vmatpush1.msra.mxu0 0.0
    %5887 = vmatprep.subr.mxu0 0.0
    %5888 = vmatpush1.msra.mxu0 0.0
    %5889 = vmatprep.subr.mxu0 0.0
    %5890 = vmatpush1.msra.mxu0 0.0
    %5891 = vmatprep.subr.mxu0 0.0
    %5892 = vmatpush1.msra.mxu0 0.0
    %5893 = vmatprep.subr.mxu0 0.0
    %5894 = vmatpush1.msra.mxu0 0.0
    %5895 = vmatprep.subr.mxu0 0.0
    %5896 = vmatpush1.msra.mxu0 0.0
    %5897 = vmatprep.subr.mxu0 0.0
    %5898 = vmatpush1.msra.mxu0 0.0
    %5899 = vmatprep.subr.mxu0 0.0
    %5900 = vmatpush1.msra.mxu0 0.0
    %5901 = vmatprep.subr.mxu0 0.0
    %5902 = vmatpush1.msra.mxu0 0.0
    %5903 = vmatprep.subr.mxu0 0.0
    %5904 = vmatpush1.msra.mxu0 0.0
    %5905 = vmatprep.subr.mxu0 0.0
    %5906 = vmatpush1.msra.mxu0 0.0
    %5907 = vmatprep.subr.mxu0 0.0
    %5908 = vmatpush1.msra.mxu0 0.0
    %5909 = vmatprep.subr.mxu0 0.0
    %5910 = vmatpush1.msra.mxu0 0.0
    %5911 = vmatprep.subr.mxu0 0.0
    %5912 = vmatpush1.msra.mxu0 0.0
    %5913 = vmatprep.subr.mxu0 0.0
    %5914 = vmatpush1.msra.mxu0 0.0
    %5915 = vmatprep.subr.mxu0 0.0
    %5916 = vmatpush1.msra.mxu0 0.0
    %5917 = vmatprep.mubr.f32.mxu0 0.0
    %5918 = vmatmul.mubr.f32.gmra.mrb[0].mxu0 %v5848
    %v5919 = vpop.f32.mrb[0].mxu0
    %v5920 = vadd.f32 0.0, %v5919
    %v5921 = vpop.f32.mrb[0].mxu0
    %5922 = vmatprep.mubr.f32.mxu0 0.0
    %5923 = vmatmul.mubr.f32.gmra.mrb[0].mxu0 %v5851
    %v5924 = vpop.f32.mrb[0].mxu0
    %v5925 = vadd.f32 0.0, %v5924
    %v5926 = vpop.f32.mrb[0].mxu0
    %5927 = vdwg.mxu0
    %5928 = vrot.lane.b32.xlu0 %v322, 64
    %v5929 = vpop.permute.xlu0 %5928
    %5930 = vrot.lane.b32.xlu0 %v324, 64
    %v5931 = vpop.permute.xlu0 %5930
    %v5935 = vsel %vm3142, %v3829, 0
    %v5938 = vsel %vm3142, %v3830, 0
    %5940 = vmatprep.subr.mxu0 0.0
    %5941 = vmatpush1.msra.mxu0 %v5929
    %5942 = vmatprep.subr.mxu0 0.0
    %5943 = vmatpush1.msra.mxu0 %v5931
    %5944 = vmatprep.subr.mxu0 0.0
    %5945 = vmatpush1.msra.mxu0 0.0
    %5946 = vmatprep.subr.mxu0 0.0
    %5947 = vmatpush1.msra.mxu0 0.0
    %5948 = vmatprep.subr.mxu0 0.0
    %5949 = vmatpush1.msra.mxu0 0.0
    %5950 = vmatprep.subr.mxu0 0.0
    %5951 = vmatpush1.msra.mxu0 0.0
    %5952 = vmatprep.subr.mxu0 0.0
    %5953 = vmatpush1.msra.mxu0 0.0
    %5954 = vmatprep.subr.mxu0 0.0
    %5955 = vmatpush1.msra.mxu0 0.0
    %5956 = vmatprep.subr.mxu0 0.0
    %5957 = vmatpush1.msra.mxu0 0.0
    %5958 = vmatprep.subr.mxu0 0.0
    %5959 = vmatpush1.msra.mxu0 0.0
    %5960 = vmatprep.subr.mxu0 0.0
    %5961 = vmatpush1.msra.mxu0 0.0
    %5962 = vmatprep.subr.mxu0 0.0
    %5963 = vmatpush1.msra.mxu0 0.0
    %5964 = vmatprep.subr.mxu0 0.0
    %5965 = vmatpush1.msra.mxu0 0.0
    %5966 = vmatprep.subr.mxu0 0.0
    %5967 = vmatpush1.msra.mxu0 0.0
    %5968 = vmatprep.subr.mxu0 0.0
    %5969 = vmatpush1.msra.mxu0 0.0
    %5970 = vmatprep.subr.mxu0 0.0
    %5971 = vmatpush1.msra.mxu0 0.0
    %5972 = vmatprep.subr.mxu0 0.0
    %5973 = vmatpush1.msra.mxu0 0.0
    %5974 = vmatprep.subr.mxu0 0.0
    %5975 = vmatpush1.msra.mxu0 0.0
    %5976 = vmatprep.subr.mxu0 0.0
    %5977 = vmatpush1.msra.mxu0 0.0
    %5978 = vmatprep.subr.mxu0 0.0
    %5979 = vmatpush1.msra.mxu0 0.0
    %5980 = vmatprep.subr.mxu0 0.0
    %5981 = vmatpush1.msra.mxu0 0.0
    %5982 = vmatprep.subr.mxu0 0.0
    %5983 = vmatpush1.msra.mxu0 0.0
    %5984 = vmatprep.subr.mxu0 0.0
    %5985 = vmatpush1.msra.mxu0 0.0
    %5986 = vmatprep.subr.mxu0 0.0
    %5987 = vmatpush1.msra.mxu0 0.0
    %5988 = vmatprep.subr.mxu0 0.0
    %5989 = vmatpush1.msra.mxu0 0.0
    %5990 = vmatprep.subr.mxu0 0.0
    %5991 = vmatpush1.msra.mxu0 0.0
    %5992 = vmatprep.subr.mxu0 0.0
    %5993 = vmatpush1.msra.mxu0 0.0
    %5994 = vmatprep.subr.mxu0 0.0
    %5995 = vmatpush1.msra.mxu0 0.0
    %5996 = vmatprep.subr.mxu0 0.0
    %5997 = vmatpush1.msra.mxu0 0.0
    %5998 = vmatprep.subr.mxu0 0.0
    %5999 = vmatpush1.msra.mxu0 0.0
    %6000 = vmatprep.subr.mxu0 0.0
    %6001 = vmatpush1.msra.mxu0 0.0
    %6002 = vmatprep.subr.mxu0 0.0
    %6003 = vmatpush1.msra.mxu0 0.0
    %6004 = vmatprep.mubr.f32.mxu0 0.0
    %6005 = vmatmul.mubr.f32.gmra.mrb[0].mxu0 %v5935
    %v6006 = vpop.f32.mrb[0].mxu0
    %v6007 = vadd.f32 0.0, %v6006
    %v6008 = vpop.f32.mrb[0].mxu0
    %6009 = vmatprep.mubr.f32.mxu0 0.0
    %6010 = vmatmul.mubr.f32.gmra.mrb[0].mxu0 %v5938
    %v6011 = vpop.f32.mrb[0].mxu0
    %v6012 = vadd.f32 0.0, %v6011
    %v6013 = vpop.f32.mrb[0].mxu0
    %6014 = vdwg.mxu0
    %6015 = vrot.lane.b32.xlu0 %v326, 64
    %v6016 = vpop.permute.xlu0 %6015
    %6017 = vrot.lane.b32.xlu0 %v328, 64
    %v6018 = vpop.permute.xlu0 %6017
    %v6022 = vsel %vm3142, %v3831, 0
    %v6025 = vsel %vm3142, %v3832, 0
    %6027 = vmatprep.subr.mxu0 0.0
    %6028 = vmatpush1.msra.mxu0 %v6016
    %6029 = vmatprep.subr.mxu0 0.0
    %6030 = vmatpush1.msra.mxu0 %v6018
    %6031 = vmatprep.subr.mxu0 0.0
    %6032 = vmatpush1.msra.mxu0 0.0
    %6033 = vmatprep.subr.mxu0 0.0
    %6034 = vmatpush1.msra.mxu0 0.0
    %6035 = vmatprep.subr.mxu0 0.0
    %6036 = vmatpush1.msra.mxu0 0.0
    %6037 = vmatprep.subr.mxu0 0.0
    %6038 = vmatpush1.msra.mxu0 0.0
    %6039 = vmatprep.subr.mxu0 0.0
    %6040 = vmatpush1.msra.mxu0 0.0
    %6041 = vmatprep.subr.mxu0 0.0
    %6042 = vmatpush1.msra.mxu0 0.0
    %6043 = vmatprep.subr.mxu0 0.0
    %6044 = vmatpush1.msra.mxu0 0.0
    %6045 = vmatprep.subr.mxu0 0.0
    %6046 = vmatpush1.msra.mxu0 0.0
    %6047 = vmatprep.subr.mxu0 0.0
    %6048 = vmatpush1.msra.mxu0 0.0
    %6049 = vmatprep.subr.mxu0 0.0
    %6050 = vmatpush1.msra.mxu0 0.0
    %6051 = vmatprep.subr.mxu0 0.0
    %6052 = vmatpush1.msra.mxu0 0.0
    %6053 = vmatprep.subr.mxu0 0.0
    %6054 = vmatpush1.msra.mxu0 0.0
    %6055 = vmatprep.subr.mxu0 0.0
    %6056 = vmatpush1.msra.mxu0 0.0
    %6057 = vmatprep.subr.mxu0 0.0
    %6058 = vmatpush1.msra.mxu0 0.0
    %6059 = vmatprep.subr.mxu0 0.0
    %6060 = vmatpush1.msra.mxu0 0.0
    %6061 = vmatprep.subr.mxu0 0.0
    %6062 = vmatpush1.msra.mxu0 0.0
    %6063 = vmatprep.subr.mxu0 0.0
    %6064 = vmatpush1.msra.mxu0 0.0
    %6065 = vmatprep.subr.mxu0 0.0
    %6066 = vmatpush1.msra.mxu0 0.0
    %6067 = vmatprep.subr.mxu0 0.0
    %6068 = vmatpush1.msra.mxu0 0.0
    %6069 = vmatprep.subr.mxu0 0.0
    %6070 = vmatpush1.msra.mxu0 0.0
    %6071 = vmatprep.subr.mxu0 0.0
    %6072 = vmatpush1.msra.mxu0 0.0
    %6073 = vmatprep.subr.mxu0 0.0
    %6074 = vmatpush1.msra.mxu0 0.0
    %6075 = vmatprep.subr.mxu0 0.0
    %6076 = vmatpush1.msra.mxu0 0.0
    %6077 = vmatprep.subr.mxu0 0.0
    %6078 = vmatpush1.msra.mxu0 0.0
    %6079 = vmatprep.subr.mxu0 0.0
    %6080 = vmatpush1.msra.mxu0 0.0
    %6081 = vmatprep.subr.mxu0 0.0
    %6082 = vmatpush1.msra.mxu0 0.0
    %6083 = vmatprep.subr.mxu0 0.0
    %6084 = vmatpush1.msra.mxu0 0.0
    %6085 = vmatprep.subr.mxu0 0.0
    %6086 = vmatpush1.msra.mxu0 0.0
    %6087 = vmatprep.subr.mxu0 0.0
    %6088 = vmatpush1.msra.mxu0 0.0
    %6089 = vmatprep.subr.mxu0 0.0
    %6090 = vmatpush1.msra.mxu0 0.0
    %6091 = vmatprep.mubr.f32.mxu0 0.0
    %6092 = vmatmul.mubr.f32.gmra.mrb[0].mxu0 %v6022
    %v6093 = vpop.f32.mrb[0].mxu0
    %v6094 = vadd.f32 0.0, %v6093
    %v6095 = vpop.f32.mrb[0].mxu0
    %6096 = vmatprep.mubr.f32.mxu0 0.0
    %6097 = vmatmul.mubr.f32.gmra.mrb[0].mxu0 %v6025
    %v6098 = vpop.f32.mrb[0].mxu0
    %v6099 = vadd.f32 0.0, %v6098
    %v6100 = vpop.f32.mrb[0].mxu0
    %6101 = vdwg.mxu0
    %6102 = vrot.lane.b32.xlu0 %v330, 64
    %v6103 = vpop.permute.xlu0 %6102
    %6104 = vrot.lane.b32.xlu0 %v332, 64
    %v6105 = vpop.permute.xlu0 %6104
    %v6109 = vsel %vm3142, %v3833, 0
    %v6112 = vsel %vm3142, %v3834, 0
    %6114 = vmatprep.subr.mxu0 0.0
    %6115 = vmatpush1.msra.mxu0 %v6103
    %6116 = vmatprep.subr.mxu0 0.0
    %6117 = vmatpush1.msra.mxu0 %v6105
    %6118 = vmatprep.subr.mxu0 0.0
    %6119 = vmatpush1.msra.mxu0 0.0
    %6120 = vmatprep.subr.mxu0 0.0
    %6121 = vmatpush1.msra.mxu0 0.0
    %6122 = vmatprep.subr.mxu0 0.0
    %6123 = vmatpush1.msra.mxu0 0.0
    %6124 = vmatprep.subr.mxu0 0.0
    %6125 = vmatpush1.msra.mxu0 0.0
    %6126 = vmatprep.subr.mxu0 0.0
    %6127 = vmatpush1.msra.mxu0 0.0
    %6128 = vmatprep.subr.mxu0 0.0
    %6129 = vmatpush1.msra.mxu0 0.0
    %6130 = vmatprep.subr.mxu0 0.0
    %6131 = vmatpush1.msra.mxu0 0.0
    %6132 = vmatprep.subr.mxu0 0.0
    %6133 = vmatpush1.msra.mxu0 0.0
    %6134 = vmatprep.subr.mxu0 0.0
    %6135 = vmatpush1.msra.mxu0 0.0
    %6136 = vmatprep.subr.mxu0 0.0
    %6137 = vmatpush1.msra.mxu0 0.0
    %6138 = vmatprep.subr.mxu0 0.0
    %6139 = vmatpush1.msra.mxu0 0.0
    %6140 = vmatprep.subr.mxu0 0.0
    %6141 = vmatpush1.msra.mxu0 0.0
    %6142 = vmatprep.subr.mxu0 0.0
    %6143 = vmatpush1.msra.mxu0 0.0
    %6144 = vmatprep.subr.mxu0 0.0
    %6145 = vmatpush1.msra.mxu0 0.0
    %6146 = vmatprep.subr.mxu0 0.0
    %6147 = vmatpush1.msra.mxu0 0.0
    %6148 = vmatprep.subr.mxu0 0.0
    %6149 = vmatpush1.msra.mxu0 0.0
    %6150 = vmatprep.subr.mxu0 0.0
    %6151 = vmatpush1.msra.mxu0 0.0
    %6152 = vmatprep.subr.mxu0 0.0
    %6153 = vmatpush1.msra.mxu0 0.0
    %6154 = vmatprep.subr.mxu0 0.0
    %6155 = vmatpush1.msra.mxu0 0.0
    %6156 = vmatprep.subr.mxu0 0.0
    %6157 = vmatpush1.msra.mxu0 0.0
    %6158 = vmatprep.subr.mxu0 0.0
    %6159 = vmatpush1.msra.mxu0 0.0
    %6160 = vmatprep.subr.mxu0 0.0
    %6161 = vmatpush1.msra.mxu0 0.0
    %6162 = vmatprep.subr.mxu0 0.0
    %6163 = vmatpush1.msra.mxu0 0.0
    %6164 = vmatprep.subr.mxu0 0.0
    %6165 = vmatpush1.msra.mxu0 0.0
    %6166 = vmatprep.subr.mxu0 0.0
    %6167 = vmatpush1.msra.mxu0 0.0
    %6168 = vmatprep.subr.mxu0 0.0
    %6169 = vmatpush1.msra.mxu0 0.0
    %6170 = vmatprep.subr.mxu0 0.0
    %6171 = vmatpush1.msra.mxu0 0.0
    %6172 = vmatprep.subr.mxu0 0.0
    %6173 = vmatpush1.msra.mxu0 0.0
    %6174 = vmatprep.subr.mxu0 0.0
    %6175 = vmatpush1.msra.mxu0 0.0
    %6176 = vmatprep.subr.mxu0 0.0
    %6177 = vmatpush1.msra.mxu0 0.0
    %6178 = vmatprep.mubr.f32.mxu0 0.0
    %6179 = vmatmul.mubr.f32.gmra.mrb[0].mxu0 %v6109
    %v6180 = vpop.f32.mrb[0].mxu0
    %v6181 = vadd.f32 0.0, %v6180
    %v6182 = vpop.f32.mrb[0].mxu0
    %6183 = vmatprep.mubr.f32.mxu0 0.0
    %6184 = vmatmul.mubr.f32.gmra.mrb[0].mxu0 %v6112
    %v6185 = vpop.f32.mrb[0].mxu0
    %v6186 = vadd.f32 0.0, %v6185
    %v6187 = vpop.f32.mrb[0].mxu0
    %6188 = vdwg.mxu0
    %6189 = vrot.lane.b32.xlu0 %v334, 64
    %v6190 = vpop.permute.xlu0 %6189
    %6191 = vrot.lane.b32.xlu0 %v336, 64
    %v6192 = vpop.permute.xlu0 %6191
    %v6196 = vsel %vm3142, %v3835, 0
    %v6199 = vsel %vm3142, %v3836, 0
    %6201 = vmatprep.subr.mxu0 0.0
    %6202 = vmatpush1.msra.mxu0 %v6190
    %6203 = vmatprep.subr.mxu0 0.0
    %6204 = vmatpush1.msra.mxu0 %v6192
    %6205 = vmatprep.subr.mxu0 0.0
    %6206 = vmatpush1.msra.mxu0 0.0
    %6207 = vmatprep.subr.mxu0 0.0
    %6208 = vmatpush1.msra.mxu0 0.0
    %6209 = vmatprep.subr.mxu0 0.0
    %6210 = vmatpush1.msra.mxu0 0.0
    %6211 = vmatprep.subr.mxu0 0.0
    %6212 = vmatpush1.msra.mxu0 0.0
    %6213 = vmatprep.subr.mxu0 0.0
    %6214 = vmatpush1.msra.mxu0 0.0
    %6215 = vmatprep.subr.mxu0 0.0
    %6216 = vmatpush1.msra.mxu0 0.0
    %6217 = vmatprep.subr.mxu0 0.0
    %6218 = vmatpush1.msra.mxu0 0.0
    %6219 = vmatprep.subr.mxu0 0.0
    %6220 = vmatpush1.msra.mxu0 0.0
    %6221 = vmatprep.subr.mxu0 0.0
    %6222 = vmatpush1.msra.mxu0 0.0
    %6223 = vmatprep.subr.mxu0 0.0
    %6224 = vmatpush1.msra.mxu0 0.0
    %6225 = vmatprep.subr.mxu0 0.0
    %6226 = vmatpush1.msra.mxu0 0.0
    %6227 = vmatprep.subr.mxu0 0.0
    %6228 = vmatpush1.msra.mxu0 0.0
    %6229 = vmatprep.subr.mxu0 0.0
    %6230 = vmatpush1.msra.mxu0 0.0
    %6231 = vmatprep.subr.mxu0 0.0
    %6232 = vmatpush1.msra.mxu0 0.0
    %6233 = vmatprep.subr.mxu0 0.0
    %6234 = vmatpush1.msra.mxu0 0.0
    %6235 = vmatprep.subr.mxu0 0.0
    %6236 = vmatpush1.msra.mxu0 0.0
    %6237 = vmatprep.subr.mxu0 0.0
    %6238 = vmatpush1.msra.mxu0 0.0
    %6239 = vmatprep.subr.mxu0 0.0
    %6240 = vmatpush1.msra.mxu0 0.0
    %6241 = vmatprep.subr.mxu0 0.0
    %6242 = vmatpush1.msra.mxu0 0.0
    %6243 = vmatprep.subr.mxu0 0.0
    %6244 = vmatpush1.msra.mxu0 0.0
    %6245 = vmatprep.subr.mxu0 0.0
    %6246 = vmatpush1.msra.mxu0 0.0
    %6247 = vmatprep.subr.mxu0 0.0
    %6248 = vmatpush1.msra.mxu0 0.0
    %6249 = vmatprep.subr.mxu0 0.0
    %6250 = vmatpush1.msra.mxu0 0.0
    %6251 = vmatprep.subr.mxu0 0.0
    %6252 = vmatpush1.msra.mxu0 0.0
    %6253 = vmatprep.subr.mxu0 0.0
    %6254 = vmatpush1.msra.mxu0 0.0
    %6255 = vmatprep.subr.mxu0 0.0
    %6256 = vmatpush1.msra.mxu0 0.0
    %6257 = vmatprep.subr.mxu0 0.0
    %6258 = vmatpush1.msra.mxu0 0.0
    %6259 = vmatprep.subr.mxu0 0.0
    %6260 = vmatpush1.msra.mxu0 0.0
    %6261 = vmatprep.subr.mxu0 0.0
    %6262 = vmatpush1.msra.mxu0 0.0
    %6263 = vmatprep.subr.mxu0 0.0
    %6264 = vmatpush1.msra.mxu0 0.0
    %6265 = vmatprep.mubr.f32.mxu0 0.0
    %6266 = vmatmul.mubr.f32.gmra.mrb[0].mxu0 %v6196
    %v6267 = vpop.f32.mrb[0].mxu0
    %v6268 = vadd.f32 0.0, %v6267
    %v6269 = vpop.f32.mrb[0].mxu0
    %6270 = vmatprep.mubr.f32.mxu0 0.0
    %6271 = vmatmul.mubr.f32.gmra.mrb[0].mxu0 %v6199
    %v6272 = vpop.f32.mrb[0].mxu0
    %v6273 = vadd.f32 0.0, %v6272
    %v6274 = vpop.f32.mrb[0].mxu0
    %6275 = vdwg.mxu0
    %6276 = vrot.lane.b32.xlu0 %v338, 64
    %v6277 = vpop.permute.xlu0 %6276
    %6278 = vrot.lane.b32.xlu0 %v340, 64
    %v6279 = vpop.permute.xlu0 %6278
    %v6283 = vsel %vm3142, %v3837, 0
    %v6286 = vsel %vm3142, %v3838, 0
    %6288 = vmatprep.subr.mxu0 0.0
    %6289 = vmatpush1.msra.mxu0 %v6277
    %6290 = vmatprep.subr.mxu0 0.0
    %6291 = vmatpush1.msra.mxu0 %v6279
    %6292 = vmatprep.subr.mxu0 0.0
    %6293 = vmatpush1.msra.mxu0 0.0
    %6294 = vmatprep.subr.mxu0 0.0
    %6295 = vmatpush1.msra.mxu0 0.0
    %6296 = vmatprep.subr.mxu0 0.0
    %6297 = vmatpush1.msra.mxu0 0.0
    %6298 = vmatprep.subr.mxu0 0.0
    %6299 = vmatpush1.msra.mxu0 0.0
    %6300 = vmatprep.subr.mxu0 0.0
    %6301 = vmatpush1.msra.mxu0 0.0
    %6302 = vmatprep.subr.mxu0 0.0
    %6303 = vmatpush1.msra.mxu0 0.0
    %6304 = vmatprep.subr.mxu0 0.0
    %6305 = vmatpush1.msra.mxu0 0.0
    %6306 = vmatprep.subr.mxu0 0.0
    %6307 = vmatpush1.msra.mxu0 0.0
    %6308 = vmatprep.subr.mxu0 0.0
    %6309 = vmatpush1.msra.mxu0 0.0
    %6310 = vmatprep.subr.mxu0 0.0
    %6311 = vmatpush1.msra.mxu0 0.0
    %6312 = vmatprep.subr.mxu0 0.0
    %6313 = vmatpush1.msra.mxu0 0.0
    %6314 = vmatprep.subr.mxu0 0.0
    %6315 = vmatpush1.msra.mxu0 0.0
    %6316 = vmatprep.subr.mxu0 0.0
    %6317 = vmatpush1.msra.mxu0 0.0
    %6318 = vmatprep.subr.mxu0 0.0
    %6319 = vmatpush1.msra.mxu0 0.0
    %6320 = vmatprep.subr.mxu0 0.0
    %6321 = vmatpush1.msra.mxu0 0.0
    %6322 = vmatprep.subr.mxu0 0.0
    %6323 = vmatpush1.msra.mxu0 0.0
    %6324 = vmatprep.subr.mxu0 0.0
    %6325 = vmatpush1.msra.mxu0 0.0
    %6326 = vmatprep.subr.mxu0 0.0
    %6327 = vmatpush1.msra.mxu0 0.0
    %6328 = vmatprep.subr.mxu0 0.0
    %6329 = vmatpush1.msra.mxu0 0.0
    %6330 = vmatprep.subr.mxu0 0.0
    %6331 = vmatpush1.msra.mxu0 0.0
    %6332 = vmatprep.subr.mxu0 0.0
    %6333 = vmatpush1.msra.mxu0 0.0
    %6334 = vmatprep.subr.mxu0 0.0
    %6335 = vmatpush1.msra.mxu0 0.0
    %6336 = vmatprep.subr.mxu0 0.0
    %6337 = vmatpush1.msra.mxu0 0.0
    %6338 = vmatprep.subr.mxu0 0.0
    %6339 = vmatpush1.msra.mxu0 0.0
    %6340 = vmatprep.subr.mxu0 0.0
    %6341 = vmatpush1.msra.mxu0 0.0
    %6342 = vmatprep.subr.mxu0 0.0
    %6343 = vmatpush1.msra.mxu0 0.0
    %6344 = vmatprep.subr.mxu0 0.0
    %6345 = vmatpush1.msra.mxu0 0.0
    %6346 = vmatprep.subr.mxu0 0.0
    %6347 = vmatpush1.msra.mxu0 0.0
    %6348 = vmatprep.subr.mxu0 0.0
    %6349 = vmatpush1.msra.mxu0 0.0
    %6350 = vmatprep.subr.mxu0 0.0
    %6351 = vmatpush1.msra.mxu0 0.0
    %6352 = vmatprep.mubr.f32.mxu0 0.0
    %6353 = vmatmul.mubr.f32.gmra.mrb[0].mxu0 %v6283
    %v6354 = vpop.f32.mrb[0].mxu0
    %v6355 = vadd.f32 0.0, %v6354
    %v6356 = vpop.f32.mrb[0].mxu0
    %6357 = vmatprep.mubr.f32.mxu0 0.0
    %6358 = vmatmul.mubr.f32.gmra.mrb[0].mxu0 %v6286
    %v6359 = vpop.f32.mrb[0].mxu0
    %v6360 = vadd.f32 0.0, %v6359
    %v6361 = vpop.f32.mrb[0].mxu0
    %6362 = vdwg.mxu0
    %6363 = vrot.lane.b32.xlu0 %v342, 64
    %v6364 = vpop.permute.xlu0 %6363
    %6365 = vrot.lane.b32.xlu0 %v344, 64
    %v6366 = vpop.permute.xlu0 %6365
    %v6370 = vsel %vm3142, %v3839, 0
    %v6373 = vsel %vm3142, %v3840, 0
    %6375 = vmatprep.subr.mxu0 0.0
    %6376 = vmatpush1.msra.mxu0 %v6364
    %6377 = vmatprep.subr.mxu0 0.0
    %6378 = vmatpush1.msra.mxu0 %v6366
    %6379 = vmatprep.subr.mxu0 0.0
    %6380 = vmatpush1.msra.mxu0 0.0
    %6381 = vmatprep.subr.mxu0 0.0
    %6382 = vmatpush1.msra.mxu0 0.0
    %6383 = vmatprep.subr.mxu0 0.0
    %6384 = vmatpush1.msra.mxu0 0.0
    %6385 = vmatprep.subr.mxu0 0.0
    %6386 = vmatpush1.msra.mxu0 0.0
    %6387 = vmatprep.subr.mxu0 0.0
    %6388 = vmatpush1.msra.mxu0 0.0
    %6389 = vmatprep.subr.mxu0 0.0
    %6390 = vmatpush1.msra.mxu0 0.0
    %6391 = vmatprep.subr.mxu0 0.0
    %6392 = vmatpush1.msra.mxu0 0.0
    %6393 = vmatprep.subr.mxu0 0.0
    %6394 = vmatpush1.msra.mxu0 0.0
    %6395 = vmatprep.subr.mxu0 0.0
    %6396 = vmatpush1.msra.mxu0 0.0
    %6397 = vmatprep.subr.mxu0 0.0
    %6398 = vmatpush1.msra.mxu0 0.0
    %6399 = vmatprep.subr.mxu0 0.0
    %6400 = vmatpush1.msra.mxu0 0.0
    %6401 = vmatprep.subr.mxu0 0.0
    %6402 = vmatpush1.msra.mxu0 0.0
    %6403 = vmatprep.subr.mxu0 0.0
    %6404 = vmatpush1.msra.mxu0 0.0
    %6405 = vmatprep.subr.mxu0 0.0
    %6406 = vmatpush1.msra.mxu0 0.0
    %6407 = vmatprep.subr.mxu0 0.0
    %6408 = vmatpush1.msra.mxu0 0.0
    %6409 = vmatprep.subr.mxu0 0.0
    %6410 = vmatpush1.msra.mxu0 0.0
    %6411 = vmatprep.subr.mxu0 0.0
    %6412 = vmatpush1.msra.mxu0 0.0
    %6413 = vmatprep.subr.mxu0 0.0
    %6414 = vmatpush1.msra.mxu0 0.0
    %6415 = vmatprep.subr.mxu0 0.0
    %6416 = vmatpush1.msra.mxu0 0.0
    %6417 = vmatprep.subr.mxu0 0.0
    %6418 = vmatpush1.msra.mxu0 0.0
    %6419 = vmatprep.subr.mxu0 0.0
    %6420 = vmatpush1.msra.mxu0 0.0
    %6421 = vmatprep.subr.mxu0 0.0
    %6422 = vmatpush1.msra.mxu0 0.0
    %6423 = vmatprep.subr.mxu0 0.0
    %6424 = vmatpush1.msra.mxu0 0.0
    %6425 = vmatprep.subr.mxu0 0.0
    %6426 = vmatpush1.msra.mxu0 0.0
    %6427 = vmatprep.subr.mxu0 0.0
    %6428 = vmatpush1.msra.mxu0 0.0
    %6429 = vmatprep.subr.mxu0 0.0
    %6430 = vmatpush1.msra.mxu0 0.0
    %6431 = vmatprep.subr.mxu0 0.0
    %6432 = vmatpush1.msra.mxu0 0.0
    %6433 = vmatprep.subr.mxu0 0.0
    %6434 = vmatpush1.msra.mxu0 0.0
    %6435 = vmatprep.subr.mxu0 0.0
    %6436 = vmatpush1.msra.mxu0 0.0
    %6437 = vmatprep.subr.mxu0 0.0
    %6438 = vmatpush1.msra.mxu0 0.0
    %6439 = vmatprep.mubr.f32.mxu0 0.0
    %6440 = vmatmul.mubr.f32.gmra.mrb[0].mxu0 %v6370
    %v6441 = vpop.f32.mrb[0].mxu0
    %v6442 = vadd.f32 0.0, %v6441
    %v6443 = vpop.f32.mrb[0].mxu0
    %6444 = vmatprep.mubr.f32.mxu0 0.0
    %6445 = vmatmul.mubr.f32.gmra.mrb[0].mxu0 %v6373
    %v6446 = vpop.f32.mrb[0].mxu0
    %v6447 = vadd.f32 0.0, %v6446
    %v6448 = vpop.f32.mrb[0].mxu0
    %6449 = vdwg.mxu0
    %6450 = vrot.lane.b32.xlu0 %v346, 64
    %v6451 = vpop.permute.xlu0 %6450
    %6452 = vrot.lane.b32.xlu0 %v348, 64
    %v6453 = vpop.permute.xlu0 %6452
    %v6457 = vsel %vm3142, %v3841, 0
    %v6460 = vsel %vm3142, %v3842, 0
    %6462 = vmatprep.subr.mxu0 0.0
    %6463 = vmatpush1.msra.mxu0 %v6451
    %6464 = vmatprep.subr.mxu0 0.0
    %6465 = vmatpush1.msra.mxu0 %v6453
    %6466 = vmatprep.subr.mxu0 0.0
    %6467 = vmatpush1.msra.mxu0 0.0
    %6468 = vmatprep.subr.mxu0 0.0
    %6469 = vmatpush1.msra.mxu0 0.0
    %6470 = vmatprep.subr.mxu0 0.0
    %6471 = vmatpush1.msra.mxu0 0.0
    %6472 = vmatprep.subr.mxu0 0.0
    %6473 = vmatpush1.msra.mxu0 0.0
    %6474 = vmatprep.subr.mxu0 0.0
    %6475 = vmatpush1.msra.mxu0 0.0
    %6476 = vmatprep.subr.mxu0 0.0
    %6477 = vmatpush1.msra.mxu0 0.0
    %6478 = vmatprep.subr.mxu0 0.0
    %6479 = vmatpush1.msra.mxu0 0.0
    %6480 = vmatprep.subr.mxu0 0.0
    %6481 = vmatpush1.msra.mxu0 0.0
    %6482 = vmatprep.subr.mxu0 0.0
    %6483 = vmatpush1.msra.mxu0 0.0
    %6484 = vmatprep.subr.mxu0 0.0
    %6485 = vmatpush1.msra.mxu0 0.0
    %6486 = vmatprep.subr.mxu0 0.0
    %6487 = vmatpush1.msra.mxu0 0.0
    %6488 = vmatprep.subr.mxu0 0.0
    %6489 = vmatpush1.msra.mxu0 0.0
    %6490 = vmatprep.subr.mxu0 0.0
    %6491 = vmatpush1.msra.mxu0 0.0
    %6492 = vmatprep.subr.mxu0 0.0
    %6493 = vmatpush1.msra.mxu0 0.0
    %6494 = vmatprep.subr.mxu0 0.0
    %6495 = vmatpush1.msra.mxu0 0.0
    %6496 = vmatprep.subr.mxu0 0.0
    %6497 = vmatpush1.msra.mxu0 0.0
    %6498 = vmatprep.subr.mxu0 0.0
    %6499 = vmatpush1.msra.mxu0 0.0
    %6500 = vmatprep.subr.mxu0 0.0
    %6501 = vmatpush1.msra.mxu0 0.0
    %6502 = vmatprep.subr.mxu0 0.0
    %6503 = vmatpush1.msra.mxu0 0.0
    %6504 = vmatprep.subr.mxu0 0.0
    %6505 = vmatpush1.msra.mxu0 0.0
    %6506 = vmatprep.subr.mxu0 0.0
    %6507 = vmatpush1.msra.mxu0 0.0
    %6508 = vmatprep.subr.mxu0 0.0
    %6509 = vmatpush1.msra.mxu0 0.0
    %6510 = vmatprep.subr.mxu0 0.0
    %6511 = vmatpush1.msra.mxu0 0.0
    %6512 = vmatprep.subr.mxu0 0.0
    %6513 = vmatpush1.msra.mxu0 0.0
    %6514 = vmatprep.subr.mxu0 0.0
    %6515 = vmatpush1.msra.mxu0 0.0
    %6516 = vmatprep.subr.mxu0 0.0
    %6517 = vmatpush1.msra.mxu0 0.0
    %6518 = vmatprep.subr.mxu0 0.0
    %6519 = vmatpush1.msra.mxu0 0.0
    %6520 = vmatprep.subr.mxu0 0.0
    %6521 = vmatpush1.msra.mxu0 0.0
    %6522 = vmatprep.subr.mxu0 0.0
    %6523 = vmatpush1.msra.mxu0 0.0
    %6524 = vmatprep.subr.mxu0 0.0
    %6525 = vmatpush1.msra.mxu0 0.0
    %6526 = vmatprep.mubr.f32.mxu0 0.0
    %6527 = vmatmul.mubr.f32.gmra.mrb[0].mxu0 %v6457
    %v6528 = vpop.f32.mrb[0].mxu0
    %v6529 = vadd.f32 0.0, %v6528
    %v6530 = vpop.f32.mrb[0].mxu0
    %6531 = vmatprep.mubr.f32.mxu0 0.0
    %6532 = vmatmul.mubr.f32.gmra.mrb[0].mxu0 %v6460
    %v6533 = vpop.f32.mrb[0].mxu0
    %v6534 = vadd.f32 0.0, %v6533
    %v6535 = vpop.f32.mrb[0].mxu0
    %6536 = vdwg.mxu0
    %6537 = vrot.lane.b32.xlu0 %v350, 64
    %v6538 = vpop.permute.xlu0 %6537
    %6539 = vrot.lane.b32.xlu0 %v352, 64
    %v6540 = vpop.permute.xlu0 %6539
    %v6544 = vsel %vm3142, %v3843, 0
    %v6547 = vsel %vm3142, %v3844, 0
    %6549 = vmatprep.subr.mxu0 0.0
    %6550 = vmatpush1.msra.mxu0 %v6538
    %6551 = vmatprep.subr.mxu0 0.0
    %6552 = vmatpush1.msra.mxu0 %v6540
    %6553 = vmatprep.subr.mxu0 0.0
    %6554 = vmatpush1.msra.mxu0 0.0
    %6555 = vmatprep.subr.mxu0 0.0
    %6556 = vmatpush1.msra.mxu0 0.0
    %6557 = vmatprep.subr.mxu0 0.0
    %6558 = vmatpush1.msra.mxu0 0.0
    %6559 = vmatprep.subr.mxu0 0.0
    %6560 = vmatpush1.msra.mxu0 0.0
    %6561 = vmatprep.subr.mxu0 0.0
    %6562 = vmatpush1.msra.mxu0 0.0
    %6563 = vmatprep.subr.mxu0 0.0
    %6564 = vmatpush1.msra.mxu0 0.0
    %6565 = vmatprep.subr.mxu0 0.0
    %6566 = vmatpush1.msra.mxu0 0.0
    %6567 = vmatprep.subr.mxu0 0.0
    %6568 = vmatpush1.msra.mxu0 0.0
    %6569 = vmatprep.subr.mxu0 0.0
    %6570 = vmatpush1.msra.mxu0 0.0
    %6571 = vmatprep.subr.mxu0 0.0
    %6572 = vmatpush1.msra.mxu0 0.0
    %6573 = vmatprep.subr.mxu0 0.0
    %6574 = vmatpush1.msra.mxu0 0.0
    %6575 = vmatprep.subr.mxu0 0.0
    %6576 = vmatpush1.msra.mxu0 0.0
    %6577 = vmatprep.subr.mxu0 0.0
    %6578 = vmatpush1.msra.mxu0 0.0
    %6579 = vmatprep.subr.mxu0 0.0
    %6580 = vmatpush1.msra.mxu0 0.0
    %6581 = vmatprep.subr.mxu0 0.0
    %6582 = vmatpush1.msra.mxu0 0.0
    %6583 = vmatprep.subr.mxu0 0.0
    %6584 = vmatpush1.msra.mxu0 0.0
    %6585 = vmatprep.subr.mxu0 0.0
    %6586 = vmatpush1.msra.mxu0 0.0
    %6587 = vmatprep.subr.mxu0 0.0
    %6588 = vmatpush1.msra.mxu0 0.0
    %6589 = vmatprep.subr.mxu0 0.0
    %6590 = vmatpush1.msra.mxu0 0.0
    %6591 = vmatprep.subr.mxu0 0.0
    %6592 = vmatpush1.msra.mxu0 0.0
    %6593 = vmatprep.subr.mxu0 0.0
    %6594 = vmatpush1.msra.mxu0 0.0
    %6595 = vmatprep.subr.mxu0 0.0
    %6596 = vmatpush1.msra.mxu0 0.0
    %6597 = vmatprep.subr.mxu0 0.0
    %6598 = vmatpush1.msra.mxu0 0.0
    %6599 = vmatprep.subr.mxu0 0.0
    %6600 = vmatpush1.msra.mxu0 0.0
    %6601 = vmatprep.subr.mxu0 0.0
    %6602 = vmatpush1.msra.mxu0 0.0
    %6603 = vmatprep.subr.mxu0 0.0
    %6604 = vmatpush1.msra.mxu0 0.0
    %6605 = vmatprep.subr.mxu0 0.0
    %6606 = vmatpush1.msra.mxu0 0.0
    %6607 = vmatprep.subr.mxu0 0.0
    %6608 = vmatpush1.msra.mxu0 0.0
    %6609 = vmatprep.subr.mxu0 0.0
    %6610 = vmatpush1.msra.mxu0 0.0
    %6611 = vmatprep.subr.mxu0 0.0
    %6612 = vmatpush1.msra.mxu0 0.0
    %6613 = vmatprep.mubr.f32.mxu0 0.0
    %6614 = vmatmul.mubr.f32.gmra.mrb[0].mxu0 %v6544
    %v6615 = vpop.f32.mrb[0].mxu0
    %v6616 = vadd.f32 0.0, %v6615
    %v6617 = vpop.f32.mrb[0].mxu0
    %6618 = vmatprep.mubr.f32.mxu0 0.0
    %6619 = vmatmul.mubr.f32.gmra.mrb[0].mxu0 %v6547
    %v6620 = vpop.f32.mrb[0].mxu0
    %v6621 = vadd.f32 0.0, %v6620
    %v6622 = vpop.f32.mrb[0].mxu0
    %6623 = vdwg.mxu0
    %6624 = vrot.lane.b32.xlu0 %v354, 64
    %v6625 = vpop.permute.xlu0 %6624
    %6626 = vrot.lane.b32.xlu0 %v356, 64
    %v6627 = vpop.permute.xlu0 %6626
    %v6631 = vsel %vm3142, %v3845, 0
    %v6634 = vsel %vm3142, %v3846, 0
    %6636 = vmatprep.subr.mxu0 0.0
    %6637 = vmatpush1.msra.mxu0 %v6625
    %6638 = vmatprep.subr.mxu0 0.0
    %6639 = vmatpush1.msra.mxu0 %v6627
    %6640 = vmatprep.subr.mxu0 0.0
    %6641 = vmatpush1.msra.mxu0 0.0
    %6642 = vmatprep.subr.mxu0 0.0
    %6643 = vmatpush1.msra.mxu0 0.0
    %6644 = vmatprep.subr.mxu0 0.0
    %6645 = vmatpush1.msra.mxu0 0.0
    %6646 = vmatprep.subr.mxu0 0.0
    %6647 = vmatpush1.msra.mxu0 0.0
    %6648 = vmatprep.subr.mxu0 0.0
    %6649 = vmatpush1.msra.mxu0 0.0
    %6650 = vmatprep.subr.mxu0 0.0
    %6651 = vmatpush1.msra.mxu0 0.0
    %6652 = vmatprep.subr.mxu0 0.0
    %6653 = vmatpush1.msra.mxu0 0.0
    %6654 = vmatprep.subr.mxu0 0.0
    %6655 = vmatpush1.msra.mxu0 0.0
    %6656 = vmatprep.subr.mxu0 0.0
    %6657 = vmatpush1.msra.mxu0 0.0
    %6658 = vmatprep.subr.mxu0 0.0
    %6659 = vmatpush1.msra.mxu0 0.0
    %6660 = vmatprep.subr.mxu0 0.0
    %6661 = vmatpush1.msra.mxu0 0.0
    %6662 = vmatprep.subr.mxu0 0.0
    %6663 = vmatpush1.msra.mxu0 0.0
    %6664 = vmatprep.subr.mxu0 0.0
    %6665 = vmatpush1.msra.mxu0 0.0
    %6666 = vmatprep.subr.mxu0 0.0
    %6667 = vmatpush1.msra.mxu0 0.0
    %6668 = vmatprep.subr.mxu0 0.0
    %6669 = vmatpush1.msra.mxu0 0.0
    %6670 = vmatprep.subr.mxu0 0.0
    %6671 = vmatpush1.msra.mxu0 0.0
    %6672 = vmatprep.subr.mxu0 0.0
    %6673 = vmatpush1.msra.mxu0 0.0
    %6674 = vmatprep.subr.mxu0 0.0
    %6675 = vmatpush1.msra.mxu0 0.0
    %6676 = vmatprep.subr.mxu0 0.0
    %6677 = vmatpush1.msra.mxu0 0.0
    %6678 = vmatprep.subr.mxu0 0.0
    %6679 = vmatpush1.msra.mxu0 0.0
    %6680 = vmatprep.subr.mxu0 0.0
    %6681 = vmatpush1.msra.mxu0 0.0
    %6682 = vmatprep.subr.mxu0 0.0
    %6683 = vmatpush1.msra.mxu0 0.0
    %6684 = vmatprep.subr.mxu0 0.0
    %6685 = vmatpush1.msra.mxu0 0.0
    %6686 = vmatprep.subr.mxu0 0.0
    %6687 = vmatpush1.msra.mxu0 0.0
    %6688 = vmatprep.subr.mxu0 0.0
    %6689 = vmatpush1.msra.mxu0 0.0
    %6690 = vmatprep.subr.mxu0 0.0
    %6691 = vmatpush1.msra.mxu0 0.0
    %6692 = vmatprep.subr.mxu0 0.0
    %6693 = vmatpush1.msra.mxu0 0.0
    %6694 = vmatprep.subr.mxu0 0.0
    %6695 = vmatpush1.msra.mxu0 0.0
    %6696 = vmatprep.subr.mxu0 0.0
    %6697 = vmatpush1.msra.mxu0 0.0
    %6698 = vmatprep.subr.mxu0 0.0
    %6699 = vmatpush1.msra.mxu0 0.0
    %6700 = vmatprep.mubr.f32.mxu0 0.0
    %6701 = vmatmul.mubr.f32.gmra.mrb[0].mxu0 %v6631
    %v6702 = vpop.f32.mrb[0].mxu0
    %v6703 = vadd.f32 0.0, %v6702
    %v6704 = vpop.f32.mrb[0].mxu0
    %6705 = vmatprep.mubr.f32.mxu0 0.0
    %6706 = vmatmul.mubr.f32.gmra.mrb[0].mxu0 %v6634
    %v6707 = vpop.f32.mrb[0].mxu0
    %v6708 = vadd.f32 0.0, %v6707
    %v6709 = vpop.f32.mrb[0].mxu0
    %6710 = vdwg.mxu0
    %6727 = vrot.lane.b32.xlu0 %v4702, 8
    %v6728 = vpop.permute.xlu0 %6727
    %6729 = vrot.lane.b32.xlu0 %v4707, 8
    %v6730 = vpop.permute.xlu0 %6729
    %6731 = vrot.lane.b32.xlu0 %v4789, 8
    %v6732 = vpop.permute.xlu0 %6731
    %6733 = vrot.lane.b32.xlu0 %v4794, 8
    %v6734 = vpop.permute.xlu0 %6733
    %6735 = vrot.lane.b32.xlu0 %v4876, 8
    %v6736 = vpop.permute.xlu0 %6735
    %6737 = vrot.lane.b32.xlu0 %v4881, 8
    %v6738 = vpop.permute.xlu0 %6737
    %6739 = vrot.lane.b32.xlu0 %v4963, 8
    %v6740 = vpop.permute.xlu0 %6739
    %6741 = vrot.lane.b32.xlu0 %v4968, 8
    %v6742 = vpop.permute.xlu0 %6741
    %6743 = vrot.lane.b32.xlu0 %v5050, 8
    %v6744 = vpop.permute.xlu0 %6743
    %6745 = vrot.lane.b32.xlu0 %v5055, 8
    %v6746 = vpop.permute.xlu0 %6745
    %6747 = vrot.lane.b32.xlu0 %v5137, 8
    %v6748 = vpop.permute.xlu0 %6747
    %6749 = vrot.lane.b32.xlu0 %v5142, 8
    %v6750 = vpop.permute.xlu0 %6749
    %6751 = vrot.lane.b32.xlu0 %v5224, 8
    %v6752 = vpop.permute.xlu0 %6751
    %6753 = vrot.lane.b32.xlu0 %v5229, 8
    %v6754 = vpop.permute.xlu0 %6753
    %6755 = vrot.lane.b32.xlu0 %v5311, 8
    %v6756 = vpop.permute.xlu0 %6755
    %6757 = vrot.lane.b32.xlu0 %v5316, 8
    %v6758 = vpop.permute.xlu0 %6757
    %6791 = vrot.lane.b32.xlu0 %v5398, 16
    %v6792 = vpop.permute.xlu0 %6791
    %6793 = vrot.lane.b32.xlu0 %v5403, 16
    %v6794 = vpop.permute.xlu0 %6793
    %6795 = vrot.lane.b32.xlu0 %v5485, 16
    %v6796 = vpop.permute.xlu0 %6795
    %6797 = vrot.lane.b32.xlu0 %v5490, 16
    %v6798 = vpop.permute.xlu0 %6797
    %6799 = vrot.lane.b32.xlu0 %v5572, 16
    %v6800 = vpop.permute.xlu0 %6799
    %6801 = vrot.lane.b32.xlu0 %v5577, 16
    %v6802 = vpop.permute.xlu0 %6801
    %6803 = vrot.lane.b32.xlu0 %v5659, 16
    %v6804 = vpop.permute.xlu0 %6803
    %6805 = vrot.lane.b32.xlu0 %v5664, 16
    %v6806 = vpop.permute.xlu0 %6805
    %6807 = vrot.lane.b32.xlu0 %v5746, 16
    %v6808 = vpop.permute.xlu0 %6807
    %6809 = vrot.lane.b32.xlu0 %v5751, 16
    %v6810 = vpop.permute.xlu0 %6809
    %6811 = vrot.lane.b32.xlu0 %v5833, 16
    %v6812 = vpop.permute.xlu0 %6811
    %6813 = vrot.lane.b32.xlu0 %v5838, 16
    %v6814 = vpop.permute.xlu0 %6813
    %6815 = vrot.lane.b32.xlu0 %v5920, 16
    %v6816 = vpop.permute.xlu0 %6815
    %6817 = vrot.lane.b32.xlu0 %v5925, 16
    %v6818 = vpop.permute.xlu0 %6817
    %6819 = vrot.lane.b32.xlu0 %v6007, 16
    %v6820 = vpop.permute.xlu0 %6819
    %6821 = vrot.lane.b32.xlu0 %v6012, 16
    %v6822 = vpop.permute.xlu0 %6821
    %6855 = vrot.lane.b32.xlu0 %v6094, 24
    %v6856 = vpop.permute.xlu0 %6855
    %6857 = vrot.lane.b32.xlu0 %v6099, 24
    %v6858 = vpop.permute.xlu0 %6857
    %6859 = vrot.lane.b32.xlu0 %v6181, 24
    %v6860 = vpop.permute.xlu0 %6859
    %6861 = vrot.lane.b32.xlu0 %v6186, 24
    %v6862 = vpop.permute.xlu0 %6861
    %6863 = vrot.lane.b32.xlu0 %v6268, 24
    %v6864 = vpop.permute.xlu0 %6863
    %6865 = vrot.lane.b32.xlu0 %v6273, 24
    %v6866 = vpop.permute.xlu0 %6865
    %6867 = vrot.lane.b32.xlu0 %v6355, 24
    %v6868 = vpop.permute.xlu0 %6867
    %6869 = vrot.lane.b32.xlu0 %v6360, 24
    %v6870 = vpop.permute.xlu0 %6869
    %6871 = vrot.lane.b32.xlu0 %v6442, 24
    %v6872 = vpop.permute.xlu0 %6871
    %6873 = vrot.lane.b32.xlu0 %v6447, 24
    %v6874 = vpop.permute.xlu0 %6873
    %6875 = vrot.lane.b32.xlu0 %v6529, 24
    %v6876 = vpop.permute.xlu0 %6875
    %6877 = vrot.lane.b32.xlu0 %v6534, 24
    %v6878 = vpop.permute.xlu0 %6877
    %6879 = vrot.lane.b32.xlu0 %v6616, 24
    %v6880 = vpop.permute.xlu0 %6879
    %6881 = vrot.lane.b32.xlu0 %v6621, 24
    %v6882 = vpop.permute.xlu0 %6881
    %6883 = vrot.lane.b32.xlu0 %v6703, 24
    %v6884 = vpop.permute.xlu0 %6883
    %6885 = vrot.lane.b32.xlu0 %v6708, 24
    %v6886 = vpop.permute.xlu0 %6885
    %v6903 = vsel %vm361, %v4006, %v6728
    %v6904 = vsel %vm361, %v4011, %v6730
    %v6905 = vsel %vm361, %v4093, %v6732
    %v6906 = vsel %vm361, %v4098, %v6734
    %v6907 = vsel %vm361, %v4180, %v6736
    %v6908 = vsel %vm361, %v4185, %v6738
    %v6909 = vsel %vm361, %v4267, %v6740
    %v6910 = vsel %vm361, %v4272, %v6742
    %v6911 = vsel %vm361, %v4354, %v6744
    %v6912 = vsel %vm361, %v4359, %v6746
    %v6913 = vsel %vm361, %v4441, %v6748
    %v6914 = vsel %vm361, %v4446, %v6750
    %v6915 = vsel %vm361, %v4528, %v6752
    %v6916 = vsel %vm361, %v4533, %v6754
    %v6917 = vsel %vm361, %v4615, %v6756
    %v6918 = vsel %vm361, %v4620, %v6758
    %v6919 = vsel %vm3142, %v6903, %v6792
    %v6920 = vsel %vm3142, %v6904, %v6794
    %v6921 = vsel %vm3142, %v6905, %v6796
    %v6922 = vsel %vm3142, %v6906, %v6798
    %v6923 = vsel %vm3142, %v6907, %v6800
    %v6924 = vsel %vm3142, %v6908, %v6802
    %v6925 = vsel %vm3142, %v6909, %v6804
    %v6926 = vsel %vm3142, %v6910, %v6806
    %v6927 = vsel %vm3142, %v6911, %v6808
    %v6928 = vsel %vm3142, %v6912, %v6810
    %v6929 = vsel %vm3142, %v6913, %v6812
    %v6930 = vsel %vm3142, %v6914, %v6814
    %v6931 = vsel %vm3142, %v6915, %v6816
    %v6932 = vsel %vm3142, %v6916, %v6818
    %v6933 = vsel %vm3142, %v6917, %v6820
    %v6934 = vsel %vm3142, %v6918, %v6822
    %vm6935 = vcmask 195584
    %v6936 = vsel %vm6935, %v6919, %v6856
    %v6937 = vsel %vm6935, %v6920, %v6858
    %v6938 = vsel %vm6935, %v6921, %v6860
    %v6939 = vsel %vm6935, %v6922, %v6862
    %v6940 = vsel %vm6935, %v6923, %v6864
    %v6941 = vsel %vm6935, %v6924, %v6866
    %v6942 = vsel %vm6935, %v6925, %v6868
    %v6943 = vsel %vm6935, %v6926, %v6870
    %v6944 = vsel %vm6935, %v6927, %v6872
    %v6945 = vsel %vm6935, %v6928, %v6874
    %v6946 = vsel %vm6935, %v6929, %v6876
    %v6947 = vsel %vm6935, %v6930, %v6878
    %v6948 = vsel %vm6935, %v6931, %v6880
    %v6949 = vsel %vm6935, %v6932, %v6882
    %v6950 = vsel %vm6935, %v6933, %v6884
    %v6951 = vsel %vm6935, %v6934, %v6886
    %v6952 = vld [vmem:[%s3] sm:$0xff]
    %v6953 = vld [vmem:[%s3 + $0x8] sm:$0xff]
    %v6954 = vld [vmem:[%s3 + $0x10] sm:$0xff]
    %v6955 = vld [vmem:[%s3 + $0x18] sm:$0xff]
    %v6956 = vld [vmem:[%s4] sm:$0x1]
    %v6958 = vlaneseq
    %v6959 = vshrl.u32 %v6958, 7
    %v6960 = vsub.s32 0, %v6959
    %v6961 = vrot.slane %v6956, %v6960
    %v6964 = vsel %vm51, %v6936, 0
    %v6967 = vsel %vm51, %v6937, 0
    %v6970 = vsel %vm51, %v6938, 0
    %v6973 = vsel %vm51, %v6939, 0
    %v6976 = vsel %vm51, %v6940, 0
    %v6979 = vsel %vm51, %v6941, 0
    %v6982 = vsel %vm51, %v6942, 0
    %v6985 = vsel %vm51, %v6943, 0
    %v6988 = vsel %vm51, %v6944, 0
    %v6991 = vsel %vm51, %v6945, 0
    %v6994 = vsel %vm51, %v6946, 0
    %v6997 = vsel %vm51, %v6947, 0
    %v7000 = vsel %vm51, %v6948, 0
    %v7003 = vsel %vm51, %v6949, 0
    %v7006 = vsel %vm51, %v6950, 0
    %v7009 = vsel %vm51, %v6951, 0
    %7011 = vmatprep.subr.mxu0 0.0
    %7012 = vmatpush1.msra.mxu0 %v6952
    %7013 = vmatprep.subr.mxu0 0.0
    %7014 = vmatpush1.msra.mxu0 %v6953
    %7015 = vmatprep.subr.mxu0 0.0
    %7016 = vmatpush1.msra.mxu0 %v6954
    %7017 = vmatprep.subr.mxu0 0.0
    %7018 = vmatpush1.msra.mxu0 %v6955
    %7019 = vmatprep.subr.mxu0 0.0
    %7020 = vmatpush1.msra.mxu0 0.0
    %7021 = vmatprep.subr.mxu0 0.0
    %7022 = vmatpush1.msra.mxu0 0.0
    %7023 = vmatprep.subr.mxu0 0.0
    %7024 = vmatpush1.msra.mxu0 0.0
    %7025 = vmatprep.subr.mxu0 0.0
    %7026 = vmatpush1.msra.mxu0 0.0
    %7027 = vmatprep.subr.mxu0 0.0
    %7028 = vmatpush1.msra.mxu0 0.0
    %7029 = vmatprep.subr.mxu0 0.0
    %7030 = vmatpush1.msra.mxu0 0.0
    %7031 = vmatprep.subr.mxu0 0.0
    %7032 = vmatpush1.msra.mxu0 0.0
    %7033 = vmatprep.subr.mxu0 0.0
    %7034 = vmatpush1.msra.mxu0 0.0
    %7035 = vmatprep.subr.mxu0 0.0
    %7036 = vmatpush1.msra.mxu0 0.0
    %7037 = vmatprep.subr.mxu0 0.0
    %7038 = vmatpush1.msra.mxu0 0.0
    %7039 = vmatprep.subr.mxu0 0.0
    %7040 = vmatpush1.msra.mxu0 0.0
    %7041 = vmatprep.subr.mxu0 0.0
    %7042 = vmatpush1.msra.mxu0 0.0
    %7043 = vmatprep.subr.mxu0 0.0
    %7044 = vmatpush1.msra.mxu0 0.0
    %7045 = vmatprep.subr.mxu0 0.0
    %7046 = vmatpush1.msra.mxu0 0.0
    %7047 = vmatprep.subr.mxu0 0.0
    %7048 = vmatpush1.msra.mxu0 0.0
    %7049 = vmatprep.subr.mxu0 0.0
    %7050 = vmatpush1.msra.mxu0 0.0
    %7051 = vmatprep.subr.mxu0 0.0
    %7052 = vmatpush1.msra.mxu0 0.0
    %7053 = vmatprep.subr.mxu0 0.0
    %7054 = vmatpush1.msra.mxu0 0.0
    %7055 = vmatprep.subr.mxu0 0.0
    %7056 = vmatpush1.msra.mxu0 0.0
    %7057 = vmatprep.subr.mxu0 0.0
    %7058 = vmatpush1.msra.mxu0 0.0
    %7059 = vmatprep.subr.mxu0 0.0
    %7060 = vmatpush1.msra.mxu0 0.0
    %7061 = vmatprep.subr.mxu0 0.0
    %7062 = vmatpush1.msra.mxu0 0.0
    %7063 = vmatprep.subr.mxu0 0.0
    %7064 = vmatpush1.msra.mxu0 0.0
    %7065 = vmatprep.subr.mxu0 0.0
    %7066 = vmatpush1.msra.mxu0 0.0
    %7067 = vmatprep.subr.mxu0 0.0
    %7068 = vmatpush1.msra.mxu0 0.0
    %7069 = vmatprep.subr.mxu0 0.0
    %7070 = vmatpush1.msra.mxu0 0.0
    %7071 = vmatprep.subr.mxu0 0.0
    %7072 = vmatpush1.msra.mxu0 0.0
    %7073 = vmatprep.subr.mxu0 0.0
    %7074 = vmatpush1.msra.mxu0 0.0
    %7075 = vmatprep.mubr.f32.mxu0 0.0
    %7076 = vmatmul.mubr.f32.gmra.mrb[0].mxu0 %v6964
    %v7077 = vpop.f32.mrb[0].mxu0
    %v7078 = vadd.f32 %v6961, %v7077
    %v7079 = vpop.f32.mrb[0].mxu0
    %7080 = vmatprep.mubr.f32.mxu0 0.0
    %7081 = vmatmul.mubr.f32.gmra.mrb[0].mxu0 %v6967
    %v7082 = vpop.f32.mrb[0].mxu0
    %v7083 = vadd.f32 %v6961, %v7082
    %v7084 = vpop.f32.mrb[0].mxu0
    %7085 = vmatprep.mubr.f32.mxu0 0.0
    %7086 = vmatmul.mubr.f32.gmra.mrb[0].mxu0 %v6970
    %v7087 = vpop.f32.mrb[0].mxu0
    %v7088 = vadd.f32 %v6961, %v7087
    %v7089 = vpop.f32.mrb[0].mxu0
    %7090 = vmatprep.mubr.f32.mxu0 0.0
    %7091 = vmatmul.mubr.f32.gmra.mrb[0].mxu0 %v6973
    %v7092 = vpop.f32.mrb[0].mxu0
    %v7093 = vadd.f32 %v6961, %v7092
    %v7094 = vpop.f32.mrb[0].mxu0
    %7095 = vmatprep.mubr.f32.mxu0 0.0
    %7096 = vmatmul.mubr.f32.gmra.mrb[0].mxu0 %v6976
    %v7097 = vpop.f32.mrb[0].mxu0
    %v7098 = vadd.f32 %v6961, %v7097
    %v7099 = vpop.f32.mrb[0].mxu0
    %7100 = vmatprep.mubr.f32.mxu0 0.0
    %7101 = vmatmul.mubr.f32.gmra.mrb[0].mxu0 %v6979
    %v7102 = vpop.f32.mrb[0].mxu0
    %v7103 = vadd.f32 %v6961, %v7102
    %v7104 = vpop.f32.mrb[0].mxu0
    %7105 = vmatprep.mubr.f32.mxu0 0.0
    %7106 = vmatmul.mubr.f32.gmra.mrb[0].mxu0 %v6982
    %v7107 = vpop.f32.mrb[0].mxu0
    %v7108 = vadd.f32 %v6961, %v7107
    %v7109 = vpop.f32.mrb[0].mxu0
    %7110 = vmatprep.mubr.f32.mxu0 0.0
    %7111 = vmatmul.mubr.f32.gmra.mrb[0].mxu0 %v6985
    %v7112 = vpop.f32.mrb[0].mxu0
    %v7113 = vadd.f32 %v6961, %v7112
    %v7114 = vpop.f32.mrb[0].mxu0
    %7115 = vmatprep.mubr.f32.mxu0 0.0
    %7116 = vmatmul.mubr.f32.gmra.mrb[0].mxu0 %v6988
    %v7117 = vpop.f32.mrb[0].mxu0
    %v7118 = vadd.f32 %v6961, %v7117
    %v7119 = vpop.f32.mrb[0].mxu0
    %7120 = vmatprep.mubr.f32.mxu0 0.0
    %7121 = vmatmul.mubr.f32.gmra.mrb[0].mxu0 %v6991
    %v7122 = vpop.f32.mrb[0].mxu0
    %v7123 = vadd.f32 %v6961, %v7122
    %v7124 = vpop.f32.mrb[0].mxu0
    %7125 = vmatprep.mubr.f32.mxu0 0.0
    %7126 = vmatmul.mubr.f32.gmra.mrb[0].mxu0 %v6994
    %v7127 = vpop.f32.mrb[0].mxu0
    %v7128 = vadd.f32 %v6961, %v7127
    %v7129 = vpop.f32.mrb[0].mxu0
    %7130 = vmatprep.mubr.f32.mxu0 0.0
    %7131 = vmatmul.mubr.f32.gmra.mrb[0].mxu0 %v6997
    %v7132 = vpop.f32.mrb[0].mxu0
    %v7133 = vadd.f32 %v6961, %v7132
    %v7134 = vpop.f32.mrb[0].mxu0
    %7135 = vmatprep.mubr.f32.mxu0 0.0
    %7136 = vmatmul.mubr.f32.gmra.mrb[0].mxu0 %v7000
    %v7137 = vpop.f32.mrb[0].mxu0
    %v7138 = vadd.f32 %v6961, %v7137
    %v7139 = vpop.f32.mrb[0].mxu0
    %7140 = vmatprep.mubr.f32.mxu0 0.0
    %7141 = vmatmul.mubr.f32.gmra.mrb[0].mxu0 %v7003
    %v7142 = vpop.f32.mrb[0].mxu0
    %v7143 = vadd.f32 %v6961, %v7142
    %v7144 = vpop.f32.mrb[0].mxu0
    %7145 = vmatprep.mubr.f32.mxu0 0.0
    %7146 = vmatmul.mubr.f32.gmra.mrb[0].mxu0 %v7006
    %v7147 = vpop.f32.mrb[0].mxu0
    %v7148 = vadd.f32 %v6961, %v7147
    %v7149 = vpop.f32.mrb[0].mxu0
    %7150 = vmatprep.mubr.f32.mxu0 0.0
    %7151 = vmatmul.mubr.f32.gmra.mrb[0].mxu0 %v7009
    %v7152 = vpop.f32.mrb[0].mxu0
    %v7153 = vadd.f32 %v6961, %v7152
    %v7154 = vpop.f32.mrb[0].mxu0
    %7155 = vdwg.mxu0
    %7156 = vst.msk [vmem:[#allocation2] sm:$0xff] %vm51, %v7078
    %7157 = vst.msk [vmem:[#allocation2 + $0x8] sm:$0xff] %vm51, %v7083
    %7158 = vst.msk [vmem:[#allocation2 + $0x10] sm:$0xff] %vm51, %v7088
    %7159 = vst.msk [vmem:[#allocation2 + $0x18] sm:$0xff] %vm51, %v7093
    %7160 = vst.msk [vmem:[#allocation2 + $0x20] sm:$0xff] %vm51, %v7098
    %7161 = vst.msk [vmem:[#allocation2 + $0x28] sm:$0xff] %vm51, %v7103
    %7162 = vst.msk [vmem:[#allocation2 + $0x30] sm:$0xff] %vm51, %v7108
    %7163 = vst.msk [vmem:[#allocation2 + $0x38] sm:$0xff] %vm51, %v7113
    %7164 = vst.msk [vmem:[#allocation2 + $0x40] sm:$0xff] %vm51, %v7118
    %7165 = vst.msk [vmem:[#allocation2 + $0x48] sm:$0xff] %vm51, %v7123
    %7166 = vst.msk [vmem:[#allocation2 + $0x50] sm:$0xff] %vm51, %v7128
    %7167 = vst.msk [vmem:[#allocation2 + $0x58] sm:$0xff] %vm51, %v7133
    %7168 = vst.msk [vmem:[#allocation2 + $0x60] sm:$0xff] %vm51, %v7138
    %7169 = vst.msk [vmem:[#allocation2 + $0x68] sm:$0xff] %vm51, %v7143
    %7170 = vst.msk [vmem:[#allocation2 + $0x70] sm:$0xff] %vm51, %v7148
    %7171 = vst.msk [vmem:[#allocation2 + $0x78] sm:$0xff] %vm51, %v7153
    // Predicated region
    $region22: #{tpu_custom_call.1} parent=1 // pred_check
      _
    $region23: #{tpu_custom_call.1} parent=1 // pred_check_branch
      %7173 = sbr.rel (0) target = $region25
    $region24: #{tpu_custom_call.1} parent=1 // pred_region
      %s7175 = ssub.s32 2048, 2048
      %7176 = vsyncadd [#allocation3], %s7175
      %s7177 = sshll.u32 [#allocation2], 4
      %s7178 = int_to_ptr.vmem [resolvable:$true] %s7177
      %7183 = dma.vmem_to_hbm [thread:$0]  %s7178, 2048, %s5, [#allocation3], 128, 128, 8
    $region25: #{tpu_custom_call.1} parent=1 // pred_fallthru
      _
    // Predicated region
    $region26: #{tpu_custom_call.1} parent=1 // pred_check
      _
    $region27: #{tpu_custom_call.1} parent=1 // pred_check_branch
      %7185 = sbr.rel (0) target = $region29
    $region28: #{tpu_custom_call.1} parent=1 // pred_region
      %s7187 = ssub.s32 2048, 2048
      %7188 = vsyncadd [#allocation5], %s7187
      %s7189 = sshll.u32 [#allocation4], 4
      %s7190 = int_to_ptr.vmem [resolvable:$true] %s7189
      %7195 = dma.vmem_to_hbm [thread:$0]  %s7190, 2048, %s6, [#allocation5], 128, 128, 8
    $region29: #{tpu_custom_call.1} parent=1 // pred_fallthru
      _
    // Predicated region
    $region30: #{tpu_custom_call.1} parent=1 // pred_check
      _
    $region31: #{tpu_custom_call.1} parent=1 // pred_check_branch
      %7197 = sbr.rel (0) target = $region33
    $region32: #{tpu_custom_call.1} parent=1 // pred_region
      %7198 = dma.done [#allocation3], 2048
    $region33: #{tpu_custom_call.1} parent=1 // pred_fallthru
      _
    // Predicated region
    $region34: #{tpu_custom_call.1} parent=1 // pred_check
      _
    $region35: #{tpu_custom_call.1} parent=1 // pred_check_branch
      %7200 = sbr.rel (0) target = $region37
    $region36: #{tpu_custom_call.1} parent=1 // pred_region
      %7201 = dma.done [#allocation5], 2048
    $region37: #{tpu_custom_call.1} parent=1 // pred_fallthru
      _
    %7202 = vsyncpa [#allocation3], 1
    %7203 = vsyncpa [#allocation5], 1

</llo_original>
